<compile_context>
chip_gen: v7x
topology: tpu7x:2x2x1
jax: 0.10.0
libtpu: 0.0.40
codegen_flags: <defaults>
</compile_context>

<pallas_src>
import numpy as np

import jax
import jax.numpy as jnp
from jax.experimental import pallas as pl
from jax.experimental.pallas import tpu as pltpu

EPS = 1e-5  # PyTorch BatchNorm2d default eps


# ----------------------------- host-side constant builders -------------------

def _bilinear_matrix_np(n_in, n_out):
    """align_corners=True interpolation matrix A (n_out, n_in): out = A @ in."""
    A = np.zeros((n_out, n_in), np.float32)
    if n_in == 1 or n_out == 1:
        A[:, 0] = 1.0
        return A
    for o in range(n_out):
        s = o * (n_in - 1) / (n_out - 1)
        lo = min(int(np.floor(s)), n_in - 2)
        f = s - lo
        A[o, lo] += 1.0 - f
        A[o, lo + 1] += f
    return A


def _avgpool_matrix_np(n_in, n_out):
    """Exact adaptive average pool matrix (n_out, n_in) for divisible bins."""
    assert n_in % n_out == 0
    r = n_in // n_out
    P = np.zeros((n_out, n_in), np.float32)
    for o in range(n_out):
        P[o, o * r:(o + 1) * r] = 1.0 / r
    return P


def _conv_mats_np(w, bn_scale, bn_bias, H, W, stride, pad):
    """Structured matrices so that conv + BN-scale = sum_j (Lcat @ X)[tap j] @ R[j] + b.

    X is the conv input in (Cin*H, W) layout.  Lcat (k*Cout*Ho, Cin*H) stacks the
    per-horizontal-tap left matrices (channel mixing x vertical taps x BN scale)
    vertically so the kernel can issue ONE deep matmul; R[j] (W, Wo) is a 0/1
    horizontal tap-selection matrix (zero padding == omitted rows/cols).
    """
    w = np.asarray(w, np.float32)
    bn_scale = np.asarray(bn_scale, np.float32)
    bn_bias = np.asarray(bn_bias, np.float32)
    Cout, Cin, k, _ = w.shape
    Ho = (H + 2 * pad - k) // stride + 1
    Wo = (W + 2 * pad - k) // stride + 1
    L = np.zeros((k, Cout * Ho, Cin * H), np.float32)
    R = np.zeros((k, W, Wo), np.float32)
    for j in range(k):
        for wo in range(Wo):
            wi = stride * wo + j - pad
            if 0 <= wi < W:
                R[j, wi, wo] = 1.0
    for co in range(Cout):
        for ho in range(Ho):
            row = co * Ho + ho
            for i in range(k):
                h = stride * ho + i - pad
                if 0 <= h < H:
                    for ci in range(Cin):
                        L[:, row, ci * H + h] = bn_scale[co] * w[co, ci, i, :]
    b = np.repeat(bn_bias, Ho)[:, None].astype(np.float32)
    return L.reshape(k * Cout * Ho, Cin * H), R, b


def build_constants(params, Cin, Cout, H, W):
    """Fold conv weights + inference BN + interpolation/pool into constants.

    Matmul operands are returned in bfloat16 (MXU-native); bias rows and the
    SMEM-resident 1x1-conv weights stay float32.
    """
    if H != 32 or W != 200:
        # TODO(synk): AdaptiveAvgPool2d((4,25)) with non-divisible bins / other
        # spatial sizes is not implemented (the module itself only works at 32x200).
        raise ValueError(
            "FPAv2 hard-codes AdaptiveAvgPool2d((4,25)) + x8 bilinear upsample; "
            f"input spatial size must be (32, 200), got ({H}, {W}).")
    f32 = np.float32
    g = lambda a: np.asarray(a, f32)

    c = {}
    s, b = params["bn_d2_1"]
    c["l21"], c["r21"], c["b21"] = _conv_mats_np(g(params["w_d2_1"]), g(s), g(b), H, W, 2, 2)
    H2, W2 = H // 2, W // 2
    s, b = params["bn_d3_1"]
    c["l31"], c["r31"], c["b31"] = _conv_mats_np(g(params["w_d3_1"]), g(s), g(b), H2, W2, 2, 1)
    H4, W4 = H2 // 2, W2 // 2
    s, b = params["bn_d2_2"]
    c["l22"], c["r22"], c["b22"] = _conv_mats_np(g(params["w_d2_2"]), g(s), g(b), H2, W2, 1, 2)
    s, b = params["bn_d3_2"]
    c["l32"], c["r32"], c["b32"] = _conv_mats_np(g(params["w_d3_2"]), g(s), g(b), H4, W4, 1, 1)

    # glob branch, kept factored (low-rank): avgpool(4,25) -> 1x1 conv -> x8 bilinear.
    ph = _avgpool_matrix_np(H, 4)                     # (4, H)
    pw = _avgpool_matrix_np(W, 25)                    # (25, W)
    wg = g(params["w_glob"]).reshape(Cout, Cin)
    ah8 = _bilinear_matrix_np(4, H)                   # (H, 4)
    aw8 = _bilinear_matrix_np(25, W)                  # (W, 25)
    c["gph"] = np.kron(np.eye(Cin, dtype=f32), ph).astype(f32)            # (Cin*4, Cin*H)
    c["gpw"] = np.ascontiguousarray(pw.T).astype(f32)                     # (W, 25)
    c["glh"] = (np.kron(np.eye(Cout, dtype=f32), ah8)
                @ np.kron(wg, np.eye(4, dtype=f32))).astype(f32)          # (Cout*H, Cin*4)
    c["gaw"] = np.ascontiguousarray(aw8.T).astype(f32)                    # (25, W)

    # conv1: 1x1 conv + folded BN, executed on the VPU in-kernel from SMEM scalars.
    s, b = params["bn_c1"]
    c["wc1"] = (g(params["w_c1"]).reshape(Cout, Cin) * g(s)[:, None]).reshape(-1).astype(f32)
    c["bc1"] = g(b).astype(f32)                                           # (Cout,)

    # bilinear x2 upsample matrices (align_corners=True), channel-blocked.
    c["u3h"] = np.kron(np.eye(Cout, dtype=f32), _bilinear_matrix_np(H4, H2)).astype(f32)
    c["u3w"] = np.ascontiguousarray(_bilinear_matrix_np(W4, W2).T.astype(f32))
    c["u2h"] = np.kron(np.eye(Cout, dtype=f32), _bilinear_matrix_np(H2, H)).astype(f32)
    c["u2w"] = np.ascontiguousarray(_bilinear_matrix_np(W2, W).T.astype(f32))

    keep_f32 = {"b21", "b31", "b22", "b32", "wc1", "bc1"}
    out = {}
    for name, v in c.items():
        arr = jnp.asarray(v)
        out[name] = arr if name in keep_f32 else arr.astype(jnp.bfloat16)
    return out


# ----------------------------- the fused Pallas kernel -----------------------

def _elu(v):
    return jnp.where(v > 0.0, v, jnp.exp(jnp.minimum(v, 0.0)) - 1.0)


def _mm(a, b):
    """MXU matmul: bf16 operands, f32 accumulation."""
    return jnp.dot(a.astype(jnp.bfloat16), b.astype(jnp.bfloat16),
                   preferred_element_type=jnp.float32)


def _conv_lr(x_bf, lcat_ref, r_ref, b_ref):
    """conv + BN-scale: ONE deep left matmul, then k 0/1 tap-selection matmuls."""
    k = r_ref.shape[0]
    m = lcat_ref.shape[0] // k
    y = _mm(lcat_ref[...], x_bf)                       # (k*M, W) f32
    acc = _mm(y[0:m], r_ref[0])
    for j in range(1, k):
        acc = acc + _mm(y[j * m:(j + 1) * m], r_ref[j])
    return acc + b_ref[...]


def _fpa_fused_kernel(x_ref, wc1_ref, bc1_ref,
                      l21, r21, b21, l31, r31, b31,
                      l22, r22, b22, l32, r32, b32,
                      gph, gpw, glh, gaw, u3h, u3w, u2h, u2w,
                      o_ref):
    cout = bc1_ref.shape[0]
    cin = wc1_ref.shape[0] // cout
    H = x_ref.shape[1] // cin

    x = x_ref[0]                                       # (Cin*H, W) f32, VMEM-resident
    xb = x.astype(jnp.bfloat16)                        # cast once for all MXU uses

    # down paths: conv + folded BN + ELU (structured bf16 matmuls on the MXU).
    d2 = _elu(_conv_lr(xb, l21, r21, b21))             # (Cin*H/2,  W/2)
    d2b = d2.astype(jnp.bfloat16)
    d3 = _elu(_conv_lr(d2b, l31, r31, b31))            # (Cin*H/4,  W/4)
    d2 = _elu(_conv_lr(d2b, l22, r22, b22))            # (Cout*H/2, W/2)
    d3 = _elu(_conv_lr(d3.astype(jnp.bfloat16), l32, r32, b32))   # (Cout*H/4, W/4)

    # d2 = d2 + bilinear_x2(d3); then bilinear_x2 to full resolution.
    d2 = d2 + _mm(_mm(u3h[...], d3), u3w[...])
    d2u = _mm(_mm(u2h[...], d2), u2w[...])             # (Cout*H, W) f32

    # glob branch, factored low-rank: pool-h/-w -> 1x1 conv -> x8 bilinear -h/-w.
    pooled = _mm(_mm(gph[...], xb), gpw[...])          # (Cin*4, 25)
    glob = _mm(_mm(glh[...], pooled), gaw[...])        # (Cout*H, W)

    # conv1 (1x1 conv + BN + ELU) on the VPU: kron(W, I_H) is 1/Cin non-zero, so do
    # Cout*Cin scalar-times-slab FMAs with SMEM-resident folded weights (f32 path).
    rows = []
    for co in range(cout):
        acc = wc1_ref[co * cin] * x[0:H, :]
        for ci in range(1, cin):
            acc = acc + wc1_ref[co * cin + ci] * x[ci * H:(ci + 1) * H, :]
        rows.append(_elu(acc + bc1_ref[co]))
    xc = jnp.concatenate(rows, axis=0)                 # (Cout*H, W) f32

    # gate, add glob; the output slab is written exactly once.
    o_ref[0] = xc * d2u + glob


_VMEM_CONST_NAMES = ("l21", "r21", "b21", "l31", "r31", "b31",
                     "l22", "r22", "b22", "l32", "r32", "b32",
                     "gph", "gpw", "glh", "gaw", "u3h", "u3w", "u2h", "u2w")


def _const_spec(shape):
    nd = len(shape)
    return pl.BlockSpec(tuple(int(s) for s in shape), lambda b, nd=nd: (0,) * nd)


def fpa_v2_forward(x, consts):
    """x: (B, Cin, 32, 200) float32 NCHW -> (B, Cout, 32, 200) float32."""
    B, Cin, H, W = x.shape
    Cout = consts["bc1"].shape[0]
    x2d = x.reshape(B, Cin * H, W)                     # free: NCHW is contiguous
    const_args = [consts[n] for n in _VMEM_CONST_NAMES]

    smem_spec = pl.BlockSpec(memory_space=pltpu.MemorySpace.SMEM)
    in_specs = [pl.BlockSpec((1, Cin * H, W), lambda b: (b, 0, 0)),
                smem_spec,   # wc1 (Cout*Cin,) folded 1x1-conv weights
                smem_spec]   # bc1 (Cout,)     folded 1x1-conv bias
    in_specs += [_const_spec(a.shape) for a in const_args]

    out2d = pl.pallas_call(
        _fpa_fused_kernel,
        grid=(B,),
        in_specs=in_specs,
        out_specs=pl.BlockSpec((1, Cout * H, W), lambda b: (b, 0, 0)),
        out_shape=jax.ShapeDtypeStruct((B, Cout * H, W), jnp.float32),
        compiler_params=pltpu.CompilerParams(
            dimension_semantics=("parallel",)),
    )(x2d, consts["wc1"], consts["bc1"], *const_args)
    return out2d.reshape(B, Cout, H, W)


# ----------------------------- parameters (PyTorch-style) --------------------

def init_params(key, cin, cout):
    ks = jax.random.split(key, 11)

    def conv_w(k, co, ci, kk):
        fan = ci * kk * kk
        return jax.random.normal(k, (co, ci, kk, kk), jnp.float32) / jnp.sqrt(float(fan))

    def bn(k, c):
        k1, k2, k3, k4 = jax.random.split(k, 4)
        gamma = 1.0 + 0.1 * jax.random.normal(k1, (c,), jnp.float32)
        beta = 0.1 * jax.random.normal(k2, (c,), jnp.float32)
        mean = 0.1 * jax.random.normal(k3, (c,), jnp.float32)
        var = 1.0 + 0.1 * jnp.abs(jax.random.normal(k4, (c,), jnp.float32))
        scale = gamma / jnp.sqrt(var + EPS)            # folded BN (inference mode)
        bias = beta - mean * scale
        return scale, bias

    p = {}
    p["w_glob"] = conv_w(ks[0], cout, cin, 1)
    p["w_d2_1"] = conv_w(ks[1], cin, cin, 5)
    p["bn_d2_1"] = bn(ks[2], cin)
    p["w_d2_2"] = conv_w(ks[3], cout, cin, 5)
    p["bn_d2_2"] = bn(ks[4], cout)
    p["w_d3_1"] = conv_w(ks[5], cin, cin, 3)
    p["bn_d3_1"] = bn(ks[6], cin)
    p["w_d3_2"] = conv_w(ks[7], cout, cin, 3)
    p["bn_d3_2"] = bn(ks[8], cout)
    p["w_c1"] = conv_w(ks[9], cout, cin, 1)
    p["bn_c1"] = bn(ks[10], cout)
    return p


# ----------------------------- pure-JAX reference (for validation) -----------

def _ref_conv(x, w, stride, pad):
    return jax.lax.conv_general_dilated(
        x, w, window_strides=(stride, stride),
        padding=((pad, pad), (pad, pad)),
        dimension_numbers=("NCHW", "OIHW", "NCHW"),
        precision=jax.lax.Precision.HIGHEST)


def _ref_bn_elu(y, sb):
    s, b = sb
    y = y * s[None, :, None, None] + b[None, :, None, None]
    return jnp.where(y > 0.0, y, jnp.exp(jnp.minimum(y, 0.0)) - 1.0)


def _ref_upsample(x, h_out, w_out):
    ah = jnp.asarray(_bilinear_matrix_np(x.shape[2], h_out))
    aw = jnp.asarray(_bilinear_matrix_np(x.shape[3], w_out))
    y = jnp.einsum("oh,bchw->bcow", ah, x, precision=jax.lax.Precision.HIGHEST)
    y = jnp.einsum("pw,bcow->bcop", aw, y, precision=jax.lax.Precision.HIGHEST)
    return y


def reference_forward(x, p):
    B, Cin, H, W = x.shape
    g = x.reshape(B, Cin, 4, H // 4, 25, W // 25).mean(axis=(3, 5))
    g = _ref_conv(g, p["w_glob"], 1, 0)
    g = _ref_upsample(g, H, W)
    d2 = _ref_bn_elu(_ref_conv(x, p["w_d2_1"], 2, 2), p["bn_d2_1"])
    d3 = _ref_bn_elu(_ref_conv(d2, p["w_d3_1"], 2, 1), p["bn_d3_1"])
    d2 = _ref_bn_elu(_ref_conv(d2, p["w_d2_2"], 1, 2), p["bn_d2_2"])
    d3 = _ref_bn_elu(_ref_conv(d3, p["w_d3_2"], 1, 1), p["bn_d3_2"])
    d3 = _ref_upsample(d3, H // 2, W // 2)
    d2 = d2 + d3
    d2 = _ref_upsample(d2, H, W)
    xc = _ref_bn_elu(_ref_conv(x, p["w_c1"], 1, 0), p["bn_c1"])
    return xc * d2 + g


# ----------------------------- main -------------------------------------------

if __name__ == "__main__":
    key = jax.random.PRNGKey(0)
    kx, kp = jax.random.split(key)
    # H=32, W=200 are forced by AdaptiveAvgPool2d((4,25)) followed by the x8
    # bilinear upsample that must be added back to the full-resolution map.
    B, Cin, Cout, H, W = 2, 4, 8, 32, 200
    x = jax.random.normal(kx, (B, Cin, H, W), jnp.float32)
    params = init_params(kp, Cin, Cout)
    consts = build_constants(params, Cin, Cout, H, W)

    out = jax.jit(fpa_v2_forward)(x, consts)
    out = jax.block_until_ready(out)
    assert out.shape == (B, Cout, H, W)
    assert bool(jnp.all(jnp.isfinite(out)))

    # Numerical sanity check against a plain-JAX (f32, HIGHEST precision) reference.
    # Matmul operands in the kernel are bf16 (f32 accumulation), so expect ~1e-2
    # level relative error; 5e-2 keeps margin.
    ref = jax.block_until_ready(jax.jit(reference_forward)(x, params))
    rel = float(jnp.max(jnp.abs(out - ref)) / (jnp.max(jnp.abs(ref)) + 1e-6))
    assert rel < 5e-2, f"mismatch vs reference: rel-max err {rel}"

    print("KERNEL_OK")
</pallas_src>

<mosaic_0001>
module attributes {stable_mosaic.version = 11 : i64} {
  func.func @_fpa_fused_kernel(%arg0: i32, %arg1: memref<1x128x200xf32, #tpu.memory_space<vmem>>, %arg2: memref<32xf32, #tpu.memory_space<smem>>, %arg3: memref<8xf32, #tpu.memory_space<smem>>, %arg4: memref<320x128xbf16, #tpu.memory_space<vmem>>, %arg5: memref<5x200x100xbf16, #tpu.memory_space<vmem>>, %arg6: memref<64x1xf32, #tpu.memory_space<vmem>>, %arg7: memref<96x64xbf16, #tpu.memory_space<vmem>>, %arg8: memref<3x100x50xbf16, #tpu.memory_space<vmem>>, %arg9: memref<32x1xf32, #tpu.memory_space<vmem>>, %arg10: memref<640x64xbf16, #tpu.memory_space<vmem>>, %arg11: memref<5x100x100xbf16, #tpu.memory_space<vmem>>, %arg12: memref<128x1xf32, #tpu.memory_space<vmem>>, %arg13: memref<192x32xbf16, #tpu.memory_space<vmem>>, %arg14: memref<3x50x50xbf16, #tpu.memory_space<vmem>>, %arg15: memref<64x1xf32, #tpu.memory_space<vmem>>, %arg16: memref<16x128xbf16, #tpu.memory_space<vmem>>, %arg17: memref<200x25xbf16, #tpu.memory_space<vmem>>, %arg18: memref<256x16xbf16, #tpu.memory_space<vmem>>, %arg19: memref<25x200xbf16, #tpu.memory_space<vmem>>, %arg20: memref<128x64xbf16, #tpu.memory_space<vmem>>, %arg21: memref<50x100xbf16, #tpu.memory_space<vmem>>, %arg22: memref<256x128xbf16, #tpu.memory_space<vmem>>, %arg23: memref<100x200xbf16, #tpu.memory_space<vmem>>, %arg24: memref<1x256x200xf32, #tpu.memory_space<vmem>>) attributes {dimension_semantics = [#tpu.dimension_semantics<parallel>], iteration_bounds = array<i64: 2>, scalar_prefetch = 0 : i64, scratch_operands = 0 : i64, tpu.core_type = #tpu.core_type<tc>, window_params = [{transform_indices = @transform_0, window_bounds = array<i64: 1, 128, 200>}, {transform_indices = @transform_1, window_bounds = array<i64: 32>}, {transform_indices = @transform_2, window_bounds = array<i64: 8>}, {pipeline_mode = #tpu.pipeline_mode<synchronous>, transform_indices = @transform_3, window_bounds = array<i64: 320, 128>}, {pipeline_mode = #tpu.pipeline_mode<synchronous>, transform_indices = @transform_4, window_bounds = array<i64: 5, 200, 100>}, {pipeline_mode = #tpu.pipeline_mode<synchronous>, transform_indices = @transform_5, window_bounds = array<i64: 64, 1>}, {pipeline_mode = #tpu.pipeline_mode<synchronous>, transform_indices = @transform_6, window_bounds = array<i64: 96, 64>}, {pipeline_mode = #tpu.pipeline_mode<synchronous>, transform_indices = @transform_7, window_bounds = array<i64: 3, 100, 50>}, {pipeline_mode = #tpu.pipeline_mode<synchronous>, transform_indices = @transform_8, window_bounds = array<i64: 32, 1>}, {pipeline_mode = #tpu.pipeline_mode<synchronous>, transform_indices = @transform_9, window_bounds = array<i64: 640, 64>}, {pipeline_mode = #tpu.pipeline_mode<synchronous>, transform_indices = @transform_10, window_bounds = array<i64: 5, 100, 100>}, {pipeline_mode = #tpu.pipeline_mode<synchronous>, transform_indices = @transform_11, window_bounds = array<i64: 128, 1>}, {pipeline_mode = #tpu.pipeline_mode<synchronous>, transform_indices = @transform_12, window_bounds = array<i64: 192, 32>}, {pipeline_mode = #tpu.pipeline_mode<synchronous>, transform_indices = @transform_13, window_bounds = array<i64: 3, 50, 50>}, {pipeline_mode = #tpu.pipeline_mode<synchronous>, transform_indices = @transform_14, window_bounds = array<i64: 64, 1>}, {pipeline_mode = #tpu.pipeline_mode<synchronous>, transform_indices = @transform_15, window_bounds = array<i64: 16, 128>}, {pipeline_mode = #tpu.pipeline_mode<synchronous>, transform_indices = @transform_16, window_bounds = array<i64: 200, 25>}, {pipeline_mode = #tpu.pipeline_mode<synchronous>, transform_indices = @transform_17, window_bounds = array<i64: 256, 16>}, {pipeline_mode = #tpu.pipeline_mode<synchronous>, transform_indices = @transform_18, window_bounds = array<i64: 25, 200>}, {pipeline_mode = #tpu.pipeline_mode<synchronous>, transform_indices = @transform_19, window_bounds = array<i64: 128, 64>}, {pipeline_mode = #tpu.pipeline_mode<synchronous>, transform_indices = @transform_20, window_bounds = array<i64: 50, 100>}, {pipeline_mode = #tpu.pipeline_mode<synchronous>, transform_indices = @transform_21, window_bounds = array<i64: 256, 128>}, {pipeline_mode = #tpu.pipeline_mode<synchronous>, transform_indices = @transform_22, window_bounds = array<i64: 100, 200>}, {transform_indices = @transform_23, window_bounds = array<i64: 1, 256, 200>}]} {
    %c0 = arith.constant 0 : index
    %c0_0 = arith.constant 0 : index
    %c0_1 = arith.constant 0 : index
    %0 = vector.load %arg1[%c0, %c0_0, %c0_1] : memref<1x128x200xf32, #tpu.memory_space<vmem>>, vector<1x128x200xf32>
    %1 = vector.shape_cast %0 : vector<1x128x200xf32> to vector<128x200xf32>
    %2 = arith.truncf %1 : vector<128x200xf32> to vector<128x200xbf16>
    %c0_2 = arith.constant 0 : index
    %c0_3 = arith.constant 0 : index
    %3 = vector.load %arg4[%c0_2, %c0_3] : memref<320x128xbf16, #tpu.memory_space<vmem>>, vector<320x128xbf16>
    %cst = arith.constant dense<0.000000e+00> : vector<320x200xf32>
    %4 = tpu.matmul %3, %2, %cst {dimension_numbers = #tpu.dot_dimension_numbers<[1], [0], [0], [1], [0, 0, 1, 1], [], []>} : vector<320x128xbf16>, vector<128x200xbf16>, vector<320x200xf32> -> vector<320x200xf32>
    %5 = vector.extract_strided_slice %4 {offsets = [0, 0], sizes = [64, 200], strides = [1, 1]} : vector<320x200xf32> to vector<64x200xf32>
    %c0_4 = arith.constant 0 : index
    %c0_5 = arith.constant 0 : index
    %c0_6 = arith.constant 0 : index
    %6 = vector.load %arg5[%c0_4, %c0_5, %c0_6] : memref<5x200x100xbf16, #tpu.memory_space<vmem>>, vector<1x200x100xbf16>
    %7 = vector.shape_cast %6 : vector<1x200x100xbf16> to vector<200x100xbf16>
    %8 = arith.truncf %5 : vector<64x200xf32> to vector<64x200xbf16>
    %cst_7 = arith.constant dense<0.000000e+00> : vector<64x100xf32>
    %9 = tpu.matmul %8, %7, %cst_7 {dimension_numbers = #tpu.dot_dimension_numbers<[1], [0], [0], [1], [0, 0, 1, 1], [], []>} : vector<64x200xbf16>, vector<200x100xbf16>, vector<64x100xf32> -> vector<64x100xf32>
    %10 = vector.extract_strided_slice %4 {offsets = [64, 0], sizes = [64, 200], strides = [1, 1]} : vector<320x200xf32> to vector<64x200xf32>
    %c1 = arith.constant 1 : index
    %c0_8 = arith.constant 0 : index
    %c0_9 = arith.constant 0 : index
    %11 = vector.load %arg5[%c1, %c0_8, %c0_9] : memref<5x200x100xbf16, #tpu.memory_space<vmem>>, vector<1x200x100xbf16>
    %12 = vector.shape_cast %11 : vector<1x200x100xbf16> to vector<200x100xbf16>
    %13 = arith.truncf %10 : vector<64x200xf32> to vector<64x200xbf16>
    %cst_10 = arith.constant dense<0.000000e+00> : vector<64x100xf32>
    %14 = tpu.matmul %13, %12, %cst_10 {dimension_numbers = #tpu.dot_dimension_numbers<[1], [0], [0], [1], [0, 0, 1, 1], [], []>} : vector<64x200xbf16>, vector<200x100xbf16>, vector<64x100xf32> -> vector<64x100xf32>
    %15 = arith.addf %9, %14 : vector<64x100xf32>
    %16 = vector.extract_strided_slice %4 {offsets = [128, 0], sizes = [64, 200], strides = [1, 1]} : vector<320x200xf32> to vector<64x200xf32>
    %c2 = arith.constant 2 : index
    %c0_11 = arith.constant 0 : index
    %c0_12 = arith.constant 0 : index
    %17 = vector.load %arg5[%c2, %c0_11, %c0_12] : memref<5x200x100xbf16, #tpu.memory_space<vmem>>, vector<1x200x100xbf16>
    %18 = vector.shape_cast %17 : vector<1x200x100xbf16> to vector<200x100xbf16>
    %19 = arith.truncf %16 : vector<64x200xf32> to vector<64x200xbf16>
    %cst_13 = arith.constant dense<0.000000e+00> : vector<64x100xf32>
    %20 = tpu.matmul %19, %18, %cst_13 {dimension_numbers = #tpu.dot_dimension_numbers<[1], [0], [0], [1], [0, 0, 1, 1], [], []>} : vector<64x200xbf16>, vector<200x100xbf16>, vector<64x100xf32> -> vector<64x100xf32>
    %21 = arith.addf %15, %20 : vector<64x100xf32>
    %22 = vector.extract_strided_slice %4 {offsets = [192, 0], sizes = [64, 200], strides = [1, 1]} : vector<320x200xf32> to vector<64x200xf32>
    %c3 = arith.constant 3 : index
    %c0_14 = arith.constant 0 : index
    %c0_15 = arith.constant 0 : index
    %23 = vector.load %arg5[%c3, %c0_14, %c0_15] : memref<5x200x100xbf16, #tpu.memory_space<vmem>>, vector<1x200x100xbf16>
    %24 = vector.shape_cast %23 : vector<1x200x100xbf16> to vector<200x100xbf16>
    %25 = arith.truncf %22 : vector<64x200xf32> to vector<64x200xbf16>
    %cst_16 = arith.constant dense<0.000000e+00> : vector<64x100xf32>
    %26 = tpu.matmul %25, %24, %cst_16 {dimension_numbers = #tpu.dot_dimension_numbers<[1], [0], [0], [1], [0, 0, 1, 1], [], []>} : vector<64x200xbf16>, vector<200x100xbf16>, vector<64x100xf32> -> vector<64x100xf32>
    %27 = arith.addf %21, %26 : vector<64x100xf32>
    %28 = vector.extract_strided_slice %4 {offsets = [256, 0], sizes = [64, 200], strides = [1, 1]} : vector<320x200xf32> to vector<64x200xf32>
    %c4 = arith.constant 4 : index
    %c0_17 = arith.constant 0 : index
    %c0_18 = arith.constant 0 : index
    %29 = vector.load %arg5[%c4, %c0_17, %c0_18] : memref<5x200x100xbf16, #tpu.memory_space<vmem>>, vector<1x200x100xbf16>
    %30 = vector.shape_cast %29 : vector<1x200x100xbf16> to vector<200x100xbf16>
    %31 = arith.truncf %28 : vector<64x200xf32> to vector<64x200xbf16>
    %cst_19 = arith.constant dense<0.000000e+00> : vector<64x100xf32>
    %32 = tpu.matmul %31, %30, %cst_19 {dimension_numbers = #tpu.dot_dimension_numbers<[1], [0], [0], [1], [0, 0, 1, 1], [], []>} : vector<64x200xbf16>, vector<200x100xbf16>, vector<64x100xf32> -> vector<64x100xf32>
    %33 = arith.addf %27, %32 : vector<64x100xf32>
    %c0_20 = arith.constant 0 : index
    %c0_21 = arith.constant 0 : index
    %34 = vector.load %arg6[%c0_20, %c0_21] : memref<64x1xf32, #tpu.memory_space<vmem>>, vector<64x1xf32>
    %35 = vector.broadcast %34 : vector<64x1xf32> to vector<64x100xf32>
    %36 = arith.addf %33, %35 : vector<64x100xf32>
    %cst_22 = arith.constant 0.000000e+00 : f32
    %37 = vector.broadcast %cst_22 : f32 to vector<64x100xf32>
    %38 = arith.cmpf ogt, %36, %37 : vector<64x100xf32>
    %cst_23 = arith.constant 0.000000e+00 : f32
    %39 = vector.broadcast %cst_23 : f32 to vector<64x100xf32>
    %40 = arith.minimumf %36, %39 : vector<64x100xf32>
    %41 = math.exp %40 : vector<64x100xf32>
    %cst_24 = arith.constant 1.000000e+00 : f32
    %42 = vector.broadcast %cst_24 : f32 to vector<64x100xf32>
    %43 = arith.subf %41, %42 : vector<64x100xf32>
    %44 = arith.select %38, %36, %43 : vector<64x100xi1>, vector<64x100xf32>
    %45 = arith.truncf %44 : vector<64x100xf32> to vector<64x100xbf16>
    %c0_25 = arith.constant 0 : index
    %c0_26 = arith.constant 0 : index
    %46 = vector.load %arg7[%c0_25, %c0_26] : memref<96x64xbf16, #tpu.memory_space<vmem>>, vector<96x64xbf16>
    %cst_27 = arith.constant dense<0.000000e+00> : vector<96x100xf32>
    %47 = tpu.matmul %46, %45, %cst_27 {dimension_numbers = #tpu.dot_dimension_numbers<[1], [0], [0], [1], [0, 0, 1, 1], [], []>} : vector<96x64xbf16>, vector<64x100xbf16>, vector<96x100xf32> -> vector<96x100xf32>
    %48 = vector.extract_strided_slice %47 {offsets = [0, 0], sizes = [32, 100], strides = [1, 1]} : vector<96x100xf32> to vector<32x100xf32>
    %c0_28 = arith.constant 0 : index
    %c0_29 = arith.constant 0 : index
    %c0_30 = arith.constant 0 : index
    %49 = vector.load %arg8[%c0_28, %c0_29, %c0_30] : memref<3x100x50xbf16, #tpu.memory_space<vmem>>, vector<1x100x50xbf16>
    %50 = vector.shape_cast %49 : vector<1x100x50xbf16> to vector<100x50xbf16>
    %51 = arith.truncf %48 : vector<32x100xf32> to vector<32x100xbf16>
    %cst_31 = arith.constant dense<0.000000e+00> : vector<32x50xf32>
    %52 = tpu.matmul %51, %50, %cst_31 {dimension_numbers = #tpu.dot_dimension_numbers<[1], [0], [0], [1], [0, 0, 1, 1], [], []>} : vector<32x100xbf16>, vector<100x50xbf16>, vector<32x50xf32> -> vector<32x50xf32>
    %53 = vector.extract_strided_slice %47 {offsets = [32, 0], sizes = [32, 100], strides = [1, 1]} : vector<96x100xf32> to vector<32x100xf32>
    %c1_32 = arith.constant 1 : index
    %c0_33 = arith.constant 0 : index
    %c0_34 = arith.constant 0 : index
    %54 = vector.load %arg8[%c1_32, %c0_33, %c0_34] : memref<3x100x50xbf16, #tpu.memory_space<vmem>>, vector<1x100x50xbf16>
    %55 = vector.shape_cast %54 : vector<1x100x50xbf16> to vector<100x50xbf16>
    %56 = arith.truncf %53 : vector<32x100xf32> to vector<32x100xbf16>
    %cst_35 = arith.constant dense<0.000000e+00> : vector<32x50xf32>
    %57 = tpu.matmul %56, %55, %cst_35 {dimension_numbers = #tpu.dot_dimension_numbers<[1], [0], [0], [1], [0, 0, 1, 1], [], []>} : vector<32x100xbf16>, vector<100x50xbf16>, vector<32x50xf32> -> vector<32x50xf32>
    %58 = arith.addf %52, %57 : vector<32x50xf32>
    %59 = vector.extract_strided_slice %47 {offsets = [64, 0], sizes = [32, 100], strides = [1, 1]} : vector<96x100xf32> to vector<32x100xf32>
    %c2_36 = arith.constant 2 : index
    %c0_37 = arith.constant 0 : index
    %c0_38 = arith.constant 0 : index
    %60 = vector.load %arg8[%c2_36, %c0_37, %c0_38] : memref<3x100x50xbf16, #tpu.memory_space<vmem>>, vector<1x100x50xbf16>
    %61 = vector.shape_cast %60 : vector<1x100x50xbf16> to vector<100x50xbf16>
    %62 = arith.truncf %59 : vector<32x100xf32> to vector<32x100xbf16>
    %cst_39 = arith.constant dense<0.000000e+00> : vector<32x50xf32>
    %63 = tpu.matmul %62, %61, %cst_39 {dimension_numbers = #tpu.dot_dimension_numbers<[1], [0], [0], [1], [0, 0, 1, 1], [], []>} : vector<32x100xbf16>, vector<100x50xbf16>, vector<32x50xf32> -> vector<32x50xf32>
    %64 = arith.addf %58, %63 : vector<32x50xf32>
    %c0_40 = arith.constant 0 : index
    %c0_41 = arith.constant 0 : index
    %65 = vector.load %arg9[%c0_40, %c0_41] : memref<32x1xf32, #tpu.memory_space<vmem>>, vector<32x1xf32>
    %66 = vector.broadcast %65 : vector<32x1xf32> to vector<32x50xf32>
    %67 = arith.addf %64, %66 : vector<32x50xf32>
    %cst_42 = arith.constant 0.000000e+00 : f32
    %68 = vector.broadcast %cst_42 : f32 to vector<32x50xf32>
    %69 = arith.cmpf ogt, %67, %68 : vector<32x50xf32>
    %cst_43 = arith.constant 0.000000e+00 : f32
    %70 = vector.broadcast %cst_43 : f32 to vector<32x50xf32>
    %71 = arith.minimumf %67, %70 : vector<32x50xf32>
    %72 = math.exp %71 : vector<32x50xf32>
    %cst_44 = arith.constant 1.000000e+00 : f32
    %73 = vector.broadcast %cst_44 : f32 to vector<32x50xf32>
    %74 = arith.subf %72, %73 : vector<32x50xf32>
    %75 = arith.select %69, %67, %74 : vector<32x50xi1>, vector<32x50xf32>
    %c0_45 = arith.constant 0 : index
    %c0_46 = arith.constant 0 : index
    %76 = vector.load %arg10[%c0_45, %c0_46] : memref<640x64xbf16, #tpu.memory_space<vmem>>, vector<640x64xbf16>
    %cst_47 = arith.constant dense<0.000000e+00> : vector<640x100xf32>
    %77 = tpu.matmul %76, %45, %cst_47 {dimension_numbers = #tpu.dot_dimension_numbers<[1], [0], [0], [1], [0, 0, 1, 1], [], []>} : vector<640x64xbf16>, vector<64x100xbf16>, vector<640x100xf32> -> vector<640x100xf32>
    %78 = vector.extract_strided_slice %77 {offsets = [0, 0], sizes = [128, 100], strides = [1, 1]} : vector<640x100xf32> to vector<128x100xf32>
    %c0_48 = arith.constant 0 : index
    %c0_49 = arith.constant 0 : index
    %c0_50 = arith.constant 0 : index
    %79 = vector.load %arg11[%c0_48, %c0_49, %c0_50] : memref<5x100x100xbf16, #tpu.memory_space<vmem>>, vector<1x100x100xbf16>
    %80 = vector.shape_cast %79 : vector<1x100x100xbf16> to vector<100x100xbf16>
    %81 = arith.truncf %78 : vector<128x100xf32> to vector<128x100xbf16>
    %cst_51 = arith.constant dense<0.000000e+00> : vector<128x100xf32>
    %82 = tpu.matmul %81, %80, %cst_51 {dimension_numbers = #tpu.dot_dimension_numbers<[1], [0], [0], [1], [0, 0, 1, 1], [], []>} : vector<128x100xbf16>, vector<100x100xbf16>, vector<128x100xf32> -> vector<128x100xf32>
    %83 = vector.extract_strided_slice %77 {offsets = [128, 0], sizes = [128, 100], strides = [1, 1]} : vector<640x100xf32> to vector<128x100xf32>
    %c1_52 = arith.constant 1 : index
    %c0_53 = arith.constant 0 : index
    %c0_54 = arith.constant 0 : index
    %84 = vector.load %arg11[%c1_52, %c0_53, %c0_54] : memref<5x100x100xbf16, #tpu.memory_space<vmem>>, vector<1x100x100xbf16>
    %85 = vector.shape_cast %84 : vector<1x100x100xbf16> to vector<100x100xbf16>
    %86 = arith.truncf %83 : vector<128x100xf32> to vector<128x100xbf16>
    %cst_55 = arith.constant dense<0.000000e+00> : vector<128x100xf32>
    %87 = tpu.matmul %86, %85, %cst_55 {dimension_numbers = #tpu.dot_dimension_numbers<[1], [0], [0], [1], [0, 0, 1, 1], [], []>} : vector<128x100xbf16>, vector<100x100xbf16>, vector<128x100xf32> -> vector<128x100xf32>
    %88 = arith.addf %82, %87 : vector<128x100xf32>
    %89 = vector.extract_strided_slice %77 {offsets = [256, 0], sizes = [128, 100], strides = [1, 1]} : vector<640x100xf32> to vector<128x100xf32>
    %c2_56 = arith.constant 2 : index
    %c0_57 = arith.constant 0 : index
    %c0_58 = arith.constant 0 : index
    %90 = vector.load %arg11[%c2_56, %c0_57, %c0_58] : memref<5x100x100xbf16, #tpu.memory_space<vmem>>, vector<1x100x100xbf16>
    %91 = vector.shape_cast %90 : vector<1x100x100xbf16> to vector<100x100xbf16>
    %92 = arith.truncf %89 : vector<128x100xf32> to vector<128x100xbf16>
    %cst_59 = arith.constant dense<0.000000e+00> : vector<128x100xf32>
    %93 = tpu.matmul %92, %91, %cst_59 {dimension_numbers = #tpu.dot_dimension_numbers<[1], [0], [0], [1], [0, 0, 1, 1], [], []>} : vector<128x100xbf16>, vector<100x100xbf16>, vector<128x100xf32> -> vector<128x100xf32>
    %94 = arith.addf %88, %93 : vector<128x100xf32>
    %95 = vector.extract_strided_slice %77 {offsets = [384, 0], sizes = [128, 100], strides = [1, 1]} : vector<640x100xf32> to vector<128x100xf32>
    %c3_60 = arith.constant 3 : index
    %c0_61 = arith.constant 0 : index
    %c0_62 = arith.constant 0 : index
    %96 = vector.load %arg11[%c3_60, %c0_61, %c0_62] : memref<5x100x100xbf16, #tpu.memory_space<vmem>>, vector<1x100x100xbf16>
    %97 = vector.shape_cast %96 : vector<1x100x100xbf16> to vector<100x100xbf16>
    %98 = arith.truncf %95 : vector<128x100xf32> to vector<128x100xbf16>
    %cst_63 = arith.constant dense<0.000000e+00> : vector<128x100xf32>
    %99 = tpu.matmul %98, %97, %cst_63 {dimension_numbers = #tpu.dot_dimension_numbers<[1], [0], [0], [1], [0, 0, 1, 1], [], []>} : vector<128x100xbf16>, vector<100x100xbf16>, vector<128x100xf32> -> vector<128x100xf32>
    %100 = arith.addf %94, %99 : vector<128x100xf32>
    %101 = vector.extract_strided_slice %77 {offsets = [512, 0], sizes = [128, 100], strides = [1, 1]} : vector<640x100xf32> to vector<128x100xf32>
    %c4_64 = arith.constant 4 : index
    %c0_65 = arith.constant 0 : index
    %c0_66 = arith.constant 0 : index
    %102 = vector.load %arg11[%c4_64, %c0_65, %c0_66] : memref<5x100x100xbf16, #tpu.memory_space<vmem>>, vector<1x100x100xbf16>
    %103 = vector.shape_cast %102 : vector<1x100x100xbf16> to vector<100x100xbf16>
    %104 = arith.truncf %101 : vector<128x100xf32> to vector<128x100xbf16>
    %cst_67 = arith.constant dense<0.000000e+00> : vector<128x100xf32>
    %105 = tpu.matmul %104, %103, %cst_67 {dimension_numbers = #tpu.dot_dimension_numbers<[1], [0], [0], [1], [0, 0, 1, 1], [], []>} : vector<128x100xbf16>, vector<100x100xbf16>, vector<128x100xf32> -> vector<128x100xf32>
    %106 = arith.addf %100, %105 : vector<128x100xf32>
    %c0_68 = arith.constant 0 : index
    %c0_69 = arith.constant 0 : index
    %107 = vector.load %arg12[%c0_68, %c0_69] : memref<128x1xf32, #tpu.memory_space<vmem>>, vector<128x1xf32>
    %108 = vector.broadcast %107 : vector<128x1xf32> to vector<128x100xf32>
    %109 = arith.addf %106, %108 : vector<128x100xf32>
    %cst_70 = arith.constant 0.000000e+00 : f32
    %110 = vector.broadcast %cst_70 : f32 to vector<128x100xf32>
    %111 = arith.cmpf ogt, %109, %110 : vector<128x100xf32>
    %cst_71 = arith.constant 0.000000e+00 : f32
    %112 = vector.broadcast %cst_71 : f32 to vector<128x100xf32>
    %113 = arith.minimumf %109, %112 : vector<128x100xf32>
    %114 = math.exp %113 : vector<128x100xf32>
    %cst_72 = arith.constant 1.000000e+00 : f32
    %115 = vector.broadcast %cst_72 : f32 to vector<128x100xf32>
    %116 = arith.subf %114, %115 : vector<128x100xf32>
    %117 = arith.select %111, %109, %116 : vector<128x100xi1>, vector<128x100xf32>
    %118 = arith.truncf %75 : vector<32x50xf32> to vector<32x50xbf16>
    %c0_73 = arith.constant 0 : index
    %c0_74 = arith.constant 0 : index
    %119 = vector.load %arg13[%c0_73, %c0_74] : memref<192x32xbf16, #tpu.memory_space<vmem>>, vector<192x32xbf16>
    %cst_75 = arith.constant dense<0.000000e+00> : vector<192x50xf32>
    %120 = tpu.matmul %119, %118, %cst_75 {dimension_numbers = #tpu.dot_dimension_numbers<[1], [0], [0], [1], [0, 0, 1, 1], [], []>} : vector<192x32xbf16>, vector<32x50xbf16>, vector<192x50xf32> -> vector<192x50xf32>
    %121 = vector.extract_strided_slice %120 {offsets = [0, 0], sizes = [64, 50], strides = [1, 1]} : vector<192x50xf32> to vector<64x50xf32>
    %c0_76 = arith.constant 0 : index
    %c0_77 = arith.constant 0 : index
    %c0_78 = arith.constant 0 : index
    %122 = vector.load %arg14[%c0_76, %c0_77, %c0_78] : memref<3x50x50xbf16, #tpu.memory_space<vmem>>, vector<1x50x50xbf16>
    %123 = vector.shape_cast %122 : vector<1x50x50xbf16> to vector<50x50xbf16>
    %124 = arith.truncf %121 : vector<64x50xf32> to vector<64x50xbf16>
    %cst_79 = arith.constant dense<0.000000e+00> : vector<64x50xf32>
    %125 = tpu.matmul %124, %123, %cst_79 {dimension_numbers = #tpu.dot_dimension_numbers<[1], [0], [0], [1], [0, 0, 1, 1], [], []>} : vector<64x50xbf16>, vector<50x50xbf16>, vector<64x50xf32> -> vector<64x50xf32>
    %126 = vector.extract_strided_slice %120 {offsets = [64, 0], sizes = [64, 50], strides = [1, 1]} : vector<192x50xf32> to vector<64x50xf32>
    %c1_80 = arith.constant 1 : index
    %c0_81 = arith.constant 0 : index
    %c0_82 = arith.constant 0 : index
    %127 = vector.load %arg14[%c1_80, %c0_81, %c0_82] : memref<3x50x50xbf16, #tpu.memory_space<vmem>>, vector<1x50x50xbf16>
    %128 = vector.shape_cast %127 : vector<1x50x50xbf16> to vector<50x50xbf16>
    %129 = arith.truncf %126 : vector<64x50xf32> to vector<64x50xbf16>
    %cst_83 = arith.constant dense<0.000000e+00> : vector<64x50xf32>
    %130 = tpu.matmul %129, %128, %cst_83 {dimension_numbers = #tpu.dot_dimension_numbers<[1], [0], [0], [1], [0, 0, 1, 1], [], []>} : vector<64x50xbf16>, vector<50x50xbf16>, vector<64x50xf32> -> vector<64x50xf32>
    %131 = arith.addf %125, %130 : vector<64x50xf32>
    %132 = vector.extract_strided_slice %120 {offsets = [128, 0], sizes = [64, 50], strides = [1, 1]} : vector<192x50xf32> to vector<64x50xf32>
    %c2_84 = arith.constant 2 : index
    %c0_85 = arith.constant 0 : index
    %c0_86 = arith.constant 0 : index
    %133 = vector.load %arg14[%c2_84, %c0_85, %c0_86] : memref<3x50x50xbf16, #tpu.memory_space<vmem>>, vector<1x50x50xbf16>
    %134 = vector.shape_cast %133 : vector<1x50x50xbf16> to vector<50x50xbf16>
    %135 = arith.truncf %132 : vector<64x50xf32> to vector<64x50xbf16>
    %cst_87 = arith.constant dense<0.000000e+00> : vector<64x50xf32>
    %136 = tpu.matmul %135, %134, %cst_87 {dimension_numbers = #tpu.dot_dimension_numbers<[1], [0], [0], [1], [0, 0, 1, 1], [], []>} : vector<64x50xbf16>, vector<50x50xbf16>, vector<64x50xf32> -> vector<64x50xf32>
    %137 = arith.addf %131, %136 : vector<64x50xf32>
    %c0_88 = arith.constant 0 : index
    %c0_89 = arith.constant 0 : index
    %138 = vector.load %arg15[%c0_88, %c0_89] : memref<64x1xf32, #tpu.memory_space<vmem>>, vector<64x1xf32>
    %139 = vector.broadcast %138 : vector<64x1xf32> to vector<64x50xf32>
    %140 = arith.addf %137, %139 : vector<64x50xf32>
    %cst_90 = arith.constant 0.000000e+00 : f32
    %141 = vector.broadcast %cst_90 : f32 to vector<64x50xf32>
    %142 = arith.cmpf ogt, %140, %141 : vector<64x50xf32>
    %cst_91 = arith.constant 0.000000e+00 : f32
    %143 = vector.broadcast %cst_91 : f32 to vector<64x50xf32>
    %144 = arith.minimumf %140, %143 : vector<64x50xf32>
    %145 = math.exp %144 : vector<64x50xf32>
    %cst_92 = arith.constant 1.000000e+00 : f32
    %146 = vector.broadcast %cst_92 : f32 to vector<64x50xf32>
    %147 = arith.subf %145, %146 : vector<64x50xf32>
    %148 = arith.select %142, %140, %147 : vector<64x50xi1>, vector<64x50xf32>
    %c0_93 = arith.constant 0 : index
    %c0_94 = arith.constant 0 : index
    %149 = vector.load %arg20[%c0_93, %c0_94] : memref<128x64xbf16, #tpu.memory_space<vmem>>, vector<128x64xbf16>
    %150 = arith.truncf %148 : vector<64x50xf32> to vector<64x50xbf16>
    %cst_95 = arith.constant dense<0.000000e+00> : vector<128x50xf32>
    %151 = tpu.matmul %149, %150, %cst_95 {dimension_numbers = #tpu.dot_dimension_numbers<[1], [0], [0], [1], [0, 0, 1, 1], [], []>} : vector<128x64xbf16>, vector<64x50xbf16>, vector<128x50xf32> -> vector<128x50xf32>
    %c0_96 = arith.constant 0 : index
    %c0_97 = arith.constant 0 : index
    %152 = vector.load %arg21[%c0_96, %c0_97] : memref<50x100xbf16, #tpu.memory_space<vmem>>, vector<50x100xbf16>
    %153 = arith.truncf %151 : vector<128x50xf32> to vector<128x50xbf16>
    %cst_98 = arith.constant dense<0.000000e+00> : vector<128x100xf32>
    %154 = tpu.matmul %153, %152, %cst_98 {dimension_numbers = #tpu.dot_dimension_numbers<[1], [0], [0], [1], [0, 0, 1, 1], [], []>} : vector<128x50xbf16>, vector<50x100xbf16>, vector<128x100xf32> -> vector<128x100xf32>
    %155 = arith.addf %117, %154 : vector<128x100xf32>
    %c0_99 = arith.constant 0 : index
    %c0_100 = arith.constant 0 : index
    %156 = vector.load %arg22[%c0_99, %c0_100] : memref<256x128xbf16, #tpu.memory_space<vmem>>, vector<256x128xbf16>
    %157 = arith.truncf %155 : vector<128x100xf32> to vector<128x100xbf16>
    %cst_101 = arith.constant dense<0.000000e+00> : vector<256x100xf32>
    %158 = tpu.matmul %156, %157, %cst_101 {dimension_numbers = #tpu.dot_dimension_numbers<[1], [0], [0], [1], [0, 0, 1, 1], [], []>} : vector<256x128xbf16>, vector<128x100xbf16>, vector<256x100xf32> -> vector<256x100xf32>
    %c0_102 = arith.constant 0 : index
    %c0_103 = arith.constant 0 : index
    %159 = vector.load %arg23[%c0_102, %c0_103] : memref<100x200xbf16, #tpu.memory_space<vmem>>, vector<100x200xbf16>
    %160 = arith.truncf %158 : vector<256x100xf32> to vector<256x100xbf16>
    %cst_104 = arith.constant dense<0.000000e+00> : vector<256x200xf32>
    %161 = tpu.matmul %160, %159, %cst_104 {dimension_numbers = #tpu.dot_dimension_numbers<[1], [0], [0], [1], [0, 0, 1, 1], [], []>} : vector<256x100xbf16>, vector<100x200xbf16>, vector<256x200xf32> -> vector<256x200xf32>
    %c0_105 = arith.constant 0 : index
    %c0_106 = arith.constant 0 : index
    %162 = vector.load %arg16[%c0_105, %c0_106] : memref<16x128xbf16, #tpu.memory_space<vmem>>, vector<16x128xbf16>
    %cst_107 = arith.constant dense<0.000000e+00> : vector<16x200xf32>
    %163 = tpu.matmul %162, %2, %cst_107 {dimension_numbers = #tpu.dot_dimension_numbers<[1], [0], [0], [1], [0, 0, 1, 1], [], []>} : vector<16x128xbf16>, vector<128x200xbf16>, vector<16x200xf32> -> vector<16x200xf32>
    %c0_108 = arith.constant 0 : index
    %c0_109 = arith.constant 0 : index
    %164 = vector.load %arg17[%c0_108, %c0_109] : memref<200x25xbf16, #tpu.memory_space<vmem>>, vector<200x25xbf16>
    %165 = arith.truncf %163 : vector<16x200xf32> to vector<16x200xbf16>
    %cst_110 = arith.constant dense<0.000000e+00> : vector<16x25xf32>
    %166 = tpu.matmul %165, %164, %cst_110 {dimension_numbers = #tpu.dot_dimension_numbers<[1], [0], [0], [1], [0, 0, 1, 1], [], []>} : vector<16x200xbf16>, vector<200x25xbf16>, vector<16x25xf32> -> vector<16x25xf32>
    %c0_111 = arith.constant 0 : index
    %c0_112 = arith.constant 0 : index
    %167 = vector.load %arg18[%c0_111, %c0_112] : memref<256x16xbf16, #tpu.memory_space<vmem>>, vector<256x16xbf16>
    %168 = arith.truncf %166 : vector<16x25xf32> to vector<16x25xbf16>
    %cst_113 = arith.constant dense<0.000000e+00> : vector<256x25xf32>
    %169 = tpu.matmul %167, %168, %cst_113 {dimension_numbers = #tpu.dot_dimension_numbers<[1], [0], [0], [1], [0, 0, 1, 1], [], []>} : vector<256x16xbf16>, vector<16x25xbf16>, vector<256x25xf32> -> vector<256x25xf32>
    %c0_114 = arith.constant 0 : index
    %c0_115 = arith.constant 0 : index
    %170 = vector.load %arg19[%c0_114, %c0_115] : memref<25x200xbf16, #tpu.memory_space<vmem>>, vector<25x200xbf16>
    %171 = arith.truncf %169 : vector<256x25xf32> to vector<256x25xbf16>
    %cst_116 = arith.constant dense<0.000000e+00> : vector<256x200xf32>
    %172 = tpu.matmul %171, %170, %cst_116 {dimension_numbers = #tpu.dot_dimension_numbers<[1], [0], [0], [1], [0, 0, 1, 1], [], []>} : vector<256x25xbf16>, vector<25x200xbf16>, vector<256x200xf32> -> vector<256x200xf32>
    %c0_117 = arith.constant 0 : index
    %173 = memref.load %arg2[%c0_117] : memref<32xf32, #tpu.memory_space<smem>>
    %174 = vector.extract_strided_slice %1 {offsets = [0, 0], sizes = [32, 200], strides = [1, 1]} : vector<128x200xf32> to vector<32x200xf32>
    %175 = vector.broadcast %173 : f32 to vector<32x200xf32>
    %176 = arith.mulf %175, %174 : vector<32x200xf32>
    %c1_118 = arith.constant 1 : index
    %177 = memref.load %arg2[%c1_118] : memref<32xf32, #tpu.memory_space<smem>>
    %178 = vector.extract_strided_slice %1 {offsets = [32, 0], sizes = [32, 200], strides = [1, 1]} : vector<128x200xf32> to vector<32x200xf32>
    %179 = vector.broadcast %177 : f32 to vector<32x200xf32>
    %180 = arith.mulf %179, %178 : vector<32x200xf32>
    %181 = arith.addf %176, %180 : vector<32x200xf32>
    %c2_119 = arith.constant 2 : index
    %182 = memref.load %arg2[%c2_119] : memref<32xf32, #tpu.memory_space<smem>>
    %183 = vector.extract_strided_slice %1 {offsets = [64, 0], sizes = [32, 200], strides = [1, 1]} : vector<128x200xf32> to vector<32x200xf32>
    %184 = vector.broadcast %182 : f32 to vector<32x200xf32>
    %185 = arith.mulf %184, %183 : vector<32x200xf32>
    %186 = arith.addf %181, %185 : vector<32x200xf32>
    %c3_120 = arith.constant 3 : index
    %187 = memref.load %arg2[%c3_120] : memref<32xf32, #tpu.memory_space<smem>>
    %188 = vector.extract_strided_slice %1 {offsets = [96, 0], sizes = [32, 200], strides = [1, 1]} : vector<128x200xf32> to vector<32x200xf32>
    %189 = vector.broadcast %187 : f32 to vector<32x200xf32>
    %190 = arith.mulf %189, %188 : vector<32x200xf32>
    %191 = arith.addf %186, %190 : vector<32x200xf32>
    %c0_121 = arith.constant 0 : index
    %192 = memref.load %arg3[%c0_121] : memref<8xf32, #tpu.memory_space<smem>>
    %193 = vector.broadcast %192 : f32 to vector<32x200xf32>
    %194 = arith.addf %191, %193 : vector<32x200xf32>
    %cst_122 = arith.constant 0.000000e+00 : f32
    %195 = vector.broadcast %cst_122 : f32 to vector<32x200xf32>
    %196 = arith.cmpf ogt, %194, %195 : vector<32x200xf32>
    %cst_123 = arith.constant 0.000000e+00 : f32
    %197 = vector.broadcast %cst_123 : f32 to vector<32x200xf32>
    %198 = arith.minimumf %194, %197 : vector<32x200xf32>
    %199 = math.exp %198 : vector<32x200xf32>
    %cst_124 = arith.constant 1.000000e+00 : f32
    %200 = vector.broadcast %cst_124 : f32 to vector<32x200xf32>
    %201 = arith.subf %199, %200 : vector<32x200xf32>
    %202 = arith.select %196, %194, %201 : vector<32x200xi1>, vector<32x200xf32>
    %c4_125 = arith.constant 4 : index
    %203 = memref.load %arg2[%c4_125] : memref<32xf32, #tpu.memory_space<smem>>
    %204 = vector.extract_strided_slice %1 {offsets = [0, 0], sizes = [32, 200], strides = [1, 1]} : vector<128x200xf32> to vector<32x200xf32>
    %205 = vector.broadcast %203 : f32 to vector<32x200xf32>
    %206 = arith.mulf %205, %204 : vector<32x200xf32>
    %c5 = arith.constant 5 : index
    %207 = memref.load %arg2[%c5] : memref<32xf32, #tpu.memory_space<smem>>
    %208 = vector.extract_strided_slice %1 {offsets = [32, 0], sizes = [32, 200], strides = [1, 1]} : vector<128x200xf32> to vector<32x200xf32>
    %209 = vector.broadcast %207 : f32 to vector<32x200xf32>
    %210 = arith.mulf %209, %208 : vector<32x200xf32>
    %211 = arith.addf %206, %210 : vector<32x200xf32>
    %c6 = arith.constant 6 : index
    %212 = memref.load %arg2[%c6] : memref<32xf32, #tpu.memory_space<smem>>
    %213 = vector.extract_strided_slice %1 {offsets = [64, 0], sizes = [32, 200], strides = [1, 1]} : vector<128x200xf32> to vector<32x200xf32>
    %214 = vector.broadcast %212 : f32 to vector<32x200xf32>
    %215 = arith.mulf %214, %213 : vector<32x200xf32>
    %216 = arith.addf %211, %215 : vector<32x200xf32>
    %c7 = arith.constant 7 : index
    %217 = memref.load %arg2[%c7] : memref<32xf32, #tpu.memory_space<smem>>
    %218 = vector.extract_strided_slice %1 {offsets = [96, 0], sizes = [32, 200], strides = [1, 1]} : vector<128x200xf32> to vector<32x200xf32>
    %219 = vector.broadcast %217 : f32 to vector<32x200xf32>
    %220 = arith.mulf %219, %218 : vector<32x200xf32>
    %221 = arith.addf %216, %220 : vector<32x200xf32>
    %c1_126 = arith.constant 1 : index
    %222 = memref.load %arg3[%c1_126] : memref<8xf32, #tpu.memory_space<smem>>
    %223 = vector.broadcast %222 : f32 to vector<32x200xf32>
    %224 = arith.addf %221, %223 : vector<32x200xf32>
    %cst_127 = arith.constant 0.000000e+00 : f32
    %225 = vector.broadcast %cst_127 : f32 to vector<32x200xf32>
    %226 = arith.cmpf ogt, %224, %225 : vector<32x200xf32>
    %cst_128 = arith.constant 0.000000e+00 : f32
    %227 = vector.broadcast %cst_128 : f32 to vector<32x200xf32>
    %228 = arith.minimumf %224, %227 : vector<32x200xf32>
    %229 = math.exp %228 : vector<32x200xf32>
    %cst_129 = arith.constant 1.000000e+00 : f32
    %230 = vector.broadcast %cst_129 : f32 to vector<32x200xf32>
    %231 = arith.subf %229, %230 : vector<32x200xf32>
    %232 = arith.select %226, %224, %231 : vector<32x200xi1>, vector<32x200xf32>
    %c8 = arith.constant 8 : index
    %233 = memref.load %arg2[%c8] : memref<32xf32, #tpu.memory_space<smem>>
    %234 = vector.extract_strided_slice %1 {offsets = [0, 0], sizes = [32, 200], strides = [1, 1]} : vector<128x200xf32> to vector<32x200xf32>
    %235 = vector.broadcast %233 : f32 to vector<32x200xf32>
    %236 = arith.mulf %235, %234 : vector<32x200xf32>
    %c9 = arith.constant 9 : index
    %237 = memref.load %arg2[%c9] : memref<32xf32, #tpu.memory_space<smem>>
    %238 = vector.extract_strided_slice %1 {offsets = [32, 0], sizes = [32, 200], strides = [1, 1]} : vector<128x200xf32> to vector<32x200xf32>
    %239 = vector.broadcast %237 : f32 to vector<32x200xf32>
    %240 = arith.mulf %239, %238 : vector<32x200xf32>
    %241 = arith.addf %236, %240 : vector<32x200xf32>
    %c10 = arith.constant 10 : index
    %242 = memref.load %arg2[%c10] : memref<32xf32, #tpu.memory_space<smem>>
    %243 = vector.extract_strided_slice %1 {offsets = [64, 0], sizes = [32, 200], strides = [1, 1]} : vector<128x200xf32> to vector<32x200xf32>
    %244 = vector.broadcast %242 : f32 to vector<32x200xf32>
    %245 = arith.mulf %244, %243 : vector<32x200xf32>
    %246 = arith.addf %241, %245 : vector<32x200xf32>
    %c11 = arith.constant 11 : index
    %247 = memref.load %arg2[%c11] : memref<32xf32, #tpu.memory_space<smem>>
    %248 = vector.extract_strided_slice %1 {offsets = [96, 0], sizes = [32, 200], strides = [1, 1]} : vector<128x200xf32> to vector<32x200xf32>
    %249 = vector.broadcast %247 : f32 to vector<32x200xf32>
    %250 = arith.mulf %249, %248 : vector<32x200xf32>
    %251 = arith.addf %246, %250 : vector<32x200xf32>
    %c2_130 = arith.constant 2 : index
    %252 = memref.load %arg3[%c2_130] : memref<8xf32, #tpu.memory_space<smem>>
    %253 = vector.broadcast %252 : f32 to vector<32x200xf32>
    %254 = arith.addf %251, %253 : vector<32x200xf32>
    %cst_131 = arith.constant 0.000000e+00 : f32
    %255 = vector.broadcast %cst_131 : f32 to vector<32x200xf32>
    %256 = arith.cmpf ogt, %254, %255 : vector<32x200xf32>
    %cst_132 = arith.constant 0.000000e+00 : f32
    %257 = vector.broadcast %cst_132 : f32 to vector<32x200xf32>
    %258 = arith.minimumf %254, %257 : vector<32x200xf32>
    %259 = math.exp %258 : vector<32x200xf32>
    %cst_133 = arith.constant 1.000000e+00 : f32
    %260 = vector.broadcast %cst_133 : f32 to vector<32x200xf32>
    %261 = arith.subf %259, %260 : vector<32x200xf32>
    %262 = arith.select %256, %254, %261 : vector<32x200xi1>, vector<32x200xf32>
    %c12 = arith.constant 12 : index
    %263 = memref.load %arg2[%c12] : memref<32xf32, #tpu.memory_space<smem>>
    %264 = vector.extract_strided_slice %1 {offsets = [0, 0], sizes = [32, 200], strides = [1, 1]} : vector<128x200xf32> to vector<32x200xf32>
    %265 = vector.broadcast %263 : f32 to vector<32x200xf32>
    %266 = arith.mulf %265, %264 : vector<32x200xf32>
    %c13 = arith.constant 13 : index
    %267 = memref.load %arg2[%c13] : memref<32xf32, #tpu.memory_space<smem>>
    %268 = vector.extract_strided_slice %1 {offsets = [32, 0], sizes = [32, 200], strides = [1, 1]} : vector<128x200xf32> to vector<32x200xf32>
    %269 = vector.broadcast %267 : f32 to vector<32x200xf32>
    %270 = arith.mulf %269, %268 : vector<32x200xf32>
    %271 = arith.addf %266, %270 : vector<32x200xf32>
    %c14 = arith.constant 14 : index
    %272 = memref.load %arg2[%c14] : memref<32xf32, #tpu.memory_space<smem>>
    %273 = vector.extract_strided_slice %1 {offsets = [64, 0], sizes = [32, 200], strides = [1, 1]} : vector<128x200xf32> to vector<32x200xf32>
    %274 = vector.broadcast %272 : f32 to vector<32x200xf32>
    %275 = arith.mulf %274, %273 : vector<32x200xf32>
    %276 = arith.addf %271, %275 : vector<32x200xf32>
    %c15 = arith.constant 15 : index
    %277 = memref.load %arg2[%c15] : memref<32xf32, #tpu.memory_space<smem>>
    %278 = vector.extract_strided_slice %1 {offsets = [96, 0], sizes = [32, 200], strides = [1, 1]} : vector<128x200xf32> to vector<32x200xf32>
    %279 = vector.broadcast %277 : f32 to vector<32x200xf32>
    %280 = arith.mulf %279, %278 : vector<32x200xf32>
    %281 = arith.addf %276, %280 : vector<32x200xf32>
    %c3_134 = arith.constant 3 : index
    %282 = memref.load %arg3[%c3_134] : memref<8xf32, #tpu.memory_space<smem>>
    %283 = vector.broadcast %282 : f32 to vector<32x200xf32>
    %284 = arith.addf %281, %283 : vector<32x200xf32>
    %cst_135 = arith.constant 0.000000e+00 : f32
    %285 = vector.broadcast %cst_135 : f32 to vector<32x200xf32>
    %286 = arith.cmpf ogt, %284, %285 : vector<32x200xf32>
    %cst_136 = arith.constant 0.000000e+00 : f32
    %287 = vector.broadcast %cst_136 : f32 to vector<32x200xf32>
    %288 = arith.minimumf %284, %287 : vector<32x200xf32>
    %289 = math.exp %288 : vector<32x200xf32>
    %cst_137 = arith.constant 1.000000e+00 : f32
    %290 = vector.broadcast %cst_137 : f32 to vector<32x200xf32>
    %291 = arith.subf %289, %290 : vector<32x200xf32>
    %292 = arith.select %286, %284, %291 : vector<32x200xi1>, vector<32x200xf32>
    %c16 = arith.constant 16 : index
    %293 = memref.load %arg2[%c16] : memref<32xf32, #tpu.memory_space<smem>>
    %294 = vector.extract_strided_slice %1 {offsets = [0, 0], sizes = [32, 200], strides = [1, 1]} : vector<128x200xf32> to vector<32x200xf32>
    %295 = vector.broadcast %293 : f32 to vector<32x200xf32>
    %296 = arith.mulf %295, %294 : vector<32x200xf32>
    %c17 = arith.constant 17 : index
    %297 = memref.load %arg2[%c17] : memref<32xf32, #tpu.memory_space<smem>>
    %298 = vector.extract_strided_slice %1 {offsets = [32, 0], sizes = [32, 200], strides = [1, 1]} : vector<128x200xf32> to vector<32x200xf32>
    %299 = vector.broadcast %297 : f32 to vector<32x200xf32>
    %300 = arith.mulf %299, %298 : vector<32x200xf32>
    %301 = arith.addf %296, %300 : vector<32x200xf32>
    %c18 = arith.constant 18 : index
    %302 = memref.load %arg2[%c18] : memref<32xf32, #tpu.memory_space<smem>>
    %303 = vector.extract_strided_slice %1 {offsets = [64, 0], sizes = [32, 200], strides = [1, 1]} : vector<128x200xf32> to vector<32x200xf32>
    %304 = vector.broadcast %302 : f32 to vector<32x200xf32>
    %305 = arith.mulf %304, %303 : vector<32x200xf32>
    %306 = arith.addf %301, %305 : vector<32x200xf32>
    %c19 = arith.constant 19 : index
    %307 = memref.load %arg2[%c19] : memref<32xf32, #tpu.memory_space<smem>>
    %308 = vector.extract_strided_slice %1 {offsets = [96, 0], sizes = [32, 200], strides = [1, 1]} : vector<128x200xf32> to vector<32x200xf32>
    %309 = vector.broadcast %307 : f32 to vector<32x200xf32>
    %310 = arith.mulf %309, %308 : vector<32x200xf32>
    %311 = arith.addf %306, %310 : vector<32x200xf32>
    %c4_138 = arith.constant 4 : index
    %312 = memref.load %arg3[%c4_138] : memref<8xf32, #tpu.memory_space<smem>>
    %313 = vector.broadcast %312 : f32 to vector<32x200xf32>
    %314 = arith.addf %311, %313 : vector<32x200xf32>
    %cst_139 = arith.constant 0.000000e+00 : f32
    %315 = vector.broadcast %cst_139 : f32 to vector<32x200xf32>
    %316 = arith.cmpf ogt, %314, %315 : vector<32x200xf32>
    %cst_140 = arith.constant 0.000000e+00 : f32
    %317 = vector.broadcast %cst_140 : f32 to vector<32x200xf32>
    %318 = arith.minimumf %314, %317 : vector<32x200xf32>
    %319 = math.exp %318 : vector<32x200xf32>
    %cst_141 = arith.constant 1.000000e+00 : f32
    %320 = vector.broadcast %cst_141 : f32 to vector<32x200xf32>
    %321 = arith.subf %319, %320 : vector<32x200xf32>
    %322 = arith.select %316, %314, %321 : vector<32x200xi1>, vector<32x200xf32>
    %c20 = arith.constant 20 : index
    %323 = memref.load %arg2[%c20] : memref<32xf32, #tpu.memory_space<smem>>
    %324 = vector.extract_strided_slice %1 {offsets = [0, 0], sizes = [32, 200], strides = [1, 1]} : vector<128x200xf32> to vector<32x200xf32>
    %325 = vector.broadcast %323 : f32 to vector<32x200xf32>
    %326 = arith.mulf %325, %324 : vector<32x200xf32>
    %c21 = arith.constant 21 : index
    %327 = memref.load %arg2[%c21] : memref<32xf32, #tpu.memory_space<smem>>
    %328 = vector.extract_strided_slice %1 {offsets = [32, 0], sizes = [32, 200], strides = [1, 1]} : vector<128x200xf32> to vector<32x200xf32>
    %329 = vector.broadcast %327 : f32 to vector<32x200xf32>
    %330 = arith.mulf %329, %328 : vector<32x200xf32>
    %331 = arith.addf %326, %330 : vector<32x200xf32>
    %c22 = arith.constant 22 : index
    %332 = memref.load %arg2[%c22] : memref<32xf32, #tpu.memory_space<smem>>
    %333 = vector.extract_strided_slice %1 {offsets = [64, 0], sizes = [32, 200], strides = [1, 1]} : vector<128x200xf32> to vector<32x200xf32>
    %334 = vector.broadcast %332 : f32 to vector<32x200xf32>
    %335 = arith.mulf %334, %333 : vector<32x200xf32>
    %336 = arith.addf %331, %335 : vector<32x200xf32>
    %c23 = arith.constant 23 : index
    %337 = memref.load %arg2[%c23] : memref<32xf32, #tpu.memory_space<smem>>
    %338 = vector.extract_strided_slice %1 {offsets = [96, 0], sizes = [32, 200], strides = [1, 1]} : vector<128x200xf32> to vector<32x200xf32>
    %339 = vector.broadcast %337 : f32 to vector<32x200xf32>
    %340 = arith.mulf %339, %338 : vector<32x200xf32>
    %341 = arith.addf %336, %340 : vector<32x200xf32>
    %c5_142 = arith.constant 5 : index
    %342 = memref.load %arg3[%c5_142] : memref<8xf32, #tpu.memory_space<smem>>
    %343 = vector.broadcast %342 : f32 to vector<32x200xf32>
    %344 = arith.addf %341, %343 : vector<32x200xf32>
    %cst_143 = arith.constant 0.000000e+00 : f32
    %345 = vector.broadcast %cst_143 : f32 to vector<32x200xf32>
    %346 = arith.cmpf ogt, %344, %345 : vector<32x200xf32>
    %cst_144 = arith.constant 0.000000e+00 : f32
    %347 = vector.broadcast %cst_144 : f32 to vector<32x200xf32>
    %348 = arith.minimumf %344, %347 : vector<32x200xf32>
    %349 = math.exp %348 : vector<32x200xf32>
    %cst_145 = arith.constant 1.000000e+00 : f32
    %350 = vector.broadcast %cst_145 : f32 to vector<32x200xf32>
    %351 = arith.subf %349, %350 : vector<32x200xf32>
    %352 = arith.select %346, %344, %351 : vector<32x200xi1>, vector<32x200xf32>
    %c24 = arith.constant 24 : index
    %353 = memref.load %arg2[%c24] : memref<32xf32, #tpu.memory_space<smem>>
    %354 = vector.extract_strided_slice %1 {offsets = [0, 0], sizes = [32, 200], strides = [1, 1]} : vector<128x200xf32> to vector<32x200xf32>
    %355 = vector.broadcast %353 : f32 to vector<32x200xf32>
    %356 = arith.mulf %355, %354 : vector<32x200xf32>
    %c25 = arith.constant 25 : index
    %357 = memref.load %arg2[%c25] : memref<32xf32, #tpu.memory_space<smem>>
    %358 = vector.extract_strided_slice %1 {offsets = [32, 0], sizes = [32, 200], strides = [1, 1]} : vector<128x200xf32> to vector<32x200xf32>
    %359 = vector.broadcast %357 : f32 to vector<32x200xf32>
    %360 = arith.mulf %359, %358 : vector<32x200xf32>
    %361 = arith.addf %356, %360 : vector<32x200xf32>
    %c26 = arith.constant 26 : index
    %362 = memref.load %arg2[%c26] : memref<32xf32, #tpu.memory_space<smem>>
    %363 = vector.extract_strided_slice %1 {offsets = [64, 0], sizes = [32, 200], strides = [1, 1]} : vector<128x200xf32> to vector<32x200xf32>
    %364 = vector.broadcast %362 : f32 to vector<32x200xf32>
    %365 = arith.mulf %364, %363 : vector<32x200xf32>
    %366 = arith.addf %361, %365 : vector<32x200xf32>
    %c27 = arith.constant 27 : index
    %367 = memref.load %arg2[%c27] : memref<32xf32, #tpu.memory_space<smem>>
    %368 = vector.extract_strided_slice %1 {offsets = [96, 0], sizes = [32, 200], strides = [1, 1]} : vector<128x200xf32> to vector<32x200xf32>
    %369 = vector.broadcast %367 : f32 to vector<32x200xf32>
    %370 = arith.mulf %369, %368 : vector<32x200xf32>
    %371 = arith.addf %366, %370 : vector<32x200xf32>
    %c6_146 = arith.constant 6 : index
    %372 = memref.load %arg3[%c6_146] : memref<8xf32, #tpu.memory_space<smem>>
    %373 = vector.broadcast %372 : f32 to vector<32x200xf32>
    %374 = arith.addf %371, %373 : vector<32x200xf32>
    %cst_147 = arith.constant 0.000000e+00 : f32
    %375 = vector.broadcast %cst_147 : f32 to vector<32x200xf32>
    %376 = arith.cmpf ogt, %374, %375 : vector<32x200xf32>
    %cst_148 = arith.constant 0.000000e+00 : f32
    %377 = vector.broadcast %cst_148 : f32 to vector<32x200xf32>
    %378 = arith.minimumf %374, %377 : vector<32x200xf32>
    %379 = math.exp %378 : vector<32x200xf32>
    %cst_149 = arith.constant 1.000000e+00 : f32
    %380 = vector.broadcast %cst_149 : f32 to vector<32x200xf32>
    %381 = arith.subf %379, %380 : vector<32x200xf32>
    %382 = arith.select %376, %374, %381 : vector<32x200xi1>, vector<32x200xf32>
    %c28 = arith.constant 28 : index
    %383 = memref.load %arg2[%c28] : memref<32xf32, #tpu.memory_space<smem>>
    %384 = vector.extract_strided_slice %1 {offsets = [0, 0], sizes = [32, 200], strides = [1, 1]} : vector<128x200xf32> to vector<32x200xf32>
    %385 = vector.broadcast %383 : f32 to vector<32x200xf32>
    %386 = arith.mulf %385, %384 : vector<32x200xf32>
    %c29 = arith.constant 29 : index
    %387 = memref.load %arg2[%c29] : memref<32xf32, #tpu.memory_space<smem>>
    %388 = vector.extract_strided_slice %1 {offsets = [32, 0], sizes = [32, 200], strides = [1, 1]} : vector<128x200xf32> to vector<32x200xf32>
    %389 = vector.broadcast %387 : f32 to vector<32x200xf32>
    %390 = arith.mulf %389, %388 : vector<32x200xf32>
    %391 = arith.addf %386, %390 : vector<32x200xf32>
    %c30 = arith.constant 30 : index
    %392 = memref.load %arg2[%c30] : memref<32xf32, #tpu.memory_space<smem>>
    %393 = vector.extract_strided_slice %1 {offsets = [64, 0], sizes = [32, 200], strides = [1, 1]} : vector<128x200xf32> to vector<32x200xf32>
    %394 = vector.broadcast %392 : f32 to vector<32x200xf32>
    %395 = arith.mulf %394, %393 : vector<32x200xf32>
    %396 = arith.addf %391, %395 : vector<32x200xf32>
    %c31 = arith.constant 31 : index
    %397 = memref.load %arg2[%c31] : memref<32xf32, #tpu.memory_space<smem>>
    %398 = vector.extract_strided_slice %1 {offsets = [96, 0], sizes = [32, 200], strides = [1, 1]} : vector<128x200xf32> to vector<32x200xf32>
    %399 = vector.broadcast %397 : f32 to vector<32x200xf32>
    %400 = arith.mulf %399, %398 : vector<32x200xf32>
    %401 = arith.addf %396, %400 : vector<32x200xf32>
    %c7_150 = arith.constant 7 : index
    %402 = memref.load %arg3[%c7_150] : memref<8xf32, #tpu.memory_space<smem>>
    %403 = vector.broadcast %402 : f32 to vector<32x200xf32>
    %404 = arith.addf %401, %403 : vector<32x200xf32>
    %cst_151 = arith.constant 0.000000e+00 : f32
    %405 = vector.broadcast %cst_151 : f32 to vector<32x200xf32>
    %406 = arith.cmpf ogt, %404, %405 : vector<32x200xf32>
    %cst_152 = arith.constant 0.000000e+00 : f32
    %407 = vector.broadcast %cst_152 : f32 to vector<32x200xf32>
    %408 = arith.minimumf %404, %407 : vector<32x200xf32>
    %409 = math.exp %408 : vector<32x200xf32>
    %cst_153 = arith.constant 1.000000e+00 : f32
    %410 = vector.broadcast %cst_153 : f32 to vector<32x200xf32>
    %411 = arith.subf %409, %410 : vector<32x200xf32>
    %412 = arith.select %406, %404, %411 : vector<32x200xi1>, vector<32x200xf32>
    %413 = tpu.concatenate %202, %232, %262, %292, %322, %352, %382, %412 in 0 : vector<32x200xf32>, vector<32x200xf32>, vector<32x200xf32>, vector<32x200xf32>, vector<32x200xf32>, vector<32x200xf32>, vector<32x200xf32>, vector<32x200xf32> -> vector<256x200xf32>
    %414 = arith.mulf %413, %161 : vector<256x200xf32>
    %415 = arith.addf %414, %172 : vector<256x200xf32>
    %c0_154 = arith.constant 0 : index
    %c0_155 = arith.constant 0 : index
    %c0_156 = arith.constant 0 : index
    %416 = vector.load %arg24[%c0_154, %c0_155, %c0_156] : memref<1x256x200xf32, #tpu.memory_space<vmem>>, vector<1x256x200xf32>
    %417 = vector.shape_cast %416 : vector<1x256x200xf32> to vector<256x200xf32>
    %418 = vector.shape_cast %415 : vector<256x200xf32> to vector<1x256x200xf32>
    tpu.vector_store %arg24[%c0_154, %c0_155, %c0_156], %418 {strides = array<i32>} : memref<1x256x200xf32, #tpu.memory_space<vmem>>, vector<1x256x200xf32>,
    return
  }
  func.func @transform_0(%arg0: i32) -> (i32, i32, i32) {
    %c0_i32 = arith.constant 0 : i32
    %c0_i32_0 = arith.constant 0 : i32
    %c0_i32_1 = arith.constant 0 : i32
    return %arg0, %c0_i32, %c0_i32_0 : i32, i32, i32
  }
  func.func @transform_1(%arg0: i32) -> i32 {
    %c0_i32 = arith.constant 0 : i32
    %c0_i32_0 = arith.constant 0 : i32
    return %c0_i32 : i32
  }
  func.func @transform_2(%arg0: i32) -> i32 {
    %c0_i32 = arith.constant 0 : i32
    %c0_i32_0 = arith.constant 0 : i32
    return %c0_i32 : i32
  }
  func.func @transform_3(%arg0: i32) -> (i32, i32) {
    %c0_i32 = arith.constant 0 : i32
    %c0_i32_0 = arith.constant 0 : i32
    %c0_i32_1 = arith.constant 0 : i32
    return %c0_i32, %c0_i32_0 : i32, i32
  }
  func.func @transform_4(%arg0: i32) -> (i32, i32, i32) {
    %c0_i32 = arith.constant 0 : i32
    %c0_i32_0 = arith.constant 0 : i32
    %c0_i32_1 = arith.constant 0 : i32
    %c0_i32_2 = arith.constant 0 : i32
    return %c0_i32, %c0_i32_0, %c0_i32_1 : i32, i32, i32
  }
  func.func @transform_5(%arg0: i32) -> (i32, i32) {
    %c0_i32 = arith.constant 0 : i32
    %c0_i32_0 = arith.constant 0 : i32
    %c0_i32_1 = arith.constant 0 : i32
    return %c0_i32, %c0_i32_0 : i32, i32
  }
  func.func @transform_6(%arg0: i32) -> (i32, i32) {
    %c0_i32 = arith.constant 0 : i32
    %c0_i32_0 = arith.constant 0 : i32
    %c0_i32_1 = arith.constant 0 : i32
    return %c0_i32, %c0_i32_0 : i32, i32
  }
  func.func @transform_7(%arg0: i32) -> (i32, i32, i32) {
    %c0_i32 = arith.constant 0 : i32
    %c0_i32_0 = arith.constant 0 : i32
    %c0_i32_1 = arith.constant 0 : i32
    %c0_i32_2 = arith.constant 0 : i32
    return %c0_i32, %c0_i32_0, %c0_i32_1 : i32, i32, i32
  }
  func.func @transform_8(%arg0: i32) -> (i32, i32) {
    %c0_i32 = arith.constant 0 : i32
    %c0_i32_0 = arith.constant 0 : i32
    %c0_i32_1 = arith.constant 0 : i32
    return %c0_i32, %c0_i32_0 : i32, i32
  }
  func.func @transform_9(%arg0: i32) -> (i32, i32) {
    %c0_i32 = arith.constant 0 : i32
    %c0_i32_0 = arith.constant 0 : i32
    %c0_i32_1 = arith.constant 0 : i32
    return %c0_i32, %c0_i32_0 : i32, i32
  }
  func.func @transform_10(%arg0: i32) -> (i32, i32, i32) {
    %c0_i32 = arith.constant 0 : i32
    %c0_i32_0 = arith.constant 0 : i32
    %c0_i32_1 = arith.constant 0 : i32
    %c0_i32_2 = arith.constant 0 : i32
    return %c0_i32, %c0_i32_0, %c0_i32_1 : i32, i32, i32
  }
  func.func @transform_11(%arg0: i32) -> (i32, i32) {
    %c0_i32 = arith.constant 0 : i32
    %c0_i32_0 = arith.constant 0 : i32
    %c0_i32_1 = arith.constant 0 : i32
    return %c0_i32, %c0_i32_0 : i32, i32
  }
  func.func @transform_12(%arg0: i32) -> (i32, i32) {
    %c0_i32 = arith.constant 0 : i32
    %c0_i32_0 = arith.constant 0 : i32
    %c0_i32_1 = arith.constant 0 : i32
    return %c0_i32, %c0_i32_0 : i32, i32
  }
  func.func @transform_13(%arg0: i32) -> (i32, i32, i32) {
    %c0_i32 = arith.constant 0 : i32
    %c0_i32_0 = arith.constant 0 : i32
    %c0_i32_1 = arith.constant 0 : i32
    %c0_i32_2 = arith.constant 0 : i32
    return %c0_i32, %c0_i32_0, %c0_i32_1 : i32, i32, i32
  }
  func.func @transform_14(%arg0: i32) -> (i32, i32) {
    %c0_i32 = arith.constant 0 : i32
    %c0_i32_0 = arith.constant 0 : i32
    %c0_i32_1 = arith.constant 0 : i32
    return %c0_i32, %c0_i32_0 : i32, i32
  }
  func.func @transform_15(%arg0: i32) -> (i32, i32) {
    %c0_i32 = arith.constant 0 : i32
    %c0_i32_0 = arith.constant 0 : i32
    %c0_i32_1 = arith.constant 0 : i32
    return %c0_i32, %c0_i32_0 : i32, i32
  }
  func.func @transform_16(%arg0: i32) -> (i32, i32) {
    %c0_i32 = arith.constant 0 : i32
    %c0_i32_0 = arith.constant 0 : i32
    %c0_i32_1 = arith.constant 0 : i32
    return %c0_i32, %c0_i32_0 : i32, i32
  }
  func.func @transform_17(%arg0: i32) -> (i32, i32) {
    %c0_i32 = arith.constant 0 : i32
    %c0_i32_0 = arith.constant 0 : i32
    %c0_i32_1 = arith.constant 0 : i32
    return %c0_i32, %c0_i32_0 : i32, i32
  }
  func.func @transform_18(%arg0: i32) -> (i32, i32) {
    %c0_i32 = arith.constant 0 : i32
    %c0_i32_0 = arith.constant 0 : i32
    %c0_i32_1 = arith.constant 0 : i32
    return %c0_i32, %c0_i32_0 : i32, i32
  }
  func.func @transform_19(%arg0: i32) -> (i32, i32) {
    %c0_i32 = arith.constant 0 : i32
    %c0_i32_0 = arith.constant 0 : i32
    %c0_i32_1 = arith.constant 0 : i32
    return %c0_i32, %c0_i32_0 : i32, i32
  }
  func.func @transform_20(%arg0: i32) -> (i32, i32) {
    %c0_i32 = arith.constant 0 : i32
    %c0_i32_0 = arith.constant 0 : i32
    %c0_i32_1 = arith.constant 0 : i32
    return %c0_i32, %c0_i32_0 : i32, i32
  }
  func.func @transform_21(%arg0: i32) -> (i32, i32) {
    %c0_i32 = arith.constant 0 : i32
    %c0_i32_0 = arith.constant 0 : i32
    %c0_i32_1 = arith.constant 0 : i32
    return %c0_i32, %c0_i32_0 : i32, i32
  }
  func.func @transform_22(%arg0: i32) -> (i32, i32) {
    %c0_i32 = arith.constant 0 : i32
    %c0_i32_0 = arith.constant 0 : i32
    %c0_i32_1 = arith.constant 0 : i32
    return %c0_i32, %c0_i32_0 : i32, i32
  }
  func.func @transform_23(%arg0: i32) -> (i32, i32, i32) {
    %c0_i32 = arith.constant 0 : i32
    %c0_i32_0 = arith.constant 0 : i32
    %c0_i32_1 = arith.constant 0 : i32
    return %arg0, %c0_i32, %c0_i32_0 : i32, i32, i32
  }
}

</mosaic_0001>

<llo_original>
// kernel: fpa_v2_forward.1
$region0: #{fpa_v2_forward.1}
  #allocation0 [shape = 'u32[]', space=smem, size = 0x4, offset = 0x4, fixed_abs, tag = 'smem constant byte address 0x4 - core index']
  #allocation1 [shape = 'u32[144,128]{1,0:T(1,128)}', space=vmem, size = 0x12000, scoped, tag = 'internal scratch']
  %s0 = inlined_call_operand.vmem [shape: f32[2,128,200], index: 0, kind: input, shape index: {}]
  %s1 = inlined_call_operand.vmem [shape: f32[32], index: 1, kind: input, shape index: {}]
  %s2 = inlined_call_operand.hbm [shape: f32[8], index: 2, kind: input, shape index: {}]
  %s3 = inlined_call_operand.vmem [shape: bf16[320,128], index: 3, kind: input, shape index: {}]
  %s4 = inlined_call_operand.vmem [shape: bf16[5,200,100], index: 4, kind: input, shape index: {}]
  %s5 = inlined_call_operand.vmem [shape: f32[64,1], index: 5, kind: input, shape index: {}]
  %s6 = inlined_call_operand.vmem [shape: bf16[96,64], index: 6, kind: input, shape index: {}]
  %s7 = inlined_call_operand.vmem [shape: bf16[3,100,50], index: 7, kind: input, shape index: {}]
  %s8 = inlined_call_operand.vmem [shape: f32[32,1], index: 8, kind: input, shape index: {}]
  %s9 = inlined_call_operand.vmem [shape: bf16[640,64], index: 9, kind: input, shape index: {}]
  %s10 = inlined_call_operand.vmem [shape: bf16[5,100,100], index: 10, kind: input, shape index: {}]
  %s11 = inlined_call_operand.vmem [shape: f32[128,1], index: 11, kind: input, shape index: {}]
  %s12 = inlined_call_operand.vmem [shape: bf16[192,32], index: 12, kind: input, shape index: {}]
  %s13 = inlined_call_operand.hbm [shape: bf16[3,50,50], index: 13, kind: input, shape index: {}]
  %s14 = inlined_call_operand.vmem [shape: f32[64,1], index: 14, kind: input, shape index: {}]
  %s15 = inlined_call_operand.hbm [shape: bf16[16,128], index: 15, kind: input, shape index: {}]
  %s16 = inlined_call_operand.vmem [shape: bf16[200,25], index: 16, kind: input, shape index: {}]
  %s17 = inlined_call_operand.vmem [shape: bf16[256,16], index: 17, kind: input, shape index: {}]
  %s18 = inlined_call_operand.hbm [shape: bf16[25,200], index: 18, kind: input, shape index: {}]
  %s19 = inlined_call_operand.vmem [shape: bf16[128,64], index: 19, kind: input, shape index: {}]
  %s20 = inlined_call_operand.hbm [shape: bf16[50,100], index: 20, kind: input, shape index: {}]
  %s21 = inlined_call_operand.vmem [shape: bf16[256,128], index: 21, kind: input, shape index: {}]
  %s22 = inlined_call_operand.vmem [shape: bf16[100,200], index: 22, kind: input, shape index: {}]
  %s23 = inlined_call_operand.hbm [shape: f32[2,256,200], index: 23, kind: output, shape index: {}]
  %s24 = sld [smem:[#allocation0]]
  $region149: #{fpa_v2_forward.1} parent=0
    _
  %s26 = ssub.s32 1, %s24
  %s27 = scalar_select 0, %s26, %s24
  $region1: #{fpa_v2_forward.1} parent=0
    #allocation2 [shape = 'u8[512]{0}', space=smem, size = 0x200, scoped, tag = 'input window, operand 1, single buffered']
    #allocation3 [shape = 's32[2]{0}', space=sflag, size = 0x8, scoped, tag = 'scoped memory for fpa_v2_forward.1']
    #allocation4 [shape = 's32[2]{0}', space=sflag, size = 0x8, scoped, tag = 'scoped memory for fpa_v2_forward.1']
    #allocation5 [shape = 's32[2]{0}', space=sflag, size = 0x8, scoped, tag = 'scoped memory for fpa_v2_forward.1']
    #allocation6 [shape = 's32[2]{0}', space=sflag, size = 0x8, scoped, tag = 'scoped memory for fpa_v2_forward.1']
    #allocation7 [shape = 'u8[512]{0}', space=smem, size = 0x200, scoped, tag = 'input window, operand 2, single buffered']
    #allocation8 [shape = 'u8[43008]{0}', space=vmem, size = 0xa800, scoped, tag = 'input window, operand 13, single buffered']
    #allocation9 [shape = 'u8[4096]{0}', space=vmem, size = 0x1000, scoped, tag = 'input window, operand 15, single buffered']
    #allocation10 [shape = 's32[1]{0}', space=sflag, size = 0x4, scoped, tag = 'scoped memory for fpa_v2_forward.1']
    #allocation11 [shape = 'u8[16384]{0}', space=vmem, size = 0x4000, scoped, tag = 'input window, operand 18, single buffered']
    #allocation12 [shape = 'u8[14336]{0}', space=vmem, size = 0x3800, scoped, tag = 'input window, operand 20, single buffered']
    #allocation13 [shape = 's32[1]{0}', space=sflag, size = 0x4, scoped, tag = 'scoped memory for fpa_v2_forward.1']
    #allocation14 [shape = 'u8[524288]{0}', space=vmem, size = 0x80000, scoped, tag = 'output window, operand 0']
    %28 = vsyncpa [#allocation6], 0
    %29 = vsyncpa [#allocation5], 0
    %30 = vsyncpa [#allocation3], 0
    %31 = vsyncpa [#allocation10], 0
    %32 = vsyncpa [#allocation13], 0
    %33 = vsyncpa [#allocation4], 0
    %s34 = scalar_lea.sflag [#allocation4], 1
    %35 = vsyncpa %s34, 0
    loop: start=0, step=1, limit=4
    $region2: #{fpa_v2_forward.1} parent=1 // loop_pre_header
      _
    $region3: #{fpa_v2_forward.1} parent=1 // loop_header
      %s37 = sphi 0, %s41
      %p38 = scmp.ge.s32.totalorder %s37, 4
      %s47 = sphi 0, %s49
      %s50 = sphi 0, %s47
      %s51 = sphi 0, %s50
      %s67 = sphi 0, %s51
      %s71 = sphi 0, %s71
      %s73 = sphi 0, %s71
      %s74 = sphi 0, %s73
      %s88 = sphi 0, %s74
      %s92 = sphi 0, %s92
      %s94 = sphi 0, %s92
      %s95 = sphi 0, %s94
      %s109 = sphi 0, %s95
      %s113 = sphi 0, %s113
      %s115 = sphi 0, %s113
      %s116 = sphi 0, %s115
      %s130 = sphi 0, %s116
      %s134 = sphi 0, %s134
      %s136 = sphi 0, %s134
      %s137 = sphi 0, %s136
      %s151 = sphi 0, %s137
      %s155 = sphi 0, %s155
      %s157 = sphi 0, %s155
      %s158 = sphi 0, %s157
      %s172 = sphi 0, %s158
      %s176 = sphi 0, %s176
      %s178 = sphi 0, %s176
      %s179 = sphi 0, %s178
      %s193 = sphi 0, %s179
      %s197 = sphi 0, %s197
      %s199 = sphi 0, %s197
      %s200 = sphi 0, %s199
      %s214 = sphi 0, %s200
      %s218 = sphi 0, %s218
      %s220 = sphi 0, %s218
      %s221 = sphi 0, %s220
      %s235 = sphi 0, %s221
      %s239 = sphi 0, %s239
      %s241 = sphi 0, %s239
      %s242 = sphi 0, %s241
      %s256 = sphi 0, %s242
      %s260 = sphi 0, %s260
      %s262 = sphi 0, %s260
      %s263 = sphi 0, %s262
      %s277 = sphi 0, %s263
      %s281 = sphi 0, %s281
      %s283 = sphi 0, %s281
      %s284 = sphi 0, %s283
      %s298 = sphi 0, %s284
      %s302 = sphi 0, %s302
      %s304 = sphi 0, %s302
      %s305 = sphi 0, %s304
      %s319 = sphi 0, %s305
      %s323 = sphi 0, %s323
      %s325 = sphi 0, %s323
      %s326 = sphi 0, %s325
      %s340 = sphi 0, %s326
      %s344 = sphi 0, %s344
      %s346 = sphi 0, %s344
      %s347 = sphi 0, %s346
      %s361 = sphi 0, %s347
      %s365 = sphi 0, %s365
      %s367 = sphi 0, %s365
      %s368 = sphi 0, %s367
      %s382 = sphi 0, %s368
      %s386 = sphi 0, %s386
      %s388 = sphi 0, %s386
      %s389 = sphi 0, %s388
      %s403 = sphi 0, %s389
      %s407 = sphi 0, %s407
      %s409 = sphi 0, %s407
      %s410 = sphi 0, %s409
      %s424 = sphi 0, %s410
      %s428 = sphi 0, %s428
      %s430 = sphi 0, %s428
      %s431 = sphi 0, %s430
      %s445 = sphi 0, %s431
      %s449 = sphi 0, %s449
      %s451 = sphi 0, %s449
      %s452 = sphi 0, %s451
      %s466 = sphi 0, %s452
      %s470 = sphi 0, %s470
      %s472 = sphi 0, %s470
      %s473 = sphi 0, %s472
      %s487 = sphi 0, %s473
      %s491 = sphi 0, %s491
      %s493 = sphi 0, %s491
      %s494 = sphi 0, %s493
      %s508 = sphi 0, %s494
      %s512 = sphi 0, %s512
      %s514 = sphi 0, %s512
      %s515 = sphi 0, %s514
      %s529 = sphi 0, %s515
      %s535 = sphi 0, %s537
      %s538 = sphi 0, %s535
      %s539 = sphi 0, %s538
      %s555 = sphi 0, %s539
    $region4: #{fpa_v2_forward.1} parent=1 // loop_header_branch
      %40 = sbr.rel (%p38) target = $region8
    $region5: #{fpa_v2_forward.1} parent=1 // loop_body
      %s42 = ssub.s32 %s37, 1
      %s43 = ssub.s32 %s37, 2
      %s44 = sadd.s32 %s37, 1
      %s45 = ssub.s32 %s37, %s44
      %p46 = scmp.eq.s32.totalorder %s45, 0
      %s48 = sadd.s32 %s47, 1
      %s49 = scalar_select %p46, %s47, %s48
      %p52 = pneg %p46
      %p53 = scmp.eq.s32.totalorder %s37, 1
      %p54 = por %p52, %p53
      %p55 = scmp.ne.s32.totalorder %s47, %s50
      %p56 = scmp.eq.s32.totalorder %s37, 0
      %p57 = por %p55, %p56
      %p58 = scmp.ne.s32.totalorder %s47, %s50
      %p59 = scmp.eq.s32.totalorder %s42, 1
      %p60 = por %p58, %p59
      %p61 = scmp.ne.s32.totalorder %s50, %s51
      %p62 = scmp.eq.s32.totalorder %s42, 0
      %p63 = por %p61, %p62
      %p64 = scmp.ne.s32.totalorder %s50, %s51
      %p65 = scmp.eq.s32.totalorder %s43, 1
      %p66 = por %p64, %p65
      %p68 = scmp.ne.s32.totalorder %s51, %s67
      %p69 = scmp.eq.s32.totalorder %s43, 0
      %p70 = por %p68, %p69
      %s72 = sadd.s32 %s71, 1
      %p75 = scmp.eq.s32.totalorder %s37, 1
      %p76 = scmp.ne.s32.totalorder %s71, %s73
      %p77 = scmp.eq.s32.totalorder %s37, 0
      %p78 = por %p76, %p77
      %p79 = scmp.ne.s32.totalorder %s71, %s73
      %p80 = scmp.eq.s32.totalorder %s42, 1
      %p81 = por %p79, %p80
      %p82 = scmp.ne.s32.totalorder %s73, %s74
      %p83 = scmp.eq.s32.totalorder %s42, 0
      %p84 = por %p82, %p83
      %p85 = scmp.ne.s32.totalorder %s73, %s74
      %p86 = scmp.eq.s32.totalorder %s43, 1
      %p87 = por %p85, %p86
      %p89 = scmp.ne.s32.totalorder %s74, %s88
      %p90 = scmp.eq.s32.totalorder %s43, 0
      %p91 = por %p89, %p90
      %s93 = sadd.s32 %s92, 1
      %p96 = scmp.eq.s32.totalorder %s37, 1
      %p97 = scmp.ne.s32.totalorder %s92, %s94
      %p98 = scmp.eq.s32.totalorder %s37, 0
      %p99 = por %p97, %p98
      %p100 = scmp.ne.s32.totalorder %s92, %s94
      %p101 = scmp.eq.s32.totalorder %s42, 1
      %p102 = por %p100, %p101
      %p103 = scmp.ne.s32.totalorder %s94, %s95
      %p104 = scmp.eq.s32.totalorder %s42, 0
      %p105 = por %p103, %p104
      %p106 = scmp.ne.s32.totalorder %s94, %s95
      %p107 = scmp.eq.s32.totalorder %s43, 1
      %p108 = por %p106, %p107
      %p110 = scmp.ne.s32.totalorder %s95, %s109
      %p111 = scmp.eq.s32.totalorder %s43, 0
      %p112 = por %p110, %p111
      %s114 = sadd.s32 %s113, 1
      %p117 = scmp.eq.s32.totalorder %s37, 1
      %p118 = scmp.ne.s32.totalorder %s113, %s115
      %p119 = scmp.eq.s32.totalorder %s37, 0
      %p120 = por %p118, %p119
      %p121 = scmp.ne.s32.totalorder %s113, %s115
      %p122 = scmp.eq.s32.totalorder %s42, 1
      %p123 = por %p121, %p122
      %p124 = scmp.ne.s32.totalorder %s115, %s116
      %p125 = scmp.eq.s32.totalorder %s42, 0
      %p126 = por %p124, %p125
      %p127 = scmp.ne.s32.totalorder %s115, %s116
      %p128 = scmp.eq.s32.totalorder %s43, 1
      %p129 = por %p127, %p128
      %p131 = scmp.ne.s32.totalorder %s116, %s130
      %p132 = scmp.eq.s32.totalorder %s43, 0
      %p133 = por %p131, %p132
      %s135 = sadd.s32 %s134, 1
      %p138 = scmp.eq.s32.totalorder %s37, 1
      %p139 = scmp.ne.s32.totalorder %s134, %s136
      %p140 = scmp.eq.s32.totalorder %s37, 0
      %p141 = por %p139, %p140
      %p142 = scmp.ne.s32.totalorder %s134, %s136
      %p143 = scmp.eq.s32.totalorder %s42, 1
      %p144 = por %p142, %p143
      %p145 = scmp.ne.s32.totalorder %s136, %s137
      %p146 = scmp.eq.s32.totalorder %s42, 0
      %p147 = por %p145, %p146
      %p148 = scmp.ne.s32.totalorder %s136, %s137
      %p149 = scmp.eq.s32.totalorder %s43, 1
      %p150 = por %p148, %p149
      %p152 = scmp.ne.s32.totalorder %s137, %s151
      %p153 = scmp.eq.s32.totalorder %s43, 0
      %p154 = por %p152, %p153
      %s156 = sadd.s32 %s155, 1
      %p159 = scmp.eq.s32.totalorder %s37, 1
      %p160 = scmp.ne.s32.totalorder %s155, %s157
      %p161 = scmp.eq.s32.totalorder %s37, 0
      %p162 = por %p160, %p161
      %p163 = scmp.ne.s32.totalorder %s155, %s157
      %p164 = scmp.eq.s32.totalorder %s42, 1
      %p165 = por %p163, %p164
      %p166 = scmp.ne.s32.totalorder %s157, %s158
      %p167 = scmp.eq.s32.totalorder %s42, 0
      %p168 = por %p166, %p167
      %p169 = scmp.ne.s32.totalorder %s157, %s158
      %p170 = scmp.eq.s32.totalorder %s43, 1
      %p171 = por %p169, %p170
      %p173 = scmp.ne.s32.totalorder %s158, %s172
      %p174 = scmp.eq.s32.totalorder %s43, 0
      %p175 = por %p173, %p174
      %s177 = sadd.s32 %s176, 1
      %p180 = scmp.eq.s32.totalorder %s37, 1
      %p181 = scmp.ne.s32.totalorder %s176, %s178
      %p182 = scmp.eq.s32.totalorder %s37, 0
      %p183 = por %p181, %p182
      %p184 = scmp.ne.s32.totalorder %s176, %s178
      %p185 = scmp.eq.s32.totalorder %s42, 1
      %p186 = por %p184, %p185
      %p187 = scmp.ne.s32.totalorder %s178, %s179
      %p188 = scmp.eq.s32.totalorder %s42, 0
      %p189 = por %p187, %p188
      %p190 = scmp.ne.s32.totalorder %s178, %s179
      %p191 = scmp.eq.s32.totalorder %s43, 1
      %p192 = por %p190, %p191
      %p194 = scmp.ne.s32.totalorder %s179, %s193
      %p195 = scmp.eq.s32.totalorder %s43, 0
      %p196 = por %p194, %p195
      %s198 = sadd.s32 %s197, 1
      %p201 = scmp.eq.s32.totalorder %s37, 1
      %p202 = scmp.ne.s32.totalorder %s197, %s199
      %p203 = scmp.eq.s32.totalorder %s37, 0
      %p204 = por %p202, %p203
      %p205 = scmp.ne.s32.totalorder %s197, %s199
      %p206 = scmp.eq.s32.totalorder %s42, 1
      %p207 = por %p205, %p206
      %p208 = scmp.ne.s32.totalorder %s199, %s200
      %p209 = scmp.eq.s32.totalorder %s42, 0
      %p210 = por %p208, %p209
      %p211 = scmp.ne.s32.totalorder %s199, %s200
      %p212 = scmp.eq.s32.totalorder %s43, 1
      %p213 = por %p211, %p212
      %p215 = scmp.ne.s32.totalorder %s200, %s214
      %p216 = scmp.eq.s32.totalorder %s43, 0
      %p217 = por %p215, %p216
      %s219 = sadd.s32 %s218, 1
      %p222 = scmp.eq.s32.totalorder %s37, 1
      %p223 = scmp.ne.s32.totalorder %s218, %s220
      %p224 = scmp.eq.s32.totalorder %s37, 0
      %p225 = por %p223, %p224
      %p226 = scmp.ne.s32.totalorder %s218, %s220
      %p227 = scmp.eq.s32.totalorder %s42, 1
      %p228 = por %p226, %p227
      %p229 = scmp.ne.s32.totalorder %s220, %s221
      %p230 = scmp.eq.s32.totalorder %s42, 0
      %p231 = por %p229, %p230
      %p232 = scmp.ne.s32.totalorder %s220, %s221
      %p233 = scmp.eq.s32.totalorder %s43, 1
      %p234 = por %p232, %p233
      %p236 = scmp.ne.s32.totalorder %s221, %s235
      %p237 = scmp.eq.s32.totalorder %s43, 0
      %p238 = por %p236, %p237
      %s240 = sadd.s32 %s239, 1
      %p243 = scmp.eq.s32.totalorder %s37, 1
      %p244 = scmp.ne.s32.totalorder %s239, %s241
      %p245 = scmp.eq.s32.totalorder %s37, 0
      %p246 = por %p244, %p245
      %p247 = scmp.ne.s32.totalorder %s239, %s241
      %p248 = scmp.eq.s32.totalorder %s42, 1
      %p249 = por %p247, %p248
      %p250 = scmp.ne.s32.totalorder %s241, %s242
      %p251 = scmp.eq.s32.totalorder %s42, 0
      %p252 = por %p250, %p251
      %p253 = scmp.ne.s32.totalorder %s241, %s242
      %p254 = scmp.eq.s32.totalorder %s43, 1
      %p255 = por %p253, %p254
      %p257 = scmp.ne.s32.totalorder %s242, %s256
      %p258 = scmp.eq.s32.totalorder %s43, 0
      %p259 = por %p257, %p258
      %s261 = sadd.s32 %s260, 1
      %p264 = scmp.eq.s32.totalorder %s37, 1
      %p265 = scmp.ne.s32.totalorder %s260, %s262
      %p266 = scmp.eq.s32.totalorder %s37, 0
      %p267 = por %p265, %p266
      %p268 = scmp.ne.s32.totalorder %s260, %s262
      %p269 = scmp.eq.s32.totalorder %s42, 1
      %p270 = por %p268, %p269
      %p271 = scmp.ne.s32.totalorder %s262, %s263
      %p272 = scmp.eq.s32.totalorder %s42, 0
      %p273 = por %p271, %p272
      %p274 = scmp.ne.s32.totalorder %s262, %s263
      %p275 = scmp.eq.s32.totalorder %s43, 1
      %p276 = por %p274, %p275
      %p278 = scmp.ne.s32.totalorder %s263, %s277
      %p279 = scmp.eq.s32.totalorder %s43, 0
      %p280 = por %p278, %p279
      %s282 = sadd.s32 %s281, 1
      %p285 = scmp.eq.s32.totalorder %s37, 1
      %p286 = scmp.ne.s32.totalorder %s281, %s283
      %p287 = scmp.eq.s32.totalorder %s37, 0
      %p288 = por %p286, %p287
      %p289 = scmp.ne.s32.totalorder %s281, %s283
      %p290 = scmp.eq.s32.totalorder %s42, 1
      %p291 = por %p289, %p290
      %p292 = scmp.ne.s32.totalorder %s283, %s284
      %p293 = scmp.eq.s32.totalorder %s42, 0
      %p294 = por %p292, %p293
      %p295 = scmp.ne.s32.totalorder %s283, %s284
      %p296 = scmp.eq.s32.totalorder %s43, 1
      %p297 = por %p295, %p296
      %p299 = scmp.ne.s32.totalorder %s284, %s298
      %p300 = scmp.eq.s32.totalorder %s43, 0
      %p301 = por %p299, %p300
      %s303 = sadd.s32 %s302, 1
      %p306 = scmp.eq.s32.totalorder %s37, 1
      %p307 = scmp.ne.s32.totalorder %s302, %s304
      %p308 = scmp.eq.s32.totalorder %s37, 0
      %p309 = por %p307, %p308
      %p310 = scmp.ne.s32.totalorder %s302, %s304
      %p311 = scmp.eq.s32.totalorder %s42, 1
      %p312 = por %p310, %p311
      %p313 = scmp.ne.s32.totalorder %s304, %s305
      %p314 = scmp.eq.s32.totalorder %s42, 0
      %p315 = por %p313, %p314
      %p316 = scmp.ne.s32.totalorder %s304, %s305
      %p317 = scmp.eq.s32.totalorder %s43, 1
      %p318 = por %p316, %p317
      %p320 = scmp.ne.s32.totalorder %s305, %s319
      %p321 = scmp.eq.s32.totalorder %s43, 0
      %p322 = por %p320, %p321
      %s324 = sadd.s32 %s323, 1
      %p327 = scmp.eq.s32.totalorder %s37, 1
      %p328 = scmp.ne.s32.totalorder %s323, %s325
      %p329 = scmp.eq.s32.totalorder %s37, 0
      %p330 = por %p328, %p329
      %p331 = scmp.ne.s32.totalorder %s323, %s325
      %p332 = scmp.eq.s32.totalorder %s42, 1
      %p333 = por %p331, %p332
      %p334 = scmp.ne.s32.totalorder %s325, %s326
      %p335 = scmp.eq.s32.totalorder %s42, 0
      %p336 = por %p334, %p335
      %p337 = scmp.ne.s32.totalorder %s325, %s326
      %p338 = scmp.eq.s32.totalorder %s43, 1
      %p339 = por %p337, %p338
      %p341 = scmp.ne.s32.totalorder %s326, %s340
      %p342 = scmp.eq.s32.totalorder %s43, 0
      %p343 = por %p341, %p342
      %s345 = sadd.s32 %s344, 1
      %p348 = scmp.eq.s32.totalorder %s37, 1
      %p349 = scmp.ne.s32.totalorder %s344, %s346
      %p350 = scmp.eq.s32.totalorder %s37, 0
      %p351 = por %p349, %p350
      %p352 = scmp.ne.s32.totalorder %s344, %s346
      %p353 = scmp.eq.s32.totalorder %s42, 1
      %p354 = por %p352, %p353
      %p355 = scmp.ne.s32.totalorder %s346, %s347
      %p356 = scmp.eq.s32.totalorder %s42, 0
      %p357 = por %p355, %p356
      %p358 = scmp.ne.s32.totalorder %s346, %s347
      %p359 = scmp.eq.s32.totalorder %s43, 1
      %p360 = por %p358, %p359
      %p362 = scmp.ne.s32.totalorder %s347, %s361
      %p363 = scmp.eq.s32.totalorder %s43, 0
      %p364 = por %p362, %p363
      %s366 = sadd.s32 %s365, 1
      %p369 = scmp.eq.s32.totalorder %s37, 1
      %p370 = scmp.ne.s32.totalorder %s365, %s367
      %p371 = scmp.eq.s32.totalorder %s37, 0
      %p372 = por %p370, %p371
      %p373 = scmp.ne.s32.totalorder %s365, %s367
      %p374 = scmp.eq.s32.totalorder %s42, 1
      %p375 = por %p373, %p374
      %p376 = scmp.ne.s32.totalorder %s367, %s368
      %p377 = scmp.eq.s32.totalorder %s42, 0
      %p378 = por %p376, %p377
      %p379 = scmp.ne.s32.totalorder %s367, %s368
      %p380 = scmp.eq.s32.totalorder %s43, 1
      %p381 = por %p379, %p380
      %p383 = scmp.ne.s32.totalorder %s368, %s382
      %p384 = scmp.eq.s32.totalorder %s43, 0
      %p385 = por %p383, %p384
      %s387 = sadd.s32 %s386, 1
      %p390 = scmp.eq.s32.totalorder %s37, 1
      %p391 = scmp.ne.s32.totalorder %s386, %s388
      %p392 = scmp.eq.s32.totalorder %s37, 0
      %p393 = por %p391, %p392
      %p394 = scmp.ne.s32.totalorder %s386, %s388
      %p395 = scmp.eq.s32.totalorder %s42, 1
      %p396 = por %p394, %p395
      %p397 = scmp.ne.s32.totalorder %s388, %s389
      %p398 = scmp.eq.s32.totalorder %s42, 0
      %p399 = por %p397, %p398
      %p400 = scmp.ne.s32.totalorder %s388, %s389
      %p401 = scmp.eq.s32.totalorder %s43, 1
      %p402 = por %p400, %p401
      %p404 = scmp.ne.s32.totalorder %s389, %s403
      %p405 = scmp.eq.s32.totalorder %s43, 0
      %p406 = por %p404, %p405
      %s408 = sadd.s32 %s407, 1
      %p411 = scmp.eq.s32.totalorder %s37, 1
      %p412 = scmp.ne.s32.totalorder %s407, %s409
      %p413 = scmp.eq.s32.totalorder %s37, 0
      %p414 = por %p412, %p413
      %p415 = scmp.ne.s32.totalorder %s407, %s409
      %p416 = scmp.eq.s32.totalorder %s42, 1
      %p417 = por %p415, %p416
      %p418 = scmp.ne.s32.totalorder %s409, %s410
      %p419 = scmp.eq.s32.totalorder %s42, 0
      %p420 = por %p418, %p419
      %p421 = scmp.ne.s32.totalorder %s409, %s410
      %p422 = scmp.eq.s32.totalorder %s43, 1
      %p423 = por %p421, %p422
      %p425 = scmp.ne.s32.totalorder %s410, %s424
      %p426 = scmp.eq.s32.totalorder %s43, 0
      %p427 = por %p425, %p426
      %s429 = sadd.s32 %s428, 1
      %p432 = scmp.eq.s32.totalorder %s37, 1
      %p433 = scmp.ne.s32.totalorder %s428, %s430
      %p434 = scmp.eq.s32.totalorder %s37, 0
      %p435 = por %p433, %p434
      %p436 = scmp.ne.s32.totalorder %s428, %s430
      %p437 = scmp.eq.s32.totalorder %s42, 1
      %p438 = por %p436, %p437
      %p439 = scmp.ne.s32.totalorder %s430, %s431
      %p440 = scmp.eq.s32.totalorder %s42, 0
      %p441 = por %p439, %p440
      %p442 = scmp.ne.s32.totalorder %s430, %s431
      %p443 = scmp.eq.s32.totalorder %s43, 1
      %p444 = por %p442, %p443
      %p446 = scmp.ne.s32.totalorder %s431, %s445
      %p447 = scmp.eq.s32.totalorder %s43, 0
      %p448 = por %p446, %p447
      %s450 = sadd.s32 %s449, 1
      %p453 = scmp.eq.s32.totalorder %s37, 1
      %p454 = scmp.ne.s32.totalorder %s449, %s451
      %p455 = scmp.eq.s32.totalorder %s37, 0
      %p456 = por %p454, %p455
      %p457 = scmp.ne.s32.totalorder %s449, %s451
      %p458 = scmp.eq.s32.totalorder %s42, 1
      %p459 = por %p457, %p458
      %p460 = scmp.ne.s32.totalorder %s451, %s452
      %p461 = scmp.eq.s32.totalorder %s42, 0
      %p462 = por %p460, %p461
      %p463 = scmp.ne.s32.totalorder %s451, %s452
      %p464 = scmp.eq.s32.totalorder %s43, 1
      %p465 = por %p463, %p464
      %p467 = scmp.ne.s32.totalorder %s452, %s466
      %p468 = scmp.eq.s32.totalorder %s43, 0
      %p469 = por %p467, %p468
      %s471 = sadd.s32 %s470, 1
      %p474 = scmp.eq.s32.totalorder %s37, 1
      %p475 = scmp.ne.s32.totalorder %s470, %s472
      %p476 = scmp.eq.s32.totalorder %s37, 0
      %p477 = por %p475, %p476
      %p478 = scmp.ne.s32.totalorder %s470, %s472
      %p479 = scmp.eq.s32.totalorder %s42, 1
      %p480 = por %p478, %p479
      %p481 = scmp.ne.s32.totalorder %s472, %s473
      %p482 = scmp.eq.s32.totalorder %s42, 0
      %p483 = por %p481, %p482
      %p484 = scmp.ne.s32.totalorder %s472, %s473
      %p485 = scmp.eq.s32.totalorder %s43, 1
      %p486 = por %p484, %p485
      %p488 = scmp.ne.s32.totalorder %s473, %s487
      %p489 = scmp.eq.s32.totalorder %s43, 0
      %p490 = por %p488, %p489
      %s492 = sadd.s32 %s491, 1
      %p495 = scmp.eq.s32.totalorder %s37, 1
      %p496 = scmp.ne.s32.totalorder %s491, %s493
      %p497 = scmp.eq.s32.totalorder %s37, 0
      %p498 = por %p496, %p497
      %p499 = scmp.ne.s32.totalorder %s491, %s493
      %p500 = scmp.eq.s32.totalorder %s42, 1
      %p501 = por %p499, %p500
      %p502 = scmp.ne.s32.totalorder %s493, %s494
      %p503 = scmp.eq.s32.totalorder %s42, 0
      %p504 = por %p502, %p503
      %p505 = scmp.ne.s32.totalorder %s493, %s494
      %p506 = scmp.eq.s32.totalorder %s43, 1
      %p507 = por %p505, %p506
      %p509 = scmp.ne.s32.totalorder %s494, %s508
      %p510 = scmp.eq.s32.totalorder %s43, 0
      %p511 = por %p509, %p510
      %s513 = sadd.s32 %s512, 1
      %p516 = scmp.eq.s32.totalorder %s37, 1
      %p517 = scmp.ne.s32.totalorder %s512, %s514
      %p518 = scmp.eq.s32.totalorder %s37, 0
      %p519 = por %p517, %p518
      %p520 = scmp.ne.s32.totalorder %s512, %s514
      %p521 = scmp.eq.s32.totalorder %s42, 1
      %p522 = por %p520, %p521
      %p523 = scmp.ne.s32.totalorder %s514, %s515
      %p524 = scmp.eq.s32.totalorder %s42, 0
      %p525 = por %p523, %p524
      %p526 = scmp.ne.s32.totalorder %s514, %s515
      %p527 = scmp.eq.s32.totalorder %s43, 1
      %p528 = por %p526, %p527
      %p530 = scmp.ne.s32.totalorder %s515, %s529
      %p531 = scmp.eq.s32.totalorder %s43, 0
      %p532 = por %p530, %p531
      %s533 = ssub.s32 %s37, %s44
      %p534 = scmp.eq.s32.totalorder %s533, 0
      %s536 = sadd.s32 %s535, 1
      %s537 = scalar_select %p534, %s535, %s536
      %p540 = pneg %p534
      %p541 = scmp.eq.s32.totalorder %s37, 1
      %p542 = por %p540, %p541
      %p543 = scmp.ne.s32.totalorder %s535, %s538
      %p544 = scmp.eq.s32.totalorder %s37, 0
      %p545 = por %p543, %p544
      %p546 = scmp.ne.s32.totalorder %s535, %s538
      %p547 = scmp.eq.s32.totalorder %s42, 1
      %p548 = por %p546, %p547
      %p549 = scmp.ne.s32.totalorder %s538, %s539
      %p550 = scmp.eq.s32.totalorder %s42, 0
      %p551 = por %p549, %p550
      %p552 = scmp.ne.s32.totalorder %s538, %s539
      %p553 = scmp.eq.s32.totalorder %s43, 1
      %p554 = por %p552, %p553
      %p556 = scmp.ne.s32.totalorder %s539, %s555
      %p557 = scmp.eq.s32.totalorder %s43, 0
      %p558 = por %p556, %p557
      %p559 = scmp.le.s32.totalorder 1, %s37
      %p560 = scmp.lt.s32.totalorder %s37, 3
      %p561 = pnand %p559, %p560
      %p562 = pneg %p561
      // Predicated region
      $region9: #{fpa_v2_forward.1} parent=5 // pred_check
        _
      $region10: #{fpa_v2_forward.1} parent=5 // pred_check_branch
        %564 = sbr.rel (%p561) target = $region12
      $region11: #{fpa_v2_forward.1} parent=5 // pred_region
        %s565 = ssub.s32 %s37, 1
        // Predicated region
        $region13: #{fpa_v2_forward.1} parent=11 // pred_check
          %p566 = pneg %p84
        $region14: #{fpa_v2_forward.1} parent=11 // pred_check_branch
          %568 = sbr.rel (%p566) target = $region16
        $region15: #{fpa_v2_forward.1} parent=11 // pred_region
          %s570 = ssub.s32 16, 16
          %571 = vsyncadd [#allocation6], %s570
          %s573 = sshll.u32 %s1, 4
          %s574 = int_to_ptr.vmem [resolvable:$true] %s573
          %576 = dma.vmem_to_smem %s574, 16, [#allocation2], [#allocation6]
        $region16: #{fpa_v2_forward.1} parent=11 // pred_fallthru
          _
        // Predicated region
        $region17: #{fpa_v2_forward.1} parent=11 // pred_check
          %p577 = pneg %p105
        $region18: #{fpa_v2_forward.1} parent=11 // pred_check_branch
          %579 = sbr.rel (%p577) target = $region20
        $region19: #{fpa_v2_forward.1} parent=11 // pred_region
          %s581 = ssub.s32 16, 16
          %582 = vsyncadd [#allocation5], %s581
          %585 = dma.hbm_to_smem %s2, 16, [#allocation7], [#allocation5]
        $region20: #{fpa_v2_forward.1} parent=11 // pred_fallthru
          _
        // Predicated region
        $region21: #{fpa_v2_forward.1} parent=11 // pred_check
          %p586 = pneg %p126
        $region22: #{fpa_v2_forward.1} parent=11 // pred_check_branch
          %588 = sbr.rel (%p586) target = $region24
        $region23: #{fpa_v2_forward.1} parent=11 // pred_region
          _
        $region24: #{fpa_v2_forward.1} parent=11 // pred_fallthru
          _
        // Predicated region
        $region25: #{fpa_v2_forward.1} parent=11 // pred_check
          %p589 = pneg %p147
        $region26: #{fpa_v2_forward.1} parent=11 // pred_check_branch
          %591 = sbr.rel (%p589) target = $region28
        $region27: #{fpa_v2_forward.1} parent=11 // pred_region
          _
        $region28: #{fpa_v2_forward.1} parent=11 // pred_fallthru
          _
        // Predicated region
        $region29: #{fpa_v2_forward.1} parent=11 // pred_check
          %p592 = pneg %p168
        $region30: #{fpa_v2_forward.1} parent=11 // pred_check_branch
          %594 = sbr.rel (%p592) target = $region32
        $region31: #{fpa_v2_forward.1} parent=11 // pred_region
          _
        $region32: #{fpa_v2_forward.1} parent=11 // pred_fallthru
          _
        // Predicated region
        $region33: #{fpa_v2_forward.1} parent=11 // pred_check
          %p595 = pneg %p189
        $region34: #{fpa_v2_forward.1} parent=11 // pred_check_branch
          %597 = sbr.rel (%p595) target = $region36
        $region35: #{fpa_v2_forward.1} parent=11 // pred_region
          _
        $region36: #{fpa_v2_forward.1} parent=11 // pred_fallthru
          _
        // Predicated region
        $region37: #{fpa_v2_forward.1} parent=11 // pred_check
          %p598 = pneg %p210
        $region38: #{fpa_v2_forward.1} parent=11 // pred_check_branch
          %600 = sbr.rel (%p598) target = $region40
        $region39: #{fpa_v2_forward.1} parent=11 // pred_region
          _
        $region40: #{fpa_v2_forward.1} parent=11 // pred_fallthru
          _
        // Predicated region
        $region41: #{fpa_v2_forward.1} parent=11 // pred_check
          %p601 = pneg %p231
        $region42: #{fpa_v2_forward.1} parent=11 // pred_check_branch
          %603 = sbr.rel (%p601) target = $region44
        $region43: #{fpa_v2_forward.1} parent=11 // pred_region
          _
        $region44: #{fpa_v2_forward.1} parent=11 // pred_fallthru
          _
        // Predicated region
        $region45: #{fpa_v2_forward.1} parent=11 // pred_check
          %p604 = pneg %p252
        $region46: #{fpa_v2_forward.1} parent=11 // pred_check_branch
          %606 = sbr.rel (%p604) target = $region48
        $region47: #{fpa_v2_forward.1} parent=11 // pred_region
          _
        $region48: #{fpa_v2_forward.1} parent=11 // pred_fallthru
          _
        // Predicated region
        $region49: #{fpa_v2_forward.1} parent=11 // pred_check
          %p607 = pneg %p273
        $region50: #{fpa_v2_forward.1} parent=11 // pred_check_branch
          %609 = sbr.rel (%p607) target = $region52
        $region51: #{fpa_v2_forward.1} parent=11 // pred_region
          _
        $region52: #{fpa_v2_forward.1} parent=11 // pred_fallthru
          _
        // Predicated region
        $region53: #{fpa_v2_forward.1} parent=11 // pred_check
          %p610 = pneg %p294
        $region54: #{fpa_v2_forward.1} parent=11 // pred_check_branch
          %612 = sbr.rel (%p610) target = $region56
        $region55: #{fpa_v2_forward.1} parent=11 // pred_region
          _
        $region56: #{fpa_v2_forward.1} parent=11 // pred_fallthru
          _
        // Predicated region
        $region57: #{fpa_v2_forward.1} parent=11 // pred_check
          %p613 = pneg %p315
        $region58: #{fpa_v2_forward.1} parent=11 // pred_check_branch
          %615 = sbr.rel (%p613) target = $region60
        $region59: #{fpa_v2_forward.1} parent=11 // pred_region
          _
        $region60: #{fpa_v2_forward.1} parent=11 // pred_fallthru
          _
        // Predicated region
        $region61: #{fpa_v2_forward.1} parent=11 // pred_check
          %p616 = pneg %p336
        $region62: #{fpa_v2_forward.1} parent=11 // pred_check_branch
          %618 = sbr.rel (%p616) target = $region64
        $region63: #{fpa_v2_forward.1} parent=11 // pred_region
          %s620 = ssub.s32 1344, 1344
          %621 = vsyncadd [#allocation3], %s620
          %s622 = sshll.u32 [#allocation8], 4
          %s623 = int_to_ptr.vmem [resolvable:$true] %s622
          %628 = dma.hbm_to_vmem [thread:$0]  %s13, 1344, %s623, [#allocation3], 64, 64, 4
        $region64: #{fpa_v2_forward.1} parent=11 // pred_fallthru
          _
        // Predicated region
        $region65: #{fpa_v2_forward.1} parent=11 // pred_check
          %p629 = pneg %p357
        $region66: #{fpa_v2_forward.1} parent=11 // pred_check_branch
          %631 = sbr.rel (%p629) target = $region68
        $region67: #{fpa_v2_forward.1} parent=11 // pred_region
          _
        $region68: #{fpa_v2_forward.1} parent=11 // pred_fallthru
          _
        // Predicated region
        $region69: #{fpa_v2_forward.1} parent=11 // pred_check
          %p632 = pneg %p378
        $region70: #{fpa_v2_forward.1} parent=11 // pred_check_branch
          %634 = sbr.rel (%p632) target = $region72
        $region71: #{fpa_v2_forward.1} parent=11 // pred_region
          %s636 = ssub.s32 128, 128
          %637 = vsyncadd [#allocation10], %s636
          %s638 = sshll.u32 [#allocation9], 4
          %s639 = int_to_ptr.vmem [resolvable:$true] %s638
          %644 = dma.hbm_to_vmem [thread:$0]  %s15, 128, %s639, [#allocation10], 64, 64, 4
        $region72: #{fpa_v2_forward.1} parent=11 // pred_fallthru
          _
        // Predicated region
        $region73: #{fpa_v2_forward.1} parent=11 // pred_check
          %p645 = pneg %p399
        $region74: #{fpa_v2_forward.1} parent=11 // pred_check_branch
          %647 = sbr.rel (%p645) target = $region76
        $region75: #{fpa_v2_forward.1} parent=11 // pred_region
          _
        $region76: #{fpa_v2_forward.1} parent=11 // pred_fallthru
          _
        // Predicated region
        $region77: #{fpa_v2_forward.1} parent=11 // pred_check
          %p648 = pneg %p420
        $region78: #{fpa_v2_forward.1} parent=11 // pred_check_branch
          %650 = sbr.rel (%p648) target = $region80
        $region79: #{fpa_v2_forward.1} parent=11 // pred_region
          _
        $region80: #{fpa_v2_forward.1} parent=11 // pred_fallthru
          _
        // Predicated region
        $region81: #{fpa_v2_forward.1} parent=11 // pred_check
          %p651 = pneg %p441
        $region82: #{fpa_v2_forward.1} parent=11 // pred_check_branch
          %653 = sbr.rel (%p651) target = $region84
        $region83: #{fpa_v2_forward.1} parent=11 // pred_region
          %s655 = ssub.s32 512, 512
          %656 = vsyncadd [#allocation10], %s655
          %s657 = sshll.u32 [#allocation11], 4
          %s658 = int_to_ptr.vmem [resolvable:$true] %s657
          %663 = dma.hbm_to_vmem [thread:$0]  %s18, 512, %s658, [#allocation10], 128, 128, 8
        $region84: #{fpa_v2_forward.1} parent=11 // pred_fallthru
          _
        // Predicated region
        $region85: #{fpa_v2_forward.1} parent=11 // pred_check
          %p664 = pneg %p462
        $region86: #{fpa_v2_forward.1} parent=11 // pred_check_branch
          %666 = sbr.rel (%p664) target = $region88
        $region87: #{fpa_v2_forward.1} parent=11 // pred_region
          _
        $region88: #{fpa_v2_forward.1} parent=11 // pred_fallthru
          _
        // Predicated region
        $region89: #{fpa_v2_forward.1} parent=11 // pred_check
          %p667 = pneg %p483
        $region90: #{fpa_v2_forward.1} parent=11 // pred_check_branch
          %669 = sbr.rel (%p667) target = $region92
        $region91: #{fpa_v2_forward.1} parent=11 // pred_region
          %s671 = ssub.s32 448, 448
          %672 = vsyncadd [#allocation13], %s671
          %s673 = sshll.u32 [#allocation12], 4
          %s674 = int_to_ptr.vmem [resolvable:$true] %s673
          %679 = dma.hbm_to_vmem [thread:$0]  %s20, 448, %s674, [#allocation13], 64, 64, 4
        $region92: #{fpa_v2_forward.1} parent=11 // pred_fallthru
          _
        // Predicated region
        $region93: #{fpa_v2_forward.1} parent=11 // pred_check
          %p680 = pneg %p504
        $region94: #{fpa_v2_forward.1} parent=11 // pred_check_branch
          %682 = sbr.rel (%p680) target = $region96
        $region95: #{fpa_v2_forward.1} parent=11 // pred_region
          _
        $region96: #{fpa_v2_forward.1} parent=11 // pred_fallthru
          _
        // Predicated region
        $region97: #{fpa_v2_forward.1} parent=11 // pred_check
          %p683 = pneg %p525
        $region98: #{fpa_v2_forward.1} parent=11 // pred_check_branch
          %685 = sbr.rel (%p683) target = $region100
        $region99: #{fpa_v2_forward.1} parent=11 // pred_region
          _
        $region100: #{fpa_v2_forward.1} parent=11 // pred_fallthru
          _
      $region12: #{fpa_v2_forward.1} parent=5 // pred_fallthru
        _
      %p686 = scmp.lt.s32.totalorder %s37, 2
      // Predicated region
      $region101: #{fpa_v2_forward.1} parent=5 // pred_check
        %p687 = pneg %p686
      $region102: #{fpa_v2_forward.1} parent=5 // pred_check_branch
        %689 = sbr.rel (%p687) target = $region104
      $region103: #{fpa_v2_forward.1} parent=5 // pred_region
        // Predicated region
        $region105: #{fpa_v2_forward.1} parent=103 // pred_check
          %p690 = pneg %p57
        $region106: #{fpa_v2_forward.1} parent=103 // pred_check_branch
          %692 = sbr.rel (%p690) target = $region108
        $region107: #{fpa_v2_forward.1} parent=103 // pred_region
          %p693 = scmp.lt.s32.totalorder %s37, 1
          %s694 = scalar_select %p693, %s37, 1
          %s695 = smul.addr %s694, 32
          %s696 = smul.addr %s695, 8
          %s697 = scalar_lea.vmem %s0, %s696
        $region108: #{fpa_v2_forward.1} parent=103 // pred_fallthru
          _
      $region104: #{fpa_v2_forward.1} parent=5 // pred_fallthru
        _
      %p698 = scmp.le.s32.totalorder 1, %s37
      %p699 = scmp.lt.s32.totalorder %s37, 3
      %p700 = pnand %p698, %p699
      %p701 = pneg %p700
      // Predicated region
      $region109: #{fpa_v2_forward.1} parent=5 // pred_check
        _
      $region110: #{fpa_v2_forward.1} parent=5 // pred_check_branch
        %703 = sbr.rel (%p700) target = $region112
      $region111: #{fpa_v2_forward.1} parent=5 // pred_region
        %s704 = ssub.s32 %s37, 1
        // Predicated region
        $region113: #{fpa_v2_forward.1} parent=111 // pred_check
          %p705 = pneg %p84
        $region114: #{fpa_v2_forward.1} parent=111 // pred_check_branch
          %707 = sbr.rel (%p705) target = $region116
        $region115: #{fpa_v2_forward.1} parent=111 // pred_region
          %708 = dma.done [#allocation6], 16
        $region116: #{fpa_v2_forward.1} parent=111 // pred_fallthru
          _
        // Predicated region
        $region117: #{fpa_v2_forward.1} parent=111 // pred_check
          %p709 = pneg %p105
        $region118: #{fpa_v2_forward.1} parent=111 // pred_check_branch
          %711 = sbr.rel (%p709) target = $region120
        $region119: #{fpa_v2_forward.1} parent=111 // pred_region
          %712 = dma.done [#allocation5], 16
        $region120: #{fpa_v2_forward.1} parent=111 // pred_fallthru
          _
        // Predicated region
        $region121: #{fpa_v2_forward.1} parent=111 // pred_check
          %p713 = pneg %p336
        $region122: #{fpa_v2_forward.1} parent=111 // pred_check_branch
          %715 = sbr.rel (%p713) target = $region124
        $region123: #{fpa_v2_forward.1} parent=111 // pred_region
          %716 = dma.done [#allocation3], 1344
        $region124: #{fpa_v2_forward.1} parent=111 // pred_fallthru
          _
        // Predicated region
        $region125: #{fpa_v2_forward.1} parent=111 // pred_check
          %p717 = pneg %p378
        $region126: #{fpa_v2_forward.1} parent=111 // pred_check_branch
          %719 = sbr.rel (%p717) target = $region128
        $region127: #{fpa_v2_forward.1} parent=111 // pred_region
          %720 = dma.done [#allocation10], 128
        $region128: #{fpa_v2_forward.1} parent=111 // pred_fallthru
          _
        // Predicated region
        $region129: #{fpa_v2_forward.1} parent=111 // pred_check
          %p721 = pneg %p441
        $region130: #{fpa_v2_forward.1} parent=111 // pred_check_branch
          %723 = sbr.rel (%p721) target = $region132
        $region131: #{fpa_v2_forward.1} parent=111 // pred_region
          %724 = dma.done [#allocation10], 512
        $region132: #{fpa_v2_forward.1} parent=111 // pred_fallthru
          _
        // Predicated region
        $region133: #{fpa_v2_forward.1} parent=111 // pred_check
          %p725 = pneg %p483
        $region134: #{fpa_v2_forward.1} parent=111 // pred_check_branch
          %727 = sbr.rel (%p725) target = $region136
        $region135: #{fpa_v2_forward.1} parent=111 // pred_region
          %728 = dma.done [#allocation13], 448
        $region136: #{fpa_v2_forward.1} parent=111 // pred_fallthru
          _
        %729 = sfence
        %p730 = scmp.lt.s32.totalorder %s42, 1
        %s731 = scalar_select %p730, %s42, 1
        %s732 = smul.addr %s731, 32
        %s733 = smul.addr %s732, 8
        %s734 = scalar_lea.vmem %s0, %s733
        %p735 = pneg %p63
        %p736 = pneg %p60
        %p737 = pneg %p84
        %p738 = pneg %p81
        %p739 = pneg %p105
        %p740 = pneg %p102
        %p741 = pneg %p126
        %p742 = pneg %p123
        %p743 = pneg %p147
        %p744 = pneg %p144
        %p745 = pneg %p168
        %p746 = pneg %p165
        %p747 = pneg %p189
        %p748 = pneg %p186
        %p749 = pneg %p210
        %p750 = pneg %p207
        %p751 = pneg %p231
        %p752 = pneg %p228
        %p753 = pneg %p252
        %p754 = pneg %p249
        %p755 = pneg %p273
        %p756 = pneg %p270
        %p757 = pneg %p294
        %p758 = pneg %p291
        %p759 = pneg %p315
        %p760 = pneg %p312
        %p761 = pneg %p336
        %p762 = pneg %p333
        %p763 = pneg %p357
        %p764 = pneg %p354
        %p765 = pneg %p378
        %p766 = pneg %p375
        %p767 = pneg %p399
        %p768 = pneg %p396
        %p769 = pneg %p420
        %p770 = pneg %p417
        %p771 = pneg %p441
        %p772 = pneg %p438
        %p773 = pneg %p462
        %p774 = pneg %p459
        %p775 = pneg %p483
        %p776 = pneg %p480
        %p777 = pneg %p504
        %p778 = pneg %p501
        %p779 = pneg %p525
        %p780 = pneg %p522
        %p781 = pneg %p551
        %p782 = pneg %p548
        %s783 = sand.u32 %s538, 1
        %s784 = scalar_lea.sflag [#allocation4], %s783
        %s785 = sand.u32 %s538, 1
        %s786 = smul.addr %s785, 512
        %s787 = scalar_lea.vmem [#allocation14], %s786
        %p788 = scmp.lt.s32.totalorder %s42, 1
        %s789 = scalar_select %p788, %s42, 1
        %s790 = smul.addr %s789, 32
        %s791 = smul.addr %s790, 8
        %s792 = scalar_lea.vmem %s0, %s791
        %v794 = vld [vmem:[%s792] sm:$0xff]
        %v795 = vld [vmem:[%s792 + $0x8] sm:$0xff]
        %v796 = vld [vmem:[%s792 + $0x10] sm:$0xff]
        %v797 = vld [vmem:[%s792 + $0x18] sm:$0xff]
        %v798 = vld [vmem:[%s792 + $0x20] sm:$0xff]
        %v799 = vld [vmem:[%s792 + $0x28] sm:$0xff]
        %v800 = vld [vmem:[%s792 + $0x30] sm:$0xff]
        %v801 = vld [vmem:[%s792 + $0x38] sm:$0xff]
        %v802 = vld [vmem:[%s792 + $0x40] sm:$0xff]
        %v803 = vld [vmem:[%s792 + $0x48] sm:$0xff]
        %v804 = vld [vmem:[%s792 + $0x50] sm:$0xff]
        %v805 = vld [vmem:[%s792 + $0x58] sm:$0xff]
        %v806 = vld [vmem:[%s792 + $0x60] sm:$0xff]
        %v807 = vld [vmem:[%s792 + $0x68] sm:$0xff]
        %v808 = vld [vmem:[%s792 + $0x70] sm:$0xff]
        %v809 = vld [vmem:[%s792 + $0x78] sm:$0xff]
        %v810 = vld [vmem:[%s792 + $0x80] sm:$0xff]
        %v811 = vld [vmem:[%s792 + $0x88] sm:$0xff]
        %v812 = vld [vmem:[%s792 + $0x90] sm:$0xff]
        %v813 = vld [vmem:[%s792 + $0x98] sm:$0xff]
        %v814 = vld [vmem:[%s792 + $0xa0] sm:$0xff]
        %v815 = vld [vmem:[%s792 + $0xa8] sm:$0xff]
        %v816 = vld [vmem:[%s792 + $0xb0] sm:$0xff]
        %v817 = vld [vmem:[%s792 + $0xb8] sm:$0xff]
        %v818 = vld [vmem:[%s792 + $0xc0] sm:$0xff]
        %v819 = vld [vmem:[%s792 + $0xc8] sm:$0xff]
        %v820 = vld [vmem:[%s792 + $0xd0] sm:$0xff]
        %v821 = vld [vmem:[%s792 + $0xd8] sm:$0xff]
        %v822 = vld [vmem:[%s792 + $0xe0] sm:$0xff]
        %v823 = vld [vmem:[%s792 + $0xe8] sm:$0xff]
        %v824 = vld [vmem:[%s792 + $0xf0] sm:$0xff]
        %v825 = vld [vmem:[%s792 + $0xf8] sm:$0xff]
        %v826 = vpack.c.bf16 %v796, %v794
        %v827 = vpack.c.bf16 %v797, %v795
        %v828 = vpack.c.bf16 %v800, %v798
        %v829 = vpack.c.bf16 %v801, %v799
        %v830 = vpack.c.bf16 %v804, %v802
        %v831 = vpack.c.bf16 %v805, %v803
        %v832 = vpack.c.bf16 %v808, %v806
        %v833 = vpack.c.bf16 %v809, %v807
        %v834 = vpack.c.bf16 %v812, %v810
        %v835 = vpack.c.bf16 %v813, %v811
        %v836 = vpack.c.bf16 %v816, %v814
        %v837 = vpack.c.bf16 %v817, %v815
        %v838 = vpack.c.bf16 %v820, %v818
        %v839 = vpack.c.bf16 %v821, %v819
        %v840 = vpack.c.bf16 %v824, %v822
        %v841 = vpack.c.bf16 %v825, %v823
        %v842 = vld [vmem:[%s3] sm:$0xf]
        %v843 = vld [vmem:[%s3 + $0x4] sm:$0xf]
        %v844 = vld [vmem:[%s3 + $0x8] sm:$0xf]
        %v845 = vld [vmem:[%s3 + $0xc] sm:$0xf]
        %v846 = vld [vmem:[%s3 + $0x10] sm:$0xf]
        %v847 = vld [vmem:[%s3 + $0x14] sm:$0xf]
        %v848 = vld [vmem:[%s3 + $0x18] sm:$0xf]
        %v849 = vld [vmem:[%s3 + $0x1c] sm:$0xf]
        %v850 = vld [vmem:[%s3 + $0x20] sm:$0xf]
        %v851 = vld [vmem:[%s3 + $0x24] sm:$0xf]
        %v852 = vld [vmem:[%s3 + $0x28] sm:$0xf]
        %v853 = vld [vmem:[%s3 + $0x2c] sm:$0xf]
        %v854 = vld [vmem:[%s3 + $0x30] sm:$0xf]
        %v855 = vld [vmem:[%s3 + $0x34] sm:$0xf]
        %v856 = vld [vmem:[%s3 + $0x38] sm:$0xf]
        %v857 = vld [vmem:[%s3 + $0x3c] sm:$0xf]
        %v858 = vld [vmem:[%s3 + $0x40] sm:$0xf]
        %v859 = vld [vmem:[%s3 + $0x44] sm:$0xf]
        %v860 = vld [vmem:[%s3 + $0x48] sm:$0xf]
        %v861 = vld [vmem:[%s3 + $0x4c] sm:$0xf]
        %v862 = vld [vmem:[%s3 + $0x50] sm:$0xf]
        %v863 = vld [vmem:[%s3 + $0x54] sm:$0xf]
        %v864 = vld [vmem:[%s3 + $0x58] sm:$0xf]
        %v865 = vld [vmem:[%s3 + $0x5c] sm:$0xf]
        %v866 = vld [vmem:[%s3 + $0x60] sm:$0xf]
        %v867 = vld [vmem:[%s3 + $0x64] sm:$0xf]
        %v868 = vld [vmem:[%s3 + $0x68] sm:$0xf]
        %v869 = vld [vmem:[%s3 + $0x6c] sm:$0xf]
        %v870 = vld [vmem:[%s3 + $0x70] sm:$0xf]
        %v871 = vld [vmem:[%s3 + $0x74] sm:$0xf]
        %v872 = vld [vmem:[%s3 + $0x78] sm:$0xf]
        %v873 = vld [vmem:[%s3 + $0x7c] sm:$0xf]
        %v874 = vld [vmem:[%s3 + $0x80] sm:$0xf]
        %v875 = vld [vmem:[%s3 + $0x84] sm:$0xf]
        %v876 = vld [vmem:[%s3 + $0x88] sm:$0xf]
        %v877 = vld [vmem:[%s3 + $0x8c] sm:$0xf]
        %v878 = vld [vmem:[%s3 + $0x90] sm:$0xf]
        %v879 = vld [vmem:[%s3 + $0x94] sm:$0xf]
        %v880 = vld [vmem:[%s3 + $0x98] sm:$0xf]
        %v881 = vld [vmem:[%s3 + $0x9c] sm:$0xf]
        %v922 = vunpack.c.l.b16 %v842
        %v923 = vunpack.c.l.b16 %v843
        %v924 = vunpack.c.l.b16 %v844
        %v925 = vunpack.c.l.b16 %v845
        %v926 = vunpack.c.l.b16 %v846
        %v927 = vunpack.c.l.b16 %v847
        %v928 = vunpack.c.l.b16 %v848
        %v929 = vunpack.c.l.b16 %v849
        %v930 = vunpack.c.l.b16 %v850
        %v931 = vunpack.c.l.b16 %v851
        %v932 = vunpack.c.l.b16 %v852
        %v933 = vunpack.c.l.b16 %v853
        %v934 = vunpack.c.l.b16 %v854
        %v935 = vunpack.c.l.b16 %v855
        %v936 = vunpack.c.l.b16 %v856
        %v937 = vunpack.c.l.b16 %v857
        %v938 = vunpack.c.l.b16 %v858
        %v939 = vunpack.c.l.b16 %v859
        %v940 = vunpack.c.l.b16 %v860
        %v941 = vunpack.c.l.b16 %v861
        %v942 = vunpack.c.l.b16 %v862
        %v943 = vunpack.c.l.b16 %v863
        %v944 = vunpack.c.l.b16 %v864
        %v945 = vunpack.c.l.b16 %v865
        %v946 = vunpack.c.l.b16 %v866
        %v947 = vunpack.c.l.b16 %v867
        %v948 = vunpack.c.l.b16 %v868
        %v949 = vunpack.c.l.b16 %v869
        %v950 = vunpack.c.l.b16 %v870
        %v951 = vunpack.c.l.b16 %v871
        %v952 = vunpack.c.l.b16 %v872
        %v953 = vunpack.c.l.b16 %v873
        %v954 = vunpack.c.l.b16 %v874
        %v955 = vunpack.c.l.b16 %v875
        %v956 = vunpack.c.l.b16 %v876
        %v957 = vunpack.c.l.b16 %v877
        %v958 = vunpack.c.l.b16 %v878
        %v959 = vunpack.c.l.b16 %v879
        %v960 = vunpack.c.l.b16 %v880
        %v961 = vunpack.c.l.b16 %v881
        %v962 = vpack.c.b16 %v923, %v922
        %v963 = vpack.c.b16 %v925, %v924
        %v964 = vpack.c.b16 %v927, %v926
        %v965 = vpack.c.b16 %v929, %v928
        %v966 = vpack.c.b16 %v931, %v930
        %v967 = vpack.c.b16 %v933, %v932
        %v968 = vpack.c.b16 %v935, %v934
        %v969 = vpack.c.b16 %v937, %v936
        %v970 = vpack.c.b16 %v939, %v938
        %v971 = vpack.c.b16 %v941, %v940
        %v972 = vpack.c.b16 %v943, %v942
        %v973 = vpack.c.b16 %v945, %v944
        %v974 = vpack.c.b16 %v947, %v946
        %v975 = vpack.c.b16 %v949, %v948
        %v976 = vpack.c.b16 %v951, %v950
        %v977 = vpack.c.b16 %v953, %v952
        %v978 = vpack.c.b16 %v955, %v954
        %v979 = vpack.c.b16 %v957, %v956
        %v980 = vpack.c.b16 %v959, %v958
        %v981 = vpack.c.b16 %v961, %v960
        %1002 = vmatprep.subr.bf16.mxu0 %v827
        %1003 = vmatpush1.bf16.msra.mxu0 %v826
        %1004 = vmatprep.subr.bf16.mxu0 %v829
        %1005 = vmatpush1.bf16.msra.mxu0 %v828
        %1006 = vmatprep.subr.bf16.mxu0 %v831
        %1007 = vmatpush1.bf16.msra.mxu0 %v830
        %1008 = vmatprep.subr.bf16.mxu0 %v833
        %1009 = vmatpush1.bf16.msra.mxu0 %v832
        %1010 = vmatprep.subr.bf16.mxu0 %v835
        %1011 = vmatpush1.bf16.msra.mxu0 %v834
        %1012 = vmatprep.subr.bf16.mxu0 %v837
        %1013 = vmatpush1.bf16.msra.mxu0 %v836
        %1014 = vmatprep.subr.bf16.mxu0 %v839
        %1015 = vmatpush1.bf16.msra.mxu0 %v838
        %1016 = vmatprep.subr.bf16.mxu0 %v841
        %1017 = vmatpush1.bf16.msra.mxu0 %v840
        %1018 = vmatprep.subr.bf16.mxu0 0
        %1019 = vmatpush1.bf16.msra.mxu0 0
        %1020 = vmatprep.subr.bf16.mxu0 0
        %1021 = vmatpush1.bf16.msra.mxu0 0
        %1022 = vmatprep.subr.bf16.mxu0 0
        %1023 = vmatpush1.bf16.msra.mxu0 0
        %1024 = vmatprep.subr.bf16.mxu0 0
        %1025 = vmatpush1.bf16.msra.mxu0 0
        %1026 = vmatprep.subr.bf16.mxu0 0
        %1027 = vmatpush1.bf16.msra.mxu0 0
        %1028 = vmatprep.subr.bf16.mxu0 0
        %1029 = vmatpush1.bf16.msra.mxu0 0
        %1030 = vmatprep.subr.bf16.mxu0 0
        %1031 = vmatpush1.bf16.msra.mxu0 0
        %1032 = vmatprep.subr.bf16.mxu0 0
        %1033 = vmatpush1.bf16.msra.mxu0 0
        %1034 = vmatprep.mubr.bf16.mxu0 0
        %1035 = vmatmul.mubr.bf16.gmra.mrb[0].mxu0 %v962
        %v1036 = vpop.f32.mrb[0].mxu0
        %v1037 = vadd.f32 0.0, %v1036
        %v1038 = vpop.f32.mrb[0].mxu0
        %v1039 = vadd.f32 0.0, %v1038
        %v1040 = vpop.f32.mrb[0].mxu0
        %v1041 = vadd.f32 0.0, %v1040
        %v1042 = vpop.f32.mrb[0].mxu0
        %v1043 = vadd.f32 0.0, %v1042
        %1044 = vmatprep.mubr.bf16.mxu0 0
        %1045 = vmatmul.mubr.bf16.gmra.mrb[0].mxu0 %v963
        %v1046 = vpop.f32.mrb[0].mxu0
        %v1047 = vadd.f32 0.0, %v1046
        %v1048 = vpop.f32.mrb[0].mxu0
        %v1049 = vadd.f32 0.0, %v1048
        %v1050 = vpop.f32.mrb[0].mxu0
        %v1051 = vadd.f32 0.0, %v1050
        %v1052 = vpop.f32.mrb[0].mxu0
        %v1053 = vadd.f32 0.0, %v1052
        %1054 = vmatprep.mubr.bf16.mxu0 0
        %1055 = vmatmul.mubr.bf16.gmra.mrb[0].mxu0 %v964
        %v1056 = vpop.f32.mrb[0].mxu0
        %v1057 = vadd.f32 0.0, %v1056
        %v1058 = vpop.f32.mrb[0].mxu0
        %v1059 = vadd.f32 0.0, %v1058
        %v1060 = vpop.f32.mrb[0].mxu0
        %v1061 = vadd.f32 0.0, %v1060
        %v1062 = vpop.f32.mrb[0].mxu0
        %v1063 = vadd.f32 0.0, %v1062
        %1064 = vmatprep.mubr.bf16.mxu0 0
        %1065 = vmatmul.mubr.bf16.gmra.mrb[0].mxu0 %v965
        %v1066 = vpop.f32.mrb[0].mxu0
        %v1067 = vadd.f32 0.0, %v1066
        %v1068 = vpop.f32.mrb[0].mxu0
        %v1069 = vadd.f32 0.0, %v1068
        %v1070 = vpop.f32.mrb[0].mxu0
        %v1071 = vadd.f32 0.0, %v1070
        %v1072 = vpop.f32.mrb[0].mxu0
        %v1073 = vadd.f32 0.0, %v1072
        %1074 = vmatprep.mubr.bf16.mxu0 0
        %1075 = vmatmul.mubr.bf16.gmra.mrb[0].mxu0 %v966
        %v1076 = vpop.f32.mrb[0].mxu0
        %v1077 = vadd.f32 0.0, %v1076
        %v1078 = vpop.f32.mrb[0].mxu0
        %v1079 = vadd.f32 0.0, %v1078
        %v1080 = vpop.f32.mrb[0].mxu0
        %v1081 = vadd.f32 0.0, %v1080
        %v1082 = vpop.f32.mrb[0].mxu0
        %v1083 = vadd.f32 0.0, %v1082
        %1084 = vmatprep.mubr.bf16.mxu0 0
        %1085 = vmatmul.mubr.bf16.gmra.mrb[0].mxu0 %v967
        %v1086 = vpop.f32.mrb[0].mxu0
        %v1087 = vadd.f32 0.0, %v1086
        %v1088 = vpop.f32.mrb[0].mxu0
        %v1089 = vadd.f32 0.0, %v1088
        %v1090 = vpop.f32.mrb[0].mxu0
        %v1091 = vadd.f32 0.0, %v1090
        %v1092 = vpop.f32.mrb[0].mxu0
        %v1093 = vadd.f32 0.0, %v1092
        %1094 = vmatprep.mubr.bf16.mxu0 0
        %1095 = vmatmul.mubr.bf16.gmra.mrb[0].mxu0 %v968
        %v1096 = vpop.f32.mrb[0].mxu0
        %v1097 = vadd.f32 0.0, %v1096
        %v1098 = vpop.f32.mrb[0].mxu0
        %v1099 = vadd.f32 0.0, %v1098
        %v1100 = vpop.f32.mrb[0].mxu0
        %v1101 = vadd.f32 0.0, %v1100
        %v1102 = vpop.f32.mrb[0].mxu0
        %v1103 = vadd.f32 0.0, %v1102
        %1104 = vmatprep.mubr.bf16.mxu0 0
        %1105 = vmatmul.mubr.bf16.gmra.mrb[0].mxu0 %v969
        %v1106 = vpop.f32.mrb[0].mxu0
        %v1107 = vadd.f32 0.0, %v1106
        %v1108 = vpop.f32.mrb[0].mxu0
        %v1109 = vadd.f32 0.0, %v1108
        %v1110 = vpop.f32.mrb[0].mxu0
        %v1111 = vadd.f32 0.0, %v1110
        %v1112 = vpop.f32.mrb[0].mxu0
        %v1113 = vadd.f32 0.0, %v1112
        %1114 = vmatprep.mubr.bf16.mxu0 0
        %1115 = vmatmul.mubr.bf16.gmra.mrb[0].mxu0 %v970
        %v1116 = vpop.f32.mrb[0].mxu0
        %v1117 = vadd.f32 0.0, %v1116
        %v1118 = vpop.f32.mrb[0].mxu0
        %v1119 = vadd.f32 0.0, %v1118
        %v1120 = vpop.f32.mrb[0].mxu0
        %v1121 = vadd.f32 0.0, %v1120
        %v1122 = vpop.f32.mrb[0].mxu0
        %v1123 = vadd.f32 0.0, %v1122
        %1124 = vmatprep.mubr.bf16.mxu0 0
        %1125 = vmatmul.mubr.bf16.gmra.mrb[0].mxu0 %v971
        %v1126 = vpop.f32.mrb[0].mxu0
        %v1127 = vadd.f32 0.0, %v1126
        %v1128 = vpop.f32.mrb[0].mxu0
        %v1129 = vadd.f32 0.0, %v1128
        %v1130 = vpop.f32.mrb[0].mxu0
        %v1131 = vadd.f32 0.0, %v1130
        %v1132 = vpop.f32.mrb[0].mxu0
        %v1133 = vadd.f32 0.0, %v1132
        %1134 = vmatprep.mubr.bf16.mxu0 0
        %1135 = vmatmul.mubr.bf16.gmra.mrb[0].mxu0 %v972
        %v1136 = vpop.f32.mrb[0].mxu0
        %v1137 = vadd.f32 0.0, %v1136
        %v1138 = vpop.f32.mrb[0].mxu0
        %v1139 = vadd.f32 0.0, %v1138
        %v1140 = vpop.f32.mrb[0].mxu0
        %v1141 = vadd.f32 0.0, %v1140
        %v1142 = vpop.f32.mrb[0].mxu0
        %v1143 = vadd.f32 0.0, %v1142
        %1144 = vmatprep.mubr.bf16.mxu0 0
        %1145 = vmatmul.mubr.bf16.gmra.mrb[0].mxu0 %v973
        %v1146 = vpop.f32.mrb[0].mxu0
        %v1147 = vadd.f32 0.0, %v1146
        %v1148 = vpop.f32.mrb[0].mxu0
        %v1149 = vadd.f32 0.0, %v1148
        %v1150 = vpop.f32.mrb[0].mxu0
        %v1151 = vadd.f32 0.0, %v1150
        %v1152 = vpop.f32.mrb[0].mxu0
        %v1153 = vadd.f32 0.0, %v1152
        %1154 = vmatprep.mubr.bf16.mxu0 0
        %1155 = vmatmul.mubr.bf16.gmra.mrb[0].mxu0 %v974
        %v1156 = vpop.f32.mrb[0].mxu0
        %v1157 = vadd.f32 0.0, %v1156
        %v1158 = vpop.f32.mrb[0].mxu0
        %v1159 = vadd.f32 0.0, %v1158
        %v1160 = vpop.f32.mrb[0].mxu0
        %v1161 = vadd.f32 0.0, %v1160
        %v1162 = vpop.f32.mrb[0].mxu0
        %v1163 = vadd.f32 0.0, %v1162
        %1164 = vmatprep.mubr.bf16.mxu0 0
        %1165 = vmatmul.mubr.bf16.gmra.mrb[0].mxu0 %v975
        %v1166 = vpop.f32.mrb[0].mxu0
        %v1167 = vadd.f32 0.0, %v1166
        %v1168 = vpop.f32.mrb[0].mxu0
        %v1169 = vadd.f32 0.0, %v1168
        %v1170 = vpop.f32.mrb[0].mxu0
        %v1171 = vadd.f32 0.0, %v1170
        %v1172 = vpop.f32.mrb[0].mxu0
        %v1173 = vadd.f32 0.0, %v1172
        %1174 = vmatprep.mubr.bf16.mxu0 0
        %1175 = vmatmul.mubr.bf16.gmra.mrb[0].mxu0 %v976
        %v1176 = vpop.f32.mrb[0].mxu0
        %v1177 = vadd.f32 0.0, %v1176
        %v1178 = vpop.f32.mrb[0].mxu0
        %v1179 = vadd.f32 0.0, %v1178
        %v1180 = vpop.f32.mrb[0].mxu0
        %v1181 = vadd.f32 0.0, %v1180
        %v1182 = vpop.f32.mrb[0].mxu0
        %v1183 = vadd.f32 0.0, %v1182
        %1184 = vmatprep.mubr.bf16.mxu0 0
        %1185 = vmatmul.mubr.bf16.gmra.mrb[0].mxu0 %v977
        %v1186 = vpop.f32.mrb[0].mxu0
        %v1187 = vadd.f32 0.0, %v1186
        %v1188 = vpop.f32.mrb[0].mxu0
        %v1189 = vadd.f32 0.0, %v1188
        %v1190 = vpop.f32.mrb[0].mxu0
        %v1191 = vadd.f32 0.0, %v1190
        %v1192 = vpop.f32.mrb[0].mxu0
        %v1193 = vadd.f32 0.0, %v1192
        %1194 = vmatprep.mubr.bf16.mxu0 0
        %1195 = vmatmul.mubr.bf16.gmra.mrb[0].mxu0 %v978
        %v1196 = vpop.f32.mrb[0].mxu0
        %v1197 = vadd.f32 0.0, %v1196
        %v1198 = vpop.f32.mrb[0].mxu0
        %v1199 = vadd.f32 0.0, %v1198
        %v1200 = vpop.f32.mrb[0].mxu0
        %v1201 = vadd.f32 0.0, %v1200
        %v1202 = vpop.f32.mrb[0].mxu0
        %v1203 = vadd.f32 0.0, %v1202
        %1204 = vmatprep.mubr.bf16.mxu0 0
        %1205 = vmatmul.mubr.bf16.gmra.mrb[0].mxu0 %v979
        %v1206 = vpop.f32.mrb[0].mxu0
        %v1207 = vadd.f32 0.0, %v1206
        %v1208 = vpop.f32.mrb[0].mxu0
        %v1209 = vadd.f32 0.0, %v1208
        %v1210 = vpop.f32.mrb[0].mxu0
        %v1211 = vadd.f32 0.0, %v1210
        %v1212 = vpop.f32.mrb[0].mxu0
        %v1213 = vadd.f32 0.0, %v1212
        %1214 = vmatprep.mubr.bf16.mxu0 0
        %1215 = vmatmul.mubr.bf16.gmra.mrb[0].mxu0 %v980
        %v1216 = vpop.f32.mrb[0].mxu0
        %v1217 = vadd.f32 0.0, %v1216
        %v1218 = vpop.f32.mrb[0].mxu0
        %v1219 = vadd.f32 0.0, %v1218
        %v1220 = vpop.f32.mrb[0].mxu0
        %v1221 = vadd.f32 0.0, %v1220
        %v1222 = vpop.f32.mrb[0].mxu0
        %v1223 = vadd.f32 0.0, %v1222
        %1224 = vmatprep.mubr.bf16.mxu0 0
        %1225 = vmatmul.mubr.bf16.gmra.mrb[0].mxu0 %v981
        %v1226 = vpop.f32.mrb[0].mxu0
        %v1227 = vadd.f32 0.0, %v1226
        %v1228 = vpop.f32.mrb[0].mxu0
        %v1229 = vadd.f32 0.0, %v1228
        %v1230 = vpop.f32.mrb[0].mxu0
        %v1231 = vadd.f32 0.0, %v1230
        %v1232 = vpop.f32.mrb[0].mxu0
        %v1233 = vadd.f32 0.0, %v1232
        %1234 = vdwg.mxu0
        %v1235 = vld [vmem:[%s4] sm:$0xf]
        %v1236 = vld [vmem:[%s4 + $0x4] sm:$0xf]
        %v1237 = vld [vmem:[%s4 + $0x8] sm:$0xf]
        %v1238 = vld [vmem:[%s4 + $0xc] sm:$0xf]
        %v1239 = vld [vmem:[%s4 + $0x10] sm:$0xf]
        %v1240 = vld [vmem:[%s4 + $0x14] sm:$0xf]
        %v1241 = vld [vmem:[%s4 + $0x18] sm:$0xf]
        %v1242 = vld [vmem:[%s4 + $0x1c] sm:$0xf]
        %v1243 = vld [vmem:[%s4 + $0x20] sm:$0xf]
        %v1244 = vld [vmem:[%s4 + $0x24] sm:$0xf]
        %v1245 = vld [vmem:[%s4 + $0x28] sm:$0xf]
        %v1246 = vld [vmem:[%s4 + $0x2c] sm:$0xf]
        %v1247 = vld [vmem:[%s4 + $0x30] sm:$0xf]
        %v1248 = vld [vmem:[%s4 + $0x34] sm:$0xf]
        %v1249 = vld [vmem:[%s4 + $0x38] sm:$0xf]
        %v1250 = vld [vmem:[%s4 + $0x3c] sm:$0xf]
        %v1251 = vld [vmem:[%s4 + $0x40] sm:$0xf]
        %v1252 = vld [vmem:[%s4 + $0x44] sm:$0xf]
        %v1253 = vld [vmem:[%s4 + $0x48] sm:$0xf]
        %v1254 = vld [vmem:[%s4 + $0x4c] sm:$0xf]
        %v1255 = vld [vmem:[%s4 + $0x50] sm:$0xf]
        %v1256 = vld [vmem:[%s4 + $0x54] sm:$0xf]
        %v1257 = vld [vmem:[%s4 + $0x58] sm:$0xf]
        %v1258 = vld [vmem:[%s4 + $0x5c] sm:$0xf]
        %v1259 = vld [vmem:[%s4 + $0x60] sm:$0xf]
        %v1260 = vpack.c.bf16 %v1041, %v1037
        %v1261 = vpack.c.bf16 %v1043, %v1039
        %v1262 = vpack.c.bf16 %v1051, %v1047
        %v1263 = vpack.c.bf16 %v1053, %v1049
        %v1264 = vpack.c.bf16 %v1061, %v1057
        %v1265 = vpack.c.bf16 %v1063, %v1059
        %v1266 = vpack.c.bf16 %v1071, %v1067
        %v1267 = vpack.c.bf16 %v1073, %v1069
        %s1268 = scalar_lea.vmem %s4, 100
        %v1269 = vld [vmem:[%s1268] sm:$0xf]
        %v1270 = vld [vmem:[%s1268 + $0x4] sm:$0xf]
        %v1271 = vld [vmem:[%s1268 + $0x8] sm:$0xf]
        %v1272 = vld [vmem:[%s1268 + $0xc] sm:$0xf]
        %v1273 = vld [vmem:[%s1268 + $0x10] sm:$0xf]
        %v1274 = vld [vmem:[%s1268 + $0x14] sm:$0xf]
        %v1275 = vld [vmem:[%s1268 + $0x18] sm:$0xf]
        %v1276 = vld [vmem:[%s1268 + $0x1c] sm:$0xf]
        %v1277 = vld [vmem:[%s1268 + $0x20] sm:$0xf]
        %v1278 = vld [vmem:[%s1268 + $0x24] sm:$0xf]
        %v1279 = vld [vmem:[%s1268 + $0x28] sm:$0xf]
        %v1280 = vld [vmem:[%s1268 + $0x2c] sm:$0xf]
        %v1281 = vld [vmem:[%s1268 + $0x30] sm:$0xf]
        %v1282 = vld [vmem:[%s1268 + $0x34] sm:$0xf]
        %v1283 = vld [vmem:[%s1268 + $0x38] sm:$0xf]
        %v1284 = vld [vmem:[%s1268 + $0x3c] sm:$0xf]
        %v1285 = vld [vmem:[%s1268 + $0x40] sm:$0xf]
        %v1286 = vld [vmem:[%s1268 + $0x44] sm:$0xf]
        %v1287 = vld [vmem:[%s1268 + $0x48] sm:$0xf]
        %v1288 = vld [vmem:[%s1268 + $0x4c] sm:$0xf]
        %v1289 = vld [vmem:[%s1268 + $0x50] sm:$0xf]
        %v1290 = vld [vmem:[%s1268 + $0x54] sm:$0xf]
        %v1291 = vld [vmem:[%s1268 + $0x58] sm:$0xf]
        %v1292 = vld [vmem:[%s1268 + $0x5c] sm:$0xf]
        %v1293 = vld [vmem:[%s1268 + $0x60] sm:$0xf]
        %v1294 = vpack.c.bf16 %v1081, %v1077
        %v1295 = vpack.c.bf16 %v1083, %v1079
        %v1296 = vpack.c.bf16 %v1091, %v1087
        %v1297 = vpack.c.bf16 %v1093, %v1089
        %v1298 = vpack.c.bf16 %v1101, %v1097
        %v1299 = vpack.c.bf16 %v1103, %v1099
        %v1300 = vpack.c.bf16 %v1111, %v1107
        %v1301 = vpack.c.bf16 %v1113, %v1109
        %v1327 = vunpack.c.l.b16 %v1269
        %v1328 = vunpack.c.l.b16 %v1270
        %v1329 = vunpack.c.l.b16 %v1271
        %v1330 = vunpack.c.l.b16 %v1272
        %v1331 = vunpack.c.l.b16 %v1273
        %v1332 = vunpack.c.l.b16 %v1274
        %v1333 = vunpack.c.l.b16 %v1275
        %v1334 = vunpack.c.l.b16 %v1276
        %v1335 = vunpack.c.l.b16 %v1277
        %v1336 = vunpack.c.l.b16 %v1278
        %v1337 = vunpack.c.l.b16 %v1279
        %v1338 = vunpack.c.l.b16 %v1280
        %v1339 = vunpack.c.l.b16 %v1281
        %v1340 = vunpack.c.l.b16 %v1282
        %v1341 = vunpack.c.l.b16 %v1283
        %v1342 = vunpack.c.l.b16 %v1284
        %v1343 = vunpack.c.l.b16 %v1285
        %v1344 = vunpack.c.l.b16 %v1286
        %v1345 = vunpack.c.l.b16 %v1287
        %v1346 = vunpack.c.l.b16 %v1288
        %v1347 = vunpack.c.l.b16 %v1289
        %v1348 = vunpack.c.l.b16 %v1290
        %v1349 = vunpack.c.l.b16 %v1291
        %v1350 = vunpack.c.l.b16 %v1292
        %v1351 = vunpack.c.l.b16 %v1293
        %v1352 = vpack.c.b16 %v1328, %v1327
        %v1353 = vpack.c.b16 %v1330, %v1329
        %v1354 = vpack.c.b16 %v1332, %v1331
        %v1355 = vpack.c.b16 %v1334, %v1333
        %v1356 = vpack.c.b16 %v1336, %v1335
        %v1357 = vpack.c.b16 %v1338, %v1337
        %v1358 = vpack.c.b16 %v1340, %v1339
        %v1359 = vpack.c.b16 %v1342, %v1341
        %v1360 = vpack.c.b16 %v1344, %v1343
        %v1361 = vpack.c.b16 %v1346, %v1345
        %v1362 = vpack.c.b16 %v1348, %v1347
        %v1363 = vpack.c.b16 %v1350, %v1349
        %v1364 = vpack.c.b16 %v1351, %v1351
        %vm1377 = vcmask 588800
        %v1379 = vsel %vm1377, %v1295, 0
        %v1382 = vsel %vm1377, %v1297, 0
        %v1385 = vsel %vm1377, %v1299, 0
        %v1388 = vsel %vm1377, %v1301, 0
        %vm1390 = vcmask 1043456
        %v1392 = vsel %vm1390, %v1364, 0
        %1394 = vmatprep.subr.bf16.mxu0 0
        %1395 = vmatpush1.bf16.msra.mxu0 %v1352
        %1396 = vmatprep.subr.bf16.mxu0 0
        %1397 = vmatpush1.bf16.msra.mxu0 %v1353
        %1398 = vmatprep.subr.bf16.mxu0 0
        %1399 = vmatpush1.bf16.msra.mxu0 %v1354
        %1400 = vmatprep.subr.bf16.mxu0 0
        %1401 = vmatpush1.bf16.msra.mxu0 %v1355
        %1402 = vmatprep.subr.bf16.mxu0 0
        %1403 = vmatpush1.bf16.msra.mxu0 %v1356
        %1404 = vmatprep.subr.bf16.mxu0 0
        %1405 = vmatpush1.bf16.msra.mxu0 %v1357
        %1406 = vmatprep.subr.bf16.mxu0 0
        %1407 = vmatpush1.bf16.msra.mxu0 %v1358
        %1408 = vmatprep.subr.bf16.mxu0 0
        %1409 = vmatpush1.bf16.msra.mxu0 %v1359
        %1410 = vmatprep.subr.bf16.mxu0 0
        %1411 = vmatpush1.bf16.msra.mxu0 %v1360
        %1412 = vmatprep.subr.bf16.mxu0 0
        %1413 = vmatpush1.bf16.msra.mxu0 %v1361
        %1414 = vmatprep.subr.bf16.mxu0 0
        %1415 = vmatpush1.bf16.msra.mxu0 %v1362
        %1416 = vmatprep.subr.bf16.mxu0 0
        %1417 = vmatpush1.bf16.msra.mxu0 %v1363
        %1418 = vmatprep.subr.bf16.mxu0 0
        %1419 = vmatpush1.bf16.msra.mxu0 %v1392
        %1420 = vmatprep.subr.bf16.mxu0 0
        %1421 = vmatpush1.bf16.msra.mxu0 0
        %1422 = vmatprep.subr.bf16.mxu0 0
        %1423 = vmatpush1.bf16.msra.mxu0 0
        %1424 = vmatprep.subr.bf16.mxu0 0
        %1425 = vmatpush1.bf16.msra.mxu0 0
        %1426 = vmatprep.mubr.bf16.mxu0 %v1379
        %1427 = vmatmul.mubr.bf16.gmra.mrb[0].mxu0 %v1294
        %v1428 = vpop.f32.mrb[0].mxu0
        %v1429 = vadd.f32 0.0, %v1428
        %v1430 = vpop.f32.mrb[0].mxu0
        %v1431 = vpop.f32.mrb[0].mxu0
        %v1432 = vadd.f32 0.0, %v1431
        %v1433 = vpop.f32.mrb[0].mxu0
        %1434 = vmatprep.mubr.bf16.mxu0 %v1382
        %1435 = vmatmul.mubr.bf16.gmra.mrb[0].mxu0 %v1296
        %v1436 = vpop.f32.mrb[0].mxu0
        %v1437 = vadd.f32 0.0, %v1436
        %v1438 = vpop.f32.mrb[0].mxu0
        %v1439 = vpop.f32.mrb[0].mxu0
        %v1440 = vadd.f32 0.0, %v1439
        %v1441 = vpop.f32.mrb[0].mxu0
        %1442 = vmatprep.mubr.bf16.mxu0 %v1385
        %1443 = vmatmul.mubr.bf16.gmra.mrb[0].mxu0 %v1298
        %v1444 = vpop.f32.mrb[0].mxu0
        %v1445 = vadd.f32 0.0, %v1444
        %v1446 = vpop.f32.mrb[0].mxu0
        %v1447 = vpop.f32.mrb[0].mxu0
        %v1448 = vadd.f32 0.0, %v1447
        %v1449 = vpop.f32.mrb[0].mxu0
        %1450 = vmatprep.mubr.bf16.mxu0 %v1388
        %1451 = vmatmul.mubr.bf16.gmra.mrb[0].mxu0 %v1300
        %v1452 = vpop.f32.mrb[0].mxu0
        %v1453 = vadd.f32 0.0, %v1452
        %v1454 = vpop.f32.mrb[0].mxu0
        %v1455 = vpop.f32.mrb[0].mxu0
        %v1456 = vadd.f32 0.0, %v1455
        %v1457 = vpop.f32.mrb[0].mxu0
        %1458 = vdwg.mxu0
        %v1484 = vunpack.c.l.b16 %v1235
        %v1485 = vunpack.c.l.b16 %v1236
        %v1486 = vunpack.c.l.b16 %v1237
        %v1487 = vunpack.c.l.b16 %v1238
        %v1488 = vunpack.c.l.b16 %v1239
        %v1489 = vunpack.c.l.b16 %v1240
        %v1490 = vunpack.c.l.b16 %v1241
        %v1491 = vunpack.c.l.b16 %v1242
        %v1492 = vunpack.c.l.b16 %v1243
        %v1493 = vunpack.c.l.b16 %v1244
        %v1494 = vunpack.c.l.b16 %v1245
        %v1495 = vunpack.c.l.b16 %v1246
        %v1496 = vunpack.c.l.b16 %v1247
        %v1497 = vunpack.c.l.b16 %v1248
        %v1498 = vunpack.c.l.b16 %v1249
        %v1499 = vunpack.c.l.b16 %v1250
        %v1500 = vunpack.c.l.b16 %v1251
        %v1501 = vunpack.c.l.b16 %v1252
        %v1502 = vunpack.c.l.b16 %v1253
        %v1503 = vunpack.c.l.b16 %v1254
        %v1504 = vunpack.c.l.b16 %v1255
        %v1505 = vunpack.c.l.b16 %v1256
        %v1506 = vunpack.c.l.b16 %v1257
        %v1507 = vunpack.c.l.b16 %v1258
        %v1508 = vunpack.c.l.b16 %v1259
        %v1509 = vpack.c.b16 %v1485, %v1484
        %v1510 = vpack.c.b16 %v1487, %v1486
        %v1511 = vpack.c.b16 %v1489, %v1488
        %v1512 = vpack.c.b16 %v1491, %v1490
        %v1513 = vpack.c.b16 %v1493, %v1492
        %v1514 = vpack.c.b16 %v1495, %v1494
        %v1515 = vpack.c.b16 %v1497, %v1496
        %v1516 = vpack.c.b16 %v1499, %v1498
        %v1517 = vpack.c.b16 %v1501, %v1500
        %v1518 = vpack.c.b16 %v1503, %v1502
        %v1519 = vpack.c.b16 %v1505, %v1504
        %v1520 = vpack.c.b16 %v1507, %v1506
        %v1521 = vpack.c.b16 %v1508, %v1508
        %v1535 = vsel %vm1377, %v1261, 0
        %v1538 = vsel %vm1377, %v1263, 0
        %v1541 = vsel %vm1377, %v1265, 0
        %v1544 = vsel %vm1377, %v1267, 0
        %v1547 = vsel %vm1390, %v1521, 0
        %1549 = vmatprep.subr.bf16.mxu0 0
        %1550 = vmatpush1.bf16.msra.mxu0 %v1509
        %1551 = vmatprep.subr.bf16.mxu0 0
        %1552 = vmatpush1.bf16.msra.mxu0 %v1510
        %1553 = vmatprep.subr.bf16.mxu0 0
        %1554 = vmatpush1.bf16.msra.mxu0 %v1511
        %1555 = vmatprep.subr.bf16.mxu0 0
        %1556 = vmatpush1.bf16.msra.mxu0 %v1512
        %1557 = vmatprep.subr.bf16.mxu0 0
        %1558 = vmatpush1.bf16.msra.mxu0 %v1513
        %1559 = vmatprep.subr.bf16.mxu0 0
        %1560 = vmatpush1.bf16.msra.mxu0 %v1514
        %1561 = vmatprep.subr.bf16.mxu0 0
        %1562 = vmatpush1.bf16.msra.mxu0 %v1515
        %1563 = vmatprep.subr.bf16.mxu0 0
        %1564 = vmatpush1.bf16.msra.mxu0 %v1516
        %1565 = vmatprep.subr.bf16.mxu0 0
        %1566 = vmatpush1.bf16.msra.mxu0 %v1517
        %1567 = vmatprep.subr.bf16.mxu0 0
        %1568 = vmatpush1.bf16.msra.mxu0 %v1518
        %1569 = vmatprep.subr.bf16.mxu0 0
        %1570 = vmatpush1.bf16.msra.mxu0 %v1519
        %1571 = vmatprep.subr.bf16.mxu0 0
        %1572 = vmatpush1.bf16.msra.mxu0 %v1520
        %1573 = vmatprep.subr.bf16.mxu0 0
        %1574 = vmatpush1.bf16.msra.mxu0 %v1547
        %1575 = vmatprep.subr.bf16.mxu0 0
        %1576 = vmatpush1.bf16.msra.mxu0 0
        %1577 = vmatprep.subr.bf16.mxu0 0
        %1578 = vmatpush1.bf16.msra.mxu0 0
        %1579 = vmatprep.subr.bf16.mxu0 0
        %1580 = vmatpush1.bf16.msra.mxu0 0
        %1581 = vmatprep.mubr.bf16.mxu0 %v1535
        %1582 = vmatmul.mubr.bf16.gmra.mrb[0].mxu0 %v1260
        %v1583 = vpop.f32.mrb[0].mxu0
        %v1584 = vadd.f32 %v1429, %v1583
        %v1585 = vpop.f32.mrb[0].mxu0
        %v1586 = vpop.f32.mrb[0].mxu0
        %v1587 = vadd.f32 %v1432, %v1586
        %v1588 = vpop.f32.mrb[0].mxu0
        %1589 = vmatprep.mubr.bf16.mxu0 %v1538
        %1590 = vmatmul.mubr.bf16.gmra.mrb[0].mxu0 %v1262
        %v1591 = vpop.f32.mrb[0].mxu0
        %v1592 = vadd.f32 %v1437, %v1591
        %v1593 = vpop.f32.mrb[0].mxu0
        %v1594 = vpop.f32.mrb[0].mxu0
        %v1595 = vadd.f32 %v1440, %v1594
        %v1596 = vpop.f32.mrb[0].mxu0
        %1597 = vmatprep.mubr.bf16.mxu0 %v1541
        %1598 = vmatmul.mubr.bf16.gmra.mrb[0].mxu0 %v1264
        %v1599 = vpop.f32.mrb[0].mxu0
        %v1600 = vadd.f32 %v1445, %v1599
        %v1601 = vpop.f32.mrb[0].mxu0
        %v1602 = vpop.f32.mrb[0].mxu0
        %v1603 = vadd.f32 %v1448, %v1602
        %v1604 = vpop.f32.mrb[0].mxu0
        %1605 = vmatprep.mubr.bf16.mxu0 %v1544
        %1606 = vmatmul.mubr.bf16.gmra.mrb[0].mxu0 %v1266
        %v1607 = vpop.f32.mrb[0].mxu0
        %v1608 = vadd.f32 %v1453, %v1607
        %v1609 = vpop.f32.mrb[0].mxu0
        %v1610 = vpop.f32.mrb[0].mxu0
        %v1611 = vadd.f32 %v1456, %v1610
        %v1612 = vpop.f32.mrb[0].mxu0
        %1613 = vdwg.mxu0
        %s1614 = scalar_lea.vmem %s4, 200
        %v1615 = vld [vmem:[%s1614] sm:$0xf]
        %v1616 = vld [vmem:[%s1614 + $0x4] sm:$0xf]
        %v1617 = vld [vmem:[%s1614 + $0x8] sm:$0xf]
        %v1618 = vld [vmem:[%s1614 + $0xc] sm:$0xf]
        %v1619 = vld [vmem:[%s1614 + $0x10] sm:$0xf]
        %v1620 = vld [vmem:[%s1614 + $0x14] sm:$0xf]
        %v1621 = vld [vmem:[%s1614 + $0x18] sm:$0xf]
        %v1622 = vld [vmem:[%s1614 + $0x1c] sm:$0xf]
        %v1623 = vld [vmem:[%s1614 + $0x20] sm:$0xf]
        %v1624 = vld [vmem:[%s1614 + $0x24] sm:$0xf]
        %v1625 = vld [vmem:[%s1614 + $0x28] sm:$0xf]
        %v1626 = vld [vmem:[%s1614 + $0x2c] sm:$0xf]
        %v1627 = vld [vmem:[%s1614 + $0x30] sm:$0xf]
        %v1628 = vld [vmem:[%s1614 + $0x34] sm:$0xf]
        %v1629 = vld [vmem:[%s1614 + $0x38] sm:$0xf]
        %v1630 = vld [vmem:[%s1614 + $0x3c] sm:$0xf]
        %v1631 = vld [vmem:[%s1614 + $0x40] sm:$0xf]
        %v1632 = vld [vmem:[%s1614 + $0x44] sm:$0xf]
        %v1633 = vld [vmem:[%s1614 + $0x48] sm:$0xf]
        %v1634 = vld [vmem:[%s1614 + $0x4c] sm:$0xf]
        %v1635 = vld [vmem:[%s1614 + $0x50] sm:$0xf]
        %v1636 = vld [vmem:[%s1614 + $0x54] sm:$0xf]
        %v1637 = vld [vmem:[%s1614 + $0x58] sm:$0xf]
        %v1638 = vld [vmem:[%s1614 + $0x5c] sm:$0xf]
        %v1639 = vld [vmem:[%s1614 + $0x60] sm:$0xf]
        %v1640 = vpack.c.bf16 %v1121, %v1117
        %v1641 = vpack.c.bf16 %v1123, %v1119
        %v1642 = vpack.c.bf16 %v1131, %v1127
        %v1643 = vpack.c.bf16 %v1133, %v1129
        %v1644 = vpack.c.bf16 %v1141, %v1137
        %v1645 = vpack.c.bf16 %v1143, %v1139
        %v1646 = vpack.c.bf16 %v1151, %v1147
        %v1647 = vpack.c.bf16 %v1153, %v1149
        %v1673 = vunpack.c.l.b16 %v1615
        %v1674 = vunpack.c.l.b16 %v1616
        %v1675 = vunpack.c.l.b16 %v1617
        %v1676 = vunpack.c.l.b16 %v1618
        %v1677 = vunpack.c.l.b16 %v1619
        %v1678 = vunpack.c.l.b16 %v1620
        %v1679 = vunpack.c.l.b16 %v1621
        %v1680 = vunpack.c.l.b16 %v1622
        %v1681 = vunpack.c.l.b16 %v1623
        %v1682 = vunpack.c.l.b16 %v1624
        %v1683 = vunpack.c.l.b16 %v1625
        %v1684 = vunpack.c.l.b16 %v1626
        %v1685 = vunpack.c.l.b16 %v1627
        %v1686 = vunpack.c.l.b16 %v1628
        %v1687 = vunpack.c.l.b16 %v1629
        %v1688 = vunpack.c.l.b16 %v1630
        %v1689 = vunpack.c.l.b16 %v1631
        %v1690 = vunpack.c.l.b16 %v1632
        %v1691 = vunpack.c.l.b16 %v1633
        %v1692 = vunpack.c.l.b16 %v1634
        %v1693 = vunpack.c.l.b16 %v1635
        %v1694 = vunpack.c.l.b16 %v1636
        %v1695 = vunpack.c.l.b16 %v1637
        %v1696 = vunpack.c.l.b16 %v1638
        %v1697 = vunpack.c.l.b16 %v1639
        %v1698 = vpack.c.b16 %v1674, %v1673
        %v1699 = vpack.c.b16 %v1676, %v1675
        %v1700 = vpack.c.b16 %v1678, %v1677
        %v1701 = vpack.c.b16 %v1680, %v1679
        %v1702 = vpack.c.b16 %v1682, %v1681
        %v1703 = vpack.c.b16 %v1684, %v1683
        %v1704 = vpack.c.b16 %v1686, %v1685
        %v1705 = vpack.c.b16 %v1688, %v1687
        %v1706 = vpack.c.b16 %v1690, %v1689
        %v1707 = vpack.c.b16 %v1692, %v1691
        %v1708 = vpack.c.b16 %v1694, %v1693
        %v1709 = vpack.c.b16 %v1696, %v1695
        %v1710 = vpack.c.b16 %v1697, %v1697
        %v1724 = vsel %vm1377, %v1641, 0
        %v1727 = vsel %vm1377, %v1643, 0
        %v1730 = vsel %vm1377, %v1645, 0
        %v1733 = vsel %vm1377, %v1647, 0
        %v1736 = vsel %vm1390, %v1710, 0
        %1738 = vmatprep.subr.bf16.mxu0 0
        %1739 = vmatpush1.bf16.msra.mxu0 %v1698
        %1740 = vmatprep.subr.bf16.mxu0 0
        %1741 = vmatpush1.bf16.msra.mxu0 %v1699
        %1742 = vmatprep.subr.bf16.mxu0 0
        %1743 = vmatpush1.bf16.msra.mxu0 %v1700
        %1744 = vmatprep.subr.bf16.mxu0 0
        %1745 = vmatpush1.bf16.msra.mxu0 %v1701
        %1746 = vmatprep.subr.bf16.mxu0 0
        %1747 = vmatpush1.bf16.msra.mxu0 %v1702
        %1748 = vmatprep.subr.bf16.mxu0 0
        %1749 = vmatpush1.bf16.msra.mxu0 %v1703
        %1750 = vmatprep.subr.bf16.mxu0 0
        %1751 = vmatpush1.bf16.msra.mxu0 %v1704
        %1752 = vmatprep.subr.bf16.mxu0 0
        %1753 = vmatpush1.bf16.msra.mxu0 %v1705
        %1754 = vmatprep.subr.bf16.mxu0 0
        %1755 = vmatpush1.bf16.msra.mxu0 %v1706
        %1756 = vmatprep.subr.bf16.mxu0 0
        %1757 = vmatpush1.bf16.msra.mxu0 %v1707
        %1758 = vmatprep.subr.bf16.mxu0 0
        %1759 = vmatpush1.bf16.msra.mxu0 %v1708
        %1760 = vmatprep.subr.bf16.mxu0 0
        %1761 = vmatpush1.bf16.msra.mxu0 %v1709
        %1762 = vmatprep.subr.bf16.mxu0 0
        %1763 = vmatpush1.bf16.msra.mxu0 %v1736
        %1764 = vmatprep.subr.bf16.mxu0 0
        %1765 = vmatpush1.bf16.msra.mxu0 0
        %1766 = vmatprep.subr.bf16.mxu0 0
        %1767 = vmatpush1.bf16.msra.mxu0 0
        %1768 = vmatprep.subr.bf16.mxu0 0
        %1769 = vmatpush1.bf16.msra.mxu0 0
        %1770 = vmatprep.mubr.bf16.mxu0 %v1724
        %1771 = vmatmul.mubr.bf16.gmra.mrb[0].mxu0 %v1640
        %v1772 = vpop.f32.mrb[0].mxu0
        %v1773 = vadd.f32 0.0, %v1772
        %v1774 = vpop.f32.mrb[0].mxu0
        %v1775 = vpop.f32.mrb[0].mxu0
        %v1776 = vadd.f32 0.0, %v1775
        %v1777 = vpop.f32.mrb[0].mxu0
        %1778 = vmatprep.mubr.bf16.mxu0 %v1727
        %1779 = vmatmul.mubr.bf16.gmra.mrb[0].mxu0 %v1642
        %v1780 = vpop.f32.mrb[0].mxu0
        %v1781 = vadd.f32 0.0, %v1780
        %v1782 = vpop.f32.mrb[0].mxu0
        %v1783 = vpop.f32.mrb[0].mxu0
        %v1784 = vadd.f32 0.0, %v1783
        %v1785 = vpop.f32.mrb[0].mxu0
        %1786 = vmatprep.mubr.bf16.mxu0 %v1730
        %1787 = vmatmul.mubr.bf16.gmra.mrb[0].mxu0 %v1644
        %v1788 = vpop.f32.mrb[0].mxu0
        %v1789 = vadd.f32 0.0, %v1788
        %v1790 = vpop.f32.mrb[0].mxu0
        %v1791 = vpop.f32.mrb[0].mxu0
        %v1792 = vadd.f32 0.0, %v1791
        %v1793 = vpop.f32.mrb[0].mxu0
        %1794 = vmatprep.mubr.bf16.mxu0 %v1733
        %1795 = vmatmul.mubr.bf16.gmra.mrb[0].mxu0 %v1646
        %v1796 = vpop.f32.mrb[0].mxu0
        %v1797 = vadd.f32 0.0, %v1796
        %v1798 = vpop.f32.mrb[0].mxu0
        %v1799 = vpop.f32.mrb[0].mxu0
        %v1800 = vadd.f32 0.0, %v1799
        %v1801 = vpop.f32.mrb[0].mxu0
        %1802 = vdwg.mxu0
        %v1803 = vadd.f32 %v1584, %v1773
        %v1804 = vadd.f32 %v1587, %v1776
        %v1805 = vadd.f32 %v1592, %v1781
        %v1806 = vadd.f32 %v1595, %v1784
        %v1807 = vadd.f32 %v1600, %v1789
        %v1808 = vadd.f32 %v1603, %v1792
        %v1809 = vadd.f32 %v1608, %v1797
        %v1810 = vadd.f32 %v1611, %v1800
        %s1811 = scalar_lea.vmem %s4, 300
        %v1812 = vld [vmem:[%s1811] sm:$0xf]
        %v1813 = vld [vmem:[%s1811 + $0x4] sm:$0xf]
        %v1814 = vld [vmem:[%s1811 + $0x8] sm:$0xf]
        %v1815 = vld [vmem:[%s1811 + $0xc] sm:$0xf]
        %v1816 = vld [vmem:[%s1811 + $0x10] sm:$0xf]
        %v1817 = vld [vmem:[%s1811 + $0x14] sm:$0xf]
        %v1818 = vld [vmem:[%s1811 + $0x18] sm:$0xf]
        %v1819 = vld [vmem:[%s1811 + $0x1c] sm:$0xf]
        %v1820 = vld [vmem:[%s1811 + $0x20] sm:$0xf]
        %v1821 = vld [vmem:[%s1811 + $0x24] sm:$0xf]
        %v1822 = vld [vmem:[%s1811 + $0x28] sm:$0xf]
        %v1823 = vld [vmem:[%s1811 + $0x2c] sm:$0xf]
        %v1824 = vld [vmem:[%s1811 + $0x30] sm:$0xf]
        %v1825 = vld [vmem:[%s1811 + $0x34] sm:$0xf]
        %v1826 = vld [vmem:[%s1811 + $0x38] sm:$0xf]
        %v1827 = vld [vmem:[%s1811 + $0x3c] sm:$0xf]
        %v1828 = vld [vmem:[%s1811 + $0x40] sm:$0xf]
        %v1829 = vld [vmem:[%s1811 + $0x44] sm:$0xf]
        %v1830 = vld [vmem:[%s1811 + $0x48] sm:$0xf]
        %v1831 = vld [vmem:[%s1811 + $0x4c] sm:$0xf]
        %v1832 = vld [vmem:[%s1811 + $0x50] sm:$0xf]
        %v1833 = vld [vmem:[%s1811 + $0x54] sm:$0xf]
        %v1834 = vld [vmem:[%s1811 + $0x58] sm:$0xf]
        %v1835 = vld [vmem:[%s1811 + $0x5c] sm:$0xf]
        %v1836 = vld [vmem:[%s1811 + $0x60] sm:$0xf]
        %v1837 = vpack.c.bf16 %v1161, %v1157
        %v1838 = vpack.c.bf16 %v1163, %v1159
        %v1839 = vpack.c.bf16 %v1171, %v1167
        %v1840 = vpack.c.bf16 %v1173, %v1169
        %v1841 = vpack.c.bf16 %v1181, %v1177
        %v1842 = vpack.c.bf16 %v1183, %v1179
        %v1843 = vpack.c.bf16 %v1191, %v1187
        %v1844 = vpack.c.bf16 %v1193, %v1189
        %v1870 = vunpack.c.l.b16 %v1812
        %v1871 = vunpack.c.l.b16 %v1813
        %v1872 = vunpack.c.l.b16 %v1814
        %v1873 = vunpack.c.l.b16 %v1815
        %v1874 = vunpack.c.l.b16 %v1816
        %v1875 = vunpack.c.l.b16 %v1817
        %v1876 = vunpack.c.l.b16 %v1818
        %v1877 = vunpack.c.l.b16 %v1819
        %v1878 = vunpack.c.l.b16 %v1820
        %v1879 = vunpack.c.l.b16 %v1821
        %v1880 = vunpack.c.l.b16 %v1822
        %v1881 = vunpack.c.l.b16 %v1823
        %v1882 = vunpack.c.l.b16 %v1824
        %v1883 = vunpack.c.l.b16 %v1825
        %v1884 = vunpack.c.l.b16 %v1826
        %v1885 = vunpack.c.l.b16 %v1827
        %v1886 = vunpack.c.l.b16 %v1828
        %v1887 = vunpack.c.l.b16 %v1829
        %v1888 = vunpack.c.l.b16 %v1830
        %v1889 = vunpack.c.l.b16 %v1831
        %v1890 = vunpack.c.l.b16 %v1832
        %v1891 = vunpack.c.l.b16 %v1833
        %v1892 = vunpack.c.l.b16 %v1834
        %v1893 = vunpack.c.l.b16 %v1835
        %v1894 = vunpack.c.l.b16 %v1836
        %v1895 = vpack.c.b16 %v1871, %v1870
        %v1896 = vpack.c.b16 %v1873, %v1872
        %v1897 = vpack.c.b16 %v1875, %v1874
        %v1898 = vpack.c.b16 %v1877, %v1876
        %v1899 = vpack.c.b16 %v1879, %v1878
        %v1900 = vpack.c.b16 %v1881, %v1880
        %v1901 = vpack.c.b16 %v1883, %v1882
        %v1902 = vpack.c.b16 %v1885, %v1884
        %v1903 = vpack.c.b16 %v1887, %v1886
        %v1904 = vpack.c.b16 %v1889, %v1888
        %v1905 = vpack.c.b16 %v1891, %v1890
        %v1906 = vpack.c.b16 %v1893, %v1892
        %v1907 = vpack.c.b16 %v1894, %v1894
        %v1921 = vsel %vm1377, %v1838, 0
        %v1924 = vsel %vm1377, %v1840, 0
        %v1927 = vsel %vm1377, %v1842, 0
        %v1930 = vsel %vm1377, %v1844, 0
        %v1933 = vsel %vm1390, %v1907, 0
        %1935 = vmatprep.subr.bf16.mxu0 0
        %1936 = vmatpush1.bf16.msra.mxu0 %v1895
        %1937 = vmatprep.subr.bf16.mxu0 0
        %1938 = vmatpush1.bf16.msra.mxu0 %v1896
        %1939 = vmatprep.subr.bf16.mxu0 0
        %1940 = vmatpush1.bf16.msra.mxu0 %v1897
        %1941 = vmatprep.subr.bf16.mxu0 0
        %1942 = vmatpush1.bf16.msra.mxu0 %v1898
        %1943 = vmatprep.subr.bf16.mxu0 0
        %1944 = vmatpush1.bf16.msra.mxu0 %v1899
        %1945 = vmatprep.subr.bf16.mxu0 0
        %1946 = vmatpush1.bf16.msra.mxu0 %v1900
        %1947 = vmatprep.subr.bf16.mxu0 0
        %1948 = vmatpush1.bf16.msra.mxu0 %v1901
        %1949 = vmatprep.subr.bf16.mxu0 0
        %1950 = vmatpush1.bf16.msra.mxu0 %v1902
        %1951 = vmatprep.subr.bf16.mxu0 0
        %1952 = vmatpush1.bf16.msra.mxu0 %v1903
        %1953 = vmatprep.subr.bf16.mxu0 0
        %1954 = vmatpush1.bf16.msra.mxu0 %v1904
        %1955 = vmatprep.subr.bf16.mxu0 0
        %1956 = vmatpush1.bf16.msra.mxu0 %v1905
        %1957 = vmatprep.subr.bf16.mxu0 0
        %1958 = vmatpush1.bf16.msra.mxu0 %v1906
        %1959 = vmatprep.subr.bf16.mxu0 0
        %1960 = vmatpush1.bf16.msra.mxu0 %v1933
        %1961 = vmatprep.subr.bf16.mxu0 0
        %1962 = vmatpush1.bf16.msra.mxu0 0
        %1963 = vmatprep.subr.bf16.mxu0 0
        %1964 = vmatpush1.bf16.msra.mxu0 0
        %1965 = vmatprep.subr.bf16.mxu0 0
        %1966 = vmatpush1.bf16.msra.mxu0 0
        %1967 = vmatprep.mubr.bf16.mxu0 %v1921
        %1968 = vmatmul.mubr.bf16.gmra.mrb[0].mxu0 %v1837
        %v1969 = vpop.f32.mrb[0].mxu0
        %v1970 = vadd.f32 0.0, %v1969
        %v1971 = vpop.f32.mrb[0].mxu0
        %v1972 = vpop.f32.mrb[0].mxu0
        %v1973 = vadd.f32 0.0, %v1972
        %v1974 = vpop.f32.mrb[0].mxu0
        %1975 = vmatprep.mubr.bf16.mxu0 %v1924
        %1976 = vmatmul.mubr.bf16.gmra.mrb[0].mxu0 %v1839
        %v1977 = vpop.f32.mrb[0].mxu0
        %v1978 = vadd.f32 0.0, %v1977
        %v1979 = vpop.f32.mrb[0].mxu0
        %v1980 = vpop.f32.mrb[0].mxu0
        %v1981 = vadd.f32 0.0, %v1980
        %v1982 = vpop.f32.mrb[0].mxu0
        %1983 = vmatprep.mubr.bf16.mxu0 %v1927
        %1984 = vmatmul.mubr.bf16.gmra.mrb[0].mxu0 %v1841
        %v1985 = vpop.f32.mrb[0].mxu0
        %v1986 = vadd.f32 0.0, %v1985
        %v1987 = vpop.f32.mrb[0].mxu0
        %v1988 = vpop.f32.mrb[0].mxu0
        %v1989 = vadd.f32 0.0, %v1988
        %v1990 = vpop.f32.mrb[0].mxu0
        %1991 = vmatprep.mubr.bf16.mxu0 %v1930
        %1992 = vmatmul.mubr.bf16.gmra.mrb[0].mxu0 %v1843
        %v1993 = vpop.f32.mrb[0].mxu0
        %v1994 = vadd.f32 0.0, %v1993
        %v1995 = vpop.f32.mrb[0].mxu0
        %v1996 = vpop.f32.mrb[0].mxu0
        %v1997 = vadd.f32 0.0, %v1996
        %v1998 = vpop.f32.mrb[0].mxu0
        %1999 = vdwg.mxu0
        %v2000 = vadd.f32 %v1803, %v1970
        %v2001 = vadd.f32 %v1804, %v1973
        %v2002 = vadd.f32 %v1805, %v1978
        %v2003 = vadd.f32 %v1806, %v1981
        %v2004 = vadd.f32 %v1807, %v1986
        %v2005 = vadd.f32 %v1808, %v1989
        %v2006 = vadd.f32 %v1809, %v1994
        %v2007 = vadd.f32 %v1810, %v1997
        %s2008 = scalar_lea.vmem %s4, 400
        %v2009 = vld [vmem:[%s2008] sm:$0xf]
        %v2010 = vld [vmem:[%s2008 + $0x4] sm:$0xf]
        %v2011 = vld [vmem:[%s2008 + $0x8] sm:$0xf]
        %v2012 = vld [vmem:[%s2008 + $0xc] sm:$0xf]
        %v2013 = vld [vmem:[%s2008 + $0x10] sm:$0xf]
        %v2014 = vld [vmem:[%s2008 + $0x14] sm:$0xf]
        %v2015 = vld [vmem:[%s2008 + $0x18] sm:$0xf]
        %v2016 = vld [vmem:[%s2008 + $0x1c] sm:$0xf]
        %v2017 = vld [vmem:[%s2008 + $0x20] sm:$0xf]
        %v2018 = vld [vmem:[%s2008 + $0x24] sm:$0xf]
        %v2019 = vld [vmem:[%s2008 + $0x28] sm:$0xf]
        %v2020 = vld [vmem:[%s2008 + $0x2c] sm:$0xf]
        %v2021 = vld [vmem:[%s2008 + $0x30] sm:$0xf]
        %v2022 = vld [vmem:[%s2008 + $0x34] sm:$0xf]
        %v2023 = vld [vmem:[%s2008 + $0x38] sm:$0xf]
        %v2024 = vld [vmem:[%s2008 + $0x3c] sm:$0xf]
        %v2025 = vld [vmem:[%s2008 + $0x40] sm:$0xf]
        %v2026 = vld [vmem:[%s2008 + $0x44] sm:$0xf]
        %v2027 = vld [vmem:[%s2008 + $0x48] sm:$0xf]
        %v2028 = vld [vmem:[%s2008 + $0x4c] sm:$0xf]
        %v2029 = vld [vmem:[%s2008 + $0x50] sm:$0xf]
        %v2030 = vld [vmem:[%s2008 + $0x54] sm:$0xf]
        %v2031 = vld [vmem:[%s2008 + $0x58] sm:$0xf]
        %v2032 = vld [vmem:[%s2008 + $0x5c] sm:$0xf]
        %v2033 = vld [vmem:[%s2008 + $0x60] sm:$0xf]
        %v2034 = vpack.c.bf16 %v1201, %v1197
        %v2035 = vpack.c.bf16 %v1203, %v1199
        %v2036 = vpack.c.bf16 %v1211, %v1207
        %v2037 = vpack.c.bf16 %v1213, %v1209
        %v2038 = vpack.c.bf16 %v1221, %v1217
        %v2039 = vpack.c.bf16 %v1223, %v1219
        %v2040 = vpack.c.bf16 %v1231, %v1227
        %v2041 = vpack.c.bf16 %v1233, %v1229
        %v2067 = vunpack.c.l.b16 %v2009
        %v2068 = vunpack.c.l.b16 %v2010
        %v2069 = vunpack.c.l.b16 %v2011
        %v2070 = vunpack.c.l.b16 %v2012
        %v2071 = vunpack.c.l.b16 %v2013
        %v2072 = vunpack.c.l.b16 %v2014
        %v2073 = vunpack.c.l.b16 %v2015
        %v2074 = vunpack.c.l.b16 %v2016
        %v2075 = vunpack.c.l.b16 %v2017
        %v2076 = vunpack.c.l.b16 %v2018
        %v2077 = vunpack.c.l.b16 %v2019
        %v2078 = vunpack.c.l.b16 %v2020
        %v2079 = vunpack.c.l.b16 %v2021
        %v2080 = vunpack.c.l.b16 %v2022
        %v2081 = vunpack.c.l.b16 %v2023
        %v2082 = vunpack.c.l.b16 %v2024
        %v2083 = vunpack.c.l.b16 %v2025
        %v2084 = vunpack.c.l.b16 %v2026
        %v2085 = vunpack.c.l.b16 %v2027
        %v2086 = vunpack.c.l.b16 %v2028
        %v2087 = vunpack.c.l.b16 %v2029
        %v2088 = vunpack.c.l.b16 %v2030
        %v2089 = vunpack.c.l.b16 %v2031
        %v2090 = vunpack.c.l.b16 %v2032
        %v2091 = vunpack.c.l.b16 %v2033
        %v2092 = vpack.c.b16 %v2068, %v2067
        %v2093 = vpack.c.b16 %v2070, %v2069
        %v2094 = vpack.c.b16 %v2072, %v2071
        %v2095 = vpack.c.b16 %v2074, %v2073
        %v2096 = vpack.c.b16 %v2076, %v2075
        %v2097 = vpack.c.b16 %v2078, %v2077
        %v2098 = vpack.c.b16 %v2080, %v2079
        %v2099 = vpack.c.b16 %v2082, %v2081
        %v2100 = vpack.c.b16 %v2084, %v2083
        %v2101 = vpack.c.b16 %v2086, %v2085
        %v2102 = vpack.c.b16 %v2088, %v2087
        %v2103 = vpack.c.b16 %v2090, %v2089
        %v2104 = vpack.c.b16 %v2091, %v2091
        %v2118 = vsel %vm1377, %v2035, 0
        %v2121 = vsel %vm1377, %v2037, 0
        %v2124 = vsel %vm1377, %v2039, 0
        %v2127 = vsel %vm1377, %v2041, 0
        %v2130 = vsel %vm1390, %v2104, 0
        %2132 = vmatprep.subr.bf16.mxu0 0
        %2133 = vmatpush1.bf16.msra.mxu0 %v2092
        %2134 = vmatprep.subr.bf16.mxu0 0
        %2135 = vmatpush1.bf16.msra.mxu0 %v2093
        %2136 = vmatprep.subr.bf16.mxu0 0
        %2137 = vmatpush1.bf16.msra.mxu0 %v2094
        %2138 = vmatprep.subr.bf16.mxu0 0
        %2139 = vmatpush1.bf16.msra.mxu0 %v2095
        %2140 = vmatprep.subr.bf16.mxu0 0
        %2141 = vmatpush1.bf16.msra.mxu0 %v2096
        %2142 = vmatprep.subr.bf16.mxu0 0
        %2143 = vmatpush1.bf16.msra.mxu0 %v2097
        %2144 = vmatprep.subr.bf16.mxu0 0
        %2145 = vmatpush1.bf16.msra.mxu0 %v2098
        %2146 = vmatprep.subr.bf16.mxu0 0
        %2147 = vmatpush1.bf16.msra.mxu0 %v2099
        %2148 = vmatprep.subr.bf16.mxu0 0
        %2149 = vmatpush1.bf16.msra.mxu0 %v2100
        %2150 = vmatprep.subr.bf16.mxu0 0
        %2151 = vmatpush1.bf16.msra.mxu0 %v2101
        %2152 = vmatprep.subr.bf16.mxu0 0
        %2153 = vmatpush1.bf16.msra.mxu0 %v2102
        %2154 = vmatprep.subr.bf16.mxu0 0
        %2155 = vmatpush1.bf16.msra.mxu0 %v2103
        %2156 = vmatprep.subr.bf16.mxu0 0
        %2157 = vmatpush1.bf16.msra.mxu0 %v2130
        %2158 = vmatprep.subr.bf16.mxu0 0
        %2159 = vmatpush1.bf16.msra.mxu0 0
        %2160 = vmatprep.subr.bf16.mxu0 0
        %2161 = vmatpush1.bf16.msra.mxu0 0
        %2162 = vmatprep.subr.bf16.mxu0 0
        %2163 = vmatpush1.bf16.msra.mxu0 0
        %2164 = vmatprep.mubr.bf16.mxu0 %v2118
        %2165 = vmatmul.mubr.bf16.gmra.mrb[0].mxu0 %v2034
        %v2166 = vpop.f32.mrb[0].mxu0
        %v2167 = vadd.f32 0.0, %v2166
        %v2168 = vpop.f32.mrb[0].mxu0
        %v2169 = vpop.f32.mrb[0].mxu0
        %v2170 = vadd.f32 0.0, %v2169
        %v2171 = vpop.f32.mrb[0].mxu0
        %2172 = vmatprep.mubr.bf16.mxu0 %v2121
        %2173 = vmatmul.mubr.bf16.gmra.mrb[0].mxu0 %v2036
        %v2174 = vpop.f32.mrb[0].mxu0
        %v2175 = vadd.f32 0.0, %v2174
        %v2176 = vpop.f32.mrb[0].mxu0
        %v2177 = vpop.f32.mrb[0].mxu0
        %v2178 = vadd.f32 0.0, %v2177
        %v2179 = vpop.f32.mrb[0].mxu0
        %2180 = vmatprep.mubr.bf16.mxu0 %v2124
        %2181 = vmatmul.mubr.bf16.gmra.mrb[0].mxu0 %v2038
        %v2182 = vpop.f32.mrb[0].mxu0
        %v2183 = vadd.f32 0.0, %v2182
        %v2184 = vpop.f32.mrb[0].mxu0
        %v2185 = vpop.f32.mrb[0].mxu0
        %v2186 = vadd.f32 0.0, %v2185
        %v2187 = vpop.f32.mrb[0].mxu0
        %2188 = vmatprep.mubr.bf16.mxu0 %v2127
        %2189 = vmatmul.mubr.bf16.gmra.mrb[0].mxu0 %v2040
        %v2190 = vpop.f32.mrb[0].mxu0
        %v2191 = vadd.f32 0.0, %v2190
        %v2192 = vpop.f32.mrb[0].mxu0
        %v2193 = vpop.f32.mrb[0].mxu0
        %v2194 = vadd.f32 0.0, %v2193
        %v2195 = vpop.f32.mrb[0].mxu0
        %2196 = vdwg.mxu0
        %v2197 = vadd.f32 %v2000, %v2167
        %v2198 = vadd.f32 %v2001, %v2170
        %v2199 = vadd.f32 %v2002, %v2175
        %v2200 = vadd.f32 %v2003, %v2178
        %v2201 = vadd.f32 %v2004, %v2183
        %v2202 = vadd.f32 %v2005, %v2186
        %v2203 = vadd.f32 %v2006, %v2191
        %v2204 = vadd.f32 %v2007, %v2194
        %v2205 = vld [vmem:[%s5] sm:$0xff]
        %v2206 = vld [vmem:[%s5 + $0x8] sm:$0xff]
        %v2207 = vld [vmem:[%s5 + $0x10] sm:$0xff]
        %v2208 = vld [vmem:[%s5 + $0x18] sm:$0xff]
        %v2209 = vld [vmem:[%s5 + $0x20] sm:$0xff]
        %v2210 = vld [vmem:[%s5 + $0x28] sm:$0xff]
        %v2211 = vld [vmem:[%s5 + $0x30] sm:$0xff]
        %v2212 = vld [vmem:[%s5 + $0x38] sm:$0xff]
        %2214 = vset.pattern.permute.xlu0 0
        %2215 = vperm.xlu0 %2214, %v2205
        %v2216 = vpop.permute.xlu0 %2215
        %2219 = vset.pattern.permute.xlu0 0
        %2220 = vperm.xlu0 %2219, %v2206
        %v2221 = vpop.permute.xlu0 %2220
        %2224 = vset.pattern.permute.xlu0 0
        %2225 = vperm.xlu0 %2224, %v2207
        %v2226 = vpop.permute.xlu0 %2225
        %2229 = vset.pattern.permute.xlu0 0
        %2230 = vperm.xlu0 %2229, %v2208
        %v2231 = vpop.permute.xlu0 %2230
        %2234 = vset.pattern.permute.xlu0 0
        %2235 = vperm.xlu0 %2234, %v2209
        %v2236 = vpop.permute.xlu0 %2235
        %2239 = vset.pattern.permute.xlu0 0
        %2240 = vperm.xlu0 %2239, %v2210
        %v2241 = vpop.permute.xlu0 %2240
        %2244 = vset.pattern.permute.xlu0 0
        %2245 = vperm.xlu0 %2244, %v2211
        %v2246 = vpop.permute.xlu0 %2245
        %2249 = vset.pattern.permute.xlu0 0
        %2250 = vperm.xlu0 %2249, %v2212
        %v2251 = vpop.permute.xlu0 %2250
        %v2253 = vadd.f32 %v2197, %v2216
        %v2254 = vadd.f32 %v2198, %v2221
        %v2255 = vadd.f32 %v2199, %v2226
        %v2256 = vadd.f32 %v2200, %v2231
        %v2257 = vadd.f32 %v2201, %v2236
        %v2258 = vadd.f32 %v2202, %v2241
        %v2259 = vadd.f32 %v2203, %v2246
        %v2260 = vadd.f32 %v2204, %v2251
        %vm2261 = vcmp.gt.f32.partialorder %v2253, 0.0
        %vm2262 = vcmp.gt.f32.partialorder %v2254, 0.0
        %vm2263 = vcmp.gt.f32.partialorder %v2255, 0.0
        %vm2264 = vcmp.gt.f32.partialorder %v2256, 0.0
        %vm2265 = vcmp.gt.f32.partialorder %v2257, 0.0
        %vm2266 = vcmp.gt.f32.partialorder %v2258, 0.0
        %vm2267 = vcmp.gt.f32.partialorder %v2259, 0.0
        %vm2268 = vcmp.gt.f32.partialorder %v2260, 0.0
        %v2269 = vmin.f32 %v2253, 0.0
        %v2270 = vmin.f32 %v2254, 0.0
        %v2271 = vmin.f32 %v2255, 0.0
        %v2272 = vmin.f32 %v2256, 0.0
        %v2273 = vmin.f32 %v2257, 0.0
        %v2274 = vmin.f32 %v2258, 0.0
        %v2275 = vmin.f32 %v2259, 0.0
        %v2276 = vmin.f32 %v2260, 0.0
        %v2277 = vmul.f32 %v2269, 1.442695
        %v2278 = vpow.pop %v2277
        %v2279 = vmul.f32 %v2270, 1.442695
        %v2280 = vpow.pop %v2279
        %v2281 = vmul.f32 %v2271, 1.442695
        %v2282 = vpow.pop %v2281
        %v2283 = vmul.f32 %v2272, 1.442695
        %v2284 = vpow.pop %v2283
        %v2285 = vmul.f32 %v2273, 1.442695
        %v2286 = vpow.pop %v2285
        %v2287 = vmul.f32 %v2274, 1.442695
        %v2288 = vpow.pop %v2287
        %v2289 = vmul.f32 %v2275, 1.442695
        %v2290 = vpow.pop %v2289
        %v2291 = vmul.f32 %v2276, 1.442695
        %v2292 = vpow.pop %v2291
        %v2293 = vsub.f32 %v2278, 1.0
        %v2294 = vsub.f32 %v2280, 1.0
        %v2295 = vsub.f32 %v2282, 1.0
        %v2296 = vsub.f32 %v2284, 1.0
        %v2297 = vsub.f32 %v2286, 1.0
        %v2298 = vsub.f32 %v2288, 1.0
        %v2299 = vsub.f32 %v2290, 1.0
        %v2300 = vsub.f32 %v2292, 1.0
        %v2301 = vsel %vm2261, %v2253, %v2293
        %v2302 = vsel %vm2262, %v2254, %v2294
        %v2303 = vsel %vm2263, %v2255, %v2295
        %v2304 = vsel %vm2264, %v2256, %v2296
        %v2305 = vsel %vm2265, %v2257, %v2297
        %v2306 = vsel %vm2266, %v2258, %v2298
        %v2307 = vsel %vm2267, %v2259, %v2299
        %v2308 = vsel %vm2268, %v2260, %v2300
        %v2309 = vpack.c.bf16 %v2302, %v2301
        %v2310 = vpack.c.bf16 %v2304, %v2303
        %v2311 = vpack.c.bf16 %v2306, %v2305
        %v2312 = vpack.c.bf16 %v2308, %v2307
        %v2313 = vld [vmem:[%s6] sm:$0xf]
        %v2314 = vld [vmem:[%s6 + $0x4] sm:$0xf]
        %v2315 = vld [vmem:[%s6 + $0x8] sm:$0xf]
        %v2316 = vld [vmem:[%s6 + $0xc] sm:$0xf]
        %v2317 = vld [vmem:[%s6 + $0x10] sm:$0xf]
        %v2318 = vld [vmem:[%s6 + $0x14] sm:$0xf]
        %v2319 = vld [vmem:[%s6 + $0x18] sm:$0xf]
        %v2320 = vld [vmem:[%s6 + $0x1c] sm:$0xf]
        %v2321 = vld [vmem:[%s6 + $0x20] sm:$0xf]
        %v2322 = vld [vmem:[%s6 + $0x24] sm:$0xf]
        %v2323 = vld [vmem:[%s6 + $0x28] sm:$0xf]
        %v2324 = vld [vmem:[%s6 + $0x2c] sm:$0xf]
        %v2337 = vunpack.c.l.b16 %v2313
        %v2338 = vunpack.c.l.b16 %v2314
        %v2339 = vunpack.c.l.b16 %v2315
        %v2340 = vunpack.c.l.b16 %v2316
        %v2341 = vunpack.c.l.b16 %v2317
        %v2342 = vunpack.c.l.b16 %v2318
        %v2343 = vunpack.c.l.b16 %v2319
        %v2344 = vunpack.c.l.b16 %v2320
        %v2345 = vunpack.c.l.b16 %v2321
        %v2346 = vunpack.c.l.b16 %v2322
        %v2347 = vunpack.c.l.b16 %v2323
        %v2348 = vunpack.c.l.b16 %v2324
        %v2349 = vpack.c.b16 %v2338, %v2337
        %v2350 = vpack.c.b16 %v2340, %v2339
        %v2351 = vpack.c.b16 %v2342, %v2341
        %v2352 = vpack.c.b16 %v2344, %v2343
        %v2353 = vpack.c.b16 %v2346, %v2345
        %v2354 = vpack.c.b16 %v2348, %v2347
        %vm2355 = vcmask 523264
        %v2357 = vsel %vm2355, %v2349, 0
        %v2360 = vsel %vm2355, %v2350, 0
        %v2363 = vsel %vm2355, %v2351, 0
        %v2366 = vsel %vm2355, %v2352, 0
        %v2369 = vsel %vm2355, %v2353, 0
        %v2372 = vsel %vm2355, %v2354, 0
        %2374 = vmatprep.subr.bf16.mxu0 0
        %2375 = vmatpush1.bf16.msra.mxu0 %v2309
        %2376 = vmatprep.subr.bf16.mxu0 0
        %2377 = vmatpush1.bf16.msra.mxu0 %v2310
        %2378 = vmatprep.subr.bf16.mxu0 0
        %2379 = vmatpush1.bf16.msra.mxu0 %v2311
        %2380 = vmatprep.subr.bf16.mxu0 0
        %2381 = vmatpush1.bf16.msra.mxu0 %v2312
        %2382 = vmatprep.subr.bf16.mxu0 0
        %2383 = vmatpush1.bf16.msra.mxu0 0
        %2384 = vmatprep.subr.bf16.mxu0 0
        %2385 = vmatpush1.bf16.msra.mxu0 0
        %2386 = vmatprep.subr.bf16.mxu0 0
        %2387 = vmatpush1.bf16.msra.mxu0 0
        %2388 = vmatprep.subr.bf16.mxu0 0
        %2389 = vmatpush1.bf16.msra.mxu0 0
        %2390 = vmatprep.subr.bf16.mxu0 0
        %2391 = vmatpush1.bf16.msra.mxu0 0
        %2392 = vmatprep.subr.bf16.mxu0 0
        %2393 = vmatpush1.bf16.msra.mxu0 0
        %2394 = vmatprep.subr.bf16.mxu0 0
        %2395 = vmatpush1.bf16.msra.mxu0 0
        %2396 = vmatprep.subr.bf16.mxu0 0
        %2397 = vmatpush1.bf16.msra.mxu0 0
        %2398 = vmatprep.subr.bf16.mxu0 0
        %2399 = vmatpush1.bf16.msra.mxu0 0
        %2400 = vmatprep.subr.bf16.mxu0 0
        %2401 = vmatpush1.bf16.msra.mxu0 0
        %2402 = vmatprep.subr.bf16.mxu0 0
        %2403 = vmatpush1.bf16.msra.mxu0 0
        %2404 = vmatprep.subr.bf16.mxu0 0
        %2405 = vmatpush1.bf16.msra.mxu0 0
        %2406 = vmatprep.mubr.bf16.mxu0 0
        %2407 = vmatmul.mubr.bf16.gmra.mrb[0].mxu0 %v2357
        %v2408 = vpop.f32.mrb[0].mxu0
        %v2409 = vadd.f32 0.0, %v2408
        %v2410 = vpop.f32.mrb[0].mxu0
        %v2411 = vpop.f32.mrb[0].mxu0
        %v2412 = vadd.f32 0.0, %v2411
        %v2413 = vpop.f32.mrb[0].mxu0
        %2414 = vmatprep.mubr.bf16.mxu0 0
        %2415 = vmatmul.mubr.bf16.gmra.mrb[0].mxu0 %v2360
        %v2416 = vpop.f32.mrb[0].mxu0
        %v2417 = vadd.f32 0.0, %v2416
        %v2418 = vpop.f32.mrb[0].mxu0
        %v2419 = vpop.f32.mrb[0].mxu0
        %v2420 = vadd.f32 0.0, %v2419
        %v2421 = vpop.f32.mrb[0].mxu0
        %2422 = vmatprep.mubr.bf16.mxu0 0
        %2423 = vmatmul.mubr.bf16.gmra.mrb[0].mxu0 %v2363
        %v2424 = vpop.f32.mrb[0].mxu0
        %v2425 = vadd.f32 0.0, %v2424
        %v2426 = vpop.f32.mrb[0].mxu0
        %v2427 = vpop.f32.mrb[0].mxu0
        %v2428 = vadd.f32 0.0, %v2427
        %v2429 = vpop.f32.mrb[0].mxu0
        %2430 = vmatprep.mubr.bf16.mxu0 0
        %2431 = vmatmul.mubr.bf16.gmra.mrb[0].mxu0 %v2366
        %v2432 = vpop.f32.mrb[0].mxu0
        %v2433 = vadd.f32 0.0, %v2432
        %v2434 = vpop.f32.mrb[0].mxu0
        %v2435 = vpop.f32.mrb[0].mxu0
        %v2436 = vadd.f32 0.0, %v2435
        %v2437 = vpop.f32.mrb[0].mxu0
        %2438 = vmatprep.mubr.bf16.mxu0 0
        %2439 = vmatmul.mubr.bf16.gmra.mrb[0].mxu0 %v2369
        %v2440 = vpop.f32.mrb[0].mxu0
        %v2441 = vadd.f32 0.0, %v2440
        %v2442 = vpop.f32.mrb[0].mxu0
        %v2443 = vpop.f32.mrb[0].mxu0
        %v2444 = vadd.f32 0.0, %v2443
        %v2445 = vpop.f32.mrb[0].mxu0
        %2446 = vmatprep.mubr.bf16.mxu0 0
        %2447 = vmatmul.mubr.bf16.gmra.mrb[0].mxu0 %v2372
        %v2448 = vpop.f32.mrb[0].mxu0
        %v2449 = vadd.f32 0.0, %v2448
        %v2450 = vpop.f32.mrb[0].mxu0
        %v2451 = vpop.f32.mrb[0].mxu0
        %v2452 = vadd.f32 0.0, %v2451
        %v2453 = vpop.f32.mrb[0].mxu0
        %2454 = vdwg.mxu0
        %v2455 = vld [vmem:[%s7] sm:$0xf]
        %v2456 = vld [vmem:[%s7 + $0x4] sm:$0xf]
        %v2457 = vld [vmem:[%s7 + $0x8] sm:$0xf]
        %v2458 = vld [vmem:[%s7 + $0xc] sm:$0xf]
        %v2459 = vld [vmem:[%s7 + $0x10] sm:$0xf]
        %v2460 = vld [vmem:[%s7 + $0x14] sm:$0xf]
        %v2461 = vld [vmem:[%s7 + $0x18] sm:$0xf]
        %v2462 = vld [vmem:[%s7 + $0x1c] sm:$0xf]
        %v2463 = vld [vmem:[%s7 + $0x20] sm:$0xf]
        %v2464 = vld [vmem:[%s7 + $0x24] sm:$0xf]
        %v2465 = vld [vmem:[%s7 + $0x28] sm:$0xf]
        %v2466 = vld [vmem:[%s7 + $0x2c] sm:$0xf]
        %v2467 = vld [vmem:[%s7 + $0x30] sm:$0x3]
        %v2468 = vpack.c.bf16 %v2412, %v2409
        %v2469 = vpack.c.bf16 %v2420, %v2417
        %s2470 = scalar_lea.vmem %s7, 52
        %v2471 = vld [vmem:[%s2470] sm:$0xf]
        %v2472 = vld [vmem:[%s2470 + $0x4] sm:$0xf]
        %v2473 = vld [vmem:[%s2470 + $0x8] sm:$0xf]
        %v2474 = vld [vmem:[%s2470 + $0xc] sm:$0xf]
        %v2475 = vld [vmem:[%s2470 + $0x10] sm:$0xf]
        %v2476 = vld [vmem:[%s2470 + $0x14] sm:$0xf]
        %v2477 = vld [vmem:[%s2470 + $0x18] sm:$0xf]
        %v2478 = vld [vmem:[%s2470 + $0x1c] sm:$0xf]
        %v2479 = vld [vmem:[%s2470 + $0x20] sm:$0xf]
        %v2480 = vld [vmem:[%s2470 + $0x24] sm:$0xf]
        %v2481 = vld [vmem:[%s2470 + $0x28] sm:$0xf]
        %v2482 = vld [vmem:[%s2470 + $0x2c] sm:$0xf]
        %v2483 = vld [vmem:[%s2470 + $0x30] sm:$0x3]
        %v2484 = vpack.c.bf16 %v2428, %v2425
        %v2485 = vpack.c.bf16 %v2436, %v2433
        %v2499 = vunpack.c.l.b16 %v2471
        %v2500 = vunpack.c.l.b16 %v2472
        %v2501 = vunpack.c.l.b16 %v2473
        %v2502 = vunpack.c.l.b16 %v2474
        %v2503 = vunpack.c.l.b16 %v2475
        %v2504 = vunpack.c.l.b16 %v2476
        %v2505 = vunpack.c.l.b16 %v2477
        %v2506 = vunpack.c.l.b16 %v2478
        %v2507 = vunpack.c.l.b16 %v2479
        %v2508 = vunpack.c.l.b16 %v2480
        %v2509 = vunpack.c.l.b16 %v2481
        %v2510 = vunpack.c.l.b16 %v2482
        %v2511 = vunpack.c.l.b16 %v2483
        %v2512 = vpack.c.b16 %v2500, %v2499
        %v2513 = vpack.c.b16 %v2502, %v2501
        %v2514 = vpack.c.b16 %v2504, %v2503
        %v2515 = vpack.c.b16 %v2506, %v2505
        %v2516 = vpack.c.b16 %v2508, %v2507
        %v2517 = vpack.c.b16 %v2510, %v2509
        %v2518 = vpack.c.b16 %v2511, %v2511
        %vm2525 = vcmask 818176
        %v2527 = vsel %vm2525, %v2484, 0
        %v2530 = vsel %vm2525, %v2485, 0
        %vm2532 = vcmask 1041408
        %v2534 = vsel %vm2532, %v2518, 0
        %2536 = vmatprep.subr.bf16.mxu0 0
        %2537 = vmatpush1.bf16.msra.mxu0 %v2512
        %2538 = vmatprep.subr.bf16.mxu0 0
        %2539 = vmatpush1.bf16.msra.mxu0 %v2513
        %2540 = vmatprep.subr.bf16.mxu0 0
        %2541 = vmatpush1.bf16.msra.mxu0 %v2514
        %2542 = vmatprep.subr.bf16.mxu0 0
        %2543 = vmatpush1.bf16.msra.mxu0 %v2515
        %2544 = vmatprep.subr.bf16.mxu0 0
        %2545 = vmatpush1.bf16.msra.mxu0 %v2516
        %2546 = vmatprep.subr.bf16.mxu0 0
        %2547 = vmatpush1.bf16.msra.mxu0 %v2517
        %2548 = vmatprep.subr.bf16.mxu0 0
        %2549 = vmatpush1.bf16.msra.mxu0 %v2534
        %2550 = vmatprep.subr.bf16.mxu0 0
        %2551 = vmatpush1.bf16.msra.mxu0 0
        %2552 = vmatprep.subr.bf16.mxu0 0
        %2553 = vmatpush1.bf16.msra.mxu0 0
        %2554 = vmatprep.subr.bf16.mxu0 0
        %2555 = vmatpush1.bf16.msra.mxu0 0
        %2556 = vmatprep.subr.bf16.mxu0 0
        %2557 = vmatpush1.bf16.msra.mxu0 0
        %2558 = vmatprep.subr.bf16.mxu0 0
        %2559 = vmatpush1.bf16.msra.mxu0 0
        %2560 = vmatprep.subr.bf16.mxu0 0
        %2561 = vmatpush1.bf16.msra.mxu0 0
        %2562 = vmatprep.subr.bf16.mxu0 0
        %2563 = vmatpush1.bf16.msra.mxu0 0
        %2564 = vmatprep.subr.bf16.mxu0 0
        %2565 = vmatpush1.bf16.msra.mxu0 0
        %2566 = vmatprep.subr.bf16.mxu0 0
        %2567 = vmatpush1.bf16.msra.mxu0 0
        %2568 = vmatprep.mubr.bf16.mxu0 0
        %2569 = vmatmul.mubr.bf16.gmra.mrb[0].mxu0 %v2527
        %v2570 = vpop.f32.mrb[0].mxu0
        %v2571 = vadd.f32 0.0, %v2570
        %v2572 = vpop.f32.mrb[0].mxu0
        %v2573 = vpop.f32.mrb[0].mxu0
        %v2574 = vadd.f32 0.0, %v2573
        %v2575 = vpop.f32.mrb[0].mxu0
        %2576 = vmatprep.mubr.bf16.mxu0 0
        %2577 = vmatmul.mubr.bf16.gmra.mrb[0].mxu0 %v2530
        %v2578 = vpop.f32.mrb[0].mxu0
        %v2579 = vadd.f32 0.0, %v2578
        %v2580 = vpop.f32.mrb[0].mxu0
        %v2581 = vpop.f32.mrb[0].mxu0
        %v2582 = vadd.f32 0.0, %v2581
        %v2583 = vpop.f32.mrb[0].mxu0
        %2584 = vdwg.mxu0
        %v2598 = vunpack.c.l.b16 %v2455
        %v2599 = vunpack.c.l.b16 %v2456
        %v2600 = vunpack.c.l.b16 %v2457
        %v2601 = vunpack.c.l.b16 %v2458
        %v2602 = vunpack.c.l.b16 %v2459
        %v2603 = vunpack.c.l.b16 %v2460
        %v2604 = vunpack.c.l.b16 %v2461
        %v2605 = vunpack.c.l.b16 %v2462
        %v2606 = vunpack.c.l.b16 %v2463
        %v2607 = vunpack.c.l.b16 %v2464
        %v2608 = vunpack.c.l.b16 %v2465
        %v2609 = vunpack.c.l.b16 %v2466
        %v2610 = vunpack.c.l.b16 %v2467
        %v2611 = vpack.c.b16 %v2599, %v2598
        %v2612 = vpack.c.b16 %v2601, %v2600
        %v2613 = vpack.c.b16 %v2603, %v2602
        %v2614 = vpack.c.b16 %v2605, %v2604
        %v2615 = vpack.c.b16 %v2607, %v2606
        %v2616 = vpack.c.b16 %v2609, %v2608
        %v2617 = vpack.c.b16 %v2610, %v2610
        %v2625 = vsel %vm2525, %v2468, 0
        %v2628 = vsel %vm2525, %v2469, 0
        %v2631 = vsel %vm2532, %v2617, 0
        %2633 = vmatprep.subr.bf16.mxu0 0
        %2634 = vmatpush1.bf16.msra.mxu0 %v2611
        %2635 = vmatprep.subr.bf16.mxu0 0
        %2636 = vmatpush1.bf16.msra.mxu0 %v2612
        %2637 = vmatprep.subr.bf16.mxu0 0
        %2638 = vmatpush1.bf16.msra.mxu0 %v2613
        %2639 = vmatprep.subr.bf16.mxu0 0
        %2640 = vmatpush1.bf16.msra.mxu0 %v2614
        %2641 = vmatprep.subr.bf16.mxu0 0
        %2642 = vmatpush1.bf16.msra.mxu0 %v2615
        %2643 = vmatprep.subr.bf16.mxu0 0
        %2644 = vmatpush1.bf16.msra.mxu0 %v2616
        %2645 = vmatprep.subr.bf16.mxu0 0
        %2646 = vmatpush1.bf16.msra.mxu0 %v2631
        %2647 = vmatprep.subr.bf16.mxu0 0
        %2648 = vmatpush1.bf16.msra.mxu0 0
        %2649 = vmatprep.subr.bf16.mxu0 0
        %2650 = vmatpush1.bf16.msra.mxu0 0
        %2651 = vmatprep.subr.bf16.mxu0 0
        %2652 = vmatpush1.bf16.msra.mxu0 0
        %2653 = vmatprep.subr.bf16.mxu0 0
        %2654 = vmatpush1.bf16.msra.mxu0 0
        %2655 = vmatprep.subr.bf16.mxu0 0
        %2656 = vmatpush1.bf16.msra.mxu0 0
        %2657 = vmatprep.subr.bf16.mxu0 0
        %2658 = vmatpush1.bf16.msra.mxu0 0
        %2659 = vmatprep.subr.bf16.mxu0 0
        %2660 = vmatpush1.bf16.msra.mxu0 0
        %2661 = vmatprep.subr.bf16.mxu0 0
        %2662 = vmatpush1.bf16.msra.mxu0 0
        %2663 = vmatprep.subr.bf16.mxu0 0
        %2664 = vmatpush1.bf16.msra.mxu0 0
        %2665 = vmatprep.mubr.bf16.mxu0 0
        %2666 = vmatmul.mubr.bf16.gmra.mrb[0].mxu0 %v2625
        %v2667 = vpop.f32.mrb[0].mxu0
        %v2668 = vadd.f32 %v2571, %v2667
        %v2669 = vpop.f32.mrb[0].mxu0
        %v2670 = vpop.f32.mrb[0].mxu0
        %v2671 = vadd.f32 %v2574, %v2670
        %v2672 = vpop.f32.mrb[0].mxu0
        %2673 = vmatprep.mubr.bf16.mxu0 0
        %2674 = vmatmul.mubr.bf16.gmra.mrb[0].mxu0 %v2628
        %v2675 = vpop.f32.mrb[0].mxu0
        %v2676 = vadd.f32 %v2579, %v2675
        %v2677 = vpop.f32.mrb[0].mxu0
        %v2678 = vpop.f32.mrb[0].mxu0
        %v2679 = vadd.f32 %v2582, %v2678
        %v2680 = vpop.f32.mrb[0].mxu0
        %2681 = vdwg.mxu0
        %s2682 = scalar_lea.vmem %s7, 104
        %v2683 = vld [vmem:[%s2682] sm:$0xf]
        %v2684 = vld [vmem:[%s2682 + $0x4] sm:$0xf]
        %v2685 = vld [vmem:[%s2682 + $0x8] sm:$0xf]
        %v2686 = vld [vmem:[%s2682 + $0xc] sm:$0xf]
        %v2687 = vld [vmem:[%s2682 + $0x10] sm:$0xf]
        %v2688 = vld [vmem:[%s2682 + $0x14] sm:$0xf]
        %v2689 = vld [vmem:[%s2682 + $0x18] sm:$0xf]
        %v2690 = vld [vmem:[%s2682 + $0x1c] sm:$0xf]
        %v2691 = vld [vmem:[%s2682 + $0x20] sm:$0xf]
        %v2692 = vld [vmem:[%s2682 + $0x24] sm:$0xf]
        %v2693 = vld [vmem:[%s2682 + $0x28] sm:$0xf]
        %v2694 = vld [vmem:[%s2682 + $0x2c] sm:$0xf]
        %v2695 = vld [vmem:[%s2682 + $0x30] sm:$0x3]
        %v2696 = vpack.c.bf16 %v2444, %v2441
        %v2697 = vpack.c.bf16 %v2452, %v2449
        %v2711 = vunpack.c.l.b16 %v2683
        %v2712 = vunpack.c.l.b16 %v2684
        %v2713 = vunpack.c.l.b16 %v2685
        %v2714 = vunpack.c.l.b16 %v2686
        %v2715 = vunpack.c.l.b16 %v2687
        %v2716 = vunpack.c.l.b16 %v2688
        %v2717 = vunpack.c.l.b16 %v2689
        %v2718 = vunpack.c.l.b16 %v2690
        %v2719 = vunpack.c.l.b16 %v2691
        %v2720 = vunpack.c.l.b16 %v2692
        %v2721 = vunpack.c.l.b16 %v2693
        %v2722 = vunpack.c.l.b16 %v2694
        %v2723 = vunpack.c.l.b16 %v2695
        %v2724 = vpack.c.b16 %v2712, %v2711
        %v2725 = vpack.c.b16 %v2714, %v2713
        %v2726 = vpack.c.b16 %v2716, %v2715
        %v2727 = vpack.c.b16 %v2718, %v2717
        %v2728 = vpack.c.b16 %v2720, %v2719
        %v2729 = vpack.c.b16 %v2722, %v2721
        %v2730 = vpack.c.b16 %v2723, %v2723
        %v2738 = vsel %vm2525, %v2696, 0
        %v2741 = vsel %vm2525, %v2697, 0
        %v2744 = vsel %vm2532, %v2730, 0
        %2746 = vmatprep.subr.bf16.mxu0 0
        %2747 = vmatpush1.bf16.msra.mxu0 %v2724
        %2748 = vmatprep.subr.bf16.mxu0 0
        %2749 = vmatpush1.bf16.msra.mxu0 %v2725
        %2750 = vmatprep.subr.bf16.mxu0 0
        %2751 = vmatpush1.bf16.msra.mxu0 %v2726
        %2752 = vmatprep.subr.bf16.mxu0 0
        %2753 = vmatpush1.bf16.msra.mxu0 %v2727
        %2754 = vmatprep.subr.bf16.mxu0 0
        %2755 = vmatpush1.bf16.msra.mxu0 %v2728
        %2756 = vmatprep.subr.bf16.mxu0 0
        %2757 = vmatpush1.bf16.msra.mxu0 %v2729
        %2758 = vmatprep.subr.bf16.mxu0 0
        %2759 = vmatpush1.bf16.msra.mxu0 %v2744
        %2760 = vmatprep.subr.bf16.mxu0 0
        %2761 = vmatpush1.bf16.msra.mxu0 0
        %2762 = vmatprep.subr.bf16.mxu0 0
        %2763 = vmatpush1.bf16.msra.mxu0 0
        %2764 = vmatprep.subr.bf16.mxu0 0
        %2765 = vmatpush1.bf16.msra.mxu0 0
        %2766 = vmatprep.subr.bf16.mxu0 0
        %2767 = vmatpush1.bf16.msra.mxu0 0
        %2768 = vmatprep.subr.bf16.mxu0 0
        %2769 = vmatpush1.bf16.msra.mxu0 0
        %2770 = vmatprep.subr.bf16.mxu0 0
        %2771 = vmatpush1.bf16.msra.mxu0 0
        %2772 = vmatprep.subr.bf16.mxu0 0
        %2773 = vmatpush1.bf16.msra.mxu0 0
        %2774 = vmatprep.subr.bf16.mxu0 0
        %2775 = vmatpush1.bf16.msra.mxu0 0
        %2776 = vmatprep.subr.bf16.mxu0 0
        %2777 = vmatpush1.bf16.msra.mxu0 0
        %2778 = vmatprep.mubr.bf16.mxu0 0
        %2779 = vmatmul.mubr.bf16.gmra.mrb[0].mxu0 %v2738
        %v2780 = vpop.f32.mrb[0].mxu0
        %v2781 = vadd.f32 0.0, %v2780
        %v2782 = vpop.f32.mrb[0].mxu0
        %v2783 = vpop.f32.mrb[0].mxu0
        %v2784 = vadd.f32 0.0, %v2783
        %v2785 = vpop.f32.mrb[0].mxu0
        %2786 = vmatprep.mubr.bf16.mxu0 0
        %2787 = vmatmul.mubr.bf16.gmra.mrb[0].mxu0 %v2741
        %v2788 = vpop.f32.mrb[0].mxu0
        %v2789 = vadd.f32 0.0, %v2788
        %v2790 = vpop.f32.mrb[0].mxu0
        %v2791 = vpop.f32.mrb[0].mxu0
        %v2792 = vadd.f32 0.0, %v2791
        %v2793 = vpop.f32.mrb[0].mxu0
        %2794 = vdwg.mxu0
        %v2795 = vadd.f32 %v2668, %v2781
        %v2796 = vadd.f32 %v2671, %v2784
        %v2797 = vadd.f32 %v2676, %v2789
        %v2798 = vadd.f32 %v2679, %v2792
        %v2799 = vld [vmem:[%s8] sm:$0xff]
        %v2800 = vld [vmem:[%s8 + $0x8] sm:$0xff]
        %v2801 = vld [vmem:[%s8 + $0x10] sm:$0xff]
        %v2802 = vld [vmem:[%s8 + $0x18] sm:$0xff]
        %2804 = vset.pattern.permute.xlu0 0
        %2805 = vperm.xlu0 %2804, %v2799
        %v2806 = vpop.permute.xlu0 %2805
        %2809 = vset.pattern.permute.xlu0 0
        %2810 = vperm.xlu0 %2809, %v2800
        %v2811 = vpop.permute.xlu0 %2810
        %2814 = vset.pattern.permute.xlu0 0
        %2815 = vperm.xlu0 %2814, %v2801
        %v2816 = vpop.permute.xlu0 %2815
        %2819 = vset.pattern.permute.xlu0 0
        %2820 = vperm.xlu0 %2819, %v2802
        %v2821 = vpop.permute.xlu0 %2820
        %v2823 = vadd.f32 %v2795, %v2806
        %v2824 = vadd.f32 %v2796, %v2811
        %v2825 = vadd.f32 %v2797, %v2816
        %v2826 = vadd.f32 %v2798, %v2821
        %vm2827 = vcmp.gt.f32.partialorder %v2823, 0.0
        %vm2828 = vcmp.gt.f32.partialorder %v2824, 0.0
        %vm2829 = vcmp.gt.f32.partialorder %v2825, 0.0
        %vm2830 = vcmp.gt.f32.partialorder %v2826, 0.0
        %v2831 = vmin.f32 %v2823, 0.0
        %v2832 = vmin.f32 %v2824, 0.0
        %v2833 = vmin.f32 %v2825, 0.0
        %v2834 = vmin.f32 %v2826, 0.0
        %v2835 = vmul.f32 %v2831, 1.442695
        %v2836 = vpow.pop %v2835
        %v2837 = vmul.f32 %v2832, 1.442695
        %v2838 = vpow.pop %v2837
        %v2839 = vmul.f32 %v2833, 1.442695
        %v2840 = vpow.pop %v2839
        %v2841 = vmul.f32 %v2834, 1.442695
        %v2842 = vpow.pop %v2841
        %v2843 = vsub.f32 %v2836, 1.0
        %v2844 = vsub.f32 %v2838, 1.0
        %v2845 = vsub.f32 %v2840, 1.0
        %v2846 = vsub.f32 %v2842, 1.0
        %v2847 = vsel %vm2827, %v2823, %v2843
        %v2848 = vsel %vm2828, %v2824, %v2844
        %v2849 = vsel %vm2829, %v2825, %v2845
        %v2850 = vsel %vm2830, %v2826, %v2846
        %v2851 = vld [vmem:[%s9] sm:$0xf]
        %v2852 = vld [vmem:[%s9 + $0x4] sm:$0xf]
        %v2853 = vld [vmem:[%s9 + $0x8] sm:$0xf]
        %v2854 = vld [vmem:[%s9 + $0xc] sm:$0xf]
        %v2855 = vld [vmem:[%s9 + $0x10] sm:$0xf]
        %v2856 = vld [vmem:[%s9 + $0x14] sm:$0xf]
        %v2857 = vld [vmem:[%s9 + $0x18] sm:$0xf]
        %v2858 = vld [vmem:[%s9 + $0x1c] sm:$0xf]
        %v2859 = vld [vmem:[%s9 + $0x20] sm:$0xf]
        %v2860 = vld [vmem:[%s9 + $0x24] sm:$0xf]
        %v2861 = vld [vmem:[%s9 + $0x28] sm:$0xf]
        %v2862 = vld [vmem:[%s9 + $0x2c] sm:$0xf]
        %v2863 = vld [vmem:[%s9 + $0x30] sm:$0xf]
        %v2864 = vld [vmem:[%s9 + $0x34] sm:$0xf]
        %v2865 = vld [vmem:[%s9 + $0x38] sm:$0xf]
        %v2866 = vld [vmem:[%s9 + $0x3c] sm:$0xf]
        %v2867 = vld [vmem:[%s9 + $0x40] sm:$0xf]
        %v2868 = vld [vmem:[%s9 + $0x44] sm:$0xf]
        %v2869 = vld [vmem:[%s9 + $0x48] sm:$0xf]
        %v2870 = vld [vmem:[%s9 + $0x4c] sm:$0xf]
        %v2871 = vld [vmem:[%s9 + $0x50] sm:$0xf]
        %v2872 = vld [vmem:[%s9 + $0x54] sm:$0xf]
        %v2873 = vld [vmem:[%s9 + $0x58] sm:$0xf]
        %v2874 = vld [vmem:[%s9 + $0x5c] sm:$0xf]
        %v2875 = vld [vmem:[%s9 + $0x60] sm:$0xf]
        %v2876 = vld [vmem:[%s9 + $0x64] sm:$0xf]
        %v2877 = vld [vmem:[%s9 + $0x68] sm:$0xf]
        %v2878 = vld [vmem:[%s9 + $0x6c] sm:$0xf]
        %v2879 = vld [vmem:[%s9 + $0x70] sm:$0xf]
        %v2880 = vld [vmem:[%s9 + $0x74] sm:$0xf]
        %v2881 = vld [vmem:[%s9 + $0x78] sm:$0xf]
        %v2882 = vld [vmem:[%s9 + $0x7c] sm:$0xf]
        %v2883 = vld [vmem:[%s9 + $0x80] sm:$0xf]
        %v2884 = vld [vmem:[%s9 + $0x84] sm:$0xf]
        %v2885 = vld [vmem:[%s9 + $0x88] sm:$0xf]
        %v2886 = vld [vmem:[%s9 + $0x8c] sm:$0xf]
        %v2887 = vld [vmem:[%s9 + $0x90] sm:$0xf]
        %v2888 = vld [vmem:[%s9 + $0x94] sm:$0xf]
        %v2889 = vld [vmem:[%s9 + $0x98] sm:$0xf]
        %v2890 = vld [vmem:[%s9 + $0x9c] sm:$0xf]
        %v2891 = vld [vmem:[%s9 + $0xa0] sm:$0xf]
        %v2892 = vld [vmem:[%s9 + $0xa4] sm:$0xf]
        %v2893 = vld [vmem:[%s9 + $0xa8] sm:$0xf]
        %v2894 = vld [vmem:[%s9 + $0xac] sm:$0xf]
        %v2895 = vld [vmem:[%s9 + $0xb0] sm:$0xf]
        %v2896 = vld [vmem:[%s9 + $0xb4] sm:$0xf]
        %v2897 = vld [vmem:[%s9 + $0xb8] sm:$0xf]
        %v2898 = vld [vmem:[%s9 + $0xbc] sm:$0xf]
        %v2899 = vld [vmem:[%s9 + $0xc0] sm:$0xf]
        %v2900 = vld [vmem:[%s9 + $0xc4] sm:$0xf]
        %v2901 = vld [vmem:[%s9 + $0xc8] sm:$0xf]
        %v2902 = vld [vmem:[%s9 + $0xcc] sm:$0xf]
        %v2903 = vld [vmem:[%s9 + $0xd0] sm:$0xf]
        %v2904 = vld [vmem:[%s9 + $0xd4] sm:$0xf]
        %v2905 = vld [vmem:[%s9 + $0xd8] sm:$0xf]
        %v2906 = vld [vmem:[%s9 + $0xdc] sm:$0xf]
        %v2907 = vld [vmem:[%s9 + $0xe0] sm:$0xf]
        %v2908 = vld [vmem:[%s9 + $0xe4] sm:$0xf]
        %v2909 = vld [vmem:[%s9 + $0xe8] sm:$0xf]
        %v2910 = vld [vmem:[%s9 + $0xec] sm:$0xf]
        %v2911 = vld [vmem:[%s9 + $0xf0] sm:$0xf]
        %v2912 = vld [vmem:[%s9 + $0xf4] sm:$0xf]
        %v2913 = vld [vmem:[%s9 + $0xf8] sm:$0xf]
        %v2914 = vld [vmem:[%s9 + $0xfc] sm:$0xf]
        %v2915 = vld [vmem:[%s9 + $0x100] sm:$0xf]
        %v2916 = vld [vmem:[%s9 + $0x104] sm:$0xf]
        %v2917 = vld [vmem:[%s9 + $0x108] sm:$0xf]
        %v2918 = vld [vmem:[%s9 + $0x10c] sm:$0xf]
        %v2919 = vld [vmem:[%s9 + $0x110] sm:$0xf]
        %v2920 = vld [vmem:[%s9 + $0x114] sm:$0xf]
        %v2921 = vld [vmem:[%s9 + $0x118] sm:$0xf]
        %v2922 = vld [vmem:[%s9 + $0x11c] sm:$0xf]
        %v2923 = vld [vmem:[%s9 + $0x120] sm:$0xf]
        %v2924 = vld [vmem:[%s9 + $0x124] sm:$0xf]
        %v2925 = vld [vmem:[%s9 + $0x128] sm:$0xf]
        %v2926 = vld [vmem:[%s9 + $0x12c] sm:$0xf]
        %v2927 = vld [vmem:[%s9 + $0x130] sm:$0xf]
        %v2928 = vld [vmem:[%s9 + $0x134] sm:$0xf]
        %v2929 = vld [vmem:[%s9 + $0x138] sm:$0xf]
        %v2930 = vld [vmem:[%s9 + $0x13c] sm:$0xf]
        %v3011 = vunpack.c.l.b16 %v2851
        %v3012 = vunpack.c.l.b16 %v2852
        %v3013 = vunpack.c.l.b16 %v2853
        %v3014 = vunpack.c.l.b16 %v2854
        %v3015 = vunpack.c.l.b16 %v2855
        %v3016 = vunpack.c.l.b16 %v2856
        %v3017 = vunpack.c.l.b16 %v2857
        %v3018 = vunpack.c.l.b16 %v2858
        %v3019 = vunpack.c.l.b16 %v2859
        %v3020 = vunpack.c.l.b16 %v2860
        %v3021 = vunpack.c.l.b16 %v2861
        %v3022 = vunpack.c.l.b16 %v2862
        %v3023 = vunpack.c.l.b16 %v2863
        %v3024 = vunpack.c.l.b16 %v2864
        %v3025 = vunpack.c.l.b16 %v2865
        %v3026 = vunpack.c.l.b16 %v2866
        %v3027 = vunpack.c.l.b16 %v2867
        %v3028 = vunpack.c.l.b16 %v2868
        %v3029 = vunpack.c.l.b16 %v2869
        %v3030 = vunpack.c.l.b16 %v2870
        %v3031 = vunpack.c.l.b16 %v2871
        %v3032 = vunpack.c.l.b16 %v2872
        %v3033 = vunpack.c.l.b16 %v2873
        %v3034 = vunpack.c.l.b16 %v2874
        %v3035 = vunpack.c.l.b16 %v2875
        %v3036 = vunpack.c.l.b16 %v2876
        %v3037 = vunpack.c.l.b16 %v2877
        %v3038 = vunpack.c.l.b16 %v2878
        %v3039 = vunpack.c.l.b16 %v2879
        %v3040 = vunpack.c.l.b16 %v2880
        %v3041 = vunpack.c.l.b16 %v2881
        %v3042 = vunpack.c.l.b16 %v2882
        %v3043 = vunpack.c.l.b16 %v2883
        %v3044 = vunpack.c.l.b16 %v2884
        %v3045 = vunpack.c.l.b16 %v2885
        %v3046 = vunpack.c.l.b16 %v2886
        %v3047 = vunpack.c.l.b16 %v2887
        %v3048 = vunpack.c.l.b16 %v2888
        %v3049 = vunpack.c.l.b16 %v2889
        %v3050 = vunpack.c.l.b16 %v2890
        %v3051 = vunpack.c.l.b16 %v2891
        %v3052 = vunpack.c.l.b16 %v2892
        %v3053 = vunpack.c.l.b16 %v2893
        %v3054 = vunpack.c.l.b16 %v2894
        %v3055 = vunpack.c.l.b16 %v2895
        %v3056 = vunpack.c.l.b16 %v2896
        %v3057 = vunpack.c.l.b16 %v2897
        %v3058 = vunpack.c.l.b16 %v2898
        %v3059 = vunpack.c.l.b16 %v2899
        %v3060 = vunpack.c.l.b16 %v2900
        %v3061 = vunpack.c.l.b16 %v2901
        %v3062 = vunpack.c.l.b16 %v2902
        %v3063 = vunpack.c.l.b16 %v2903
        %v3064 = vunpack.c.l.b16 %v2904
        %v3065 = vunpack.c.l.b16 %v2905
        %v3066 = vunpack.c.l.b16 %v2906
        %v3067 = vunpack.c.l.b16 %v2907
        %v3068 = vunpack.c.l.b16 %v2908
        %v3069 = vunpack.c.l.b16 %v2909
        %v3070 = vunpack.c.l.b16 %v2910
        %v3071 = vunpack.c.l.b16 %v2911
        %v3072 = vunpack.c.l.b16 %v2912
        %v3073 = vunpack.c.l.b16 %v2913
        %v3074 = vunpack.c.l.b16 %v2914
        %v3075 = vunpack.c.l.b16 %v2915
        %v3076 = vunpack.c.l.b16 %v2916
        %v3077 = vunpack.c.l.b16 %v2917
        %v3078 = vunpack.c.l.b16 %v2918
        %v3079 = vunpack.c.l.b16 %v2919
        %v3080 = vunpack.c.l.b16 %v2920
        %v3081 = vunpack.c.l.b16 %v2921
        %v3082 = vunpack.c.l.b16 %v2922
        %v3083 = vunpack.c.l.b16 %v2923
        %v3084 = vunpack.c.l.b16 %v2924
        %v3085 = vunpack.c.l.b16 %v2925
        %v3086 = vunpack.c.l.b16 %v2926
        %v3087 = vunpack.c.l.b16 %v2927
        %v3088 = vunpack.c.l.b16 %v2928
        %v3089 = vunpack.c.l.b16 %v2929
        %v3090 = vunpack.c.l.b16 %v2930
        %v3091 = vpack.c.b16 %v3012, %v3011
        %v3092 = vpack.c.b16 %v3014, %v3013
        %v3093 = vpack.c.b16 %v3016, %v3015
        %v3094 = vpack.c.b16 %v3018, %v3017
        %v3095 = vpack.c.b16 %v3020, %v3019
        %v3096 = vpack.c.b16 %v3022, %v3021
        %v3097 = vpack.c.b16 %v3024, %v3023
        %v3098 = vpack.c.b16 %v3026, %v3025
        %v3099 = vpack.c.b16 %v3028, %v3027
        %v3100 = vpack.c.b16 %v3030, %v3029
        %v3101 = vpack.c.b16 %v3032, %v3031
        %v3102 = vpack.c.b16 %v3034, %v3033
        %v3103 = vpack.c.b16 %v3036, %v3035
        %v3104 = vpack.c.b16 %v3038, %v3037
        %v3105 = vpack.c.b16 %v3040, %v3039
        %v3106 = vpack.c.b16 %v3042, %v3041
        %v3107 = vpack.c.b16 %v3044, %v3043
        %v3108 = vpack.c.b16 %v3046, %v3045
        %v3109 = vpack.c.b16 %v3048, %v3047
        %v3110 = vpack.c.b16 %v3050, %v3049
        %v3111 = vpack.c.b16 %v3052, %v3051
        %v3112 = vpack.c.b16 %v3054, %v3053
        %v3113 = vpack.c.b16 %v3056, %v3055
        %v3114 = vpack.c.b16 %v3058, %v3057
        %v3115 = vpack.c.b16 %v3060, %v3059
        %v3116 = vpack.c.b16 %v3062, %v3061
        %v3117 = vpack.c.b16 %v3064, %v3063
        %v3118 = vpack.c.b16 %v3066, %v3065
        %v3119 = vpack.c.b16 %v3068, %v3067
        %v3120 = vpack.c.b16 %v3070, %v3069
        %v3121 = vpack.c.b16 %v3072, %v3071
        %v3122 = vpack.c.b16 %v3074, %v3073
        %v3123 = vpack.c.b16 %v3076, %v3075
        %v3124 = vpack.c.b16 %v3078, %v3077
        %v3125 = vpack.c.b16 %v3080, %v3079
        %v3126 = vpack.c.b16 %v3082, %v3081
        %v3127 = vpack.c.b16 %v3084, %v3083
        %v3128 = vpack.c.b16 %v3086, %v3085
        %v3129 = vpack.c.b16 %v3088, %v3087
        %v3130 = vpack.c.b16 %v3090, %v3089
        %v3132 = vsel %vm2355, %v3091, 0
        %v3135 = vsel %vm2355, %v3092, 0
        %v3138 = vsel %vm2355, %v3093, 0
        %v3141 = vsel %vm2355, %v3094, 0
        %v3144 = vsel %vm2355, %v3095, 0
        %v3147 = vsel %vm2355, %v3096, 0
        %v3150 = vsel %vm2355, %v3097, 0
        %v3153 = vsel %vm2355, %v3098, 0
        %v3156 = vsel %vm2355, %v3099, 0
        %v3159 = vsel %vm2355, %v3100, 0
        %v3162 = vsel %vm2355, %v3101, 0
        %v3165 = vsel %vm2355, %v3102, 0
        %v3168 = vsel %vm2355, %v3103, 0
        %v3171 = vsel %vm2355, %v3104, 0
        %v3174 = vsel %vm2355, %v3105, 0
        %v3177 = vsel %vm2355, %v3106, 0
        %v3180 = vsel %vm2355, %v3107, 0
        %v3183 = vsel %vm2355, %v3108, 0
        %v3186 = vsel %vm2355, %v3109, 0
        %v3189 = vsel %vm2355, %v3110, 0
        %v3192 = vsel %vm2355, %v3111, 0
        %v3195 = vsel %vm2355, %v3112, 0
        %v3198 = vsel %vm2355, %v3113, 0
        %v3201 = vsel %vm2355, %v3114, 0
        %v3204 = vsel %vm2355, %v3115, 0
        %v3207 = vsel %vm2355, %v3116, 0
        %v3210 = vsel %vm2355, %v3117, 0
        %v3213 = vsel %vm2355, %v3118, 0
        %v3216 = vsel %vm2355, %v3119, 0
        %v3219 = vsel %vm2355, %v3120, 0
        %v3222 = vsel %vm2355, %v3121, 0
        %v3225 = vsel %vm2355, %v3122, 0
        %v3228 = vsel %vm2355, %v3123, 0
        %v3231 = vsel %vm2355, %v3124, 0
        %v3234 = vsel %vm2355, %v3125, 0
        %v3237 = vsel %vm2355, %v3126, 0
        %v3240 = vsel %vm2355, %v3127, 0
        %v3243 = vsel %vm2355, %v3128, 0
        %v3246 = vsel %vm2355, %v3129, 0
        %v3249 = vsel %vm2355, %v3130, 0
        %3251 = vmatprep.subr.bf16.mxu0 0
        %3252 = vmatpush1.bf16.msra.mxu0 %v2309
        %3253 = vmatprep.subr.bf16.mxu0 0
        %3254 = vmatpush1.bf16.msra.mxu0 %v2310
        %3255 = vmatprep.subr.bf16.mxu0 0
        %3256 = vmatpush1.bf16.msra.mxu0 %v2311
        %3257 = vmatprep.subr.bf16.mxu0 0
        %3258 = vmatpush1.bf16.msra.mxu0 %v2312
        %3259 = vmatprep.subr.bf16.mxu0 0
        %3260 = vmatpush1.bf16.msra.mxu0 0
        %3261 = vmatprep.subr.bf16.mxu0 0
        %3262 = vmatpush1.bf16.msra.mxu0 0
        %3263 = vmatprep.subr.bf16.mxu0 0
        %3264 = vmatpush1.bf16.msra.mxu0 0
        %3265 = vmatprep.subr.bf16.mxu0 0
        %3266 = vmatpush1.bf16.msra.mxu0 0
        %3267 = vmatprep.subr.bf16.mxu0 0
        %3268 = vmatpush1.bf16.msra.mxu0 0
        %3269 = vmatprep.subr.bf16.mxu0 0
        %3270 = vmatpush1.bf16.msra.mxu0 0
        %3271 = vmatprep.subr.bf16.mxu0 0
        %3272 = vmatpush1.bf16.msra.mxu0 0
        %3273 = vmatprep.subr.bf16.mxu0 0
        %3274 = vmatpush1.bf16.msra.mxu0 0
        %3275 = vmatprep.subr.bf16.mxu0 0
        %3276 = vmatpush1.bf16.msra.mxu0 0
        %3277 = vmatprep.subr.bf16.mxu0 0
        %3278 = vmatpush1.bf16.msra.mxu0 0
        %3279 = vmatprep.subr.bf16.mxu0 0
        %3280 = vmatpush1.bf16.msra.mxu0 0
        %3281 = vmatprep.subr.bf16.mxu0 0
        %3282 = vmatpush1.bf16.msra.mxu0 0
        %3283 = vmatprep.mubr.bf16.mxu0 0
        %3284 = vmatmul.mubr.bf16.gmra.mrb[0].mxu0 %v3132
        %v3285 = vpop.f32.mrb[0].mxu0
        %v3286 = vadd.f32 0.0, %v3285
        %v3287 = vpop.f32.mrb[0].mxu0
        %v3288 = vpop.f32.mrb[0].mxu0
        %v3289 = vadd.f32 0.0, %v3288
        %v3290 = vpop.f32.mrb[0].mxu0
        %3291 = vmatprep.mubr.bf16.mxu0 0
        %3292 = vmatmul.mubr.bf16.gmra.mrb[0].mxu0 %v3135
        %v3293 = vpop.f32.mrb[0].mxu0
        %v3294 = vadd.f32 0.0, %v3293
        %v3295 = vpop.f32.mrb[0].mxu0
        %v3296 = vpop.f32.mrb[0].mxu0
        %v3297 = vadd.f32 0.0, %v3296
        %v3298 = vpop.f32.mrb[0].mxu0
        %3299 = vmatprep.mubr.bf16.mxu0 0
        %3300 = vmatmul.mubr.bf16.gmra.mrb[0].mxu0 %v3138
        %v3301 = vpop.f32.mrb[0].mxu0
        %v3302 = vadd.f32 0.0, %v3301
        %v3303 = vpop.f32.mrb[0].mxu0
        %v3304 = vpop.f32.mrb[0].mxu0
        %v3305 = vadd.f32 0.0, %v3304
        %v3306 = vpop.f32.mrb[0].mxu0
        %3307 = vmatprep.mubr.bf16.mxu0 0
        %3308 = vmatmul.mubr.bf16.gmra.mrb[0].mxu0 %v3141
        %v3309 = vpop.f32.mrb[0].mxu0
        %v3310 = vadd.f32 0.0, %v3309
        %v3311 = vpop.f32.mrb[0].mxu0
        %v3312 = vpop.f32.mrb[0].mxu0
        %v3313 = vadd.f32 0.0, %v3312
        %v3314 = vpop.f32.mrb[0].mxu0
        %3315 = vmatprep.mubr.bf16.mxu0 0
        %3316 = vmatmul.mubr.bf16.gmra.mrb[0].mxu0 %v3144
        %v3317 = vpop.f32.mrb[0].mxu0
        %v3318 = vadd.f32 0.0, %v3317
        %v3319 = vpop.f32.mrb[0].mxu0
        %v3320 = vpop.f32.mrb[0].mxu0
        %v3321 = vadd.f32 0.0, %v3320
        %v3322 = vpop.f32.mrb[0].mxu0
        %3323 = vmatprep.mubr.bf16.mxu0 0
        %3324 = vmatmul.mubr.bf16.gmra.mrb[0].mxu0 %v3147
        %v3325 = vpop.f32.mrb[0].mxu0
        %v3326 = vadd.f32 0.0, %v3325
        %v3327 = vpop.f32.mrb[0].mxu0
        %v3328 = vpop.f32.mrb[0].mxu0
        %v3329 = vadd.f32 0.0, %v3328
        %v3330 = vpop.f32.mrb[0].mxu0
        %3331 = vmatprep.mubr.bf16.mxu0 0
        %3332 = vmatmul.mubr.bf16.gmra.mrb[0].mxu0 %v3150
        %v3333 = vpop.f32.mrb[0].mxu0
        %v3334 = vadd.f32 0.0, %v3333
        %v3335 = vpop.f32.mrb[0].mxu0
        %v3336 = vpop.f32.mrb[0].mxu0
        %v3337 = vadd.f32 0.0, %v3336
        %v3338 = vpop.f32.mrb[0].mxu0
        %3339 = vmatprep.mubr.bf16.mxu0 0
        %3340 = vmatmul.mubr.bf16.gmra.mrb[0].mxu0 %v3153
        %v3341 = vpop.f32.mrb[0].mxu0
        %v3342 = vadd.f32 0.0, %v3341
        %v3343 = vpop.f32.mrb[0].mxu0
        %v3344 = vpop.f32.mrb[0].mxu0
        %v3345 = vadd.f32 0.0, %v3344
        %v3346 = vpop.f32.mrb[0].mxu0
        %3347 = vmatprep.mubr.bf16.mxu0 0
        %3348 = vmatmul.mubr.bf16.gmra.mrb[0].mxu0 %v3156
        %v3349 = vpop.f32.mrb[0].mxu0
        %v3350 = vadd.f32 0.0, %v3349
        %v3351 = vpop.f32.mrb[0].mxu0
        %v3352 = vpop.f32.mrb[0].mxu0
        %v3353 = vadd.f32 0.0, %v3352
        %v3354 = vpop.f32.mrb[0].mxu0
        %3355 = vmatprep.mubr.bf16.mxu0 0
        %3356 = vmatmul.mubr.bf16.gmra.mrb[0].mxu0 %v3159
        %v3357 = vpop.f32.mrb[0].mxu0
        %v3358 = vadd.f32 0.0, %v3357
        %v3359 = vpop.f32.mrb[0].mxu0
        %v3360 = vpop.f32.mrb[0].mxu0
        %v3361 = vadd.f32 0.0, %v3360
        %v3362 = vpop.f32.mrb[0].mxu0
        %3363 = vmatprep.mubr.bf16.mxu0 0
        %3364 = vmatmul.mubr.bf16.gmra.mrb[0].mxu0 %v3162
        %v3365 = vpop.f32.mrb[0].mxu0
        %v3366 = vadd.f32 0.0, %v3365
        %v3367 = vpop.f32.mrb[0].mxu0
        %v3368 = vpop.f32.mrb[0].mxu0
        %v3369 = vadd.f32 0.0, %v3368
        %v3370 = vpop.f32.mrb[0].mxu0
        %3371 = vmatprep.mubr.bf16.mxu0 0
        %3372 = vmatmul.mubr.bf16.gmra.mrb[0].mxu0 %v3165
        %v3373 = vpop.f32.mrb[0].mxu0
        %v3374 = vadd.f32 0.0, %v3373
        %v3375 = vpop.f32.mrb[0].mxu0
        %v3376 = vpop.f32.mrb[0].mxu0
        %v3377 = vadd.f32 0.0, %v3376
        %v3378 = vpop.f32.mrb[0].mxu0
        %3379 = vmatprep.mubr.bf16.mxu0 0
        %3380 = vmatmul.mubr.bf16.gmra.mrb[0].mxu0 %v3168
        %v3381 = vpop.f32.mrb[0].mxu0
        %v3382 = vadd.f32 0.0, %v3381
        %v3383 = vpop.f32.mrb[0].mxu0
        %v3384 = vpop.f32.mrb[0].mxu0
        %v3385 = vadd.f32 0.0, %v3384
        %v3386 = vpop.f32.mrb[0].mxu0
        %3387 = vmatprep.mubr.bf16.mxu0 0
        %3388 = vmatmul.mubr.bf16.gmra.mrb[0].mxu0 %v3171
        %v3389 = vpop.f32.mrb[0].mxu0
        %v3390 = vadd.f32 0.0, %v3389
        %v3391 = vpop.f32.mrb[0].mxu0
        %v3392 = vpop.f32.mrb[0].mxu0
        %v3393 = vadd.f32 0.0, %v3392
        %v3394 = vpop.f32.mrb[0].mxu0
        %3395 = vmatprep.mubr.bf16.mxu0 0
        %3396 = vmatmul.mubr.bf16.gmra.mrb[0].mxu0 %v3174
        %v3397 = vpop.f32.mrb[0].mxu0
        %v3398 = vadd.f32 0.0, %v3397
        %v3399 = vpop.f32.mrb[0].mxu0
        %v3400 = vpop.f32.mrb[0].mxu0
        %v3401 = vadd.f32 0.0, %v3400
        %v3402 = vpop.f32.mrb[0].mxu0
        %3403 = vmatprep.mubr.bf16.mxu0 0
        %3404 = vmatmul.mubr.bf16.gmra.mrb[0].mxu0 %v3177
        %v3405 = vpop.f32.mrb[0].mxu0
        %v3406 = vadd.f32 0.0, %v3405
        %v3407 = vpop.f32.mrb[0].mxu0
        %v3408 = vpop.f32.mrb[0].mxu0
        %v3409 = vadd.f32 0.0, %v3408
        %v3410 = vpop.f32.mrb[0].mxu0
        %3411 = vmatprep.mubr.bf16.mxu0 0
        %3412 = vmatmul.mubr.bf16.gmra.mrb[0].mxu0 %v3180
        %v3413 = vpop.f32.mrb[0].mxu0
        %v3414 = vadd.f32 0.0, %v3413
        %v3415 = vpop.f32.mrb[0].mxu0
        %v3416 = vpop.f32.mrb[0].mxu0
        %v3417 = vadd.f32 0.0, %v3416
        %v3418 = vpop.f32.mrb[0].mxu0
        %3419 = vmatprep.mubr.bf16.mxu0 0
        %3420 = vmatmul.mubr.bf16.gmra.mrb[0].mxu0 %v3183
        %v3421 = vpop.f32.mrb[0].mxu0
        %v3422 = vadd.f32 0.0, %v3421
        %v3423 = vpop.f32.mrb[0].mxu0
        %v3424 = vpop.f32.mrb[0].mxu0
        %v3425 = vadd.f32 0.0, %v3424
        %v3426 = vpop.f32.mrb[0].mxu0
        %3427 = vmatprep.mubr.bf16.mxu0 0
        %3428 = vmatmul.mubr.bf16.gmra.mrb[0].mxu0 %v3186
        %v3429 = vpop.f32.mrb[0].mxu0
        %v3430 = vadd.f32 0.0, %v3429
        %v3431 = vpop.f32.mrb[0].mxu0
        %v3432 = vpop.f32.mrb[0].mxu0
        %v3433 = vadd.f32 0.0, %v3432
        %v3434 = vpop.f32.mrb[0].mxu0
        %3435 = vmatprep.mubr.bf16.mxu0 0
        %3436 = vmatmul.mubr.bf16.gmra.mrb[0].mxu0 %v3189
        %v3437 = vpop.f32.mrb[0].mxu0
        %v3438 = vadd.f32 0.0, %v3437
        %v3439 = vpop.f32.mrb[0].mxu0
        %v3440 = vpop.f32.mrb[0].mxu0
        %v3441 = vadd.f32 0.0, %v3440
        %v3442 = vpop.f32.mrb[0].mxu0
        %3443 = vmatprep.mubr.bf16.mxu0 0
        %3444 = vmatmul.mubr.bf16.gmra.mrb[0].mxu0 %v3192
        %v3445 = vpop.f32.mrb[0].mxu0
        %v3446 = vadd.f32 0.0, %v3445
        %v3447 = vpop.f32.mrb[0].mxu0
        %v3448 = vpop.f32.mrb[0].mxu0
        %v3449 = vadd.f32 0.0, %v3448
        %v3450 = vpop.f32.mrb[0].mxu0
        %3451 = vmatprep.mubr.bf16.mxu0 0
        %3452 = vmatmul.mubr.bf16.gmra.mrb[0].mxu0 %v3195
        %v3453 = vpop.f32.mrb[0].mxu0
        %v3454 = vadd.f32 0.0, %v3453
        %v3455 = vpop.f32.mrb[0].mxu0
        %v3456 = vpop.f32.mrb[0].mxu0
        %v3457 = vadd.f32 0.0, %v3456
        %v3458 = vpop.f32.mrb[0].mxu0
        %3459 = vmatprep.mubr.bf16.mxu0 0
        %3460 = vmatmul.mubr.bf16.gmra.mrb[0].mxu0 %v3198
        %v3461 = vpop.f32.mrb[0].mxu0
        %v3462 = vadd.f32 0.0, %v3461
        %v3463 = vpop.f32.mrb[0].mxu0
        %v3464 = vpop.f32.mrb[0].mxu0
        %v3465 = vadd.f32 0.0, %v3464
        %v3466 = vpop.f32.mrb[0].mxu0
        %3467 = vmatprep.mubr.bf16.mxu0 0
        %3468 = vmatmul.mubr.bf16.gmra.mrb[0].mxu0 %v3201
        %v3469 = vpop.f32.mrb[0].mxu0
        %v3470 = vadd.f32 0.0, %v3469
        %v3471 = vpop.f32.mrb[0].mxu0
        %v3472 = vpop.f32.mrb[0].mxu0
        %v3473 = vadd.f32 0.0, %v3472
        %v3474 = vpop.f32.mrb[0].mxu0
        %3475 = vmatprep.mubr.bf16.mxu0 0
        %3476 = vmatmul.mubr.bf16.gmra.mrb[0].mxu0 %v3204
        %v3477 = vpop.f32.mrb[0].mxu0
        %v3478 = vadd.f32 0.0, %v3477
        %v3479 = vpop.f32.mrb[0].mxu0
        %v3480 = vpop.f32.mrb[0].mxu0
        %v3481 = vadd.f32 0.0, %v3480
        %v3482 = vpop.f32.mrb[0].mxu0
        %3483 = vmatprep.mubr.bf16.mxu0 0
        %3484 = vmatmul.mubr.bf16.gmra.mrb[0].mxu0 %v3207
        %v3485 = vpop.f32.mrb[0].mxu0
        %v3486 = vadd.f32 0.0, %v3485
        %v3487 = vpop.f32.mrb[0].mxu0
        %v3488 = vpop.f32.mrb[0].mxu0
        %v3489 = vadd.f32 0.0, %v3488
        %v3490 = vpop.f32.mrb[0].mxu0
        %3491 = vmatprep.mubr.bf16.mxu0 0
        %3492 = vmatmul.mubr.bf16.gmra.mrb[0].mxu0 %v3210
        %v3493 = vpop.f32.mrb[0].mxu0
        %v3494 = vadd.f32 0.0, %v3493
        %v3495 = vpop.f32.mrb[0].mxu0
        %v3496 = vpop.f32.mrb[0].mxu0
        %v3497 = vadd.f32 0.0, %v3496
        %v3498 = vpop.f32.mrb[0].mxu0
        %3499 = vmatprep.mubr.bf16.mxu0 0
        %3500 = vmatmul.mubr.bf16.gmra.mrb[0].mxu0 %v3213
        %v3501 = vpop.f32.mrb[0].mxu0
        %v3502 = vadd.f32 0.0, %v3501
        %v3503 = vpop.f32.mrb[0].mxu0
        %v3504 = vpop.f32.mrb[0].mxu0
        %v3505 = vadd.f32 0.0, %v3504
        %v3506 = vpop.f32.mrb[0].mxu0
        %3507 = vmatprep.mubr.bf16.mxu0 0
        %3508 = vmatmul.mubr.bf16.gmra.mrb[0].mxu0 %v3216
        %v3509 = vpop.f32.mrb[0].mxu0
        %v3510 = vadd.f32 0.0, %v3509
        %v3511 = vpop.f32.mrb[0].mxu0
        %v3512 = vpop.f32.mrb[0].mxu0
        %v3513 = vadd.f32 0.0, %v3512
        %v3514 = vpop.f32.mrb[0].mxu0
        %3515 = vmatprep.mubr.bf16.mxu0 0
        %3516 = vmatmul.mubr.bf16.gmra.mrb[0].mxu0 %v3219
        %v3517 = vpop.f32.mrb[0].mxu0
        %v3518 = vadd.f32 0.0, %v3517
        %v3519 = vpop.f32.mrb[0].mxu0
        %v3520 = vpop.f32.mrb[0].mxu0
        %v3521 = vadd.f32 0.0, %v3520
        %v3522 = vpop.f32.mrb[0].mxu0
        %3523 = vmatprep.mubr.bf16.mxu0 0
        %3524 = vmatmul.mubr.bf16.gmra.mrb[0].mxu0 %v3222
        %v3525 = vpop.f32.mrb[0].mxu0
        %v3526 = vadd.f32 0.0, %v3525
        %v3527 = vpop.f32.mrb[0].mxu0
        %v3528 = vpop.f32.mrb[0].mxu0
        %v3529 = vadd.f32 0.0, %v3528
        %v3530 = vpop.f32.mrb[0].mxu0
        %3531 = vmatprep.mubr.bf16.mxu0 0
        %3532 = vmatmul.mubr.bf16.gmra.mrb[0].mxu0 %v3225
        %v3533 = vpop.f32.mrb[0].mxu0
        %v3534 = vadd.f32 0.0, %v3533
        %v3535 = vpop.f32.mrb[0].mxu0
        %v3536 = vpop.f32.mrb[0].mxu0
        %v3537 = vadd.f32 0.0, %v3536
        %v3538 = vpop.f32.mrb[0].mxu0
        %3539 = vmatprep.mubr.bf16.mxu0 0
        %3540 = vmatmul.mubr.bf16.gmra.mrb[0].mxu0 %v3228
        %v3541 = vpop.f32.mrb[0].mxu0
        %v3542 = vadd.f32 0.0, %v3541
        %v3543 = vpop.f32.mrb[0].mxu0
        %v3544 = vpop.f32.mrb[0].mxu0
        %v3545 = vadd.f32 0.0, %v3544
        %v3546 = vpop.f32.mrb[0].mxu0
        %3547 = vmatprep.mubr.bf16.mxu0 0
        %3548 = vmatmul.mubr.bf16.gmra.mrb[0].mxu0 %v3231
        %v3549 = vpop.f32.mrb[0].mxu0
        %v3550 = vadd.f32 0.0, %v3549
        %v3551 = vpop.f32.mrb[0].mxu0
        %v3552 = vpop.f32.mrb[0].mxu0
        %v3553 = vadd.f32 0.0, %v3552
        %v3554 = vpop.f32.mrb[0].mxu0
        %3555 = vmatprep.mubr.bf16.mxu0 0
        %3556 = vmatmul.mubr.bf16.gmra.mrb[0].mxu0 %v3234
        %v3557 = vpop.f32.mrb[0].mxu0
        %v3558 = vadd.f32 0.0, %v3557
        %v3559 = vpop.f32.mrb[0].mxu0
        %v3560 = vpop.f32.mrb[0].mxu0
        %v3561 = vadd.f32 0.0, %v3560
        %v3562 = vpop.f32.mrb[0].mxu0
        %3563 = vmatprep.mubr.bf16.mxu0 0
        %3564 = vmatmul.mubr.bf16.gmra.mrb[0].mxu0 %v3237
        %v3565 = vpop.f32.mrb[0].mxu0
        %v3566 = vadd.f32 0.0, %v3565
        %v3567 = vpop.f32.mrb[0].mxu0
        %v3568 = vpop.f32.mrb[0].mxu0
        %v3569 = vadd.f32 0.0, %v3568
        %v3570 = vpop.f32.mrb[0].mxu0
        %3571 = vmatprep.mubr.bf16.mxu0 0
        %3572 = vmatmul.mubr.bf16.gmra.mrb[0].mxu0 %v3240
        %v3573 = vpop.f32.mrb[0].mxu0
        %v3574 = vadd.f32 0.0, %v3573
        %v3575 = vpop.f32.mrb[0].mxu0
        %v3576 = vpop.f32.mrb[0].mxu0
        %v3577 = vadd.f32 0.0, %v3576
        %v3578 = vpop.f32.mrb[0].mxu0
        %3579 = vmatprep.mubr.bf16.mxu0 0
        %3580 = vmatmul.mubr.bf16.gmra.mrb[0].mxu0 %v3243
        %v3581 = vpop.f32.mrb[0].mxu0
        %v3582 = vadd.f32 0.0, %v3581
        %v3583 = vpop.f32.mrb[0].mxu0
        %v3584 = vpop.f32.mrb[0].mxu0
        %v3585 = vadd.f32 0.0, %v3584
        %v3586 = vpop.f32.mrb[0].mxu0
        %3587 = vmatprep.mubr.bf16.mxu0 0
        %3588 = vmatmul.mubr.bf16.gmra.mrb[0].mxu0 %v3246
        %v3589 = vpop.f32.mrb[0].mxu0
        %v3590 = vadd.f32 0.0, %v3589
        %v3591 = vpop.f32.mrb[0].mxu0
        %v3592 = vpop.f32.mrb[0].mxu0
        %v3593 = vadd.f32 0.0, %v3592
        %v3594 = vpop.f32.mrb[0].mxu0
        %3595 = vmatprep.mubr.bf16.mxu0 0
        %3596 = vmatmul.mubr.bf16.gmra.mrb[0].mxu0 %v3249
        %v3597 = vpop.f32.mrb[0].mxu0
        %v3598 = vadd.f32 0.0, %v3597
        %v3599 = vpop.f32.mrb[0].mxu0
        %v3600 = vpop.f32.mrb[0].mxu0
        %v3601 = vadd.f32 0.0, %v3600
        %v3602 = vpop.f32.mrb[0].mxu0
        %3603 = vdwg.mxu0
        %v3604 = vld [vmem:[%s10] sm:$0xf]
        %v3605 = vld [vmem:[%s10 + $0x4] sm:$0xf]
        %v3606 = vld [vmem:[%s10 + $0x8] sm:$0xf]
        %v3607 = vld [vmem:[%s10 + $0xc] sm:$0xf]
        %v3608 = vld [vmem:[%s10 + $0x10] sm:$0xf]
        %v3609 = vld [vmem:[%s10 + $0x14] sm:$0xf]
        %v3610 = vld [vmem:[%s10 + $0x18] sm:$0xf]
        %v3611 = vld [vmem:[%s10 + $0x1c] sm:$0xf]
        %v3612 = vld [vmem:[%s10 + $0x20] sm:$0xf]
        %v3613 = vld [vmem:[%s10 + $0x24] sm:$0xf]
        %v3614 = vld [vmem:[%s10 + $0x28] sm:$0xf]
        %v3615 = vld [vmem:[%s10 + $0x2c] sm:$0xf]
        %v3616 = vld [vmem:[%s10 + $0x30] sm:$0x3]
        %v3617 = vpack.c.bf16 %v3289, %v3286
        %v3618 = vpack.c.bf16 %v3297, %v3294
        %v3619 = vpack.c.bf16 %v3305, %v3302
        %v3620 = vpack.c.bf16 %v3313, %v3310
        %v3621 = vpack.c.bf16 %v3321, %v3318
        %v3622 = vpack.c.bf16 %v3329, %v3326
        %v3623 = vpack.c.bf16 %v3337, %v3334
        %v3624 = vpack.c.bf16 %v3345, %v3342
        %s3625 = scalar_lea.vmem %s10, 52
        %v3626 = vld [vmem:[%s3625] sm:$0xf]
        %v3627 = vld [vmem:[%s3625 + $0x4] sm:$0xf]
        %v3628 = vld [vmem:[%s3625 + $0x8] sm:$0xf]
        %v3629 = vld [vmem:[%s3625 + $0xc] sm:$0xf]
        %v3630 = vld [vmem:[%s3625 + $0x10] sm:$0xf]
        %v3631 = vld [vmem:[%s3625 + $0x14] sm:$0xf]
        %v3632 = vld [vmem:[%s3625 + $0x18] sm:$0xf]
        %v3633 = vld [vmem:[%s3625 + $0x1c] sm:$0xf]
        %v3634 = vld [vmem:[%s3625 + $0x20] sm:$0xf]
        %v3635 = vld [vmem:[%s3625 + $0x24] sm:$0xf]
        %v3636 = vld [vmem:[%s3625 + $0x28] sm:$0xf]
        %v3637 = vld [vmem:[%s3625 + $0x2c] sm:$0xf]
        %v3638 = vld [vmem:[%s3625 + $0x30] sm:$0x3]
        %v3639 = vpack.c.bf16 %v3353, %v3350
        %v3640 = vpack.c.bf16 %v3361, %v3358
        %v3641 = vpack.c.bf16 %v3369, %v3366
        %v3642 = vpack.c.bf16 %v3377, %v3374
        %v3643 = vpack.c.bf16 %v3385, %v3382
        %v3644 = vpack.c.bf16 %v3393, %v3390
        %v3645 = vpack.c.bf16 %v3401, %v3398
        %v3646 = vpack.c.bf16 %v3409, %v3406
        %v3660 = vunpack.c.l.b16 %v3626
        %v3661 = vunpack.c.l.b16 %v3627
        %v3662 = vunpack.c.l.b16 %v3628
        %v3663 = vunpack.c.l.b16 %v3629
        %v3664 = vunpack.c.l.b16 %v3630
        %v3665 = vunpack.c.l.b16 %v3631
        %v3666 = vunpack.c.l.b16 %v3632
        %v3667 = vunpack.c.l.b16 %v3633
        %v3668 = vunpack.c.l.b16 %v3634
        %v3669 = vunpack.c.l.b16 %v3635
        %v3670 = vunpack.c.l.b16 %v3636
        %v3671 = vunpack.c.l.b16 %v3637
        %v3672 = vunpack.c.l.b16 %v3638
        %v3673 = vpack.c.b16 %v3661, %v3660
        %v3674 = vpack.c.b16 %v3663, %v3662
        %v3675 = vpack.c.b16 %v3665, %v3664
        %v3676 = vpack.c.b16 %v3667, %v3666
        %v3677 = vpack.c.b16 %v3669, %v3668
        %v3678 = vpack.c.b16 %v3671, %v3670
        %v3679 = vpack.c.b16 %v3672, %v3672
        %v3687 = vsel %vm2525, %v3639, 0
        %v3690 = vsel %vm2525, %v3640, 0
        %v3693 = vsel %vm2525, %v3641, 0
        %v3696 = vsel %vm2525, %v3642, 0
        %v3699 = vsel %vm2525, %v3643, 0
        %v3702 = vsel %vm2525, %v3644, 0
        %v3705 = vsel %vm2525, %v3645, 0
        %v3708 = vsel %vm2525, %v3646, 0
        %v3711 = vsel %vm2532, %v3679, 0
        %3713 = vmatprep.subr.bf16.mxu0 0
        %3714 = vmatpush1.bf16.msra.mxu0 %v3673
        %3715 = vmatprep.subr.bf16.mxu0 0
        %3716 = vmatpush1.bf16.msra.mxu0 %v3674
        %3717 = vmatprep.subr.bf16.mxu0 0
        %3718 = vmatpush1.bf16.msra.mxu0 %v3675
        %3719 = vmatprep.subr.bf16.mxu0 0
        %3720 = vmatpush1.bf16.msra.mxu0 %v3676
        %3721 = vmatprep.subr.bf16.mxu0 0
        %3722 = vmatpush1.bf16.msra.mxu0 %v3677
        %3723 = vmatprep.subr.bf16.mxu0 0
        %3724 = vmatpush1.bf16.msra.mxu0 %v3678
        %3725 = vmatprep.subr.bf16.mxu0 0
        %3726 = vmatpush1.bf16.msra.mxu0 %v3711
        %3727 = vmatprep.subr.bf16.mxu0 0
        %3728 = vmatpush1.bf16.msra.mxu0 0
        %3729 = vmatprep.subr.bf16.mxu0 0
        %3730 = vmatpush1.bf16.msra.mxu0 0
        %3731 = vmatprep.subr.bf16.mxu0 0
        %3732 = vmatpush1.bf16.msra.mxu0 0
        %3733 = vmatprep.subr.bf16.mxu0 0
        %3734 = vmatpush1.bf16.msra.mxu0 0
        %3735 = vmatprep.subr.bf16.mxu0 0
        %3736 = vmatpush1.bf16.msra.mxu0 0
        %3737 = vmatprep.subr.bf16.mxu0 0
        %3738 = vmatpush1.bf16.msra.mxu0 0
        %3739 = vmatprep.subr.bf16.mxu0 0
        %3740 = vmatpush1.bf16.msra.mxu0 0
        %3741 = vmatprep.subr.bf16.mxu0 0
        %3742 = vmatpush1.bf16.msra.mxu0 0
        %3743 = vmatprep.subr.bf16.mxu0 0
        %3744 = vmatpush1.bf16.msra.mxu0 0
        %3745 = vmatprep.mubr.bf16.mxu0 0
        %3746 = vmatmul.mubr.bf16.gmra.mrb[0].mxu0 %v3687
        %v3747 = vpop.f32.mrb[0].mxu0
        %v3748 = vadd.f32 0.0, %v3747
        %v3749 = vpop.f32.mrb[0].mxu0
        %v3750 = vpop.f32.mrb[0].mxu0
        %v3751 = vadd.f32 0.0, %v3750
        %v3752 = vpop.f32.mrb[0].mxu0
        %3753 = vmatprep.mubr.bf16.mxu0 0
        %3754 = vmatmul.mubr.bf16.gmra.mrb[0].mxu0 %v3690
        %v3755 = vpop.f32.mrb[0].mxu0
        %v3756 = vadd.f32 0.0, %v3755
        %v3757 = vpop.f32.mrb[0].mxu0
        %v3758 = vpop.f32.mrb[0].mxu0
        %v3759 = vadd.f32 0.0, %v3758
        %v3760 = vpop.f32.mrb[0].mxu0
        %3761 = vmatprep.mubr.bf16.mxu0 0
        %3762 = vmatmul.mubr.bf16.gmra.mrb[0].mxu0 %v3693
        %v3763 = vpop.f32.mrb[0].mxu0
        %v3764 = vadd.f32 0.0, %v3763
        %v3765 = vpop.f32.mrb[0].mxu0
        %v3766 = vpop.f32.mrb[0].mxu0
        %v3767 = vadd.f32 0.0, %v3766
        %v3768 = vpop.f32.mrb[0].mxu0
        %3769 = vmatprep.mubr.bf16.mxu0 0
        %3770 = vmatmul.mubr.bf16.gmra.mrb[0].mxu0 %v3696
        %v3771 = vpop.f32.mrb[0].mxu0
        %v3772 = vadd.f32 0.0, %v3771
        %v3773 = vpop.f32.mrb[0].mxu0
        %v3774 = vpop.f32.mrb[0].mxu0
        %v3775 = vadd.f32 0.0, %v3774
        %v3776 = vpop.f32.mrb[0].mxu0
        %3777 = vmatprep.mubr.bf16.mxu0 0
        %3778 = vmatmul.mubr.bf16.gmra.mrb[0].mxu0 %v3699
        %v3779 = vpop.f32.mrb[0].mxu0
        %v3780 = vadd.f32 0.0, %v3779
        %v3781 = vpop.f32.mrb[0].mxu0
        %v3782 = vpop.f32.mrb[0].mxu0
        %v3783 = vadd.f32 0.0, %v3782
        %v3784 = vpop.f32.mrb[0].mxu0
        %3785 = vmatprep.mubr.bf16.mxu0 0
        %3786 = vmatmul.mubr.bf16.gmra.mrb[0].mxu0 %v3702
        %v3787 = vpop.f32.mrb[0].mxu0
        %v3788 = vadd.f32 0.0, %v3787
        %v3789 = vpop.f32.mrb[0].mxu0
        %v3790 = vpop.f32.mrb[0].mxu0
        %v3791 = vadd.f32 0.0, %v3790
        %v3792 = vpop.f32.mrb[0].mxu0
        %3793 = vmatprep.mubr.bf16.mxu0 0
        %3794 = vmatmul.mubr.bf16.gmra.mrb[0].mxu0 %v3705
        %v3795 = vpop.f32.mrb[0].mxu0
        %v3796 = vadd.f32 0.0, %v3795
        %v3797 = vpop.f32.mrb[0].mxu0
        %v3798 = vpop.f32.mrb[0].mxu0
        %v3799 = vadd.f32 0.0, %v3798
        %v3800 = vpop.f32.mrb[0].mxu0
        %3801 = vmatprep.mubr.bf16.mxu0 0
        %3802 = vmatmul.mubr.bf16.gmra.mrb[0].mxu0 %v3708
        %v3803 = vpop.f32.mrb[0].mxu0
        %v3804 = vadd.f32 0.0, %v3803
        %v3805 = vpop.f32.mrb[0].mxu0
        %v3806 = vpop.f32.mrb[0].mxu0
        %v3807 = vadd.f32 0.0, %v3806
        %v3808 = vpop.f32.mrb[0].mxu0
        %3809 = vdwg.mxu0
        %v3823 = vunpack.c.l.b16 %v3604
        %v3824 = vunpack.c.l.b16 %v3605
        %v3825 = vunpack.c.l.b16 %v3606
        %v3826 = vunpack.c.l.b16 %v3607
        %v3827 = vunpack.c.l.b16 %v3608
        %v3828 = vunpack.c.l.b16 %v3609
        %v3829 = vunpack.c.l.b16 %v3610
        %v3830 = vunpack.c.l.b16 %v3611
        %v3831 = vunpack.c.l.b16 %v3612
        %v3832 = vunpack.c.l.b16 %v3613
        %v3833 = vunpack.c.l.b16 %v3614
        %v3834 = vunpack.c.l.b16 %v3615
        %v3835 = vunpack.c.l.b16 %v3616
        %v3836 = vpack.c.b16 %v3824, %v3823
        %v3837 = vpack.c.b16 %v3826, %v3825
        %v3838 = vpack.c.b16 %v3828, %v3827
        %v3839 = vpack.c.b16 %v3830, %v3829
        %v3840 = vpack.c.b16 %v3832, %v3831
        %v3841 = vpack.c.b16 %v3834, %v3833
        %v3842 = vpack.c.b16 %v3835, %v3835
        %v3850 = vsel %vm2525, %v3617, 0
        %v3853 = vsel %vm2525, %v3618, 0
        %v3856 = vsel %vm2525, %v3619, 0
        %v3859 = vsel %vm2525, %v3620, 0
        %v3862 = vsel %vm2525, %v3621, 0
        %v3865 = vsel %vm2525, %v3622, 0
        %v3868 = vsel %vm2525, %v3623, 0
        %v3871 = vsel %vm2525, %v3624, 0
        %v3874 = vsel %vm2532, %v3842, 0
        %3876 = vmatprep.subr.bf16.mxu0 0
        %3877 = vmatpush1.bf16.msra.mxu0 %v3836
        %3878 = vmatprep.subr.bf16.mxu0 0
        %3879 = vmatpush1.bf16.msra.mxu0 %v3837
        %3880 = vmatprep.subr.bf16.mxu0 0
        %3881 = vmatpush1.bf16.msra.mxu0 %v3838
        %3882 = vmatprep.subr.bf16.mxu0 0
        %3883 = vmatpush1.bf16.msra.mxu0 %v3839
        %3884 = vmatprep.subr.bf16.mxu0 0
        %3885 = vmatpush1.bf16.msra.mxu0 %v3840
        %3886 = vmatprep.subr.bf16.mxu0 0
        %3887 = vmatpush1.bf16.msra.mxu0 %v3841
        %3888 = vmatprep.subr.bf16.mxu0 0
        %3889 = vmatpush1.bf16.msra.mxu0 %v3874
        %3890 = vmatprep.subr.bf16.mxu0 0
        %3891 = vmatpush1.bf16.msra.mxu0 0
        %3892 = vmatprep.subr.bf16.mxu0 0
        %3893 = vmatpush1.bf16.msra.mxu0 0
        %3894 = vmatprep.subr.bf16.mxu0 0
        %3895 = vmatpush1.bf16.msra.mxu0 0
        %3896 = vmatprep.subr.bf16.mxu0 0
        %3897 = vmatpush1.bf16.msra.mxu0 0
        %3898 = vmatprep.subr.bf16.mxu0 0
        %3899 = vmatpush1.bf16.msra.mxu0 0
        %3900 = vmatprep.subr.bf16.mxu0 0
        %3901 = vmatpush1.bf16.msra.mxu0 0
        %3902 = vmatprep.subr.bf16.mxu0 0
        %3903 = vmatpush1.bf16.msra.mxu0 0
        %3904 = vmatprep.subr.bf16.mxu0 0
        %3905 = vmatpush1.bf16.msra.mxu0 0
        %3906 = vmatprep.subr.bf16.mxu0 0
        %3907 = vmatpush1.bf16.msra.mxu0 0
        %3908 = vmatprep.mubr.bf16.mxu0 0
        %3909 = vmatmul.mubr.bf16.gmra.mrb[0].mxu0 %v3850
        %v3910 = vpop.f32.mrb[0].mxu0
        %v3911 = vadd.f32 %v3748, %v3910
        %v3912 = vpop.f32.mrb[0].mxu0
        %v3913 = vpop.f32.mrb[0].mxu0
        %v3914 = vadd.f32 %v3751, %v3913
        %v3915 = vpop.f32.mrb[0].mxu0
        %3916 = vmatprep.mubr.bf16.mxu0 0
        %3917 = vmatmul.mubr.bf16.gmra.mrb[0].mxu0 %v3853
        %v3918 = vpop.f32.mrb[0].mxu0
        %v3919 = vadd.f32 %v3756, %v3918
        %v3920 = vpop.f32.mrb[0].mxu0
        %v3921 = vpop.f32.mrb[0].mxu0
        %v3922 = vadd.f32 %v3759, %v3921
        %v3923 = vpop.f32.mrb[0].mxu0
        %3924 = vmatprep.mubr.bf16.mxu0 0
        %3925 = vmatmul.mubr.bf16.gmra.mrb[0].mxu0 %v3856
        %v3926 = vpop.f32.mrb[0].mxu0
        %v3927 = vadd.f32 %v3764, %v3926
        %v3928 = vpop.f32.mrb[0].mxu0
        %v3929 = vpop.f32.mrb[0].mxu0
        %v3930 = vadd.f32 %v3767, %v3929
        %v3931 = vpop.f32.mrb[0].mxu0
        %3932 = vmatprep.mubr.bf16.mxu0 0
        %3933 = vmatmul.mubr.bf16.gmra.mrb[0].mxu0 %v3859
        %v3934 = vpop.f32.mrb[0].mxu0
        %v3935 = vadd.f32 %v3772, %v3934
        %v3936 = vpop.f32.mrb[0].mxu0
        %v3937 = vpop.f32.mrb[0].mxu0
        %v3938 = vadd.f32 %v3775, %v3937
        %v3939 = vpop.f32.mrb[0].mxu0
        %3940 = vmatprep.mubr.bf16.mxu0 0
        %3941 = vmatmul.mubr.bf16.gmra.mrb[0].mxu0 %v3862
        %v3942 = vpop.f32.mrb[0].mxu0
        %v3943 = vadd.f32 %v3780, %v3942
        %v3944 = vpop.f32.mrb[0].mxu0
        %v3945 = vpop.f32.mrb[0].mxu0
        %v3946 = vadd.f32 %v3783, %v3945
        %v3947 = vpop.f32.mrb[0].mxu0
        %3948 = vmatprep.mubr.bf16.mxu0 0
        %3949 = vmatmul.mubr.bf16.gmra.mrb[0].mxu0 %v3865
        %v3950 = vpop.f32.mrb[0].mxu0
        %v3951 = vadd.f32 %v3788, %v3950
        %v3952 = vpop.f32.mrb[0].mxu0
        %v3953 = vpop.f32.mrb[0].mxu0
        %v3954 = vadd.f32 %v3791, %v3953
        %v3955 = vpop.f32.mrb[0].mxu0
        %3956 = vmatprep.mubr.bf16.mxu0 0
        %3957 = vmatmul.mubr.bf16.gmra.mrb[0].mxu0 %v3868
        %v3958 = vpop.f32.mrb[0].mxu0
        %v3959 = vadd.f32 %v3796, %v3958
        %v3960 = vpop.f32.mrb[0].mxu0
        %v3961 = vpop.f32.mrb[0].mxu0
        %v3962 = vadd.f32 %v3799, %v3961
        %v3963 = vpop.f32.mrb[0].mxu0
        %3964 = vmatprep.mubr.bf16.mxu0 0
        %3965 = vmatmul.mubr.bf16.gmra.mrb[0].mxu0 %v3871
        %v3966 = vpop.f32.mrb[0].mxu0
        %v3967 = vadd.f32 %v3804, %v3966
        %v3968 = vpop.f32.mrb[0].mxu0
        %v3969 = vpop.f32.mrb[0].mxu0
        %v3970 = vadd.f32 %v3807, %v3969
        %v3971 = vpop.f32.mrb[0].mxu0
        %3972 = vdwg.mxu0
        %s3973 = scalar_lea.vmem %s10, 104
        %v3974 = vld [vmem:[%s3973] sm:$0xf]
        %v3975 = vld [vmem:[%s3973 + $0x4] sm:$0xf]
        %v3976 = vld [vmem:[%s3973 + $0x8] sm:$0xf]
        %v3977 = vld [vmem:[%s3973 + $0xc] sm:$0xf]
        %v3978 = vld [vmem:[%s3973 + $0x10] sm:$0xf]
        %v3979 = vld [vmem:[%s3973 + $0x14] sm:$0xf]
        %v3980 = vld [vmem:[%s3973 + $0x18] sm:$0xf]
        %v3981 = vld [vmem:[%s3973 + $0x1c] sm:$0xf]
        %v3982 = vld [vmem:[%s3973 + $0x20] sm:$0xf]
        %v3983 = vld [vmem:[%s3973 + $0x24] sm:$0xf]
        %v3984 = vld [vmem:[%s3973 + $0x28] sm:$0xf]
        %v3985 = vld [vmem:[%s3973 + $0x2c] sm:$0xf]
        %v3986 = vld [vmem:[%s3973 + $0x30] sm:$0x3]
        %v3987 = vpack.c.bf16 %v3417, %v3414
        %v3988 = vpack.c.bf16 %v3425, %v3422
        %v3989 = vpack.c.bf16 %v3433, %v3430
        %v3990 = vpack.c.bf16 %v3441, %v3438
        %v3991 = vpack.c.bf16 %v3449, %v3446
        %v3992 = vpack.c.bf16 %v3457, %v3454
        %v3993 = vpack.c.bf16 %v3465, %v3462
        %v3994 = vpack.c.bf16 %v3473, %v3470
        %v4008 = vunpack.c.l.b16 %v3974
        %v4009 = vunpack.c.l.b16 %v3975
        %v4010 = vunpack.c.l.b16 %v3976
        %v4011 = vunpack.c.l.b16 %v3977
        %v4012 = vunpack.c.l.b16 %v3978
        %v4013 = vunpack.c.l.b16 %v3979
        %v4014 = vunpack.c.l.b16 %v3980
        %v4015 = vunpack.c.l.b16 %v3981
        %v4016 = vunpack.c.l.b16 %v3982
        %v4017 = vunpack.c.l.b16 %v3983
        %v4018 = vunpack.c.l.b16 %v3984
        %v4019 = vunpack.c.l.b16 %v3985
        %v4020 = vunpack.c.l.b16 %v3986
        %v4021 = vpack.c.b16 %v4009, %v4008
        %v4022 = vpack.c.b16 %v4011, %v4010
        %v4023 = vpack.c.b16 %v4013, %v4012
        %v4024 = vpack.c.b16 %v4015, %v4014
        %v4025 = vpack.c.b16 %v4017, %v4016
        %v4026 = vpack.c.b16 %v4019, %v4018
        %v4027 = vpack.c.b16 %v4020, %v4020
        %v4035 = vsel %vm2525, %v3987, 0
        %v4038 = vsel %vm2525, %v3988, 0
        %v4041 = vsel %vm2525, %v3989, 0
        %v4044 = vsel %vm2525, %v3990, 0
        %v4047 = vsel %vm2525, %v3991, 0
        %v4050 = vsel %vm2525, %v3992, 0
        %v4053 = vsel %vm2525, %v3993, 0
        %v4056 = vsel %vm2525, %v3994, 0
        %v4059 = vsel %vm2532, %v4027, 0
        %4061 = vmatprep.subr.bf16.mxu0 0
        %4062 = vmatpush1.bf16.msra.mxu0 %v4021
        %4063 = vmatprep.subr.bf16.mxu0 0
        %4064 = vmatpush1.bf16.msra.mxu0 %v4022
        %4065 = vmatprep.subr.bf16.mxu0 0
        %4066 = vmatpush1.bf16.msra.mxu0 %v4023
        %4067 = vmatprep.subr.bf16.mxu0 0
        %4068 = vmatpush1.bf16.msra.mxu0 %v4024
        %4069 = vmatprep.subr.bf16.mxu0 0
        %4070 = vmatpush1.bf16.msra.mxu0 %v4025
        %4071 = vmatprep.subr.bf16.mxu0 0
        %4072 = vmatpush1.bf16.msra.mxu0 %v4026
        %4073 = vmatprep.subr.bf16.mxu0 0
        %4074 = vmatpush1.bf16.msra.mxu0 %v4059
        %4075 = vmatprep.subr.bf16.mxu0 0
        %4076 = vmatpush1.bf16.msra.mxu0 0
        %4077 = vmatprep.subr.bf16.mxu0 0
        %4078 = vmatpush1.bf16.msra.mxu0 0
        %4079 = vmatprep.subr.bf16.mxu0 0
        %4080 = vmatpush1.bf16.msra.mxu0 0
        %4081 = vmatprep.subr.bf16.mxu0 0
        %4082 = vmatpush1.bf16.msra.mxu0 0
        %4083 = vmatprep.subr.bf16.mxu0 0
        %4084 = vmatpush1.bf16.msra.mxu0 0
        %4085 = vmatprep.subr.bf16.mxu0 0
        %4086 = vmatpush1.bf16.msra.mxu0 0
        %4087 = vmatprep.subr.bf16.mxu0 0
        %4088 = vmatpush1.bf16.msra.mxu0 0
        %4089 = vmatprep.subr.bf16.mxu0 0
        %4090 = vmatpush1.bf16.msra.mxu0 0
        %4091 = vmatprep.subr.bf16.mxu0 0
        %4092 = vmatpush1.bf16.msra.mxu0 0
        %4093 = vmatprep.mubr.bf16.mxu0 0
        %4094 = vmatmul.mubr.bf16.gmra.mrb[0].mxu0 %v4035
        %v4095 = vpop.f32.mrb[0].mxu0
        %v4096 = vadd.f32 0.0, %v4095
        %v4097 = vpop.f32.mrb[0].mxu0
        %v4098 = vpop.f32.mrb[0].mxu0
        %v4099 = vadd.f32 0.0, %v4098
        %v4100 = vpop.f32.mrb[0].mxu0
        %4101 = vmatprep.mubr.bf16.mxu0 0
        %4102 = vmatmul.mubr.bf16.gmra.mrb[0].mxu0 %v4038
        %v4103 = vpop.f32.mrb[0].mxu0
        %v4104 = vadd.f32 0.0, %v4103
        %v4105 = vpop.f32.mrb[0].mxu0
        %v4106 = vpop.f32.mrb[0].mxu0
        %v4107 = vadd.f32 0.0, %v4106
        %v4108 = vpop.f32.mrb[0].mxu0
        %4109 = vmatprep.mubr.bf16.mxu0 0
        %4110 = vmatmul.mubr.bf16.gmra.mrb[0].mxu0 %v4041
        %v4111 = vpop.f32.mrb[0].mxu0
        %v4112 = vadd.f32 0.0, %v4111
        %v4113 = vpop.f32.mrb[0].mxu0
        %v4114 = vpop.f32.mrb[0].mxu0
        %v4115 = vadd.f32 0.0, %v4114
        %v4116 = vpop.f32.mrb[0].mxu0
        %4117 = vmatprep.mubr.bf16.mxu0 0
        %4118 = vmatmul.mubr.bf16.gmra.mrb[0].mxu0 %v4044
        %v4119 = vpop.f32.mrb[0].mxu0
        %v4120 = vadd.f32 0.0, %v4119
        %v4121 = vpop.f32.mrb[0].mxu0
        %v4122 = vpop.f32.mrb[0].mxu0
        %v4123 = vadd.f32 0.0, %v4122
        %v4124 = vpop.f32.mrb[0].mxu0
        %4125 = vmatprep.mubr.bf16.mxu0 0
        %4126 = vmatmul.mubr.bf16.gmra.mrb[0].mxu0 %v4047
        %v4127 = vpop.f32.mrb[0].mxu0
        %v4128 = vadd.f32 0.0, %v4127
        %v4129 = vpop.f32.mrb[0].mxu0
        %v4130 = vpop.f32.mrb[0].mxu0
        %v4131 = vadd.f32 0.0, %v4130
        %v4132 = vpop.f32.mrb[0].mxu0
        %4133 = vmatprep.mubr.bf16.mxu0 0
        %4134 = vmatmul.mubr.bf16.gmra.mrb[0].mxu0 %v4050
        %v4135 = vpop.f32.mrb[0].mxu0
        %v4136 = vadd.f32 0.0, %v4135
        %v4137 = vpop.f32.mrb[0].mxu0
        %v4138 = vpop.f32.mrb[0].mxu0
        %v4139 = vadd.f32 0.0, %v4138
        %v4140 = vpop.f32.mrb[0].mxu0
        %4141 = vmatprep.mubr.bf16.mxu0 0
        %4142 = vmatmul.mubr.bf16.gmra.mrb[0].mxu0 %v4053
        %v4143 = vpop.f32.mrb[0].mxu0
        %v4144 = vadd.f32 0.0, %v4143
        %v4145 = vpop.f32.mrb[0].mxu0
        %v4146 = vpop.f32.mrb[0].mxu0
        %v4147 = vadd.f32 0.0, %v4146
        %v4148 = vpop.f32.mrb[0].mxu0
        %4149 = vmatprep.mubr.bf16.mxu0 0
        %4150 = vmatmul.mubr.bf16.gmra.mrb[0].mxu0 %v4056
        %v4151 = vpop.f32.mrb[0].mxu0
        %v4152 = vadd.f32 0.0, %v4151
        %v4153 = vpop.f32.mrb[0].mxu0
        %v4154 = vpop.f32.mrb[0].mxu0
        %v4155 = vadd.f32 0.0, %v4154
        %v4156 = vpop.f32.mrb[0].mxu0
        %4157 = vdwg.mxu0
        %v4158 = vadd.f32 %v3911, %v4096
        %v4159 = vadd.f32 %v3914, %v4099
        %v4160 = vadd.f32 %v3919, %v4104
        %v4161 = vadd.f32 %v3922, %v4107
        %v4162 = vadd.f32 %v3927, %v4112
        %v4163 = vadd.f32 %v3930, %v4115
        %v4164 = vadd.f32 %v3935, %v4120
        %v4165 = vadd.f32 %v3938, %v4123
        %v4166 = vadd.f32 %v3943, %v4128
        %v4167 = vadd.f32 %v3946, %v4131
        %v4168 = vadd.f32 %v3951, %v4136
        %v4169 = vadd.f32 %v3954, %v4139
        %v4170 = vadd.f32 %v3959, %v4144
        %v4171 = vadd.f32 %v3962, %v4147
        %v4172 = vadd.f32 %v3967, %v4152
        %v4173 = vadd.f32 %v3970, %v4155
        %s4174 = scalar_lea.vmem %s10, 156
        %v4175 = vld [vmem:[%s4174] sm:$0xf]
        %v4176 = vld [vmem:[%s4174 + $0x4] sm:$0xf]
        %v4177 = vld [vmem:[%s4174 + $0x8] sm:$0xf]
        %v4178 = vld [vmem:[%s4174 + $0xc] sm:$0xf]
        %v4179 = vld [vmem:[%s4174 + $0x10] sm:$0xf]
        %v4180 = vld [vmem:[%s4174 + $0x14] sm:$0xf]
        %v4181 = vld [vmem:[%s4174 + $0x18] sm:$0xf]
        %v4182 = vld [vmem:[%s4174 + $0x1c] sm:$0xf]
        %v4183 = vld [vmem:[%s4174 + $0x20] sm:$0xf]
        %v4184 = vld [vmem:[%s4174 + $0x24] sm:$0xf]
        %v4185 = vld [vmem:[%s4174 + $0x28] sm:$0xf]
        %v4186 = vld [vmem:[%s4174 + $0x2c] sm:$0xf]
        %v4187 = vld [vmem:[%s4174 + $0x30] sm:$0x3]
        %v4188 = vpack.c.bf16 %v3481, %v3478
        %v4189 = vpack.c.bf16 %v3489, %v3486
        %v4190 = vpack.c.bf16 %v3497, %v3494
        %v4191 = vpack.c.bf16 %v3505, %v3502
        %v4192 = vpack.c.bf16 %v3513, %v3510
        %v4193 = vpack.c.bf16 %v3521, %v3518
        %v4194 = vpack.c.bf16 %v3529, %v3526
        %v4195 = vpack.c.bf16 %v3537, %v3534
        %v4209 = vunpack.c.l.b16 %v4175
        %v4210 = vunpack.c.l.b16 %v4176
        %v4211 = vunpack.c.l.b16 %v4177
        %v4212 = vunpack.c.l.b16 %v4178
        %v4213 = vunpack.c.l.b16 %v4179
        %v4214 = vunpack.c.l.b16 %v4180
        %v4215 = vunpack.c.l.b16 %v4181
        %v4216 = vunpack.c.l.b16 %v4182
        %v4217 = vunpack.c.l.b16 %v4183
        %v4218 = vunpack.c.l.b16 %v4184
        %v4219 = vunpack.c.l.b16 %v4185
        %v4220 = vunpack.c.l.b16 %v4186
        %v4221 = vunpack.c.l.b16 %v4187
        %v4222 = vpack.c.b16 %v4210, %v4209
        %v4223 = vpack.c.b16 %v4212, %v4211
        %v4224 = vpack.c.b16 %v4214, %v4213
        %v4225 = vpack.c.b16 %v4216, %v4215
        %v4226 = vpack.c.b16 %v4218, %v4217
        %v4227 = vpack.c.b16 %v4220, %v4219
        %v4228 = vpack.c.b16 %v4221, %v4221
        %v4236 = vsel %vm2525, %v4188, 0
        %v4239 = vsel %vm2525, %v4189, 0
        %v4242 = vsel %vm2525, %v4190, 0
        %v4245 = vsel %vm2525, %v4191, 0
        %v4248 = vsel %vm2525, %v4192, 0
        %v4251 = vsel %vm2525, %v4193, 0
        %v4254 = vsel %vm2525, %v4194, 0
        %v4257 = vsel %vm2525, %v4195, 0
        %v4260 = vsel %vm2532, %v4228, 0
        %4262 = vmatprep.subr.bf16.mxu0 0
        %4263 = vmatpush1.bf16.msra.mxu0 %v4222
        %4264 = vmatprep.subr.bf16.mxu0 0
        %4265 = vmatpush1.bf16.msra.mxu0 %v4223
        %4266 = vmatprep.subr.bf16.mxu0 0
        %4267 = vmatpush1.bf16.msra.mxu0 %v4224
        %4268 = vmatprep.subr.bf16.mxu0 0
        %4269 = vmatpush1.bf16.msra.mxu0 %v4225
        %4270 = vmatprep.subr.bf16.mxu0 0
        %4271 = vmatpush1.bf16.msra.mxu0 %v4226
        %4272 = vmatprep.subr.bf16.mxu0 0
        %4273 = vmatpush1.bf16.msra.mxu0 %v4227
        %4274 = vmatprep.subr.bf16.mxu0 0
        %4275 = vmatpush1.bf16.msra.mxu0 %v4260
        %4276 = vmatprep.subr.bf16.mxu0 0
        %4277 = vmatpush1.bf16.msra.mxu0 0
        %4278 = vmatprep.subr.bf16.mxu0 0
        %4279 = vmatpush1.bf16.msra.mxu0 0
        %4280 = vmatprep.subr.bf16.mxu0 0
        %4281 = vmatpush1.bf16.msra.mxu0 0
        %4282 = vmatprep.subr.bf16.mxu0 0
        %4283 = vmatpush1.bf16.msra.mxu0 0
        %4284 = vmatprep.subr.bf16.mxu0 0
        %4285 = vmatpush1.bf16.msra.mxu0 0
        %4286 = vmatprep.subr.bf16.mxu0 0
        %4287 = vmatpush1.bf16.msra.mxu0 0
        %4288 = vmatprep.subr.bf16.mxu0 0
        %4289 = vmatpush1.bf16.msra.mxu0 0
        %4290 = vmatprep.subr.bf16.mxu0 0
        %4291 = vmatpush1.bf16.msra.mxu0 0
        %4292 = vmatprep.subr.bf16.mxu0 0
        %4293 = vmatpush1.bf16.msra.mxu0 0
        %4294 = vmatprep.mubr.bf16.mxu0 0
        %4295 = vmatmul.mubr.bf16.gmra.mrb[0].mxu0 %v4236
        %v4296 = vpop.f32.mrb[0].mxu0
        %v4297 = vadd.f32 0.0, %v4296
        %v4298 = vpop.f32.mrb[0].mxu0
        %v4299 = vpop.f32.mrb[0].mxu0
        %v4300 = vadd.f32 0.0, %v4299
        %v4301 = vpop.f32.mrb[0].mxu0
        %4302 = vmatprep.mubr.bf16.mxu0 0
        %4303 = vmatmul.mubr.bf16.gmra.mrb[0].mxu0 %v4239
        %v4304 = vpop.f32.mrb[0].mxu0
        %v4305 = vadd.f32 0.0, %v4304
        %v4306 = vpop.f32.mrb[0].mxu0
        %v4307 = vpop.f32.mrb[0].mxu0
        %v4308 = vadd.f32 0.0, %v4307
        %v4309 = vpop.f32.mrb[0].mxu0
        %4310 = vmatprep.mubr.bf16.mxu0 0
        %4311 = vmatmul.mubr.bf16.gmra.mrb[0].mxu0 %v4242
        %v4312 = vpop.f32.mrb[0].mxu0
        %v4313 = vadd.f32 0.0, %v4312
        %v4314 = vpop.f32.mrb[0].mxu0
        %v4315 = vpop.f32.mrb[0].mxu0
        %v4316 = vadd.f32 0.0, %v4315
        %v4317 = vpop.f32.mrb[0].mxu0
        %4318 = vmatprep.mubr.bf16.mxu0 0
        %4319 = vmatmul.mubr.bf16.gmra.mrb[0].mxu0 %v4245
        %v4320 = vpop.f32.mrb[0].mxu0
        %v4321 = vadd.f32 0.0, %v4320
        %v4322 = vpop.f32.mrb[0].mxu0
        %v4323 = vpop.f32.mrb[0].mxu0
        %v4324 = vadd.f32 0.0, %v4323
        %v4325 = vpop.f32.mrb[0].mxu0
        %4326 = vmatprep.mubr.bf16.mxu0 0
        %4327 = vmatmul.mubr.bf16.gmra.mrb[0].mxu0 %v4248
        %v4328 = vpop.f32.mrb[0].mxu0
        %v4329 = vadd.f32 0.0, %v4328
        %v4330 = vpop.f32.mrb[0].mxu0
        %v4331 = vpop.f32.mrb[0].mxu0
        %v4332 = vadd.f32 0.0, %v4331
        %v4333 = vpop.f32.mrb[0].mxu0
        %4334 = vmatprep.mubr.bf16.mxu0 0
        %4335 = vmatmul.mubr.bf16.gmra.mrb[0].mxu0 %v4251
        %v4336 = vpop.f32.mrb[0].mxu0
        %v4337 = vadd.f32 0.0, %v4336
        %v4338 = vpop.f32.mrb[0].mxu0
        %v4339 = vpop.f32.mrb[0].mxu0
        %v4340 = vadd.f32 0.0, %v4339
        %v4341 = vpop.f32.mrb[0].mxu0
        %4342 = vmatprep.mubr.bf16.mxu0 0
        %4343 = vmatmul.mubr.bf16.gmra.mrb[0].mxu0 %v4254
        %v4344 = vpop.f32.mrb[0].mxu0
        %v4345 = vadd.f32 0.0, %v4344
        %v4346 = vpop.f32.mrb[0].mxu0
        %v4347 = vpop.f32.mrb[0].mxu0
        %v4348 = vadd.f32 0.0, %v4347
        %v4349 = vpop.f32.mrb[0].mxu0
        %4350 = vmatprep.mubr.bf16.mxu0 0
        %4351 = vmatmul.mubr.bf16.gmra.mrb[0].mxu0 %v4257
        %v4352 = vpop.f32.mrb[0].mxu0
        %v4353 = vadd.f32 0.0, %v4352
        %v4354 = vpop.f32.mrb[0].mxu0
        %v4355 = vpop.f32.mrb[0].mxu0
        %v4356 = vadd.f32 0.0, %v4355
        %v4357 = vpop.f32.mrb[0].mxu0
        %4358 = vdwg.mxu0
        %v4359 = vadd.f32 %v4158, %v4297
        %v4360 = vadd.f32 %v4159, %v4300
        %v4361 = vadd.f32 %v4160, %v4305
        %v4362 = vadd.f32 %v4161, %v4308
        %v4363 = vadd.f32 %v4162, %v4313
        %v4364 = vadd.f32 %v4163, %v4316
        %v4365 = vadd.f32 %v4164, %v4321
        %v4366 = vadd.f32 %v4165, %v4324
        %v4367 = vadd.f32 %v4166, %v4329
        %v4368 = vadd.f32 %v4167, %v4332
        %v4369 = vadd.f32 %v4168, %v4337
        %v4370 = vadd.f32 %v4169, %v4340
        %v4371 = vadd.f32 %v4170, %v4345
        %v4372 = vadd.f32 %v4171, %v4348
        %v4373 = vadd.f32 %v4172, %v4353
        %v4374 = vadd.f32 %v4173, %v4356
        %s4375 = scalar_lea.vmem %s10, 208
        %v4376 = vld [vmem:[%s4375] sm:$0xf]
        %v4377 = vld [vmem:[%s4375 + $0x4] sm:$0xf]
        %v4378 = vld [vmem:[%s4375 + $0x8] sm:$0xf]
        %v4379 = vld [vmem:[%s4375 + $0xc] sm:$0xf]
        %v4380 = vld [vmem:[%s4375 + $0x10] sm:$0xf]
        %v4381 = vld [vmem:[%s4375 + $0x14] sm:$0xf]
        %v4382 = vld [vmem:[%s4375 + $0x18] sm:$0xf]
        %v4383 = vld [vmem:[%s4375 + $0x1c] sm:$0xf]
        %v4384 = vld [vmem:[%s4375 + $0x20] sm:$0xf]
        %v4385 = vld [vmem:[%s4375 + $0x24] sm:$0xf]
        %v4386 = vld [vmem:[%s4375 + $0x28] sm:$0xf]
        %v4387 = vld [vmem:[%s4375 + $0x2c] sm:$0xf]
        %v4388 = vld [vmem:[%s4375 + $0x30] sm:$0x3]
        %v4389 = vpack.c.bf16 %v3545, %v3542
        %v4390 = vpack.c.bf16 %v3553, %v3550
        %v4391 = vpack.c.bf16 %v3561, %v3558
        %v4392 = vpack.c.bf16 %v3569, %v3566
        %v4393 = vpack.c.bf16 %v3577, %v3574
        %v4394 = vpack.c.bf16 %v3585, %v3582
        %v4395 = vpack.c.bf16 %v3593, %v3590
        %v4396 = vpack.c.bf16 %v3601, %v3598
        %v4410 = vunpack.c.l.b16 %v4376
        %v4411 = vunpack.c.l.b16 %v4377
        %v4412 = vunpack.c.l.b16 %v4378
        %v4413 = vunpack.c.l.b16 %v4379
        %v4414 = vunpack.c.l.b16 %v4380
        %v4415 = vunpack.c.l.b16 %v4381
        %v4416 = vunpack.c.l.b16 %v4382
        %v4417 = vunpack.c.l.b16 %v4383
        %v4418 = vunpack.c.l.b16 %v4384
        %v4419 = vunpack.c.l.b16 %v4385
        %v4420 = vunpack.c.l.b16 %v4386
        %v4421 = vunpack.c.l.b16 %v4387
        %v4422 = vunpack.c.l.b16 %v4388
        %v4423 = vpack.c.b16 %v4411, %v4410
        %v4424 = vpack.c.b16 %v4413, %v4412
        %v4425 = vpack.c.b16 %v4415, %v4414
        %v4426 = vpack.c.b16 %v4417, %v4416
        %v4427 = vpack.c.b16 %v4419, %v4418
        %v4428 = vpack.c.b16 %v4421, %v4420
        %v4429 = vpack.c.b16 %v4422, %v4422
        %v4437 = vsel %vm2525, %v4389, 0
        %v4440 = vsel %vm2525, %v4390, 0
        %v4443 = vsel %vm2525, %v4391, 0
        %v4446 = vsel %vm2525, %v4392, 0
        %v4449 = vsel %vm2525, %v4393, 0
        %v4452 = vsel %vm2525, %v4394, 0
        %v4455 = vsel %vm2525, %v4395, 0
        %v4458 = vsel %vm2525, %v4396, 0
        %v4461 = vsel %vm2532, %v4429, 0
        %4463 = vmatprep.subr.bf16.mxu0 0
        %4464 = vmatpush1.bf16.msra.mxu0 %v4423
        %4465 = vmatprep.subr.bf16.mxu0 0
        %4466 = vmatpush1.bf16.msra.mxu0 %v4424
        %4467 = vmatprep.subr.bf16.mxu0 0
        %4468 = vmatpush1.bf16.msra.mxu0 %v4425
        %4469 = vmatprep.subr.bf16.mxu0 0
        %4470 = vmatpush1.bf16.msra.mxu0 %v4426
        %4471 = vmatprep.subr.bf16.mxu0 0
        %4472 = vmatpush1.bf16.msra.mxu0 %v4427
        %4473 = vmatprep.subr.bf16.mxu0 0
        %4474 = vmatpush1.bf16.msra.mxu0 %v4428
        %4475 = vmatprep.subr.bf16.mxu0 0
        %4476 = vmatpush1.bf16.msra.mxu0 %v4461
        %4477 = vmatprep.subr.bf16.mxu0 0
        %4478 = vmatpush1.bf16.msra.mxu0 0
        %4479 = vmatprep.subr.bf16.mxu0 0
        %4480 = vmatpush1.bf16.msra.mxu0 0
        %4481 = vmatprep.subr.bf16.mxu0 0
        %4482 = vmatpush1.bf16.msra.mxu0 0
        %4483 = vmatprep.subr.bf16.mxu0 0
        %4484 = vmatpush1.bf16.msra.mxu0 0
        %4485 = vmatprep.subr.bf16.mxu0 0
        %4486 = vmatpush1.bf16.msra.mxu0 0
        %4487 = vmatprep.subr.bf16.mxu0 0
        %4488 = vmatpush1.bf16.msra.mxu0 0
        %4489 = vmatprep.subr.bf16.mxu0 0
        %4490 = vmatpush1.bf16.msra.mxu0 0
        %4491 = vmatprep.subr.bf16.mxu0 0
        %4492 = vmatpush1.bf16.msra.mxu0 0
        %4493 = vmatprep.subr.bf16.mxu0 0
        %4494 = vmatpush1.bf16.msra.mxu0 0
        %4495 = vmatprep.mubr.bf16.mxu0 0
        %4496 = vmatmul.mubr.bf16.gmra.mrb[0].mxu0 %v4437
        %v4497 = vpop.f32.mrb[0].mxu0
        %v4498 = vadd.f32 0.0, %v4497
        %v4499 = vpop.f32.mrb[0].mxu0
        %v4500 = vpop.f32.mrb[0].mxu0
        %v4501 = vadd.f32 0.0, %v4500
        %v4502 = vpop.f32.mrb[0].mxu0
        %4503 = vmatprep.mubr.bf16.mxu0 0
        %4504 = vmatmul.mubr.bf16.gmra.mrb[0].mxu0 %v4440
        %v4505 = vpop.f32.mrb[0].mxu0
        %v4506 = vadd.f32 0.0, %v4505
        %v4507 = vpop.f32.mrb[0].mxu0
        %v4508 = vpop.f32.mrb[0].mxu0
        %v4509 = vadd.f32 0.0, %v4508
        %v4510 = vpop.f32.mrb[0].mxu0
        %4511 = vmatprep.mubr.bf16.mxu0 0
        %4512 = vmatmul.mubr.bf16.gmra.mrb[0].mxu0 %v4443
        %v4513 = vpop.f32.mrb[0].mxu0
        %v4514 = vadd.f32 0.0, %v4513
        %v4515 = vpop.f32.mrb[0].mxu0
        %v4516 = vpop.f32.mrb[0].mxu0
        %v4517 = vadd.f32 0.0, %v4516
        %v4518 = vpop.f32.mrb[0].mxu0
        %4519 = vmatprep.mubr.bf16.mxu0 0
        %4520 = vmatmul.mubr.bf16.gmra.mrb[0].mxu0 %v4446
        %v4521 = vpop.f32.mrb[0].mxu0
        %v4522 = vadd.f32 0.0, %v4521
        %v4523 = vpop.f32.mrb[0].mxu0
        %v4524 = vpop.f32.mrb[0].mxu0
        %v4525 = vadd.f32 0.0, %v4524
        %v4526 = vpop.f32.mrb[0].mxu0
        %4527 = vmatprep.mubr.bf16.mxu0 0
        %4528 = vmatmul.mubr.bf16.gmra.mrb[0].mxu0 %v4449
        %v4529 = vpop.f32.mrb[0].mxu0
        %v4530 = vadd.f32 0.0, %v4529
        %v4531 = vpop.f32.mrb[0].mxu0
        %v4532 = vpop.f32.mrb[0].mxu0
        %v4533 = vadd.f32 0.0, %v4532
        %v4534 = vpop.f32.mrb[0].mxu0
        %4535 = vmatprep.mubr.bf16.mxu0 0
        %4536 = vmatmul.mubr.bf16.gmra.mrb[0].mxu0 %v4452
        %v4537 = vpop.f32.mrb[0].mxu0
        %v4538 = vadd.f32 0.0, %v4537
        %v4539 = vpop.f32.mrb[0].mxu0
        %v4540 = vpop.f32.mrb[0].mxu0
        %v4541 = vadd.f32 0.0, %v4540
        %v4542 = vpop.f32.mrb[0].mxu0
        %4543 = vmatprep.mubr.bf16.mxu0 0
        %4544 = vmatmul.mubr.bf16.gmra.mrb[0].mxu0 %v4455
        %v4545 = vpop.f32.mrb[0].mxu0
        %v4546 = vadd.f32 0.0, %v4545
        %v4547 = vpop.f32.mrb[0].mxu0
        %v4548 = vpop.f32.mrb[0].mxu0
        %v4549 = vadd.f32 0.0, %v4548
        %v4550 = vpop.f32.mrb[0].mxu0
        %4551 = vmatprep.mubr.bf16.mxu0 0
        %4552 = vmatmul.mubr.bf16.gmra.mrb[0].mxu0 %v4458
        %v4553 = vpop.f32.mrb[0].mxu0
        %v4554 = vadd.f32 0.0, %v4553
        %v4555 = vpop.f32.mrb[0].mxu0
        %v4556 = vpop.f32.mrb[0].mxu0
        %v4557 = vadd.f32 0.0, %v4556
        %v4558 = vpop.f32.mrb[0].mxu0
        %4559 = vdwg.mxu0
        %v4560 = vadd.f32 %v4359, %v4498
        %v4561 = vadd.f32 %v4360, %v4501
        %v4562 = vadd.f32 %v4361, %v4506
        %v4563 = vadd.f32 %v4362, %v4509
        %v4564 = vadd.f32 %v4363, %v4514
        %v4565 = vadd.f32 %v4364, %v4517
        %v4566 = vadd.f32 %v4365, %v4522
        %v4567 = vadd.f32 %v4366, %v4525
        %v4568 = vadd.f32 %v4367, %v4530
        %v4569 = vadd.f32 %v4368, %v4533
        %v4570 = vadd.f32 %v4369, %v4538
        %v4571 = vadd.f32 %v4370, %v4541
        %v4572 = vadd.f32 %v4371, %v4546
        %v4573 = vadd.f32 %v4372, %v4549
        %v4574 = vadd.f32 %v4373, %v4554
        %v4575 = vadd.f32 %v4374, %v4557
        %v4576 = vld [vmem:[%s11] sm:$0xff]
        %v4577 = vld [vmem:[%s11 + $0x8] sm:$0xff]
        %v4578 = vld [vmem:[%s11 + $0x10] sm:$0xff]
        %v4579 = vld [vmem:[%s11 + $0x18] sm:$0xff]
        %v4580 = vld [vmem:[%s11 + $0x20] sm:$0xff]
        %v4581 = vld [vmem:[%s11 + $0x28] sm:$0xff]
        %v4582 = vld [vmem:[%s11 + $0x30] sm:$0xff]
        %v4583 = vld [vmem:[%s11 + $0x38] sm:$0xff]
        %v4584 = vld [vmem:[%s11 + $0x40] sm:$0xff]
        %v4585 = vld [vmem:[%s11 + $0x48] sm:$0xff]
        %v4586 = vld [vmem:[%s11 + $0x50] sm:$0xff]
        %v4587 = vld [vmem:[%s11 + $0x58] sm:$0xff]
        %v4588 = vld [vmem:[%s11 + $0x60] sm:$0xff]
        %v4589 = vld [vmem:[%s11 + $0x68] sm:$0xff]
        %v4590 = vld [vmem:[%s11 + $0x70] sm:$0xff]
        %v4591 = vld [vmem:[%s11 + $0x78] sm:$0xff]
        %4593 = vset.pattern.permute.xlu0 0
        %4594 = vperm.xlu0 %4593, %v4576
        %v4595 = vpop.permute.xlu0 %4594
        %4598 = vset.pattern.permute.xlu0 0
        %4599 = vperm.xlu0 %4598, %v4577
        %v4600 = vpop.permute.xlu0 %4599
        %4603 = vset.pattern.permute.xlu0 0
        %4604 = vperm.xlu0 %4603, %v4578
        %v4605 = vpop.permute.xlu0 %4604
        %4608 = vset.pattern.permute.xlu0 0
        %4609 = vperm.xlu0 %4608, %v4579
        %v4610 = vpop.permute.xlu0 %4609
        %4613 = vset.pattern.permute.xlu0 0
        %4614 = vperm.xlu0 %4613, %v4580
        %v4615 = vpop.permute.xlu0 %4614
        %4618 = vset.pattern.permute.xlu0 0
        %4619 = vperm.xlu0 %4618, %v4581
        %v4620 = vpop.permute.xlu0 %4619
        %4623 = vset.pattern.permute.xlu0 0
        %4624 = vperm.xlu0 %4623, %v4582
        %v4625 = vpop.permute.xlu0 %4624
        %4628 = vset.pattern.permute.xlu0 0
        %4629 = vperm.xlu0 %4628, %v4583
        %v4630 = vpop.permute.xlu0 %4629
        %4633 = vset.pattern.permute.xlu0 0
        %4634 = vperm.xlu0 %4633, %v4584
        %v4635 = vpop.permute.xlu0 %4634
        %4638 = vset.pattern.permute.xlu0 0
        %4639 = vperm.xlu0 %4638, %v4585
        %v4640 = vpop.permute.xlu0 %4639
        %4643 = vset.pattern.permute.xlu0 0
        %4644 = vperm.xlu0 %4643, %v4586
        %v4645 = vpop.permute.xlu0 %4644
        %4648 = vset.pattern.permute.xlu0 0
        %4649 = vperm.xlu0 %4648, %v4587
        %v4650 = vpop.permute.xlu0 %4649
        %4653 = vset.pattern.permute.xlu0 0
        %4654 = vperm.xlu0 %4653, %v4588
        %v4655 = vpop.permute.xlu0 %4654
        %4658 = vset.pattern.permute.xlu0 0
        %4659 = vperm.xlu0 %4658, %v4589
        %v4660 = vpop.permute.xlu0 %4659
        %4663 = vset.pattern.permute.xlu0 0
        %4664 = vperm.xlu0 %4663, %v4590
        %v4665 = vpop.permute.xlu0 %4664
        %4668 = vset.pattern.permute.xlu0 0
        %4669 = vperm.xlu0 %4668, %v4591
        %v4670 = vpop.permute.xlu0 %4669
        %v4672 = vadd.f32 %v4560, %v4595
        %v4673 = vadd.f32 %v4561, %v4600
        %v4674 = vadd.f32 %v4562, %v4605
        %v4675 = vadd.f32 %v4563, %v4610
        %v4676 = vadd.f32 %v4564, %v4615
        %v4677 = vadd.f32 %v4565, %v4620
        %v4678 = vadd.f32 %v4566, %v4625
        %v4679 = vadd.f32 %v4567, %v4630
        %v4680 = vadd.f32 %v4568, %v4635
        %v4681 = vadd.f32 %v4569, %v4640
        %v4682 = vadd.f32 %v4570, %v4645
        %v4683 = vadd.f32 %v4571, %v4650
        %v4684 = vadd.f32 %v4572, %v4655
        %v4685 = vadd.f32 %v4573, %v4660
        %v4686 = vadd.f32 %v4574, %v4665
        %v4687 = vadd.f32 %v4575, %v4670
        %vm4688 = vcmp.gt.f32.partialorder %v4672, 0.0
        %vm4689 = vcmp.gt.f32.partialorder %v4673, 0.0
        %vm4690 = vcmp.gt.f32.partialorder %v4674, 0.0
        %vm4691 = vcmp.gt.f32.partialorder %v4675, 0.0
        %vm4692 = vcmp.gt.f32.partialorder %v4676, 0.0
        %vm4693 = vcmp.gt.f32.partialorder %v4677, 0.0
        %vm4694 = vcmp.gt.f32.partialorder %v4678, 0.0
        %vm4695 = vcmp.gt.f32.partialorder %v4679, 0.0
        %vm4696 = vcmp.gt.f32.partialorder %v4680, 0.0
        %vm4697 = vcmp.gt.f32.partialorder %v4681, 0.0
        %vm4698 = vcmp.gt.f32.partialorder %v4682, 0.0
        %vm4699 = vcmp.gt.f32.partialorder %v4683, 0.0
        %vm4700 = vcmp.gt.f32.partialorder %v4684, 0.0
        %vm4701 = vcmp.gt.f32.partialorder %v4685, 0.0
        %vm4702 = vcmp.gt.f32.partialorder %v4686, 0.0
        %vm4703 = vcmp.gt.f32.partialorder %v4687, 0.0
        %v4704 = vmin.f32 %v4672, 0.0
        %v4705 = vmin.f32 %v4673, 0.0
        %v4706 = vmin.f32 %v4674, 0.0
        %v4707 = vmin.f32 %v4675, 0.0
        %v4708 = vmin.f32 %v4676, 0.0
        %v4709 = vmin.f32 %v4677, 0.0
        %v4710 = vmin.f32 %v4678, 0.0
        %v4711 = vmin.f32 %v4679, 0.0
        %v4712 = vmin.f32 %v4680, 0.0
        %v4713 = vmin.f32 %v4681, 0.0
        %v4714 = vmin.f32 %v4682, 0.0
        %v4715 = vmin.f32 %v4683, 0.0
        %v4716 = vmin.f32 %v4684, 0.0
        %v4717 = vmin.f32 %v4685, 0.0
        %v4718 = vmin.f32 %v4686, 0.0
        %v4719 = vmin.f32 %v4687, 0.0
        %v4720 = vmul.f32 %v4704, 1.442695
        %v4721 = vpow.pop %v4720
        %v4722 = vmul.f32 %v4705, 1.442695
        %v4723 = vpow.pop %v4722
        %v4724 = vmul.f32 %v4706, 1.442695
        %v4725 = vpow.pop %v4724
        %v4726 = vmul.f32 %v4707, 1.442695
        %v4727 = vpow.pop %v4726
        %v4728 = vmul.f32 %v4708, 1.442695
        %v4729 = vpow.pop %v4728
        %v4730 = vmul.f32 %v4709, 1.442695
        %v4731 = vpow.pop %v4730
        %v4732 = vmul.f32 %v4710, 1.442695
        %v4733 = vpow.pop %v4732
        %v4734 = vmul.f32 %v4711, 1.442695
        %v4735 = vpow.pop %v4734
        %v4736 = vmul.f32 %v4712, 1.442695
        %v4737 = vpow.pop %v4736
        %v4738 = vmul.f32 %v4713, 1.442695
        %v4739 = vpow.pop %v4738
        %v4740 = vmul.f32 %v4714, 1.442695
        %v4741 = vpow.pop %v4740
        %v4742 = vmul.f32 %v4715, 1.442695
        %v4743 = vpow.pop %v4742
        %v4744 = vmul.f32 %v4716, 1.442695
        %v4745 = vpow.pop %v4744
        %v4746 = vmul.f32 %v4717, 1.442695
        %v4747 = vpow.pop %v4746
        %v4748 = vmul.f32 %v4718, 1.442695
        %v4749 = vpow.pop %v4748
        %v4750 = vmul.f32 %v4719, 1.442695
        %v4751 = vpow.pop %v4750
        %v4752 = vsub.f32 %v4721, 1.0
        %v4753 = vsub.f32 %v4723, 1.0
        %v4754 = vsub.f32 %v4725, 1.0
        %v4755 = vsub.f32 %v4727, 1.0
        %v4756 = vsub.f32 %v4729, 1.0
        %v4757 = vsub.f32 %v4731, 1.0
        %v4758 = vsub.f32 %v4733, 1.0
        %v4759 = vsub.f32 %v4735, 1.0
        %v4760 = vsub.f32 %v4737, 1.0
        %v4761 = vsub.f32 %v4739, 1.0
        %v4762 = vsub.f32 %v4741, 1.0
        %v4763 = vsub.f32 %v4743, 1.0
        %v4764 = vsub.f32 %v4745, 1.0
        %v4765 = vsub.f32 %v4747, 1.0
        %v4766 = vsub.f32 %v4749, 1.0
        %v4767 = vsub.f32 %v4751, 1.0
        %v4768 = vsel %vm4688, %v4672, %v4752
        %v4769 = vsel %vm4689, %v4673, %v4753
        %v4770 = vsel %vm4690, %v4674, %v4754
        %v4771 = vsel %vm4691, %v4675, %v4755
        %v4772 = vsel %vm4692, %v4676, %v4756
        %v4773 = vsel %vm4693, %v4677, %v4757
        %v4774 = vsel %vm4694, %v4678, %v4758
        %v4775 = vsel %vm4695, %v4679, %v4759
        %v4776 = vsel %vm4696, %v4680, %v4760
        %v4777 = vsel %vm4697, %v4681, %v4761
        %v4778 = vsel %vm4698, %v4682, %v4762
        %v4779 = vsel %vm4699, %v4683, %v4763
        %v4780 = vsel %vm4700, %v4684, %v4764
        %v4781 = vsel %vm4701, %v4685, %v4765
        %v4782 = vsel %vm4702, %v4686, %v4766
        %v4783 = vsel %vm4703, %v4687, %v4767
        %v4784 = vpack.c.bf16 %v2848, %v2847
        %v4785 = vpack.c.bf16 %v2850, %v2849
        %v4786 = vld [vmem:[%s12] sm:$0xf]
        %v4787 = vld [vmem:[%s12 + $0x4] sm:$0xf]
        %v4788 = vld [vmem:[%s12 + $0x8] sm:$0xf]
        %v4789 = vld [vmem:[%s12 + $0xc] sm:$0xf]
        %v4790 = vld [vmem:[%s12 + $0x10] sm:$0xf]
        %v4791 = vld [vmem:[%s12 + $0x14] sm:$0xf]
        %v4792 = vld [vmem:[%s12 + $0x18] sm:$0xf]
        %v4793 = vld [vmem:[%s12 + $0x1c] sm:$0xf]
        %v4794 = vld [vmem:[%s12 + $0x20] sm:$0xf]
        %v4795 = vld [vmem:[%s12 + $0x24] sm:$0xf]
        %v4796 = vld [vmem:[%s12 + $0x28] sm:$0xf]
        %v4797 = vld [vmem:[%s12 + $0x2c] sm:$0xf]
        %v4798 = vld [vmem:[%s12 + $0x30] sm:$0xf]
        %v4799 = vld [vmem:[%s12 + $0x34] sm:$0xf]
        %v4800 = vld [vmem:[%s12 + $0x38] sm:$0xf]
        %v4801 = vld [vmem:[%s12 + $0x3c] sm:$0xf]
        %v4802 = vld [vmem:[%s12 + $0x40] sm:$0xf]
        %v4803 = vld [vmem:[%s12 + $0x44] sm:$0xf]
        %v4804 = vld [vmem:[%s12 + $0x48] sm:$0xf]
        %v4805 = vld [vmem:[%s12 + $0x4c] sm:$0xf]
        %v4806 = vld [vmem:[%s12 + $0x50] sm:$0xf]
        %v4807 = vld [vmem:[%s12 + $0x54] sm:$0xf]
        %v4808 = vld [vmem:[%s12 + $0x58] sm:$0xf]
        %v4809 = vld [vmem:[%s12 + $0x5c] sm:$0xf]
        %v4834 = vunpack.c.l.b16 %v4786
        %v4835 = vunpack.c.l.b16 %v4787
        %v4836 = vunpack.c.l.b16 %v4788
        %v4837 = vunpack.c.l.b16 %v4789
        %v4838 = vunpack.c.l.b16 %v4790
        %v4839 = vunpack.c.l.b16 %v4791
        %v4840 = vunpack.c.l.b16 %v4792
        %v4841 = vunpack.c.l.b16 %v4793
        %v4842 = vunpack.c.l.b16 %v4794
        %v4843 = vunpack.c.l.b16 %v4795
        %v4844 = vunpack.c.l.b16 %v4796
        %v4845 = vunpack.c.l.b16 %v4797
        %v4846 = vunpack.c.l.b16 %v4798
        %v4847 = vunpack.c.l.b16 %v4799
        %v4848 = vunpack.c.l.b16 %v4800
        %v4849 = vunpack.c.l.b16 %v4801
        %v4850 = vunpack.c.l.b16 %v4802
        %v4851 = vunpack.c.l.b16 %v4803
        %v4852 = vunpack.c.l.b16 %v4804
        %v4853 = vunpack.c.l.b16 %v4805
        %v4854 = vunpack.c.l.b16 %v4806
        %v4855 = vunpack.c.l.b16 %v4807
        %v4856 = vunpack.c.l.b16 %v4808
        %v4857 = vunpack.c.l.b16 %v4809
        %v4858 = vpack.c.b16 %v4835, %v4834
        %v4859 = vpack.c.b16 %v4837, %v4836
        %v4860 = vpack.c.b16 %v4839, %v4838
        %v4861 = vpack.c.b16 %v4841, %v4840
        %v4862 = vpack.c.b16 %v4843, %v4842
        %v4863 = vpack.c.b16 %v4845, %v4844
        %v4864 = vpack.c.b16 %v4847, %v4846
        %v4865 = vpack.c.b16 %v4849, %v4848
        %v4866 = vpack.c.b16 %v4851, %v4850
        %v4867 = vpack.c.b16 %v4853, %v4852
        %v4868 = vpack.c.b16 %v4855, %v4854
        %v4869 = vpack.c.b16 %v4857, %v4856
        %vm4870 = vcmask 261120
        %v4872 = vsel %vm4870, %v4858, 0
        %v4875 = vsel %vm4870, %v4859, 0
        %v4878 = vsel %vm4870, %v4860, 0
        %v4881 = vsel %vm4870, %v4861, 0
        %v4884 = vsel %vm4870, %v4862, 0
        %v4887 = vsel %vm4870, %v4863, 0
        %v4890 = vsel %vm4870, %v4864, 0
        %v4893 = vsel %vm4870, %v4865, 0
        %v4896 = vsel %vm4870, %v4866, 0
        %v4899 = vsel %vm4870, %v4867, 0
        %v4902 = vsel %vm4870, %v4868, 0
        %v4905 = vsel %vm4870, %v4869, 0
        %4907 = vmatprep.subr.bf16.mxu0 0
        %4908 = vmatpush1.bf16.msra.mxu0 %v4784
        %4909 = vmatprep.subr.bf16.mxu0 0
        %4910 = vmatpush1.bf16.msra.mxu0 %v4785
        %4911 = vmatprep.subr.bf16.mxu0 0
        %4912 = vmatpush1.bf16.msra.mxu0 0
        %4913 = vmatprep.subr.bf16.mxu0 0
        %4914 = vmatpush1.bf16.msra.mxu0 0
        %4915 = vmatprep.subr.bf16.mxu0 0
        %4916 = vmatpush1.bf16.msra.mxu0 0
        %4917 = vmatprep.subr.bf16.mxu0 0
        %4918 = vmatpush1.bf16.msra.mxu0 0
        %4919 = vmatprep.subr.bf16.mxu0 0
        %4920 = vmatpush1.bf16.msra.mxu0 0
        %4921 = vmatprep.subr.bf16.mxu0 0
        %4922 = vmatpush1.bf16.msra.mxu0 0
        %4923 = vmatprep.subr.bf16.mxu0 0
        %4924 = vmatpush1.bf16.msra.mxu0 0
        %4925 = vmatprep.subr.bf16.mxu0 0
        %4926 = vmatpush1.bf16.msra.mxu0 0
        %4927 = vmatprep.subr.bf16.mxu0 0
        %4928 = vmatpush1.bf16.msra.mxu0 0
        %4929 = vmatprep.subr.bf16.mxu0 0
        %4930 = vmatpush1.bf16.msra.mxu0 0
        %4931 = vmatprep.subr.bf16.mxu0 0
        %4932 = vmatpush1.bf16.msra.mxu0 0
        %4933 = vmatprep.subr.bf16.mxu0 0
        %4934 = vmatpush1.bf16.msra.mxu0 0
        %4935 = vmatprep.subr.bf16.mxu0 0
        %4936 = vmatpush1.bf16.msra.mxu0 0
        %4937 = vmatprep.subr.bf16.mxu0 0
        %4938 = vmatpush1.bf16.msra.mxu0 0
        %4939 = vmatprep.mubr.bf16.mxu0 0
        %4940 = vmatmul.mubr.bf16.gmra.mrb[0].mxu0 %v4872
        %v4941 = vpop.f32.mrb[0].mxu0
        %v4942 = vadd.f32 0.0, %v4941
        %v4943 = vpop.f32.mrb[0].mxu0
        %v4944 = vpop.f32.mrb[0].mxu0
        %v4945 = vadd.f32 0.0, %v4944
        %v4946 = vpop.f32.mrb[0].mxu0
        %4947 = vmatprep.mubr.bf16.mxu0 0
        %4948 = vmatmul.mubr.bf16.gmra.mrb[0].mxu0 %v4875
        %v4949 = vpop.f32.mrb[0].mxu0
        %v4950 = vadd.f32 0.0, %v4949
        %v4951 = vpop.f32.mrb[0].mxu0
        %v4952 = vpop.f32.mrb[0].mxu0
        %v4953 = vadd.f32 0.0, %v4952
        %v4954 = vpop.f32.mrb[0].mxu0
        %4955 = vmatprep.mubr.bf16.mxu0 0
        %4956 = vmatmul.mubr.bf16.gmra.mrb[0].mxu0 %v4878
        %v4957 = vpop.f32.mrb[0].mxu0
        %v4958 = vadd.f32 0.0, %v4957
        %v4959 = vpop.f32.mrb[0].mxu0
        %v4960 = vpop.f32.mrb[0].mxu0
        %v4961 = vadd.f32 0.0, %v4960
        %v4962 = vpop.f32.mrb[0].mxu0
        %4963 = vmatprep.mubr.bf16.mxu0 0
        %4964 = vmatmul.mubr.bf16.gmra.mrb[0].mxu0 %v4881
        %v4965 = vpop.f32.mrb[0].mxu0
        %v4966 = vadd.f32 0.0, %v4965
        %v4967 = vpop.f32.mrb[0].mxu0
        %v4968 = vpop.f32.mrb[0].mxu0
        %v4969 = vadd.f32 0.0, %v4968
        %v4970 = vpop.f32.mrb[0].mxu0
        %4971 = vmatprep.mubr.bf16.mxu0 0
        %4972 = vmatmul.mubr.bf16.gmra.mrb[0].mxu0 %v4884
        %v4973 = vpop.f32.mrb[0].mxu0
        %v4974 = vadd.f32 0.0, %v4973
        %v4975 = vpop.f32.mrb[0].mxu0
        %v4976 = vpop.f32.mrb[0].mxu0
        %v4977 = vadd.f32 0.0, %v4976
        %v4978 = vpop.f32.mrb[0].mxu0
        %4979 = vmatprep.mubr.bf16.mxu0 0
        %4980 = vmatmul.mubr.bf16.gmra.mrb[0].mxu0 %v4887
        %v4981 = vpop.f32.mrb[0].mxu0
        %v4982 = vadd.f32 0.0, %v4981
        %v4983 = vpop.f32.mrb[0].mxu0
        %v4984 = vpop.f32.mrb[0].mxu0
        %v4985 = vadd.f32 0.0, %v4984
        %v4986 = vpop.f32.mrb[0].mxu0
        %4987 = vmatprep.mubr.bf16.mxu0 0
        %4988 = vmatmul.mubr.bf16.gmra.mrb[0].mxu0 %v4890
        %v4989 = vpop.f32.mrb[0].mxu0
        %v4990 = vadd.f32 0.0, %v4989
        %v4991 = vpop.f32.mrb[0].mxu0
        %v4992 = vpop.f32.mrb[0].mxu0
        %v4993 = vadd.f32 0.0, %v4992
        %v4994 = vpop.f32.mrb[0].mxu0
        %4995 = vmatprep.mubr.bf16.mxu0 0
        %4996 = vmatmul.mubr.bf16.gmra.mrb[0].mxu0 %v4893
        %v4997 = vpop.f32.mrb[0].mxu0
        %v4998 = vadd.f32 0.0, %v4997
        %v4999 = vpop.f32.mrb[0].mxu0
        %v5000 = vpop.f32.mrb[0].mxu0
        %v5001 = vadd.f32 0.0, %v5000
        %v5002 = vpop.f32.mrb[0].mxu0
        %5003 = vmatprep.mubr.bf16.mxu0 0
        %5004 = vmatmul.mubr.bf16.gmra.mrb[0].mxu0 %v4896
        %v5005 = vpop.f32.mrb[0].mxu0
        %v5006 = vadd.f32 0.0, %v5005
        %v5007 = vpop.f32.mrb[0].mxu0
        %v5008 = vpop.f32.mrb[0].mxu0
        %v5009 = vadd.f32 0.0, %v5008
        %v5010 = vpop.f32.mrb[0].mxu0
        %5011 = vmatprep.mubr.bf16.mxu0 0
        %5012 = vmatmul.mubr.bf16.gmra.mrb[0].mxu0 %v4899
        %v5013 = vpop.f32.mrb[0].mxu0
        %v5014 = vadd.f32 0.0, %v5013
        %v5015 = vpop.f32.mrb[0].mxu0
        %v5016 = vpop.f32.mrb[0].mxu0
        %v5017 = vadd.f32 0.0, %v5016
        %v5018 = vpop.f32.mrb[0].mxu0
        %5019 = vmatprep.mubr.bf16.mxu0 0
        %5020 = vmatmul.mubr.bf16.gmra.mrb[0].mxu0 %v4902
        %v5021 = vpop.f32.mrb[0].mxu0
        %v5022 = vadd.f32 0.0, %v5021
        %v5023 = vpop.f32.mrb[0].mxu0
        %v5024 = vpop.f32.mrb[0].mxu0
        %v5025 = vadd.f32 0.0, %v5024
        %v5026 = vpop.f32.mrb[0].mxu0
        %5027 = vmatprep.mubr.bf16.mxu0 0
        %5028 = vmatmul.mubr.bf16.gmra.mrb[0].mxu0 %v4905
        %v5029 = vpop.f32.mrb[0].mxu0
        %v5030 = vadd.f32 0.0, %v5029
        %v5031 = vpop.f32.mrb[0].mxu0
        %v5032 = vpop.f32.mrb[0].mxu0
        %v5033 = vadd.f32 0.0, %v5032
        %v5034 = vpop.f32.mrb[0].mxu0
        %5035 = vdwg.mxu0
        %v5036 = vld [vmem:[#allocation8] sm:$0xf]
        %v5037 = vld [vmem:[#allocation8 + $0x4] sm:$0xf]
        %v5038 = vld [vmem:[#allocation8 + $0x8] sm:$0xf]
        %v5039 = vld [vmem:[#allocation8 + $0xc] sm:$0xf]
        %v5040 = vld [vmem:[#allocation8 + $0x10] sm:$0xf]
        %v5041 = vld [vmem:[#allocation8 + $0x14] sm:$0xf]
        %v5042 = vld [vmem:[#allocation8 + $0x18] sm:$0x1]
        %v5043 = vpack.c.bf16 %v4945, %v4942
        %v5044 = vpack.c.bf16 %v4953, %v4950
        %v5045 = vpack.c.bf16 %v4961, %v4958
        %v5046 = vpack.c.bf16 %v4969, %v4966
        %s5047 = scalar_lea.vmem [#allocation8], 28
        %v5048 = vld [vmem:[%s5047] sm:$0xf]
        %v5049 = vld [vmem:[%s5047 + $0x4] sm:$0xf]
        %v5050 = vld [vmem:[%s5047 + $0x8] sm:$0xf]
        %v5051 = vld [vmem:[%s5047 + $0xc] sm:$0xf]
        %v5052 = vld [vmem:[%s5047 + $0x10] sm:$0xf]
        %v5053 = vld [vmem:[%s5047 + $0x14] sm:$0xf]
        %v5054 = vld [vmem:[%s5047 + $0x18] sm:$0x1]
        %v5055 = vpack.c.bf16 %v4977, %v4974
        %v5056 = vpack.c.bf16 %v4985, %v4982
        %v5057 = vpack.c.bf16 %v4993, %v4990
        %v5058 = vpack.c.bf16 %v5001, %v4998
        %v5066 = vunpack.c.l.b16 %v5048
        %v5067 = vunpack.c.l.b16 %v5049
        %v5068 = vunpack.c.l.b16 %v5050
        %v5069 = vunpack.c.l.b16 %v5051
        %v5070 = vunpack.c.l.b16 %v5052
        %v5071 = vunpack.c.l.b16 %v5053
        %v5072 = vunpack.c.l.b16 %v5054
        %v5073 = vpack.c.b16 %v5067, %v5066
        %v5074 = vpack.c.b16 %v5069, %v5068
        %v5075 = vpack.c.b16 %v5071, %v5070
        %v5076 = vpack.c.b16 %v5072, %v5072
        %vm5080 = vcmask 408576
        %v5082 = vsel %vm5080, %v5055, 0
        %v5085 = vsel %vm5080, %v5056, 0
        %v5088 = vsel %vm5080, %v5057, 0
        %v5091 = vsel %vm5080, %v5058, 0
        %vm5093 = vcmask 1040384
        %v5095 = vsel %vm5093, %v5076, 0
        %5097 = vmatprep.subr.bf16.mxu0 0
        %5098 = vmatpush1.bf16.msra.mxu0 %v5073
        %5099 = vmatprep.subr.bf16.mxu0 0
        %5100 = vmatpush1.bf16.msra.mxu0 %v5074
        %5101 = vmatprep.subr.bf16.mxu0 0
        %5102 = vmatpush1.bf16.msra.mxu0 %v5075
        %5103 = vmatprep.subr.bf16.mxu0 0
        %5104 = vmatpush1.bf16.msra.mxu0 %v5095
        %5105 = vmatprep.subr.bf16.mxu0 0
        %5106 = vmatpush1.bf16.msra.mxu0 0
        %5107 = vmatprep.subr.bf16.mxu0 0
        %5108 = vmatpush1.bf16.msra.mxu0 0
        %5109 = vmatprep.subr.bf16.mxu0 0
        %5110 = vmatpush1.bf16.msra.mxu0 0
        %5111 = vmatprep.subr.bf16.mxu0 0
        %5112 = vmatpush1.bf16.msra.mxu0 0
        %5113 = vmatprep.subr.bf16.mxu0 0
        %5114 = vmatpush1.bf16.msra.mxu0 0
        %5115 = vmatprep.subr.bf16.mxu0 0
        %5116 = vmatpush1.bf16.msra.mxu0 0
        %5117 = vmatprep.subr.bf16.mxu0 0
        %5118 = vmatpush1.bf16.msra.mxu0 0
        %5119 = vmatprep.subr.bf16.mxu0 0
        %5120 = vmatpush1.bf16.msra.mxu0 0
        %5121 = vmatprep.subr.bf16.mxu0 0
        %5122 = vmatpush1.bf16.msra.mxu0 0
        %5123 = vmatprep.subr.bf16.mxu0 0
        %5124 = vmatpush1.bf16.msra.mxu0 0
        %5125 = vmatprep.subr.bf16.mxu0 0
        %5126 = vmatpush1.bf16.msra.mxu0 0
        %5127 = vmatprep.subr.bf16.mxu0 0
        %5128 = vmatpush1.bf16.msra.mxu0 0
        %5129 = vmatprep.mubr.bf16.mxu0 0
        %5130 = vmatmul.mubr.bf16.gmra.mrb[0].mxu0 %v5082
        %v5131 = vpop.f32.mrb[0].mxu0
        %v5132 = vadd.f32 0.0, %v5131
        %v5133 = vpop.f32.mrb[0].mxu0
        %v5134 = vpop.f32.mrb[0].mxu0
        %v5135 = vadd.f32 0.0, %v5134
        %v5136 = vpop.f32.mrb[0].mxu0
        %5137 = vmatprep.mubr.bf16.mxu0 0
        %5138 = vmatmul.mubr.bf16.gmra.mrb[0].mxu0 %v5085
        %v5139 = vpop.f32.mrb[0].mxu0
        %v5140 = vadd.f32 0.0, %v5139
        %v5141 = vpop.f32.mrb[0].mxu0
        %v5142 = vpop.f32.mrb[0].mxu0
        %v5143 = vadd.f32 0.0, %v5142
        %v5144 = vpop.f32.mrb[0].mxu0
        %5145 = vmatprep.mubr.bf16.mxu0 0
        %5146 = vmatmul.mubr.bf16.gmra.mrb[0].mxu0 %v5088
        %v5147 = vpop.f32.mrb[0].mxu0
        %v5148 = vadd.f32 0.0, %v5147
        %v5149 = vpop.f32.mrb[0].mxu0
        %v5150 = vpop.f32.mrb[0].mxu0
        %v5151 = vadd.f32 0.0, %v5150
        %v5152 = vpop.f32.mrb[0].mxu0
        %5153 = vmatprep.mubr.bf16.mxu0 0
        %5154 = vmatmul.mubr.bf16.gmra.mrb[0].mxu0 %v5091
        %v5155 = vpop.f32.mrb[0].mxu0
        %v5156 = vadd.f32 0.0, %v5155
        %v5157 = vpop.f32.mrb[0].mxu0
        %v5158 = vpop.f32.mrb[0].mxu0
        %v5159 = vadd.f32 0.0, %v5158
        %v5160 = vpop.f32.mrb[0].mxu0
        %5161 = vdwg.mxu0
        %v5169 = vunpack.c.l.b16 %v5036
        %v5170 = vunpack.c.l.b16 %v5037
        %v5171 = vunpack.c.l.b16 %v5038
        %v5172 = vunpack.c.l.b16 %v5039
        %v5173 = vunpack.c.l.b16 %v5040
        %v5174 = vunpack.c.l.b16 %v5041
        %v5175 = vunpack.c.l.b16 %v5042
        %v5176 = vpack.c.b16 %v5170, %v5169
        %v5177 = vpack.c.b16 %v5172, %v5171
        %v5178 = vpack.c.b16 %v5174, %v5173
        %v5179 = vpack.c.b16 %v5175, %v5175
        %v5184 = vsel %vm5080, %v5043, 0
        %v5187 = vsel %vm5080, %v5044, 0
        %v5190 = vsel %vm5080, %v5045, 0
        %v5193 = vsel %vm5080, %v5046, 0
        %v5196 = vsel %vm5093, %v5179, 0
        %5198 = vmatprep.subr.bf16.mxu0 0
        %5199 = vmatpush1.bf16.msra.mxu0 %v5176
        %5200 = vmatprep.subr.bf16.mxu0 0
        %5201 = vmatpush1.bf16.msra.mxu0 %v5177
        %5202 = vmatprep.subr.bf16.mxu0 0
        %5203 = vmatpush1.bf16.msra.mxu0 %v5178
        %5204 = vmatprep.subr.bf16.mxu0 0
        %5205 = vmatpush1.bf16.msra.mxu0 %v5196
        %5206 = vmatprep.subr.bf16.mxu0 0
        %5207 = vmatpush1.bf16.msra.mxu0 0
        %5208 = vmatprep.subr.bf16.mxu0 0
        %5209 = vmatpush1.bf16.msra.mxu0 0
        %5210 = vmatprep.subr.bf16.mxu0 0
        %5211 = vmatpush1.bf16.msra.mxu0 0
        %5212 = vmatprep.subr.bf16.mxu0 0
        %5213 = vmatpush1.bf16.msra.mxu0 0
        %5214 = vmatprep.subr.bf16.mxu0 0
        %5215 = vmatpush1.bf16.msra.mxu0 0
        %5216 = vmatprep.subr.bf16.mxu0 0
        %5217 = vmatpush1.bf16.msra.mxu0 0
        %5218 = vmatprep.subr.bf16.mxu0 0
        %5219 = vmatpush1.bf16.msra.mxu0 0
        %5220 = vmatprep.subr.bf16.mxu0 0
        %5221 = vmatpush1.bf16.msra.mxu0 0
        %5222 = vmatprep.subr.bf16.mxu0 0
        %5223 = vmatpush1.bf16.msra.mxu0 0
        %5224 = vmatprep.subr.bf16.mxu0 0
        %5225 = vmatpush1.bf16.msra.mxu0 0
        %5226 = vmatprep.subr.bf16.mxu0 0
        %5227 = vmatpush1.bf16.msra.mxu0 0
        %5228 = vmatprep.subr.bf16.mxu0 0
        %5229 = vmatpush1.bf16.msra.mxu0 0
        %5230 = vmatprep.mubr.bf16.mxu0 0
        %5231 = vmatmul.mubr.bf16.gmra.mrb[0].mxu0 %v5184
        %v5232 = vpop.f32.mrb[0].mxu0
        %v5233 = vadd.f32 %v5132, %v5232
        %v5234 = vpop.f32.mrb[0].mxu0
        %v5235 = vpop.f32.mrb[0].mxu0
        %v5236 = vadd.f32 %v5135, %v5235
        %v5237 = vpop.f32.mrb[0].mxu0
        %5238 = vmatprep.mubr.bf16.mxu0 0
        %5239 = vmatmul.mubr.bf16.gmra.mrb[0].mxu0 %v5187
        %v5240 = vpop.f32.mrb[0].mxu0
        %v5241 = vadd.f32 %v5140, %v5240
        %v5242 = vpop.f32.mrb[0].mxu0
        %v5243 = vpop.f32.mrb[0].mxu0
        %v5244 = vadd.f32 %v5143, %v5243
        %v5245 = vpop.f32.mrb[0].mxu0
        %5246 = vmatprep.mubr.bf16.mxu0 0
        %5247 = vmatmul.mubr.bf16.gmra.mrb[0].mxu0 %v5190
        %v5248 = vpop.f32.mrb[0].mxu0
        %v5249 = vadd.f32 %v5148, %v5248
        %v5250 = vpop.f32.mrb[0].mxu0
        %v5251 = vpop.f32.mrb[0].mxu0
        %v5252 = vadd.f32 %v5151, %v5251
        %v5253 = vpop.f32.mrb[0].mxu0
        %5254 = vmatprep.mubr.bf16.mxu0 0
        %5255 = vmatmul.mubr.bf16.gmra.mrb[0].mxu0 %v5193
        %v5256 = vpop.f32.mrb[0].mxu0
        %v5257 = vadd.f32 %v5156, %v5256
        %v5258 = vpop.f32.mrb[0].mxu0
        %v5259 = vpop.f32.mrb[0].mxu0
        %v5260 = vadd.f32 %v5159, %v5259
        %v5261 = vpop.f32.mrb[0].mxu0
        %5262 = vdwg.mxu0
        %s5263 = scalar_lea.vmem [#allocation8], 56
        %v5264 = vld [vmem:[%s5263] sm:$0xf]
        %v5265 = vld [vmem:[%s5263 + $0x4] sm:$0xf]
        %v5266 = vld [vmem:[%s5263 + $0x8] sm:$0xf]
        %v5267 = vld [vmem:[%s5263 + $0xc] sm:$0xf]
        %v5268 = vld [vmem:[%s5263 + $0x10] sm:$0xf]
        %v5269 = vld [vmem:[%s5263 + $0x14] sm:$0xf]
        %v5270 = vld [vmem:[%s5263 + $0x18] sm:$0x1]
        %v5271 = vpack.c.bf16 %v5009, %v5006
        %v5272 = vpack.c.bf16 %v5017, %v5014
        %v5273 = vpack.c.bf16 %v5025, %v5022
        %v5274 = vpack.c.bf16 %v5033, %v5030
        %v5282 = vunpack.c.l.b16 %v5264
        %v5283 = vunpack.c.l.b16 %v5265
        %v5284 = vunpack.c.l.b16 %v5266
        %v5285 = vunpack.c.l.b16 %v5267
        %v5286 = vunpack.c.l.b16 %v5268
        %v5287 = vunpack.c.l.b16 %v5269
        %v5288 = vunpack.c.l.b16 %v5270
        %v5289 = vpack.c.b16 %v5283, %v5282
        %v5290 = vpack.c.b16 %v5285, %v5284
        %v5291 = vpack.c.b16 %v5287, %v5286
        %v5292 = vpack.c.b16 %v5288, %v5288
        %v5297 = vsel %vm5080, %v5271, 0
        %v5300 = vsel %vm5080, %v5272, 0
        %v5303 = vsel %vm5080, %v5273, 0
        %v5306 = vsel %vm5080, %v5274, 0
        %v5309 = vsel %vm5093, %v5292, 0
        %5311 = vmatprep.subr.bf16.mxu0 0
        %5312 = vmatpush1.bf16.msra.mxu0 %v5289
        %5313 = vmatprep.subr.bf16.mxu0 0
        %5314 = vmatpush1.bf16.msra.mxu0 %v5290
        %5315 = vmatprep.subr.bf16.mxu0 0
        %5316 = vmatpush1.bf16.msra.mxu0 %v5291
        %5317 = vmatprep.subr.bf16.mxu0 0
        %5318 = vmatpush1.bf16.msra.mxu0 %v5309
        %5319 = vmatprep.subr.bf16.mxu0 0
        %5320 = vmatpush1.bf16.msra.mxu0 0
        %5321 = vmatprep.subr.bf16.mxu0 0
        %5322 = vmatpush1.bf16.msra.mxu0 0
        %5323 = vmatprep.subr.bf16.mxu0 0
        %5324 = vmatpush1.bf16.msra.mxu0 0
        %5325 = vmatprep.subr.bf16.mxu0 0
        %5326 = vmatpush1.bf16.msra.mxu0 0
        %5327 = vmatprep.subr.bf16.mxu0 0
        %5328 = vmatpush1.bf16.msra.mxu0 0
        %5329 = vmatprep.subr.bf16.mxu0 0
        %5330 = vmatpush1.bf16.msra.mxu0 0
        %5331 = vmatprep.subr.bf16.mxu0 0
        %5332 = vmatpush1.bf16.msra.mxu0 0
        %5333 = vmatprep.subr.bf16.mxu0 0
        %5334 = vmatpush1.bf16.msra.mxu0 0
        %5335 = vmatprep.subr.bf16.mxu0 0
        %5336 = vmatpush1.bf16.msra.mxu0 0
        %5337 = vmatprep.subr.bf16.mxu0 0
        %5338 = vmatpush1.bf16.msra.mxu0 0
        %5339 = vmatprep.subr.bf16.mxu0 0
        %5340 = vmatpush1.bf16.msra.mxu0 0
        %5341 = vmatprep.subr.bf16.mxu0 0
        %5342 = vmatpush1.bf16.msra.mxu0 0
        %5343 = vmatprep.mubr.bf16.mxu0 0
        %5344 = vmatmul.mubr.bf16.gmra.mrb[0].mxu0 %v5297
        %v5345 = vpop.f32.mrb[0].mxu0
        %v5346 = vadd.f32 0.0, %v5345
        %v5347 = vpop.f32.mrb[0].mxu0
        %v5348 = vpop.f32.mrb[0].mxu0
        %v5349 = vadd.f32 0.0, %v5348
        %v5350 = vpop.f32.mrb[0].mxu0
        %5351 = vmatprep.mubr.bf16.mxu0 0
        %5352 = vmatmul.mubr.bf16.gmra.mrb[0].mxu0 %v5300
        %v5353 = vpop.f32.mrb[0].mxu0
        %v5354 = vadd.f32 0.0, %v5353
        %v5355 = vpop.f32.mrb[0].mxu0
        %v5356 = vpop.f32.mrb[0].mxu0
        %v5357 = vadd.f32 0.0, %v5356
        %v5358 = vpop.f32.mrb[0].mxu0
        %5359 = vmatprep.mubr.bf16.mxu0 0
        %5360 = vmatmul.mubr.bf16.gmra.mrb[0].mxu0 %v5303
        %v5361 = vpop.f32.mrb[0].mxu0
        %v5362 = vadd.f32 0.0, %v5361
        %v5363 = vpop.f32.mrb[0].mxu0
        %v5364 = vpop.f32.mrb[0].mxu0
        %v5365 = vadd.f32 0.0, %v5364
        %v5366 = vpop.f32.mrb[0].mxu0
        %5367 = vmatprep.mubr.bf16.mxu0 0
        %5368 = vmatmul.mubr.bf16.gmra.mrb[0].mxu0 %v5306
        %v5369 = vpop.f32.mrb[0].mxu0
        %v5370 = vadd.f32 0.0, %v5369
        %v5371 = vpop.f32.mrb[0].mxu0
        %v5372 = vpop.f32.mrb[0].mxu0
        %v5373 = vadd.f32 0.0, %v5372
        %v5374 = vpop.f32.mrb[0].mxu0
        %5375 = vdwg.mxu0
        %v5376 = vadd.f32 %v5233, %v5346
        %v5377 = vadd.f32 %v5236, %v5349
        %v5378 = vadd.f32 %v5241, %v5354
        %v5379 = vadd.f32 %v5244, %v5357
        %v5380 = vadd.f32 %v5249, %v5362
        %v5381 = vadd.f32 %v5252, %v5365
        %v5382 = vadd.f32 %v5257, %v5370
        %v5383 = vadd.f32 %v5260, %v5373
        %v5384 = vld [vmem:[%s14] sm:$0xff]
        %v5385 = vld [vmem:[%s14 + $0x8] sm:$0xff]
        %v5386 = vld [vmem:[%s14 + $0x10] sm:$0xff]
        %v5387 = vld [vmem:[%s14 + $0x18] sm:$0xff]
        %v5388 = vld [vmem:[%s14 + $0x20] sm:$0xff]
        %v5389 = vld [vmem:[%s14 + $0x28] sm:$0xff]
        %v5390 = vld [vmem:[%s14 + $0x30] sm:$0xff]
        %v5391 = vld [vmem:[%s14 + $0x38] sm:$0xff]
        %5393 = vset.pattern.permute.xlu0 0
        %5394 = vperm.xlu0 %5393, %v5384
        %v5395 = vpop.permute.xlu0 %5394
        %5398 = vset.pattern.permute.xlu0 0
        %5399 = vperm.xlu0 %5398, %v5385
        %v5400 = vpop.permute.xlu0 %5399
        %5403 = vset.pattern.permute.xlu0 0
        %5404 = vperm.xlu0 %5403, %v5386
        %v5405 = vpop.permute.xlu0 %5404
        %5408 = vset.pattern.permute.xlu0 0
        %5409 = vperm.xlu0 %5408, %v5387
        %v5410 = vpop.permute.xlu0 %5409
        %5413 = vset.pattern.permute.xlu0 0
        %5414 = vperm.xlu0 %5413, %v5388
        %v5415 = vpop.permute.xlu0 %5414
        %5418 = vset.pattern.permute.xlu0 0
        %5419 = vperm.xlu0 %5418, %v5389
        %v5420 = vpop.permute.xlu0 %5419
        %5423 = vset.pattern.permute.xlu0 0
        %5424 = vperm.xlu0 %5423, %v5390
        %v5425 = vpop.permute.xlu0 %5424
        %5428 = vset.pattern.permute.xlu0 0
        %5429 = vperm.xlu0 %5428, %v5391
        %v5430 = vpop.permute.xlu0 %5429
        %v5432 = vadd.f32 %v5376, %v5395
        %v5433 = vadd.f32 %v5377, %v5400
        %v5434 = vadd.f32 %v5378, %v5405
        %v5435 = vadd.f32 %v5379, %v5410
        %v5436 = vadd.f32 %v5380, %v5415
        %v5437 = vadd.f32 %v5381, %v5420
        %v5438 = vadd.f32 %v5382, %v5425
        %v5439 = vadd.f32 %v5383, %v5430
        %vm5440 = vcmp.gt.f32.partialorder %v5432, 0.0
        %vm5441 = vcmp.gt.f32.partialorder %v5433, 0.0
        %vm5442 = vcmp.gt.f32.partialorder %v5434, 0.0
        %vm5443 = vcmp.gt.f32.partialorder %v5435, 0.0
        %vm5444 = vcmp.gt.f32.partialorder %v5436, 0.0
        %vm5445 = vcmp.gt.f32.partialorder %v5437, 0.0
        %vm5446 = vcmp.gt.f32.partialorder %v5438, 0.0
        %vm5447 = vcmp.gt.f32.partialorder %v5439, 0.0
        %v5448 = vmin.f32 %v5432, 0.0
        %v5449 = vmin.f32 %v5433, 0.0
        %v5450 = vmin.f32 %v5434, 0.0
        %v5451 = vmin.f32 %v5435, 0.0
        %v5452 = vmin.f32 %v5436, 0.0
        %v5453 = vmin.f32 %v5437, 0.0
        %v5454 = vmin.f32 %v5438, 0.0
        %v5455 = vmin.f32 %v5439, 0.0
        %v5456 = vmul.f32 %v5448, 1.442695
        %v5457 = vpow.pop %v5456
        %v5458 = vmul.f32 %v5449, 1.442695
        %v5459 = vpow.pop %v5458
        %v5460 = vmul.f32 %v5450, 1.442695
        %v5461 = vpow.pop %v5460
        %v5462 = vmul.f32 %v5451, 1.442695
        %v5463 = vpow.pop %v5462
        %v5464 = vmul.f32 %v5452, 1.442695
        %v5465 = vpow.pop %v5464
        %v5466 = vmul.f32 %v5453, 1.442695
        %v5467 = vpow.pop %v5466
        %v5468 = vmul.f32 %v5454, 1.442695
        %v5469 = vpow.pop %v5468
        %v5470 = vmul.f32 %v5455, 1.442695
        %v5471 = vpow.pop %v5470
        %v5472 = vsub.f32 %v5457, 1.0
        %v5473 = vsub.f32 %v5459, 1.0
        %v5474 = vsub.f32 %v5461, 1.0
        %v5475 = vsub.f32 %v5463, 1.0
        %v5476 = vsub.f32 %v5465, 1.0
        %v5477 = vsub.f32 %v5467, 1.0
        %v5478 = vsub.f32 %v5469, 1.0
        %v5479 = vsub.f32 %v5471, 1.0
        %v5480 = vsel %vm5440, %v5432, %v5472
        %v5481 = vsel %vm5441, %v5433, %v5473
        %v5482 = vsel %vm5442, %v5434, %v5474
        %v5483 = vsel %vm5443, %v5435, %v5475
        %v5484 = vsel %vm5444, %v5436, %v5476
        %v5485 = vsel %vm5445, %v5437, %v5477
        %v5486 = vsel %vm5446, %v5438, %v5478
        %v5487 = vsel %vm5447, %v5439, %v5479
        %v5488 = vld [vmem:[%s19] sm:$0xf]
        %v5489 = vld [vmem:[%s19 + $0x4] sm:$0xf]
        %v5490 = vld [vmem:[%s19 + $0x8] sm:$0xf]
        %v5491 = vld [vmem:[%s19 + $0xc] sm:$0xf]
        %v5492 = vld [vmem:[%s19 + $0x10] sm:$0xf]
        %v5493 = vld [vmem:[%s19 + $0x14] sm:$0xf]
        %v5494 = vld [vmem:[%s19 + $0x18] sm:$0xf]
        %v5495 = vld [vmem:[%s19 + $0x1c] sm:$0xf]
        %v5496 = vld [vmem:[%s19 + $0x20] sm:$0xf]
        %v5497 = vld [vmem:[%s19 + $0x24] sm:$0xf]
        %v5498 = vld [vmem:[%s19 + $0x28] sm:$0xf]
        %v5499 = vld [vmem:[%s19 + $0x2c] sm:$0xf]
        %v5500 = vld [vmem:[%s19 + $0x30] sm:$0xf]
        %v5501 = vld [vmem:[%s19 + $0x34] sm:$0xf]
        %v5502 = vld [vmem:[%s19 + $0x38] sm:$0xf]
        %v5503 = vld [vmem:[%s19 + $0x3c] sm:$0xf]
        %v5504 = vpack.c.bf16 %v5481, %v5480
        %v5505 = vpack.c.bf16 %v5483, %v5482
        %v5506 = vpack.c.bf16 %v5485, %v5484
        %v5507 = vpack.c.bf16 %v5487, %v5486
        %v5524 = vunpack.c.l.b16 %v5488
        %v5525 = vunpack.c.l.b16 %v5489
        %v5526 = vunpack.c.l.b16 %v5490
        %v5527 = vunpack.c.l.b16 %v5491
        %v5528 = vunpack.c.l.b16 %v5492
        %v5529 = vunpack.c.l.b16 %v5493
        %v5530 = vunpack.c.l.b16 %v5494
        %v5531 = vunpack.c.l.b16 %v5495
        %v5532 = vunpack.c.l.b16 %v5496
        %v5533 = vunpack.c.l.b16 %v5497
        %v5534 = vunpack.c.l.b16 %v5498
        %v5535 = vunpack.c.l.b16 %v5499
        %v5536 = vunpack.c.l.b16 %v5500
        %v5537 = vunpack.c.l.b16 %v5501
        %v5538 = vunpack.c.l.b16 %v5502
        %v5539 = vunpack.c.l.b16 %v5503
        %v5540 = vpack.c.b16 %v5525, %v5524
        %v5541 = vpack.c.b16 %v5527, %v5526
        %v5542 = vpack.c.b16 %v5529, %v5528
        %v5543 = vpack.c.b16 %v5531, %v5530
        %v5544 = vpack.c.b16 %v5533, %v5532
        %v5545 = vpack.c.b16 %v5535, %v5534
        %v5546 = vpack.c.b16 %v5537, %v5536
        %v5547 = vpack.c.b16 %v5539, %v5538
        %v5549 = vsel %vm2355, %v5540, 0
        %v5552 = vsel %vm2355, %v5541, 0
        %v5555 = vsel %vm2355, %v5542, 0
        %v5558 = vsel %vm2355, %v5543, 0
        %v5561 = vsel %vm2355, %v5544, 0
        %v5564 = vsel %vm2355, %v5545, 0
        %v5567 = vsel %vm2355, %v5546, 0
        %v5570 = vsel %vm2355, %v5547, 0
        %5572 = vmatprep.subr.bf16.mxu0 0
        %5573 = vmatpush1.bf16.msra.mxu0 %v5504
        %5574 = vmatprep.subr.bf16.mxu0 0
        %5575 = vmatpush1.bf16.msra.mxu0 %v5505
        %5576 = vmatprep.subr.bf16.mxu0 0
        %5577 = vmatpush1.bf16.msra.mxu0 %v5506
        %5578 = vmatprep.subr.bf16.mxu0 0
        %5579 = vmatpush1.bf16.msra.mxu0 %v5507
        %5580 = vmatprep.subr.bf16.mxu0 0
        %5581 = vmatpush1.bf16.msra.mxu0 0
        %5582 = vmatprep.subr.bf16.mxu0 0
        %5583 = vmatpush1.bf16.msra.mxu0 0
        %5584 = vmatprep.subr.bf16.mxu0 0
        %5585 = vmatpush1.bf16.msra.mxu0 0
        %5586 = vmatprep.subr.bf16.mxu0 0
        %5587 = vmatpush1.bf16.msra.mxu0 0
        %5588 = vmatprep.subr.bf16.mxu0 0
        %5589 = vmatpush1.bf16.msra.mxu0 0
        %5590 = vmatprep.subr.bf16.mxu0 0
        %5591 = vmatpush1.bf16.msra.mxu0 0
        %5592 = vmatprep.subr.bf16.mxu0 0
        %5593 = vmatpush1.bf16.msra.mxu0 0
        %5594 = vmatprep.subr.bf16.mxu0 0
        %5595 = vmatpush1.bf16.msra.mxu0 0
        %5596 = vmatprep.subr.bf16.mxu0 0
        %5597 = vmatpush1.bf16.msra.mxu0 0
        %5598 = vmatprep.subr.bf16.mxu0 0
        %5599 = vmatpush1.bf16.msra.mxu0 0
        %5600 = vmatprep.subr.bf16.mxu0 0
        %5601 = vmatpush1.bf16.msra.mxu0 0
        %5602 = vmatprep.subr.bf16.mxu0 0
        %5603 = vmatpush1.bf16.msra.mxu0 0
        %5604 = vmatprep.mubr.bf16.mxu0 0
        %5605 = vmatmul.mubr.bf16.gmra.mrb[0].mxu0 %v5549
        %v5606 = vpop.f32.mrb[0].mxu0
        %v5607 = vadd.f32 0.0, %v5606
        %v5608 = vpop.f32.mrb[0].mxu0
        %v5609 = vpop.f32.mrb[0].mxu0
        %v5610 = vadd.f32 0.0, %v5609
        %v5611 = vpop.f32.mrb[0].mxu0
        %5612 = vmatprep.mubr.bf16.mxu0 0
        %5613 = vmatmul.mubr.bf16.gmra.mrb[0].mxu0 %v5552
        %v5614 = vpop.f32.mrb[0].mxu0
        %v5615 = vadd.f32 0.0, %v5614
        %v5616 = vpop.f32.mrb[0].mxu0
        %v5617 = vpop.f32.mrb[0].mxu0
        %v5618 = vadd.f32 0.0, %v5617
        %v5619 = vpop.f32.mrb[0].mxu0
        %5620 = vmatprep.mubr.bf16.mxu0 0
        %5621 = vmatmul.mubr.bf16.gmra.mrb[0].mxu0 %v5555
        %v5622 = vpop.f32.mrb[0].mxu0
        %v5623 = vadd.f32 0.0, %v5622
        %v5624 = vpop.f32.mrb[0].mxu0
        %v5625 = vpop.f32.mrb[0].mxu0
        %v5626 = vadd.f32 0.0, %v5625
        %v5627 = vpop.f32.mrb[0].mxu0
        %5628 = vmatprep.mubr.bf16.mxu0 0
        %5629 = vmatmul.mubr.bf16.gmra.mrb[0].mxu0 %v5558
        %v5630 = vpop.f32.mrb[0].mxu0
        %v5631 = vadd.f32 0.0, %v5630
        %v5632 = vpop.f32.mrb[0].mxu0
        %v5633 = vpop.f32.mrb[0].mxu0
        %v5634 = vadd.f32 0.0, %v5633
        %v5635 = vpop.f32.mrb[0].mxu0
        %5636 = vmatprep.mubr.bf16.mxu0 0
        %5637 = vmatmul.mubr.bf16.gmra.mrb[0].mxu0 %v5561
        %v5638 = vpop.f32.mrb[0].mxu0
        %v5639 = vadd.f32 0.0, %v5638
        %v5640 = vpop.f32.mrb[0].mxu0
        %v5641 = vpop.f32.mrb[0].mxu0
        %v5642 = vadd.f32 0.0, %v5641
        %v5643 = vpop.f32.mrb[0].mxu0
        %5644 = vmatprep.mubr.bf16.mxu0 0
        %5645 = vmatmul.mubr.bf16.gmra.mrb[0].mxu0 %v5564
        %v5646 = vpop.f32.mrb[0].mxu0
        %v5647 = vadd.f32 0.0, %v5646
        %v5648 = vpop.f32.mrb[0].mxu0
        %v5649 = vpop.f32.mrb[0].mxu0
        %v5650 = vadd.f32 0.0, %v5649
        %v5651 = vpop.f32.mrb[0].mxu0
        %5652 = vmatprep.mubr.bf16.mxu0 0
        %5653 = vmatmul.mubr.bf16.gmra.mrb[0].mxu0 %v5567
        %v5654 = vpop.f32.mrb[0].mxu0
        %v5655 = vadd.f32 0.0, %v5654
        %v5656 = vpop.f32.mrb[0].mxu0
        %v5657 = vpop.f32.mrb[0].mxu0
        %v5658 = vadd.f32 0.0, %v5657
        %v5659 = vpop.f32.mrb[0].mxu0
        %5660 = vmatprep.mubr.bf16.mxu0 0
        %5661 = vmatmul.mubr.bf16.gmra.mrb[0].mxu0 %v5570
        %v5662 = vpop.f32.mrb[0].mxu0
        %v5663 = vadd.f32 0.0, %v5662
        %v5664 = vpop.f32.mrb[0].mxu0
        %v5665 = vpop.f32.mrb[0].mxu0
        %v5666 = vadd.f32 0.0, %v5665
        %v5667 = vpop.f32.mrb[0].mxu0
        %5668 = vdwg.mxu0
        %v5669 = vld [vmem:[#allocation12] sm:$0xf]
        %v5670 = vld [vmem:[#allocation12 + $0x4] sm:$0xf]
        %v5671 = vld [vmem:[#allocation12 + $0x8] sm:$0xf]
        %v5672 = vld [vmem:[#allocation12 + $0xc] sm:$0xf]
        %v5673 = vld [vmem:[#allocation12 + $0x10] sm:$0xf]
        %v5674 = vld [vmem:[#allocation12 + $0x14] sm:$0xf]
        %v5675 = vld [vmem:[#allocation12 + $0x18] sm:$0x1]
        %v5676 = vpack.c.bf16 %v5610, %v5607
        %v5677 = vpack.c.bf16 %v5618, %v5615
        %v5678 = vpack.c.bf16 %v5626, %v5623
        %v5679 = vpack.c.bf16 %v5634, %v5631
        %v5680 = vpack.c.bf16 %v5642, %v5639
        %v5681 = vpack.c.bf16 %v5650, %v5647
        %v5682 = vpack.c.bf16 %v5658, %v5655
        %v5683 = vpack.c.bf16 %v5666, %v5663
        %v5691 = vunpack.c.l.b16 %v5669
        %v5692 = vunpack.c.l.b16 %v5670
        %v5693 = vunpack.c.l.b16 %v5671
        %v5694 = vunpack.c.l.b16 %v5672
        %v5695 = vunpack.c.l.b16 %v5673
        %v5696 = vunpack.c.l.b16 %v5674
        %v5697 = vunpack.c.l.b16 %v5675
        %v5698 = vpack.c.b16 %v5692, %v5691
        %v5699 = vpack.c.b16 %v5694, %v5693
        %v5700 = vpack.c.b16 %v5696, %v5695
        %v5701 = vpack.c.b16 %v5697, %v5697
        %v5706 = vsel %vm5080, %v5676, 0
        %v5709 = vsel %vm5080, %v5677, 0
        %v5712 = vsel %vm5080, %v5678, 0
        %v5715 = vsel %vm5080, %v5679, 0
        %v5718 = vsel %vm5080, %v5680, 0
        %v5721 = vsel %vm5080, %v5681, 0
        %v5724 = vsel %vm5080, %v5682, 0
        %v5727 = vsel %vm5080, %v5683, 0
        %v5730 = vsel %vm5093, %v5701, 0
        %5732 = vmatprep.subr.bf16.mxu0 0
        %5733 = vmatpush1.bf16.msra.mxu0 %v5698
        %5734 = vmatprep.subr.bf16.mxu0 0
        %5735 = vmatpush1.bf16.msra.mxu0 %v5699
        %5736 = vmatprep.subr.bf16.mxu0 0
        %5737 = vmatpush1.bf16.msra.mxu0 %v5700
        %5738 = vmatprep.subr.bf16.mxu0 0
        %5739 = vmatpush1.bf16.msra.mxu0 %v5730
        %5740 = vmatprep.subr.bf16.mxu0 0
        %5741 = vmatpush1.bf16.msra.mxu0 0
        %5742 = vmatprep.subr.bf16.mxu0 0
        %5743 = vmatpush1.bf16.msra.mxu0 0
        %5744 = vmatprep.subr.bf16.mxu0 0
        %5745 = vmatpush1.bf16.msra.mxu0 0
        %5746 = vmatprep.subr.bf16.mxu0 0
        %5747 = vmatpush1.bf16.msra.mxu0 0
        %5748 = vmatprep.subr.bf16.mxu0 0
        %5749 = vmatpush1.bf16.msra.mxu0 0
        %5750 = vmatprep.subr.bf16.mxu0 0
        %5751 = vmatpush1.bf16.msra.mxu0 0
        %5752 = vmatprep.subr.bf16.mxu0 0
        %5753 = vmatpush1.bf16.msra.mxu0 0
        %5754 = vmatprep.subr.bf16.mxu0 0
        %5755 = vmatpush1.bf16.msra.mxu0 0
        %5756 = vmatprep.subr.bf16.mxu0 0
        %5757 = vmatpush1.bf16.msra.mxu0 0
        %5758 = vmatprep.subr.bf16.mxu0 0
        %5759 = vmatpush1.bf16.msra.mxu0 0
        %5760 = vmatprep.subr.bf16.mxu0 0
        %5761 = vmatpush1.bf16.msra.mxu0 0
        %5762 = vmatprep.subr.bf16.mxu0 0
        %5763 = vmatpush1.bf16.msra.mxu0 0
        %5764 = vmatprep.mubr.bf16.mxu0 0
        %5765 = vmatmul.mubr.bf16.gmra.mrb[0].mxu0 %v5706
        %v5766 = vpop.f32.mrb[0].mxu0
        %v5767 = vadd.f32 0.0, %v5766
        %v5768 = vpop.f32.mrb[0].mxu0
        %v5769 = vpop.f32.mrb[0].mxu0
        %v5770 = vadd.f32 0.0, %v5769
        %v5771 = vpop.f32.mrb[0].mxu0
        %5772 = vmatprep.mubr.bf16.mxu0 0
        %5773 = vmatmul.mubr.bf16.gmra.mrb[0].mxu0 %v5709
        %v5774 = vpop.f32.mrb[0].mxu0
        %v5775 = vadd.f32 0.0, %v5774
        %v5776 = vpop.f32.mrb[0].mxu0
        %v5777 = vpop.f32.mrb[0].mxu0
        %v5778 = vadd.f32 0.0, %v5777
        %v5779 = vpop.f32.mrb[0].mxu0
        %5780 = vmatprep.mubr.bf16.mxu0 0
        %5781 = vmatmul.mubr.bf16.gmra.mrb[0].mxu0 %v5712
        %v5782 = vpop.f32.mrb[0].mxu0
        %v5783 = vadd.f32 0.0, %v5782
        %v5784 = vpop.f32.mrb[0].mxu0
        %v5785 = vpop.f32.mrb[0].mxu0
        %v5786 = vadd.f32 0.0, %v5785
        %v5787 = vpop.f32.mrb[0].mxu0
        %5788 = vmatprep.mubr.bf16.mxu0 0
        %5789 = vmatmul.mubr.bf16.gmra.mrb[0].mxu0 %v5715
        %v5790 = vpop.f32.mrb[0].mxu0
        %v5791 = vadd.f32 0.0, %v5790
        %v5792 = vpop.f32.mrb[0].mxu0
        %v5793 = vpop.f32.mrb[0].mxu0
        %v5794 = vadd.f32 0.0, %v5793
        %v5795 = vpop.f32.mrb[0].mxu0
        %5796 = vmatprep.mubr.bf16.mxu0 0
        %5797 = vmatmul.mubr.bf16.gmra.mrb[0].mxu0 %v5718
        %v5798 = vpop.f32.mrb[0].mxu0
        %v5799 = vadd.f32 0.0, %v5798
        %v5800 = vpop.f32.mrb[0].mxu0
        %v5801 = vpop.f32.mrb[0].mxu0
        %v5802 = vadd.f32 0.0, %v5801
        %v5803 = vpop.f32.mrb[0].mxu0
        %5804 = vmatprep.mubr.bf16.mxu0 0
        %5805 = vmatmul.mubr.bf16.gmra.mrb[0].mxu0 %v5721
        %v5806 = vpop.f32.mrb[0].mxu0
        %v5807 = vadd.f32 0.0, %v5806
        %v5808 = vpop.f32.mrb[0].mxu0
        %v5809 = vpop.f32.mrb[0].mxu0
        %v5810 = vadd.f32 0.0, %v5809
        %v5811 = vpop.f32.mrb[0].mxu0
        %5812 = vmatprep.mubr.bf16.mxu0 0
        %5813 = vmatmul.mubr.bf16.gmra.mrb[0].mxu0 %v5724
        %v5814 = vpop.f32.mrb[0].mxu0
        %v5815 = vadd.f32 0.0, %v5814
        %v5816 = vpop.f32.mrb[0].mxu0
        %v5817 = vpop.f32.mrb[0].mxu0
        %v5818 = vadd.f32 0.0, %v5817
        %v5819 = vpop.f32.mrb[0].mxu0
        %5820 = vmatprep.mubr.bf16.mxu0 0
        %5821 = vmatmul.mubr.bf16.gmra.mrb[0].mxu0 %v5727
        %v5822 = vpop.f32.mrb[0].mxu0
        %v5823 = vadd.f32 0.0, %v5822
        %v5824 = vpop.f32.mrb[0].mxu0
        %v5825 = vpop.f32.mrb[0].mxu0
        %v5826 = vadd.f32 0.0, %v5825
        %v5827 = vpop.f32.mrb[0].mxu0
        %5828 = vdwg.mxu0
        %v5829 = vadd.f32 %v4768, %v5767
        %v5830 = vadd.f32 %v4769, %v5770
        %v5831 = vadd.f32 %v4770, %v5775
        %v5832 = vadd.f32 %v4771, %v5778
        %v5833 = vadd.f32 %v4772, %v5783
        %v5834 = vadd.f32 %v4773, %v5786
        %v5835 = vadd.f32 %v4774, %v5791
        %v5836 = vadd.f32 %v4775, %v5794
        %v5837 = vadd.f32 %v4776, %v5799
        %v5838 = vadd.f32 %v4777, %v5802
        %v5839 = vadd.f32 %v4778, %v5807
        %v5840 = vadd.f32 %v4779, %v5810
        %v5841 = vadd.f32 %v4780, %v5815
        %v5842 = vadd.f32 %v4781, %v5818
        %v5843 = vadd.f32 %v4782, %v5823
        %v5844 = vadd.f32 %v4783, %v5826
        %v5845 = vld [vmem:[%s21] sm:$0xf]
        %v5846 = vld [vmem:[%s21 + $0x4] sm:$0xf]
        %v5847 = vld [vmem:[%s21 + $0x8] sm:$0xf]
        %v5848 = vld [vmem:[%s21 + $0xc] sm:$0xf]
        %v5849 = vld [vmem:[%s21 + $0x10] sm:$0xf]
        %v5850 = vld [vmem:[%s21 + $0x14] sm:$0xf]
        %v5851 = vld [vmem:[%s21 + $0x18] sm:$0xf]
        %v5852 = vld [vmem:[%s21 + $0x1c] sm:$0xf]
        %v5853 = vld [vmem:[%s21 + $0x20] sm:$0xf]
        %v5854 = vld [vmem:[%s21 + $0x24] sm:$0xf]
        %v5855 = vld [vmem:[%s21 + $0x28] sm:$0xf]
        %v5856 = vld [vmem:[%s21 + $0x2c] sm:$0xf]
        %v5857 = vld [vmem:[%s21 + $0x30] sm:$0xf]
        %v5858 = vld [vmem:[%s21 + $0x34] sm:$0xf]
        %v5859 = vld [vmem:[%s21 + $0x38] sm:$0xf]
        %v5860 = vld [vmem:[%s21 + $0x3c] sm:$0xf]
        %v5861 = vld [vmem:[%s21 + $0x40] sm:$0xf]
        %v5862 = vld [vmem:[%s21 + $0x44] sm:$0xf]
        %v5863 = vld [vmem:[%s21 + $0x48] sm:$0xf]
        %v5864 = vld [vmem:[%s21 + $0x4c] sm:$0xf]
        %v5865 = vld [vmem:[%s21 + $0x50] sm:$0xf]
        %v5866 = vld [vmem:[%s21 + $0x54] sm:$0xf]
        %v5867 = vld [vmem:[%s21 + $0x58] sm:$0xf]
        %v5868 = vld [vmem:[%s21 + $0x5c] sm:$0xf]
        %v5869 = vld [vmem:[%s21 + $0x60] sm:$0xf]
        %v5870 = vld [vmem:[%s21 + $0x64] sm:$0xf]
        %v5871 = vld [vmem:[%s21 + $0x68] sm:$0xf]
        %v5872 = vld [vmem:[%s21 + $0x6c] sm:$0xf]
        %v5873 = vld [vmem:[%s21 + $0x70] sm:$0xf]
        %v5874 = vld [vmem:[%s21 + $0x74] sm:$0xf]
        %v5875 = vld [vmem:[%s21 + $0x78] sm:$0xf]
        %v5876 = vld [vmem:[%s21 + $0x7c] sm:$0xf]
        %v5877 = vpack.c.bf16 %v5830, %v5829
        %v5878 = vpack.c.bf16 %v5832, %v5831
        %v5879 = vpack.c.bf16 %v5834, %v5833
        %v5880 = vpack.c.bf16 %v5836, %v5835
        %v5881 = vpack.c.bf16 %v5838, %v5837
        %v5882 = vpack.c.bf16 %v5840, %v5839
        %v5883 = vpack.c.bf16 %v5842, %v5841
        %v5884 = vpack.c.bf16 %v5844, %v5843
        %v5917 = vunpack.c.l.b16 %v5845
        %v5918 = vunpack.c.l.b16 %v5846
        %v5919 = vunpack.c.l.b16 %v5847
        %v5920 = vunpack.c.l.b16 %v5848
        %v5921 = vunpack.c.l.b16 %v5849
        %v5922 = vunpack.c.l.b16 %v5850
        %v5923 = vunpack.c.l.b16 %v5851
        %v5924 = vunpack.c.l.b16 %v5852
        %v5925 = vunpack.c.l.b16 %v5853
        %v5926 = vunpack.c.l.b16 %v5854
        %v5927 = vunpack.c.l.b16 %v5855
        %v5928 = vunpack.c.l.b16 %v5856
        %v5929 = vunpack.c.l.b16 %v5857
        %v5930 = vunpack.c.l.b16 %v5858
        %v5931 = vunpack.c.l.b16 %v5859
        %v5932 = vunpack.c.l.b16 %v5860
        %v5933 = vunpack.c.l.b16 %v5861
        %v5934 = vunpack.c.l.b16 %v5862
        %v5935 = vunpack.c.l.b16 %v5863
        %v5936 = vunpack.c.l.b16 %v5864
        %v5937 = vunpack.c.l.b16 %v5865
        %v5938 = vunpack.c.l.b16 %v5866
        %v5939 = vunpack.c.l.b16 %v5867
        %v5940 = vunpack.c.l.b16 %v5868
        %v5941 = vunpack.c.l.b16 %v5869
        %v5942 = vunpack.c.l.b16 %v5870
        %v5943 = vunpack.c.l.b16 %v5871
        %v5944 = vunpack.c.l.b16 %v5872
        %v5945 = vunpack.c.l.b16 %v5873
        %v5946 = vunpack.c.l.b16 %v5874
        %v5947 = vunpack.c.l.b16 %v5875
        %v5948 = vunpack.c.l.b16 %v5876
        %v5949 = vpack.c.b16 %v5918, %v5917
        %v5950 = vpack.c.b16 %v5920, %v5919
        %v5951 = vpack.c.b16 %v5922, %v5921
        %v5952 = vpack.c.b16 %v5924, %v5923
        %v5953 = vpack.c.b16 %v5926, %v5925
        %v5954 = vpack.c.b16 %v5928, %v5927
        %v5955 = vpack.c.b16 %v5930, %v5929
        %v5956 = vpack.c.b16 %v5932, %v5931
        %v5957 = vpack.c.b16 %v5934, %v5933
        %v5958 = vpack.c.b16 %v5936, %v5935
        %v5959 = vpack.c.b16 %v5938, %v5937
        %v5960 = vpack.c.b16 %v5940, %v5939
        %v5961 = vpack.c.b16 %v5942, %v5941
        %v5962 = vpack.c.b16 %v5944, %v5943
        %v5963 = vpack.c.b16 %v5946, %v5945
        %v5964 = vpack.c.b16 %v5948, %v5947
        %5981 = vmatprep.subr.bf16.mxu0 0
        %5982 = vmatpush1.bf16.msra.mxu0 %v5877
        %5983 = vmatprep.subr.bf16.mxu0 0
        %5984 = vmatpush1.bf16.msra.mxu0 %v5878
        %5985 = vmatprep.subr.bf16.mxu0 0
        %5986 = vmatpush1.bf16.msra.mxu0 %v5879
        %5987 = vmatprep.subr.bf16.mxu0 0
        %5988 = vmatpush1.bf16.msra.mxu0 %v5880
        %5989 = vmatprep.subr.bf16.mxu0 0
        %5990 = vmatpush1.bf16.msra.mxu0 %v5881
        %5991 = vmatprep.subr.bf16.mxu0 0
        %5992 = vmatpush1.bf16.msra.mxu0 %v5882
        %5993 = vmatprep.subr.bf16.mxu0 0
        %5994 = vmatpush1.bf16.msra.mxu0 %v5883
        %5995 = vmatprep.subr.bf16.mxu0 0
        %5996 = vmatpush1.bf16.msra.mxu0 %v5884
        %5997 = vmatprep.subr.bf16.mxu0 0
        %5998 = vmatpush1.bf16.msra.mxu0 0
        %5999 = vmatprep.subr.bf16.mxu0 0
        %6000 = vmatpush1.bf16.msra.mxu0 0
        %6001 = vmatprep.subr.bf16.mxu0 0
        %6002 = vmatpush1.bf16.msra.mxu0 0
        %6003 = vmatprep.subr.bf16.mxu0 0
        %6004 = vmatpush1.bf16.msra.mxu0 0
        %6005 = vmatprep.subr.bf16.mxu0 0
        %6006 = vmatpush1.bf16.msra.mxu0 0
        %6007 = vmatprep.subr.bf16.mxu0 0
        %6008 = vmatpush1.bf16.msra.mxu0 0
        %6009 = vmatprep.subr.bf16.mxu0 0
        %6010 = vmatpush1.bf16.msra.mxu0 0
        %6011 = vmatprep.subr.bf16.mxu0 0
        %6012 = vmatpush1.bf16.msra.mxu0 0
        %6013 = vmatprep.mubr.bf16.mxu0 0
        %6014 = vmatmul.mubr.bf16.gmra.mrb[0].mxu0 %v5949
        %v6015 = vpop.f32.mrb[0].mxu0
        %v6016 = vadd.f32 0.0, %v6015
        %v6017 = vpop.f32.mrb[0].mxu0
        %v6018 = vpop.f32.mrb[0].mxu0
        %v6019 = vadd.f32 0.0, %v6018
        %v6020 = vpop.f32.mrb[0].mxu0
        %6021 = vmatprep.mubr.bf16.mxu0 0
        %6022 = vmatmul.mubr.bf16.gmra.mrb[0].mxu0 %v5950
        %v6023 = vpop.f32.mrb[0].mxu0
        %v6024 = vadd.f32 0.0, %v6023
        %v6025 = vpop.f32.mrb[0].mxu0
        %v6026 = vpop.f32.mrb[0].mxu0
        %v6027 = vadd.f32 0.0, %v6026
        %v6028 = vpop.f32.mrb[0].mxu0
        %6029 = vmatprep.mubr.bf16.mxu0 0
        %6030 = vmatmul.mubr.bf16.gmra.mrb[0].mxu0 %v5951
        %v6031 = vpop.f32.mrb[0].mxu0
        %v6032 = vadd.f32 0.0, %v6031
        %v6033 = vpop.f32.mrb[0].mxu0
        %v6034 = vpop.f32.mrb[0].mxu0
        %v6035 = vadd.f32 0.0, %v6034
        %v6036 = vpop.f32.mrb[0].mxu0
        %6037 = vmatprep.mubr.bf16.mxu0 0
        %6038 = vmatmul.mubr.bf16.gmra.mrb[0].mxu0 %v5952
        %v6039 = vpop.f32.mrb[0].mxu0
        %v6040 = vadd.f32 0.0, %v6039
        %v6041 = vpop.f32.mrb[0].mxu0
        %v6042 = vpop.f32.mrb[0].mxu0
        %v6043 = vadd.f32 0.0, %v6042
        %v6044 = vpop.f32.mrb[0].mxu0
        %6045 = vmatprep.mubr.bf16.mxu0 0
        %6046 = vmatmul.mubr.bf16.gmra.mrb[0].mxu0 %v5953
        %v6047 = vpop.f32.mrb[0].mxu0
        %v6048 = vadd.f32 0.0, %v6047
        %v6049 = vpop.f32.mrb[0].mxu0
        %v6050 = vpop.f32.mrb[0].mxu0
        %v6051 = vadd.f32 0.0, %v6050
        %v6052 = vpop.f32.mrb[0].mxu0
        %6053 = vmatprep.mubr.bf16.mxu0 0
        %6054 = vmatmul.mubr.bf16.gmra.mrb[0].mxu0 %v5954
        %v6055 = vpop.f32.mrb[0].mxu0
        %v6056 = vadd.f32 0.0, %v6055
        %v6057 = vpop.f32.mrb[0].mxu0
        %v6058 = vpop.f32.mrb[0].mxu0
        %v6059 = vadd.f32 0.0, %v6058
        %v6060 = vpop.f32.mrb[0].mxu0
        %6061 = vmatprep.mubr.bf16.mxu0 0
        %6062 = vmatmul.mubr.bf16.gmra.mrb[0].mxu0 %v5955
        %v6063 = vpop.f32.mrb[0].mxu0
        %v6064 = vadd.f32 0.0, %v6063
        %v6065 = vpop.f32.mrb[0].mxu0
        %v6066 = vpop.f32.mrb[0].mxu0
        %v6067 = vadd.f32 0.0, %v6066
        %v6068 = vpop.f32.mrb[0].mxu0
        %6069 = vmatprep.mubr.bf16.mxu0 0
        %6070 = vmatmul.mubr.bf16.gmra.mrb[0].mxu0 %v5956
        %v6071 = vpop.f32.mrb[0].mxu0
        %v6072 = vadd.f32 0.0, %v6071
        %v6073 = vpop.f32.mrb[0].mxu0
        %v6074 = vpop.f32.mrb[0].mxu0
        %v6075 = vadd.f32 0.0, %v6074
        %v6076 = vpop.f32.mrb[0].mxu0
        %6077 = vmatprep.mubr.bf16.mxu0 0
        %6078 = vmatmul.mubr.bf16.gmra.mrb[0].mxu0 %v5957
        %v6079 = vpop.f32.mrb[0].mxu0
        %v6080 = vadd.f32 0.0, %v6079
        %v6081 = vpop.f32.mrb[0].mxu0
        %v6082 = vpop.f32.mrb[0].mxu0
        %v6083 = vadd.f32 0.0, %v6082
        %v6084 = vpop.f32.mrb[0].mxu0
        %6085 = vmatprep.mubr.bf16.mxu0 0
        %6086 = vmatmul.mubr.bf16.gmra.mrb[0].mxu0 %v5958
        %v6087 = vpop.f32.mrb[0].mxu0
        %v6088 = vadd.f32 0.0, %v6087
        %v6089 = vpop.f32.mrb[0].mxu0
        %v6090 = vpop.f32.mrb[0].mxu0
        %v6091 = vadd.f32 0.0, %v6090
        %v6092 = vpop.f32.mrb[0].mxu0
        %6093 = vmatprep.mubr.bf16.mxu0 0
        %6094 = vmatmul.mubr.bf16.gmra.mrb[0].mxu0 %v5959
        %v6095 = vpop.f32.mrb[0].mxu0
        %v6096 = vadd.f32 0.0, %v6095
        %v6097 = vpop.f32.mrb[0].mxu0
        %v6098 = vpop.f32.mrb[0].mxu0
        %v6099 = vadd.f32 0.0, %v6098
        %v6100 = vpop.f32.mrb[0].mxu0
        %6101 = vmatprep.mubr.bf16.mxu0 0
        %6102 = vmatmul.mubr.bf16.gmra.mrb[0].mxu0 %v5960
        %v6103 = vpop.f32.mrb[0].mxu0
        %v6104 = vadd.f32 0.0, %v6103
        %v6105 = vpop.f32.mrb[0].mxu0
        %v6106 = vpop.f32.mrb[0].mxu0
        %v6107 = vadd.f32 0.0, %v6106
        %v6108 = vpop.f32.mrb[0].mxu0
        %6109 = vmatprep.mubr.bf16.mxu0 0
        %6110 = vmatmul.mubr.bf16.gmra.mrb[0].mxu0 %v5961
        %v6111 = vpop.f32.mrb[0].mxu0
        %v6112 = vadd.f32 0.0, %v6111
        %v6113 = vpop.f32.mrb[0].mxu0
        %v6114 = vpop.f32.mrb[0].mxu0
        %v6115 = vadd.f32 0.0, %v6114
        %v6116 = vpop.f32.mrb[0].mxu0
        %6117 = vmatprep.mubr.bf16.mxu0 0
        %6118 = vmatmul.mubr.bf16.gmra.mrb[0].mxu0 %v5962
        %v6119 = vpop.f32.mrb[0].mxu0
        %v6120 = vadd.f32 0.0, %v6119
        %v6121 = vpop.f32.mrb[0].mxu0
        %v6122 = vpop.f32.mrb[0].mxu0
        %v6123 = vadd.f32 0.0, %v6122
        %v6124 = vpop.f32.mrb[0].mxu0
        %6125 = vmatprep.mubr.bf16.mxu0 0
        %6126 = vmatmul.mubr.bf16.gmra.mrb[0].mxu0 %v5963
        %v6127 = vpop.f32.mrb[0].mxu0
        %v6128 = vadd.f32 0.0, %v6127
        %v6129 = vpop.f32.mrb[0].mxu0
        %v6130 = vpop.f32.mrb[0].mxu0
        %v6131 = vadd.f32 0.0, %v6130
        %v6132 = vpop.f32.mrb[0].mxu0
        %6133 = vmatprep.mubr.bf16.mxu0 0
        %6134 = vmatmul.mubr.bf16.gmra.mrb[0].mxu0 %v5964
        %v6135 = vpop.f32.mrb[0].mxu0
        %v6136 = vadd.f32 0.0, %v6135
        %v6137 = vpop.f32.mrb[0].mxu0
        %v6138 = vpop.f32.mrb[0].mxu0
        %v6139 = vadd.f32 0.0, %v6138
        %v6140 = vpop.f32.mrb[0].mxu0
        %6141 = vdwg.mxu0
        %v6142 = vld [vmem:[%s22] sm:$0xff]
        %v6143 = vld [vmem:[%s22 + $0x8] sm:$0xff]
        %v6144 = vld [vmem:[%s22 + $0x10] sm:$0xff]
        %v6145 = vld [vmem:[%s22 + $0x18] sm:$0xff]
        %v6146 = vld [vmem:[%s22 + $0x20] sm:$0xff]
        %v6147 = vld [vmem:[%s22 + $0x28] sm:$0xff]
        %v6148 = vld [vmem:[%s22 + $0x30] sm:$0xff]
        %v6149 = vld [vmem:[%s22 + $0x38] sm:$0xff]
        %v6150 = vld [vmem:[%s22 + $0x40] sm:$0xff]
        %v6151 = vld [vmem:[%s22 + $0x48] sm:$0xff]
        %v6152 = vld [vmem:[%s22 + $0x50] sm:$0xff]
        %v6153 = vld [vmem:[%s22 + $0x58] sm:$0xff]
        %v6154 = vld [vmem:[%s22 + $0x60] sm:$0x33]
        %v6155 = vpack.c.bf16 %v6019, %v6016
        %v6156 = vpack.c.bf16 %v6027, %v6024
        %v6157 = vpack.c.bf16 %v6035, %v6032
        %v6158 = vpack.c.bf16 %v6043, %v6040
        %v6159 = vpack.c.bf16 %v6051, %v6048
        %v6160 = vpack.c.bf16 %v6059, %v6056
        %v6161 = vpack.c.bf16 %v6067, %v6064
        %v6162 = vpack.c.bf16 %v6075, %v6072
        %v6163 = vpack.c.bf16 %v6083, %v6080
        %v6164 = vpack.c.bf16 %v6091, %v6088
        %v6165 = vpack.c.bf16 %v6099, %v6096
        %v6166 = vpack.c.bf16 %v6107, %v6104
        %v6167 = vpack.c.bf16 %v6115, %v6112
        %v6168 = vpack.c.bf16 %v6123, %v6120
        %v6169 = vpack.c.bf16 %v6131, %v6128
        %v6170 = vpack.c.bf16 %v6139, %v6136
        %v6184 = vunpack.c.l.b16 %v6142
        %v6185 = vunpack.c.h.b16 %v6142
        %v6186 = vunpack.c.l.b16 %v6143
        %v6187 = vunpack.c.h.b16 %v6143
        %v6188 = vunpack.c.l.b16 %v6144
        %v6189 = vunpack.c.h.b16 %v6144
        %v6190 = vunpack.c.l.b16 %v6145
        %v6191 = vunpack.c.h.b16 %v6145
        %v6192 = vunpack.c.l.b16 %v6146
        %v6193 = vunpack.c.h.b16 %v6146
        %v6194 = vunpack.c.l.b16 %v6147
        %v6195 = vunpack.c.h.b16 %v6147
        %v6196 = vunpack.c.l.b16 %v6148
        %v6197 = vunpack.c.h.b16 %v6148
        %v6198 = vunpack.c.l.b16 %v6149
        %v6199 = vunpack.c.h.b16 %v6149
        %v6200 = vunpack.c.l.b16 %v6150
        %v6201 = vunpack.c.h.b16 %v6150
        %v6202 = vunpack.c.l.b16 %v6151
        %v6203 = vunpack.c.h.b16 %v6151
        %v6204 = vunpack.c.l.b16 %v6152
        %v6205 = vunpack.c.h.b16 %v6152
        %v6206 = vunpack.c.l.b16 %v6153
        %v6207 = vunpack.c.h.b16 %v6153
        %v6208 = vunpack.c.l.b16 %v6154
        %v6209 = vunpack.c.h.b16 %v6154
        %v6210 = vpack.c.b16 %v6186, %v6184
        %v6211 = vpack.c.b16 %v6187, %v6185
        %v6212 = vpack.c.b16 %v6190, %v6188
        %v6213 = vpack.c.b16 %v6191, %v6189
        %v6214 = vpack.c.b16 %v6194, %v6192
        %v6215 = vpack.c.b16 %v6195, %v6193
        %v6216 = vpack.c.b16 %v6198, %v6196
        %v6217 = vpack.c.b16 %v6199, %v6197
        %v6218 = vpack.c.b16 %v6202, %v6200
        %v6219 = vpack.c.b16 %v6203, %v6201
        %v6220 = vpack.c.b16 %v6206, %v6204
        %v6221 = vpack.c.b16 %v6207, %v6205
        %v6222 = vpack.c.b16 %v6208, %v6208
        %v6223 = vpack.c.b16 %v6209, %v6209
        %v6237 = vsel %vm2525, %v6155, 0
        %v6240 = vsel %vm2525, %v6156, 0
        %v6243 = vsel %vm2525, %v6157, 0
        %v6246 = vsel %vm2525, %v6158, 0
        %v6249 = vsel %vm2525, %v6159, 0
        %v6252 = vsel %vm2525, %v6160, 0
        %v6255 = vsel %vm2525, %v6161, 0
        %v6258 = vsel %vm2525, %v6162, 0
        %v6261 = vsel %vm2525, %v6163, 0
        %v6264 = vsel %vm2525, %v6164, 0
        %v6267 = vsel %vm2525, %v6165, 0
        %v6270 = vsel %vm2525, %v6166, 0
        %v6273 = vsel %vm2525, %v6167, 0
        %v6276 = vsel %vm2525, %v6168, 0
        %v6279 = vsel %vm2525, %v6169, 0
        %v6282 = vsel %vm2525, %v6170, 0
        %v6285 = vsel %vm2532, %v6222, 0
        %v6288 = vsel %vm2532, %v6223, 0
        %6290 = vmatprep.subr.bf16.mxu0 %v6211
        %6291 = vmatpush1.bf16.msra.mxu0 %v6210
        %6292 = vmatprep.subr.bf16.mxu0 %v6213
        %6293 = vmatpush1.bf16.msra.mxu0 %v6212
        %6294 = vmatprep.subr.bf16.mxu0 %v6215
        %6295 = vmatpush1.bf16.msra.mxu0 %v6214
        %6296 = vmatprep.subr.bf16.mxu0 %v6217
        %6297 = vmatpush1.bf16.msra.mxu0 %v6216
        %6298 = vmatprep.subr.bf16.mxu0 %v6219
        %6299 = vmatpush1.bf16.msra.mxu0 %v6218
        %6300 = vmatprep.subr.bf16.mxu0 %v6221
        %6301 = vmatpush1.bf16.msra.mxu0 %v6220
        %6302 = vmatprep.subr.bf16.mxu0 %v6288
        %6303 = vmatpush1.bf16.msra.mxu0 %v6285
        %6304 = vmatprep.subr.bf16.mxu0 0
        %6305 = vmatpush1.bf16.msra.mxu0 0
        %6306 = vmatprep.subr.bf16.mxu0 0
        %6307 = vmatpush1.bf16.msra.mxu0 0
        %6308 = vmatprep.subr.bf16.mxu0 0
        %6309 = vmatpush1.bf16.msra.mxu0 0
        %6310 = vmatprep.subr.bf16.mxu0 0
        %6311 = vmatpush1.bf16.msra.mxu0 0
        %6312 = vmatprep.subr.bf16.mxu0 0
        %6313 = vmatpush1.bf16.msra.mxu0 0
        %6314 = vmatprep.subr.bf16.mxu0 0
        %6315 = vmatpush1.bf16.msra.mxu0 0
        %6316 = vmatprep.subr.bf16.mxu0 0
        %6317 = vmatpush1.bf16.msra.mxu0 0
        %6318 = vmatprep.subr.bf16.mxu0 0
        %6319 = vmatpush1.bf16.msra.mxu0 0
        %6320 = vmatprep.subr.bf16.mxu0 0
        %6321 = vmatpush1.bf16.msra.mxu0 0
        %6322 = vmatprep.mubr.bf16.mxu0 0
        %6323 = vmatmul.mubr.bf16.gmra.mrb[0].mxu0 %v6237
        %v6324 = vpop.f32.mrb[0].mxu0
        %v6325 = vadd.f32 0.0, %v6324
        %v6326 = vpop.f32.mrb[0].mxu0
        %v6327 = vadd.f32 0.0, %v6326
        %v6328 = vpop.f32.mrb[0].mxu0
        %v6329 = vadd.f32 0.0, %v6328
        %v6330 = vpop.f32.mrb[0].mxu0
        %v6331 = vadd.f32 0.0, %v6330
        %6332 = vmatprep.mubr.bf16.mxu0 0
        %6333 = vmatmul.mubr.bf16.gmra.mrb[0].mxu0 %v6240
        %v6334 = vpop.f32.mrb[0].mxu0
        %v6335 = vadd.f32 0.0, %v6334
        %v6336 = vpop.f32.mrb[0].mxu0
        %v6337 = vadd.f32 0.0, %v6336
        %v6338 = vpop.f32.mrb[0].mxu0
        %v6339 = vadd.f32 0.0, %v6338
        %v6340 = vpop.f32.mrb[0].mxu0
        %v6341 = vadd.f32 0.0, %v6340
        %6342 = vmatprep.mubr.bf16.mxu0 0
        %6343 = vmatmul.mubr.bf16.gmra.mrb[0].mxu0 %v6243
        %v6344 = vpop.f32.mrb[0].mxu0
        %v6345 = vadd.f32 0.0, %v6344
        %v6346 = vpop.f32.mrb[0].mxu0
        %v6347 = vadd.f32 0.0, %v6346
        %v6348 = vpop.f32.mrb[0].mxu0
        %v6349 = vadd.f32 0.0, %v6348
        %v6350 = vpop.f32.mrb[0].mxu0
        %v6351 = vadd.f32 0.0, %v6350
        %6352 = vmatprep.mubr.bf16.mxu0 0
        %6353 = vmatmul.mubr.bf16.gmra.mrb[0].mxu0 %v6246
        %v6354 = vpop.f32.mrb[0].mxu0
        %v6355 = vadd.f32 0.0, %v6354
        %v6356 = vpop.f32.mrb[0].mxu0
        %v6357 = vadd.f32 0.0, %v6356
        %v6358 = vpop.f32.mrb[0].mxu0
        %v6359 = vadd.f32 0.0, %v6358
        %v6360 = vpop.f32.mrb[0].mxu0
        %v6361 = vadd.f32 0.0, %v6360
        %6362 = vmatprep.mubr.bf16.mxu0 0
        %6363 = vmatmul.mubr.bf16.gmra.mrb[0].mxu0 %v6249
        %v6364 = vpop.f32.mrb[0].mxu0
        %v6365 = vadd.f32 0.0, %v6364
        %v6366 = vpop.f32.mrb[0].mxu0
        %v6367 = vadd.f32 0.0, %v6366
        %v6368 = vpop.f32.mrb[0].mxu0
        %v6369 = vadd.f32 0.0, %v6368
        %v6370 = vpop.f32.mrb[0].mxu0
        %v6371 = vadd.f32 0.0, %v6370
        %6372 = vmatprep.mubr.bf16.mxu0 0
        %6373 = vmatmul.mubr.bf16.gmra.mrb[0].mxu0 %v6252
        %v6374 = vpop.f32.mrb[0].mxu0
        %v6375 = vadd.f32 0.0, %v6374
        %v6376 = vpop.f32.mrb[0].mxu0
        %v6377 = vadd.f32 0.0, %v6376
        %v6378 = vpop.f32.mrb[0].mxu0
        %v6379 = vadd.f32 0.0, %v6378
        %v6380 = vpop.f32.mrb[0].mxu0
        %v6381 = vadd.f32 0.0, %v6380
        %6382 = vmatprep.mubr.bf16.mxu0 0
        %6383 = vmatmul.mubr.bf16.gmra.mrb[0].mxu0 %v6255
        %v6384 = vpop.f32.mrb[0].mxu0
        %v6385 = vadd.f32 0.0, %v6384
        %v6386 = vpop.f32.mrb[0].mxu0
        %v6387 = vadd.f32 0.0, %v6386
        %v6388 = vpop.f32.mrb[0].mxu0
        %v6389 = vadd.f32 0.0, %v6388
        %v6390 = vpop.f32.mrb[0].mxu0
        %v6391 = vadd.f32 0.0, %v6390
        %6392 = vmatprep.mubr.bf16.mxu0 0
        %6393 = vmatmul.mubr.bf16.gmra.mrb[0].mxu0 %v6258
        %v6394 = vpop.f32.mrb[0].mxu0
        %v6395 = vadd.f32 0.0, %v6394
        %v6396 = vpop.f32.mrb[0].mxu0
        %v6397 = vadd.f32 0.0, %v6396
        %v6398 = vpop.f32.mrb[0].mxu0
        %v6399 = vadd.f32 0.0, %v6398
        %v6400 = vpop.f32.mrb[0].mxu0
        %v6401 = vadd.f32 0.0, %v6400
        %6402 = vmatprep.mubr.bf16.mxu0 0
        %6403 = vmatmul.mubr.bf16.gmra.mrb[0].mxu0 %v6261
        %v6404 = vpop.f32.mrb[0].mxu0
        %v6405 = vadd.f32 0.0, %v6404
        %v6406 = vpop.f32.mrb[0].mxu0
        %v6407 = vadd.f32 0.0, %v6406
        %v6408 = vpop.f32.mrb[0].mxu0
        %v6409 = vadd.f32 0.0, %v6408
        %v6410 = vpop.f32.mrb[0].mxu0
        %v6411 = vadd.f32 0.0, %v6410
        %6412 = vmatprep.mubr.bf16.mxu0 0
        %6413 = vmatmul.mubr.bf16.gmra.mrb[0].mxu0 %v6264
        %v6414 = vpop.f32.mrb[0].mxu0
        %v6415 = vadd.f32 0.0, %v6414
        %v6416 = vpop.f32.mrb[0].mxu0
        %v6417 = vadd.f32 0.0, %v6416
        %v6418 = vpop.f32.mrb[0].mxu0
        %v6419 = vadd.f32 0.0, %v6418
        %v6420 = vpop.f32.mrb[0].mxu0
        %v6421 = vadd.f32 0.0, %v6420
        %6422 = vmatprep.mubr.bf16.mxu0 0
        %6423 = vmatmul.mubr.bf16.gmra.mrb[0].mxu0 %v6267
        %v6424 = vpop.f32.mrb[0].mxu0
        %v6425 = vadd.f32 0.0, %v6424
        %v6426 = vpop.f32.mrb[0].mxu0
        %v6427 = vadd.f32 0.0, %v6426
        %v6428 = vpop.f32.mrb[0].mxu0
        %v6429 = vadd.f32 0.0, %v6428
        %v6430 = vpop.f32.mrb[0].mxu0
        %v6431 = vadd.f32 0.0, %v6430
        %6432 = vmatprep.mubr.bf16.mxu0 0
        %6433 = vmatmul.mubr.bf16.gmra.mrb[0].mxu0 %v6270
        %v6434 = vpop.f32.mrb[0].mxu0
        %v6435 = vadd.f32 0.0, %v6434
        %v6436 = vpop.f32.mrb[0].mxu0
        %v6437 = vadd.f32 0.0, %v6436
        %v6438 = vpop.f32.mrb[0].mxu0
        %v6439 = vadd.f32 0.0, %v6438
        %v6440 = vpop.f32.mrb[0].mxu0
        %v6441 = vadd.f32 0.0, %v6440
        %6442 = vmatprep.mubr.bf16.mxu0 0
        %6443 = vmatmul.mubr.bf16.gmra.mrb[0].mxu0 %v6273
        %v6444 = vpop.f32.mrb[0].mxu0
        %v6445 = vadd.f32 0.0, %v6444
        %v6446 = vpop.f32.mrb[0].mxu0
        %v6447 = vadd.f32 0.0, %v6446
        %v6448 = vpop.f32.mrb[0].mxu0
        %v6449 = vadd.f32 0.0, %v6448
        %v6450 = vpop.f32.mrb[0].mxu0
        %v6451 = vadd.f32 0.0, %v6450
        %6452 = vmatprep.mubr.bf16.mxu0 0
        %6453 = vmatmul.mubr.bf16.gmra.mrb[0].mxu0 %v6276
        %v6454 = vpop.f32.mrb[0].mxu0
        %v6455 = vadd.f32 0.0, %v6454
        %v6456 = vpop.f32.mrb[0].mxu0
        %v6457 = vadd.f32 0.0, %v6456
        %v6458 = vpop.f32.mrb[0].mxu0
        %v6459 = vadd.f32 0.0, %v6458
        %v6460 = vpop.f32.mrb[0].mxu0
        %v6461 = vadd.f32 0.0, %v6460
        %6462 = vmatprep.mubr.bf16.mxu0 0
        %6463 = vmatmul.mubr.bf16.gmra.mrb[0].mxu0 %v6279
        %v6464 = vpop.f32.mrb[0].mxu0
        %v6465 = vadd.f32 0.0, %v6464
        %v6466 = vpop.f32.mrb[0].mxu0
        %v6467 = vadd.f32 0.0, %v6466
        %v6468 = vpop.f32.mrb[0].mxu0
        %v6469 = vadd.f32 0.0, %v6468
        %v6470 = vpop.f32.mrb[0].mxu0
        %v6471 = vadd.f32 0.0, %v6470
        %6472 = vmatprep.mubr.bf16.mxu0 0
        %6473 = vmatmul.mubr.bf16.gmra.mrb[0].mxu0 %v6282
        %v6474 = vpop.f32.mrb[0].mxu0
        %v6475 = vadd.f32 0.0, %v6474
        %v6476 = vpop.f32.mrb[0].mxu0
        %v6477 = vadd.f32 0.0, %v6476
        %v6478 = vpop.f32.mrb[0].mxu0
        %v6479 = vadd.f32 0.0, %v6478
        %v6480 = vpop.f32.mrb[0].mxu0
        %v6481 = vadd.f32 0.0, %v6480
        %6482 = vdwg.mxu0
        %v6483 = vld [vmem:[#allocation9] sm:$0xf]
        %v6484 = vld [vmem:[#allocation9 + $0x4] sm:$0xf]
        %v6487 = vunpack.c.l.b16 %v6483
        %v6488 = vunpack.c.l.b16 %v6484
        %v6489 = vpack.c.b16 %v6488, %v6487
        %6491 = vmatprep.subr.bf16.mxu0 %v827
        %6492 = vmatpush1.bf16.msra.mxu0 %v826
        %6493 = vmatprep.subr.bf16.mxu0 %v829
        %6494 = vmatpush1.bf16.msra.mxu0 %v828
        %6495 = vmatprep.subr.bf16.mxu0 %v831
        %6496 = vmatpush1.bf16.msra.mxu0 %v830
        %6497 = vmatprep.subr.bf16.mxu0 %v833
        %6498 = vmatpush1.bf16.msra.mxu0 %v832
        %6499 = vmatprep.subr.bf16.mxu0 %v835
        %6500 = vmatpush1.bf16.msra.mxu0 %v834
        %6501 = vmatprep.subr.bf16.mxu0 %v837
        %6502 = vmatpush1.bf16.msra.mxu0 %v836
        %6503 = vmatprep.subr.bf16.mxu0 %v839
        %6504 = vmatpush1.bf16.msra.mxu0 %v838
        %6505 = vmatprep.subr.bf16.mxu0 %v841
        %6506 = vmatpush1.bf16.msra.mxu0 %v840
        %6507 = vmatprep.subr.bf16.mxu0 0
        %6508 = vmatpush1.bf16.msra.mxu0 0
        %6509 = vmatprep.subr.bf16.mxu0 0
        %6510 = vmatpush1.bf16.msra.mxu0 0
        %6511 = vmatprep.subr.bf16.mxu0 0
        %6512 = vmatpush1.bf16.msra.mxu0 0
        %6513 = vmatprep.subr.bf16.mxu0 0
        %6514 = vmatpush1.bf16.msra.mxu0 0
        %6515 = vmatprep.subr.bf16.mxu0 0
        %6516 = vmatpush1.bf16.msra.mxu0 0
        %6517 = vmatprep.subr.bf16.mxu0 0
        %6518 = vmatpush1.bf16.msra.mxu0 0
        %6519 = vmatprep.subr.bf16.mxu0 0
        %6520 = vmatpush1.bf16.msra.mxu0 0
        %6521 = vmatprep.subr.bf16.mxu0 0
        %6522 = vmatpush1.bf16.msra.mxu0 0
        %6523 = vmatprep.mubr.bf16.mxu0 0
        %6524 = vmatmul.mubr.bf16.gmra.mrb[0].mxu0 %v6489
        %v6525 = vpop.f32.mrb[0].mxu0
        %v6526 = vadd.f32 0.0, %v6525
        %v6527 = vpop.f32.mrb[0].mxu0
        %v6528 = vadd.f32 0.0, %v6527
        %v6529 = vpop.f32.mrb[0].mxu0
        %v6530 = vadd.f32 0.0, %v6529
        %v6531 = vpop.f32.mrb[0].mxu0
        %v6532 = vadd.f32 0.0, %v6531
        %6533 = vdwg.mxu0
        %v6534 = vld [vmem:[%s16] sm:$0xf]
        %v6535 = vld [vmem:[%s16 + $0x4] sm:$0xf]
        %v6536 = vld [vmem:[%s16 + $0x8] sm:$0xf]
        %v6537 = vld [vmem:[%s16 + $0xc] sm:$0xf]
        %v6538 = vld [vmem:[%s16 + $0x10] sm:$0xf]
        %v6539 = vld [vmem:[%s16 + $0x14] sm:$0xf]
        %v6540 = vld [vmem:[%s16 + $0x18] sm:$0xf]
        %v6541 = vld [vmem:[%s16 + $0x1c] sm:$0xf]
        %v6542 = vld [vmem:[%s16 + $0x20] sm:$0xf]
        %v6543 = vld [vmem:[%s16 + $0x24] sm:$0xf]
        %v6544 = vld [vmem:[%s16 + $0x28] sm:$0xf]
        %v6545 = vld [vmem:[%s16 + $0x2c] sm:$0xf]
        %v6546 = vld [vmem:[%s16 + $0x30] sm:$0xf]
        %v6547 = vld [vmem:[%s16 + $0x34] sm:$0xf]
        %v6548 = vld [vmem:[%s16 + $0x38] sm:$0xf]
        %v6549 = vld [vmem:[%s16 + $0x3c] sm:$0xf]
        %v6550 = vld [vmem:[%s16 + $0x40] sm:$0xf]
        %v6551 = vld [vmem:[%s16 + $0x44] sm:$0xf]
        %v6552 = vld [vmem:[%s16 + $0x48] sm:$0xf]
        %v6553 = vld [vmem:[%s16 + $0x4c] sm:$0xf]
        %v6554 = vld [vmem:[%s16 + $0x50] sm:$0xf]
        %v6555 = vld [vmem:[%s16 + $0x54] sm:$0xf]
        %v6556 = vld [vmem:[%s16 + $0x58] sm:$0xf]
        %v6557 = vld [vmem:[%s16 + $0x5c] sm:$0xf]
        %v6558 = vld [vmem:[%s16 + $0x60] sm:$0xf]
        %v6559 = vpack.c.bf16 %v6530, %v6526
        %v6560 = vpack.c.bf16 %v6532, %v6528
        %v6586 = vunpack.c.l.b16 %v6534
        %v6587 = vunpack.c.l.b16 %v6535
        %v6588 = vunpack.c.l.b16 %v6536
        %v6589 = vunpack.c.l.b16 %v6537
        %v6590 = vunpack.c.l.b16 %v6538
        %v6591 = vunpack.c.l.b16 %v6539
        %v6592 = vunpack.c.l.b16 %v6540
        %v6593 = vunpack.c.l.b16 %v6541
        %v6594 = vunpack.c.l.b16 %v6542
        %v6595 = vunpack.c.l.b16 %v6543
        %v6596 = vunpack.c.l.b16 %v6544
        %v6597 = vunpack.c.l.b16 %v6545
        %v6598 = vunpack.c.l.b16 %v6546
        %v6599 = vunpack.c.l.b16 %v6547
        %v6600 = vunpack.c.l.b16 %v6548
        %v6601 = vunpack.c.l.b16 %v6549
        %v6602 = vunpack.c.l.b16 %v6550
        %v6603 = vunpack.c.l.b16 %v6551
        %v6604 = vunpack.c.l.b16 %v6552
        %v6605 = vunpack.c.l.b16 %v6553
        %v6606 = vunpack.c.l.b16 %v6554
        %v6607 = vunpack.c.l.b16 %v6555
        %v6608 = vunpack.c.l.b16 %v6556
        %v6609 = vunpack.c.l.b16 %v6557
        %v6610 = vunpack.c.l.b16 %v6558
        %v6611 = vpack.c.b16 %v6587, %v6586
        %v6612 = vpack.c.b16 %v6589, %v6588
        %v6613 = vpack.c.b16 %v6591, %v6590
        %v6614 = vpack.c.b16 %v6593, %v6592
        %v6615 = vpack.c.b16 %v6595, %v6594
        %v6616 = vpack.c.b16 %v6597, %v6596
        %v6617 = vpack.c.b16 %v6599, %v6598
        %v6618 = vpack.c.b16 %v6601, %v6600
        %v6619 = vpack.c.b16 %v6603, %v6602
        %v6620 = vpack.c.b16 %v6605, %v6604
        %v6621 = vpack.c.b16 %v6607, %v6606
        %v6622 = vpack.c.b16 %v6609, %v6608
        %v6623 = vpack.c.b16 %v6610, %v6610
        %v6637 = vsel %vm1377, %v6560, 0
        %v6640 = vsel %vm1390, %v6623, 0
        %6642 = vmatprep.subr.bf16.mxu0 0
        %6643 = vmatpush1.bf16.msra.mxu0 %v6611
        %6644 = vmatprep.subr.bf16.mxu0 0
        %6645 = vmatpush1.bf16.msra.mxu0 %v6612
        %6646 = vmatprep.subr.bf16.mxu0 0
        %6647 = vmatpush1.bf16.msra.mxu0 %v6613
        %6648 = vmatprep.subr.bf16.mxu0 0
        %6649 = vmatpush1.bf16.msra.mxu0 %v6614
        %6650 = vmatprep.subr.bf16.mxu0 0
        %6651 = vmatpush1.bf16.msra.mxu0 %v6615
        %6652 = vmatprep.subr.bf16.mxu0 0
        %6653 = vmatpush1.bf16.msra.mxu0 %v6616
        %6654 = vmatprep.subr.bf16.mxu0 0
        %6655 = vmatpush1.bf16.msra.mxu0 %v6617
        %6656 = vmatprep.subr.bf16.mxu0 0
        %6657 = vmatpush1.bf16.msra.mxu0 %v6618
        %6658 = vmatprep.subr.bf16.mxu0 0
        %6659 = vmatpush1.bf16.msra.mxu0 %v6619
        %6660 = vmatprep.subr.bf16.mxu0 0
        %6661 = vmatpush1.bf16.msra.mxu0 %v6620
        %6662 = vmatprep.subr.bf16.mxu0 0
        %6663 = vmatpush1.bf16.msra.mxu0 %v6621
        %6664 = vmatprep.subr.bf16.mxu0 0
        %6665 = vmatpush1.bf16.msra.mxu0 %v6622
        %6666 = vmatprep.subr.bf16.mxu0 0
        %6667 = vmatpush1.bf16.msra.mxu0 %v6640
        %6668 = vmatprep.subr.bf16.mxu0 0
        %6669 = vmatpush1.bf16.msra.mxu0 0
        %6670 = vmatprep.subr.bf16.mxu0 0
        %6671 = vmatpush1.bf16.msra.mxu0 0
        %6672 = vmatprep.subr.bf16.mxu0 0
        %6673 = vmatpush1.bf16.msra.mxu0 0
        %6674 = vmatprep.mubr.bf16.mxu0 %v6637
        %6675 = vmatmul.mubr.bf16.gmra.mrb[0].mxu0 %v6559
        %v6676 = vpop.f32.mrb[0].mxu0
        %v6677 = vadd.f32 0.0, %v6676
        %v6678 = vpop.f32.mrb[0].mxu0
        %v6679 = vpop.f32.mrb[0].mxu0
        %v6680 = vadd.f32 0.0, %v6679
        %v6681 = vpop.f32.mrb[0].mxu0
        %6682 = vdwg.mxu0
        %v6683 = vld [vmem:[%s17] sm:$0xf]
        %v6684 = vld [vmem:[%s17 + $0x4] sm:$0xf]
        %v6685 = vld [vmem:[%s17 + $0x8] sm:$0xf]
        %v6686 = vld [vmem:[%s17 + $0xc] sm:$0xf]
        %v6687 = vld [vmem:[%s17 + $0x10] sm:$0xf]
        %v6688 = vld [vmem:[%s17 + $0x14] sm:$0xf]
        %v6689 = vld [vmem:[%s17 + $0x18] sm:$0xf]
        %v6690 = vld [vmem:[%s17 + $0x1c] sm:$0xf]
        %v6691 = vld [vmem:[%s17 + $0x20] sm:$0xf]
        %v6692 = vld [vmem:[%s17 + $0x24] sm:$0xf]
        %v6693 = vld [vmem:[%s17 + $0x28] sm:$0xf]
        %v6694 = vld [vmem:[%s17 + $0x2c] sm:$0xf]
        %v6695 = vld [vmem:[%s17 + $0x30] sm:$0xf]
        %v6696 = vld [vmem:[%s17 + $0x34] sm:$0xf]
        %v6697 = vld [vmem:[%s17 + $0x38] sm:$0xf]
        %v6698 = vld [vmem:[%s17 + $0x3c] sm:$0xf]
        %v6699 = vld [vmem:[%s17 + $0x40] sm:$0xf]
        %v6700 = vld [vmem:[%s17 + $0x44] sm:$0xf]
        %v6701 = vld [vmem:[%s17 + $0x48] sm:$0xf]
        %v6702 = vld [vmem:[%s17 + $0x4c] sm:$0xf]
        %v6703 = vld [vmem:[%s17 + $0x50] sm:$0xf]
        %v6704 = vld [vmem:[%s17 + $0x54] sm:$0xf]
        %v6705 = vld [vmem:[%s17 + $0x58] sm:$0xf]
        %v6706 = vld [vmem:[%s17 + $0x5c] sm:$0xf]
        %v6707 = vld [vmem:[%s17 + $0x60] sm:$0xf]
        %v6708 = vld [vmem:[%s17 + $0x64] sm:$0xf]
        %v6709 = vld [vmem:[%s17 + $0x68] sm:$0xf]
        %v6710 = vld [vmem:[%s17 + $0x6c] sm:$0xf]
        %v6711 = vld [vmem:[%s17 + $0x70] sm:$0xf]
        %v6712 = vld [vmem:[%s17 + $0x74] sm:$0xf]
        %v6713 = vld [vmem:[%s17 + $0x78] sm:$0xf]
        %v6714 = vld [vmem:[%s17 + $0x7c] sm:$0xf]
        %v6715 = vpack.c.bf16 %v6680, %v6677
        %v6748 = vunpack.c.l.b16 %v6683
        %v6749 = vunpack.c.l.b16 %v6684
        %v6750 = vunpack.c.l.b16 %v6685
        %v6751 = vunpack.c.l.b16 %v6686
        %v6752 = vunpack.c.l.b16 %v6687
        %v6753 = vunpack.c.l.b16 %v6688
        %v6754 = vunpack.c.l.b16 %v6689
        %v6755 = vunpack.c.l.b16 %v6690
        %v6756 = vunpack.c.l.b16 %v6691
        %v6757 = vunpack.c.l.b16 %v6692
        %v6758 = vunpack.c.l.b16 %v6693
        %v6759 = vunpack.c.l.b16 %v6694
        %v6760 = vunpack.c.l.b16 %v6695
        %v6761 = vunpack.c.l.b16 %v6696
        %v6762 = vunpack.c.l.b16 %v6697
        %v6763 = vunpack.c.l.b16 %v6698
        %v6764 = vunpack.c.l.b16 %v6699
        %v6765 = vunpack.c.l.b16 %v6700
        %v6766 = vunpack.c.l.b16 %v6701
        %v6767 = vunpack.c.l.b16 %v6702
        %v6768 = vunpack.c.l.b16 %v6703
        %v6769 = vunpack.c.l.b16 %v6704
        %v6770 = vunpack.c.l.b16 %v6705
        %v6771 = vunpack.c.l.b16 %v6706
        %v6772 = vunpack.c.l.b16 %v6707
        %v6773 = vunpack.c.l.b16 %v6708
        %v6774 = vunpack.c.l.b16 %v6709
        %v6775 = vunpack.c.l.b16 %v6710
        %v6776 = vunpack.c.l.b16 %v6711
        %v6777 = vunpack.c.l.b16 %v6712
        %v6778 = vunpack.c.l.b16 %v6713
        %v6779 = vunpack.c.l.b16 %v6714
        %v6780 = vpack.c.b16 %v6749, %v6748
        %v6781 = vpack.c.b16 %v6751, %v6750
        %v6782 = vpack.c.b16 %v6753, %v6752
        %v6783 = vpack.c.b16 %v6755, %v6754
        %v6784 = vpack.c.b16 %v6757, %v6756
        %v6785 = vpack.c.b16 %v6759, %v6758
        %v6786 = vpack.c.b16 %v6761, %v6760
        %v6787 = vpack.c.b16 %v6763, %v6762
        %v6788 = vpack.c.b16 %v6765, %v6764
        %v6789 = vpack.c.b16 %v6767, %v6766
        %v6790 = vpack.c.b16 %v6769, %v6768
        %v6791 = vpack.c.b16 %v6771, %v6770
        %v6792 = vpack.c.b16 %v6773, %v6772
        %v6793 = vpack.c.b16 %v6775, %v6774
        %v6794 = vpack.c.b16 %v6777, %v6776
        %v6795 = vpack.c.b16 %v6779, %v6778
        %vm6796 = vcmask 130048
        %v6798 = vsel %vm6796, %v6780, 0
        %v6801 = vsel %vm6796, %v6781, 0
        %v6804 = vsel %vm6796, %v6782, 0
        %v6807 = vsel %vm6796, %v6783, 0
        %v6810 = vsel %vm6796, %v6784, 0
        %v6813 = vsel %vm6796, %v6785, 0
        %v6816 = vsel %vm6796, %v6786, 0
        %v6819 = vsel %vm6796, %v6787, 0
        %v6822 = vsel %vm6796, %v6788, 0
        %v6825 = vsel %vm6796, %v6789, 0
        %v6828 = vsel %vm6796, %v6790, 0
        %v6831 = vsel %vm6796, %v6791, 0
        %v6834 = vsel %vm6796, %v6792, 0
        %v6837 = vsel %vm6796, %v6793, 0
        %v6840 = vsel %vm6796, %v6794, 0
        %v6843 = vsel %vm6796, %v6795, 0
        %6845 = vmatprep.subr.bf16.mxu0 0
        %6846 = vmatpush1.bf16.msra.mxu0 %v6715
        %6847 = vmatprep.subr.bf16.mxu0 0
        %6848 = vmatpush1.bf16.msra.mxu0 0
        %6849 = vmatprep.subr.bf16.mxu0 0
        %6850 = vmatpush1.bf16.msra.mxu0 0
        %6851 = vmatprep.subr.bf16.mxu0 0
        %6852 = vmatpush1.bf16.msra.mxu0 0
        %6853 = vmatprep.subr.bf16.mxu0 0
        %6854 = vmatpush1.bf16.msra.mxu0 0
        %6855 = vmatprep.subr.bf16.mxu0 0
        %6856 = vmatpush1.bf16.msra.mxu0 0
        %6857 = vmatprep.subr.bf16.mxu0 0
        %6858 = vmatpush1.bf16.msra.mxu0 0
        %6859 = vmatprep.subr.bf16.mxu0 0
        %6860 = vmatpush1.bf16.msra.mxu0 0
        %6861 = vmatprep.subr.bf16.mxu0 0
        %6862 = vmatpush1.bf16.msra.mxu0 0
        %6863 = vmatprep.subr.bf16.mxu0 0
        %6864 = vmatpush1.bf16.msra.mxu0 0
        %6865 = vmatprep.subr.bf16.mxu0 0
        %6866 = vmatpush1.bf16.msra.mxu0 0
        %6867 = vmatprep.subr.bf16.mxu0 0
        %6868 = vmatpush1.bf16.msra.mxu0 0
        %6869 = vmatprep.subr.bf16.mxu0 0
        %6870 = vmatpush1.bf16.msra.mxu0 0
        %6871 = vmatprep.subr.bf16.mxu0 0
        %6872 = vmatpush1.bf16.msra.mxu0 0
        %6873 = vmatprep.subr.bf16.mxu0 0
        %6874 = vmatpush1.bf16.msra.mxu0 0
        %6875 = vmatprep.subr.bf16.mxu0 0
        %6876 = vmatpush1.bf16.msra.mxu0 0
        %6877 = vmatprep.mubr.bf16.mxu0 0
        %6878 = vmatmul.mubr.bf16.gmra.mrb[0].mxu0 %v6798
        %v6879 = vpop.f32.mrb[0].mxu0
        %v6880 = vadd.f32 0.0, %v6879
        %v6881 = vpop.f32.mrb[0].mxu0
        %v6882 = vpop.f32.mrb[0].mxu0
        %v6883 = vadd.f32 0.0, %v6882
        %v6884 = vpop.f32.mrb[0].mxu0
        %6885 = vmatprep.mubr.bf16.mxu0 0
        %6886 = vmatmul.mubr.bf16.gmra.mrb[0].mxu0 %v6801
        %v6887 = vpop.f32.mrb[0].mxu0
        %v6888 = vadd.f32 0.0, %v6887
        %v6889 = vpop.f32.mrb[0].mxu0
        %v6890 = vpop.f32.mrb[0].mxu0
        %v6891 = vadd.f32 0.0, %v6890
        %v6892 = vpop.f32.mrb[0].mxu0
        %6893 = vmatprep.mubr.bf16.mxu0 0
        %6894 = vmatmul.mubr.bf16.gmra.mrb[0].mxu0 %v6804
        %v6895 = vpop.f32.mrb[0].mxu0
        %v6896 = vadd.f32 0.0, %v6895
        %v6897 = vpop.f32.mrb[0].mxu0
        %v6898 = vpop.f32.mrb[0].mxu0
        %v6899 = vadd.f32 0.0, %v6898
        %v6900 = vpop.f32.mrb[0].mxu0
        %6901 = vmatprep.mubr.bf16.mxu0 0
        %6902 = vmatmul.mubr.bf16.gmra.mrb[0].mxu0 %v6807
        %v6903 = vpop.f32.mrb[0].mxu0
        %v6904 = vadd.f32 0.0, %v6903
        %v6905 = vpop.f32.mrb[0].mxu0
        %v6906 = vpop.f32.mrb[0].mxu0
        %v6907 = vadd.f32 0.0, %v6906
        %v6908 = vpop.f32.mrb[0].mxu0
        %6909 = vmatprep.mubr.bf16.mxu0 0
        %6910 = vmatmul.mubr.bf16.gmra.mrb[0].mxu0 %v6810
        %v6911 = vpop.f32.mrb[0].mxu0
        %v6912 = vadd.f32 0.0, %v6911
        %v6913 = vpop.f32.mrb[0].mxu0
        %v6914 = vpop.f32.mrb[0].mxu0
        %v6915 = vadd.f32 0.0, %v6914
        %v6916 = vpop.f32.mrb[0].mxu0
        %6917 = vmatprep.mubr.bf16.mxu0 0
        %6918 = vmatmul.mubr.bf16.gmra.mrb[0].mxu0 %v6813
        %v6919 = vpop.f32.mrb[0].mxu0
        %v6920 = vadd.f32 0.0, %v6919
        %v6921 = vpop.f32.mrb[0].mxu0
        %v6922 = vpop.f32.mrb[0].mxu0
        %v6923 = vadd.f32 0.0, %v6922
        %v6924 = vpop.f32.mrb[0].mxu0
        %6925 = vmatprep.mubr.bf16.mxu0 0
        %6926 = vmatmul.mubr.bf16.gmra.mrb[0].mxu0 %v6816
        %v6927 = vpop.f32.mrb[0].mxu0
        %v6928 = vadd.f32 0.0, %v6927
        %v6929 = vpop.f32.mrb[0].mxu0
        %v6930 = vpop.f32.mrb[0].mxu0
        %v6931 = vadd.f32 0.0, %v6930
        %v6932 = vpop.f32.mrb[0].mxu0
        %6933 = vmatprep.mubr.bf16.mxu0 0
        %6934 = vmatmul.mubr.bf16.gmra.mrb[0].mxu0 %v6819
        %v6935 = vpop.f32.mrb[0].mxu0
        %v6936 = vadd.f32 0.0, %v6935
        %v6937 = vpop.f32.mrb[0].mxu0
        %v6938 = vpop.f32.mrb[0].mxu0
        %v6939 = vadd.f32 0.0, %v6938
        %v6940 = vpop.f32.mrb[0].mxu0
        %6941 = vmatprep.mubr.bf16.mxu0 0
        %6942 = vmatmul.mubr.bf16.gmra.mrb[0].mxu0 %v6822
        %v6943 = vpop.f32.mrb[0].mxu0
        %v6944 = vadd.f32 0.0, %v6943
        %v6945 = vpop.f32.mrb[0].mxu0
        %v6946 = vpop.f32.mrb[0].mxu0
        %v6947 = vadd.f32 0.0, %v6946
        %v6948 = vpop.f32.mrb[0].mxu0
        %6949 = vmatprep.mubr.bf16.mxu0 0
        %6950 = vmatmul.mubr.bf16.gmra.mrb[0].mxu0 %v6825
        %v6951 = vpop.f32.mrb[0].mxu0
        %v6952 = vadd.f32 0.0, %v6951
        %v6953 = vpop.f32.mrb[0].mxu0
        %v6954 = vpop.f32.mrb[0].mxu0
        %v6955 = vadd.f32 0.0, %v6954
        %v6956 = vpop.f32.mrb[0].mxu0
        %6957 = vmatprep.mubr.bf16.mxu0 0
        %6958 = vmatmul.mubr.bf16.gmra.mrb[0].mxu0 %v6828
        %v6959 = vpop.f32.mrb[0].mxu0
        %v6960 = vadd.f32 0.0, %v6959
        %v6961 = vpop.f32.mrb[0].mxu0
        %v6962 = vpop.f32.mrb[0].mxu0
        %v6963 = vadd.f32 0.0, %v6962
        %v6964 = vpop.f32.mrb[0].mxu0
        %6965 = vmatprep.mubr.bf16.mxu0 0
        %6966 = vmatmul.mubr.bf16.gmra.mrb[0].mxu0 %v6831
        %v6967 = vpop.f32.mrb[0].mxu0
        %v6968 = vadd.f32 0.0, %v6967
        %v6969 = vpop.f32.mrb[0].mxu0
        %v6970 = vpop.f32.mrb[0].mxu0
        %v6971 = vadd.f32 0.0, %v6970
        %v6972 = vpop.f32.mrb[0].mxu0
        %6973 = vmatprep.mubr.bf16.mxu0 0
        %6974 = vmatmul.mubr.bf16.gmra.mrb[0].mxu0 %v6834
        %v6975 = vpop.f32.mrb[0].mxu0
        %v6976 = vadd.f32 0.0, %v6975
        %v6977 = vpop.f32.mrb[0].mxu0
        %v6978 = vpop.f32.mrb[0].mxu0
        %v6979 = vadd.f32 0.0, %v6978
        %v6980 = vpop.f32.mrb[0].mxu0
        %6981 = vmatprep.mubr.bf16.mxu0 0
        %6982 = vmatmul.mubr.bf16.gmra.mrb[0].mxu0 %v6837
        %v6983 = vpop.f32.mrb[0].mxu0
        %v6984 = vadd.f32 0.0, %v6983
        %v6985 = vpop.f32.mrb[0].mxu0
        %v6986 = vpop.f32.mrb[0].mxu0
        %v6987 = vadd.f32 0.0, %v6986
        %v6988 = vpop.f32.mrb[0].mxu0
        %6989 = vmatprep.mubr.bf16.mxu0 0
        %6990 = vmatmul.mubr.bf16.gmra.mrb[0].mxu0 %v6840
        %v6991 = vpop.f32.mrb[0].mxu0
        %v6992 = vadd.f32 0.0, %v6991
        %v6993 = vpop.f32.mrb[0].mxu0
        %v6994 = vpop.f32.mrb[0].mxu0
        %v6995 = vadd.f32 0.0, %v6994
        %v6996 = vpop.f32.mrb[0].mxu0
        %6997 = vmatprep.mubr.bf16.mxu0 0
        %6998 = vmatmul.mubr.bf16.gmra.mrb[0].mxu0 %v6843
        %v6999 = vpop.f32.mrb[0].mxu0
        %v7000 = vadd.f32 0.0, %v6999
        %v7001 = vpop.f32.mrb[0].mxu0
        %v7002 = vpop.f32.mrb[0].mxu0
        %v7003 = vadd.f32 0.0, %v7002
        %v7004 = vpop.f32.mrb[0].mxu0
        %7005 = vdwg.mxu0
        %v7006 = vld [vmem:[#allocation11] sm:$0xff]
        %v7007 = vld [vmem:[#allocation11 + $0x8] sm:$0xff]
        %v7008 = vld [vmem:[#allocation11 + $0x10] sm:$0xff]
        %v7009 = vld [vmem:[#allocation11 + $0x18] sm:$0x11]
        %v7010 = vpack.c.bf16 %v6883, %v6880
        %v7011 = vpack.c.bf16 %v6891, %v6888
        %v7012 = vpack.c.bf16 %v6899, %v6896
        %v7013 = vpack.c.bf16 %v6907, %v6904
        %v7014 = vpack.c.bf16 %v6915, %v6912
        %v7015 = vpack.c.bf16 %v6923, %v6920
        %v7016 = vpack.c.bf16 %v6931, %v6928
        %v7017 = vpack.c.bf16 %v6939, %v6936
        %v7018 = vpack.c.bf16 %v6947, %v6944
        %v7019 = vpack.c.bf16 %v6955, %v6952
        %v7020 = vpack.c.bf16 %v6963, %v6960
        %v7021 = vpack.c.bf16 %v6971, %v6968
        %v7022 = vpack.c.bf16 %v6979, %v6976
        %v7023 = vpack.c.bf16 %v6987, %v6984
        %v7024 = vpack.c.bf16 %v6995, %v6992
        %v7025 = vpack.c.bf16 %v7003, %v7000
        %v7030 = vunpack.c.l.b16 %v7006
        %v7031 = vunpack.c.h.b16 %v7006
        %v7032 = vunpack.c.l.b16 %v7007
        %v7033 = vunpack.c.h.b16 %v7007
        %v7034 = vunpack.c.l.b16 %v7008
        %v7035 = vunpack.c.h.b16 %v7008
        %v7036 = vunpack.c.l.b16 %v7009
        %v7037 = vunpack.c.h.b16 %v7009
        %v7038 = vpack.c.b16 %v7032, %v7030
        %v7039 = vpack.c.b16 %v7033, %v7031
        %v7040 = vpack.c.b16 %v7036, %v7034
        %v7041 = vpack.c.b16 %v7037, %v7035
        %vm7044 = vcmask 203776
        %v7046 = vsel %vm7044, %v7010, 0
        %v7049 = vsel %vm7044, %v7011, 0
        %v7052 = vsel %vm7044, %v7012, 0
        %v7055 = vsel %vm7044, %v7013, 0
        %v7058 = vsel %vm7044, %v7014, 0
        %v7061 = vsel %vm7044, %v7015, 0
        %v7064 = vsel %vm7044, %v7016, 0
        %v7067 = vsel %vm7044, %v7017, 0
        %v7070 = vsel %vm7044, %v7018, 0
        %v7073 = vsel %vm7044, %v7019, 0
        %v7076 = vsel %vm7044, %v7020, 0
        %v7079 = vsel %vm7044, %v7021, 0
        %v7082 = vsel %vm7044, %v7022, 0
        %v7085 = vsel %vm7044, %v7023, 0
        %v7088 = vsel %vm7044, %v7024, 0
        %v7091 = vsel %vm7044, %v7025, 0
        %vm7093 = vcmask 1044480
        %v7094 = vsel %vm1390, 4294967295, 65535
        %v7095 = vsel %vm7093, %v7094, 0
        %v7097 = vand.u32 %v7040, %v7095
        %v7100 = vand.u32 %v7041, %v7095
        %7102 = vmatprep.subr.bf16.mxu0 %v7039
        %7103 = vmatpush1.bf16.msra.mxu0 %v7038
        %7104 = vmatprep.subr.bf16.mxu0 %v7100
        %7105 = vmatpush1.bf16.msra.mxu0 %v7097
        %7106 = vmatprep.subr.bf16.mxu0 0
        %7107 = vmatpush1.bf16.msra.mxu0 0
        %7108 = vmatprep.subr.bf16.mxu0 0
        %7109 = vmatpush1.bf16.msra.mxu0 0
        %7110 = vmatprep.subr.bf16.mxu0 0
        %7111 = vmatpush1.bf16.msra.mxu0 0
        %7112 = vmatprep.subr.bf16.mxu0 0
        %7113 = vmatpush1.bf16.msra.mxu0 0
        %7114 = vmatprep.subr.bf16.mxu0 0
        %7115 = vmatpush1.bf16.msra.mxu0 0
        %7116 = vmatprep.subr.bf16.mxu0 0
        %7117 = vmatpush1.bf16.msra.mxu0 0
        %7118 = vmatprep.subr.bf16.mxu0 0
        %7119 = vmatpush1.bf16.msra.mxu0 0
        %7120 = vmatprep.subr.bf16.mxu0 0
        %7121 = vmatpush1.bf16.msra.mxu0 0
        %7122 = vmatprep.subr.bf16.mxu0 0
        %7123 = vmatpush1.bf16.msra.mxu0 0
        %7124 = vmatprep.subr.bf16.mxu0 0
        %7125 = vmatpush1.bf16.msra.mxu0 0
        %7126 = vmatprep.subr.bf16.mxu0 0
        %7127 = vmatpush1.bf16.msra.mxu0 0
        %7128 = vmatprep.subr.bf16.mxu0 0
        %7129 = vmatpush1.bf16.msra.mxu0 0
        %7130 = vmatprep.subr.bf16.mxu0 0
        %7131 = vmatpush1.bf16.msra.mxu0 0
        %7132 = vmatprep.subr.bf16.mxu0 0
        %7133 = vmatpush1.bf16.msra.mxu0 0
        %7134 = vmatprep.mubr.bf16.mxu0 0
        %7135 = vmatmul.mubr.bf16.gmra.mrb[0].mxu0 %v7046
        %v7136 = vpop.f32.mrb[0].mxu0
        %v7137 = vadd.f32 0.0, %v7136
        %v7138 = vpop.f32.mrb[0].mxu0
        %v7139 = vadd.f32 0.0, %v7138
        %v7140 = vpop.f32.mrb[0].mxu0
        %v7141 = vadd.f32 0.0, %v7140
        %v7142 = vpop.f32.mrb[0].mxu0
        %v7143 = vadd.f32 0.0, %v7142
        %7144 = vmatprep.mubr.bf16.mxu0 0
        %7145 = vmatmul.mubr.bf16.gmra.mrb[0].mxu0 %v7049
        %v7146 = vpop.f32.mrb[0].mxu0
        %v7147 = vadd.f32 0.0, %v7146
        %v7148 = vpop.f32.mrb[0].mxu0
        %v7149 = vadd.f32 0.0, %v7148
        %v7150 = vpop.f32.mrb[0].mxu0
        %v7151 = vadd.f32 0.0, %v7150
        %v7152 = vpop.f32.mrb[0].mxu0
        %v7153 = vadd.f32 0.0, %v7152
        %7154 = vmatprep.mubr.bf16.mxu0 0
        %7155 = vmatmul.mubr.bf16.gmra.mrb[0].mxu0 %v7052
        %v7156 = vpop.f32.mrb[0].mxu0
        %v7157 = vadd.f32 0.0, %v7156
        %v7158 = vpop.f32.mrb[0].mxu0
        %v7159 = vadd.f32 0.0, %v7158
        %v7160 = vpop.f32.mrb[0].mxu0
        %v7161 = vadd.f32 0.0, %v7160
        %v7162 = vpop.f32.mrb[0].mxu0
        %v7163 = vadd.f32 0.0, %v7162
        %7164 = vmatprep.mubr.bf16.mxu0 0
        %7165 = vmatmul.mubr.bf16.gmra.mrb[0].mxu0 %v7055
        %v7166 = vpop.f32.mrb[0].mxu0
        %v7167 = vadd.f32 0.0, %v7166
        %v7168 = vpop.f32.mrb[0].mxu0
        %v7169 = vadd.f32 0.0, %v7168
        %v7170 = vpop.f32.mrb[0].mxu0
        %v7171 = vadd.f32 0.0, %v7170
        %v7172 = vpop.f32.mrb[0].mxu0
        %v7173 = vadd.f32 0.0, %v7172
        %7174 = vmatprep.mubr.bf16.mxu0 0
        %7175 = vmatmul.mubr.bf16.gmra.mrb[0].mxu0 %v7058
        %v7176 = vpop.f32.mrb[0].mxu0
        %v7177 = vadd.f32 0.0, %v7176
        %v7178 = vpop.f32.mrb[0].mxu0
        %v7179 = vadd.f32 0.0, %v7178
        %v7180 = vpop.f32.mrb[0].mxu0
        %v7181 = vadd.f32 0.0, %v7180
        %v7182 = vpop.f32.mrb[0].mxu0
        %v7183 = vadd.f32 0.0, %v7182
        %7184 = vmatprep.mubr.bf16.mxu0 0
        %7185 = vmatmul.mubr.bf16.gmra.mrb[0].mxu0 %v7061
        %v7186 = vpop.f32.mrb[0].mxu0
        %v7187 = vadd.f32 0.0, %v7186
        %v7188 = vpop.f32.mrb[0].mxu0
        %v7189 = vadd.f32 0.0, %v7188
        %v7190 = vpop.f32.mrb[0].mxu0
        %v7191 = vadd.f32 0.0, %v7190
        %v7192 = vpop.f32.mrb[0].mxu0
        %v7193 = vadd.f32 0.0, %v7192
        %7194 = vmatprep.mubr.bf16.mxu0 0
        %7195 = vmatmul.mubr.bf16.gmra.mrb[0].mxu0 %v7064
        %v7196 = vpop.f32.mrb[0].mxu0
        %v7197 = vadd.f32 0.0, %v7196
        %v7198 = vpop.f32.mrb[0].mxu0
        %v7199 = vadd.f32 0.0, %v7198
        %v7200 = vpop.f32.mrb[0].mxu0
        %v7201 = vadd.f32 0.0, %v7200
        %v7202 = vpop.f32.mrb[0].mxu0
        %v7203 = vadd.f32 0.0, %v7202
        %7204 = vmatprep.mubr.bf16.mxu0 0
        %7205 = vmatmul.mubr.bf16.gmra.mrb[0].mxu0 %v7067
        %v7206 = vpop.f32.mrb[0].mxu0
        %v7207 = vadd.f32 0.0, %v7206
        %v7208 = vpop.f32.mrb[0].mxu0
        %v7209 = vadd.f32 0.0, %v7208
        %v7210 = vpop.f32.mrb[0].mxu0
        %v7211 = vadd.f32 0.0, %v7210
        %v7212 = vpop.f32.mrb[0].mxu0
        %v7213 = vadd.f32 0.0, %v7212
        %7214 = vmatprep.mubr.bf16.mxu0 0
        %7215 = vmatmul.mubr.bf16.gmra.mrb[0].mxu0 %v7070
        %v7216 = vpop.f32.mrb[0].mxu0
        %v7217 = vadd.f32 0.0, %v7216
        %v7218 = vpop.f32.mrb[0].mxu0
        %v7219 = vadd.f32 0.0, %v7218
        %v7220 = vpop.f32.mrb[0].mxu0
        %v7221 = vadd.f32 0.0, %v7220
        %v7222 = vpop.f32.mrb[0].mxu0
        %v7223 = vadd.f32 0.0, %v7222
        %7224 = vmatprep.mubr.bf16.mxu0 0
        %7225 = vmatmul.mubr.bf16.gmra.mrb[0].mxu0 %v7073
        %v7226 = vpop.f32.mrb[0].mxu0
        %v7227 = vadd.f32 0.0, %v7226
        %v7228 = vpop.f32.mrb[0].mxu0
        %v7229 = vadd.f32 0.0, %v7228
        %v7230 = vpop.f32.mrb[0].mxu0
        %v7231 = vadd.f32 0.0, %v7230
        %v7232 = vpop.f32.mrb[0].mxu0
        %v7233 = vadd.f32 0.0, %v7232
        %7234 = vmatprep.mubr.bf16.mxu0 0
        %7235 = vmatmul.mubr.bf16.gmra.mrb[0].mxu0 %v7076
        %v7236 = vpop.f32.mrb[0].mxu0
        %v7237 = vadd.f32 0.0, %v7236
        %v7238 = vpop.f32.mrb[0].mxu0
        %v7239 = vadd.f32 0.0, %v7238
        %v7240 = vpop.f32.mrb[0].mxu0
        %v7241 = vadd.f32 0.0, %v7240
        %v7242 = vpop.f32.mrb[0].mxu0
        %v7243 = vadd.f32 0.0, %v7242
        %7244 = vmatprep.mubr.bf16.mxu0 0
        %7245 = vmatmul.mubr.bf16.gmra.mrb[0].mxu0 %v7079
        %v7246 = vpop.f32.mrb[0].mxu0
        %v7247 = vadd.f32 0.0, %v7246
        %v7248 = vpop.f32.mrb[0].mxu0
        %v7249 = vadd.f32 0.0, %v7248
        %v7250 = vpop.f32.mrb[0].mxu0
        %v7251 = vadd.f32 0.0, %v7250
        %v7252 = vpop.f32.mrb[0].mxu0
        %v7253 = vadd.f32 0.0, %v7252
        %7254 = vmatprep.mubr.bf16.mxu0 0
        %7255 = vmatmul.mubr.bf16.gmra.mrb[0].mxu0 %v7082
        %v7256 = vpop.f32.mrb[0].mxu0
        %v7257 = vadd.f32 0.0, %v7256
        %v7258 = vpop.f32.mrb[0].mxu0
        %v7259 = vadd.f32 0.0, %v7258
        %v7260 = vpop.f32.mrb[0].mxu0
        %v7261 = vadd.f32 0.0, %v7260
        %v7262 = vpop.f32.mrb[0].mxu0
        %v7263 = vadd.f32 0.0, %v7262
        %7264 = vmatprep.mubr.bf16.mxu0 0
        %7265 = vmatmul.mubr.bf16.gmra.mrb[0].mxu0 %v7085
        %v7266 = vpop.f32.mrb[0].mxu0
        %v7267 = vadd.f32 0.0, %v7266
        %v7268 = vpop.f32.mrb[0].mxu0
        %v7269 = vadd.f32 0.0, %v7268
        %v7270 = vpop.f32.mrb[0].mxu0
        %v7271 = vadd.f32 0.0, %v7270
        %v7272 = vpop.f32.mrb[0].mxu0
        %v7273 = vadd.f32 0.0, %v7272
        %7274 = vmatprep.mubr.bf16.mxu0 0
        %7275 = vmatmul.mubr.bf16.gmra.mrb[0].mxu0 %v7088
        %v7276 = vpop.f32.mrb[0].mxu0
        %v7277 = vadd.f32 0.0, %v7276
        %v7278 = vpop.f32.mrb[0].mxu0
        %v7279 = vadd.f32 0.0, %v7278
        %v7280 = vpop.f32.mrb[0].mxu0
        %v7281 = vadd.f32 0.0, %v7280
        %v7282 = vpop.f32.mrb[0].mxu0
        %v7283 = vadd.f32 0.0, %v7282
        %7284 = vmatprep.mubr.bf16.mxu0 0
        %7285 = vmatmul.mubr.bf16.gmra.mrb[0].mxu0 %v7091
        %v7286 = vpop.f32.mrb[0].mxu0
        %v7287 = vadd.f32 0.0, %v7286
        %v7288 = vpop.f32.mrb[0].mxu0
        %v7289 = vadd.f32 0.0, %v7288
        %v7290 = vpop.f32.mrb[0].mxu0
        %v7291 = vadd.f32 0.0, %v7290
        %v7292 = vpop.f32.mrb[0].mxu0
        %v7293 = vadd.f32 0.0, %v7292
        %7294 = vdwg.mxu0
        %s7295 = sld [smem:[#allocation2]]
        %v7296 = vstv %s7295
        %v7297 = vmul.f32 %v7296, %v794
        %v7298 = vmul.f32 %v7296, %v795
        %v7299 = vmul.f32 %v7296, %v796
        %v7300 = vmul.f32 %v7296, %v797
        %v7301 = vmul.f32 %v7296, %v798
        %v7302 = vmul.f32 %v7296, %v799
        %v7303 = vmul.f32 %v7296, %v800
        %v7304 = vmul.f32 %v7296, %v801
        %s7305 = sld [smem:[#allocation2 + $0x1]]
        %v7306 = vstv %s7305
        %v7307 = vmul.f32 %v7306, %v802
        %v7308 = vmul.f32 %v7306, %v803
        %v7309 = vmul.f32 %v7306, %v804
        %v7310 = vmul.f32 %v7306, %v805
        %v7311 = vmul.f32 %v7306, %v806
        %v7312 = vmul.f32 %v7306, %v807
        %v7313 = vmul.f32 %v7306, %v808
        %v7314 = vmul.f32 %v7306, %v809
        %v7315 = vadd.f32 %v7297, %v7307
        %v7316 = vadd.f32 %v7298, %v7308
        %v7317 = vadd.f32 %v7299, %v7309
        %v7318 = vadd.f32 %v7300, %v7310
        %v7319 = vadd.f32 %v7301, %v7311
        %v7320 = vadd.f32 %v7302, %v7312
        %v7321 = vadd.f32 %v7303, %v7313
        %v7322 = vadd.f32 %v7304, %v7314
        %s7323 = sld [smem:[#allocation2 + $0x2]]
        %v7324 = vstv %s7323
        %v7325 = vmul.f32 %v7324, %v810
        %v7326 = vmul.f32 %v7324, %v811
        %v7327 = vmul.f32 %v7324, %v812
        %v7328 = vmul.f32 %v7324, %v813
        %v7329 = vmul.f32 %v7324, %v814
        %v7330 = vmul.f32 %v7324, %v815
        %v7331 = vmul.f32 %v7324, %v816
        %v7332 = vmul.f32 %v7324, %v817
        %v7333 = vadd.f32 %v7315, %v7325
        %v7334 = vadd.f32 %v7316, %v7326
        %v7335 = vadd.f32 %v7317, %v7327
        %v7336 = vadd.f32 %v7318, %v7328
        %v7337 = vadd.f32 %v7319, %v7329
        %v7338 = vadd.f32 %v7320, %v7330
        %v7339 = vadd.f32 %v7321, %v7331
        %v7340 = vadd.f32 %v7322, %v7332
        %s7341 = sld [smem:[#allocation2 + $0x3]]
        %v7342 = vstv %s7341
        %v7343 = vmul.f32 %v7342, %v818
        %v7344 = vmul.f32 %v7342, %v819
        %v7345 = vmul.f32 %v7342, %v820
        %v7346 = vmul.f32 %v7342, %v821
        %v7347 = vmul.f32 %v7342, %v822
        %v7348 = vmul.f32 %v7342, %v823
        %v7349 = vmul.f32 %v7342, %v824
        %v7350 = vmul.f32 %v7342, %v825
        %v7351 = vadd.f32 %v7333, %v7343
        %v7352 = vadd.f32 %v7334, %v7344
        %v7353 = vadd.f32 %v7335, %v7345
        %v7354 = vadd.f32 %v7336, %v7346
        %v7355 = vadd.f32 %v7337, %v7347
        %v7356 = vadd.f32 %v7338, %v7348
        %v7357 = vadd.f32 %v7339, %v7349
        %v7358 = vadd.f32 %v7340, %v7350
        %s7359 = sld [smem:[#allocation7]]
        %v7360 = vstv %s7359
        %v7361 = vadd.f32 %v7351, %v7360
        %v7362 = vadd.f32 %v7352, %v7360
        %v7363 = vadd.f32 %v7353, %v7360
        %v7364 = vadd.f32 %v7354, %v7360
        %v7365 = vadd.f32 %v7355, %v7360
        %v7366 = vadd.f32 %v7356, %v7360
        %v7367 = vadd.f32 %v7357, %v7360
        %v7368 = vadd.f32 %v7358, %v7360
        %vm7369 = vcmp.gt.f32.partialorder %v7361, 0.0
        %vm7370 = vcmp.gt.f32.partialorder %v7362, 0.0
        %vm7371 = vcmp.gt.f32.partialorder %v7363, 0.0
        %vm7372 = vcmp.gt.f32.partialorder %v7364, 0.0
        %vm7373 = vcmp.gt.f32.partialorder %v7365, 0.0
        %vm7374 = vcmp.gt.f32.partialorder %v7366, 0.0
        %vm7375 = vcmp.gt.f32.partialorder %v7367, 0.0
        %vm7376 = vcmp.gt.f32.partialorder %v7368, 0.0
        %v7377 = vmin.f32 %v7361, 0.0
        %v7378 = vmin.f32 %v7362, 0.0
        %v7379 = vmin.f32 %v7363, 0.0
        %v7380 = vmin.f32 %v7364, 0.0
        %v7381 = vmin.f32 %v7365, 0.0
        %v7382 = vmin.f32 %v7366, 0.0
        %v7383 = vmin.f32 %v7367, 0.0
        %v7384 = vmin.f32 %v7368, 0.0
        %v7385 = vmul.f32 %v7377, 1.442695
        %v7386 = vpow.pop %v7385
        %v7387 = vmul.f32 %v7378, 1.442695
        %v7388 = vpow.pop %v7387
        %v7389 = vmul.f32 %v7379, 1.442695
        %v7390 = vpow.pop %v7389
        %v7391 = vmul.f32 %v7380, 1.442695
        %v7392 = vpow.pop %v7391
        %v7393 = vmul.f32 %v7381, 1.442695
        %v7394 = vpow.pop %v7393
        %v7395 = vmul.f32 %v7382, 1.442695
        %v7396 = vpow.pop %v7395
        %v7397 = vmul.f32 %v7383, 1.442695
        %v7398 = vpow.pop %v7397
        %v7399 = vmul.f32 %v7384, 1.442695
        %v7400 = vpow.pop %v7399
        %v7401 = vsub.f32 %v7386, 1.0
        %v7402 = vsub.f32 %v7388, 1.0
        %v7403 = vsub.f32 %v7390, 1.0
        %v7404 = vsub.f32 %v7392, 1.0
        %v7405 = vsub.f32 %v7394, 1.0
        %v7406 = vsub.f32 %v7396, 1.0
        %v7407 = vsub.f32 %v7398, 1.0
        %v7408 = vsub.f32 %v7400, 1.0
        %v7409 = vsel %vm7369, %v7361, %v7401
        %v7410 = vsel %vm7370, %v7362, %v7402
        %v7411 = vsel %vm7371, %v7363, %v7403
        %v7412 = vsel %vm7372, %v7364, %v7404
        %v7413 = vsel %vm7373, %v7365, %v7405
        %v7414 = vsel %vm7374, %v7366, %v7406
        %v7415 = vsel %vm7375, %v7367, %v7407
        %v7416 = vsel %vm7376, %v7368, %v7408
        %s7417 = sld [smem:[#allocation2 + $0x4]]
        %v7418 = vstv %s7417
        %v7419 = vmul.f32 %v7418, %v794
        %v7420 = vmul.f32 %v7418, %v795
        %v7421 = vmul.f32 %v7418, %v796
        %v7422 = vmul.f32 %v7418, %v797
        %v7423 = vmul.f32 %v7418, %v798
        %v7424 = vmul.f32 %v7418, %v799
        %v7425 = vmul.f32 %v7418, %v800
        %v7426 = vmul.f32 %v7418, %v801
        %s7427 = sld [smem:[#allocation2 + $0x5]]
        %v7428 = vstv %s7427
        %v7429 = vmul.f32 %v7428, %v802
        %v7430 = vmul.f32 %v7428, %v803
        %v7431 = vmul.f32 %v7428, %v804
        %v7432 = vmul.f32 %v7428, %v805
        %v7433 = vmul.f32 %v7428, %v806
        %v7434 = vmul.f32 %v7428, %v807
        %v7435 = vmul.f32 %v7428, %v808
        %v7436 = vmul.f32 %v7428, %v809
        %v7437 = vadd.f32 %v7419, %v7429
        %v7438 = vadd.f32 %v7420, %v7430
        %v7439 = vadd.f32 %v7421, %v7431
        %v7440 = vadd.f32 %v7422, %v7432
        %v7441 = vadd.f32 %v7423, %v7433
        %v7442 = vadd.f32 %v7424, %v7434
        %v7443 = vadd.f32 %v7425, %v7435
        %v7444 = vadd.f32 %v7426, %v7436
        %s7445 = sld [smem:[#allocation2 + $0x6]]
        %v7446 = vstv %s7445
        %v7447 = vmul.f32 %v7446, %v810
        %v7448 = vmul.f32 %v7446, %v811
        %v7449 = vmul.f32 %v7446, %v812
        %v7450 = vmul.f32 %v7446, %v813
        %v7451 = vmul.f32 %v7446, %v814
        %v7452 = vmul.f32 %v7446, %v815
        %v7453 = vmul.f32 %v7446, %v816
        %v7454 = vmul.f32 %v7446, %v817
        %v7455 = vadd.f32 %v7437, %v7447
        %v7456 = vadd.f32 %v7438, %v7448
        %v7457 = vadd.f32 %v7439, %v7449
        %v7458 = vadd.f32 %v7440, %v7450
        %v7459 = vadd.f32 %v7441, %v7451
        %v7460 = vadd.f32 %v7442, %v7452
        %v7461 = vadd.f32 %v7443, %v7453
        %v7462 = vadd.f32 %v7444, %v7454
        %s7463 = sld [smem:[#allocation2 + $0x7]]
        %v7464 = vstv %s7463
        %v7465 = vmul.f32 %v7464, %v818
        %v7466 = vmul.f32 %v7464, %v819
        %v7467 = vmul.f32 %v7464, %v820
        %v7468 = vmul.f32 %v7464, %v821
        %v7469 = vmul.f32 %v7464, %v822
        %v7470 = vmul.f32 %v7464, %v823
        %v7471 = vmul.f32 %v7464, %v824
        %v7472 = vmul.f32 %v7464, %v825
        %v7473 = vadd.f32 %v7455, %v7465
        %v7474 = vadd.f32 %v7456, %v7466
        %v7475 = vadd.f32 %v7457, %v7467
        %v7476 = vadd.f32 %v7458, %v7468
        %v7477 = vadd.f32 %v7459, %v7469
        %v7478 = vadd.f32 %v7460, %v7470
        %v7479 = vadd.f32 %v7461, %v7471
        %v7480 = vadd.f32 %v7462, %v7472
        %s7481 = sld [smem:[#allocation7 + $0x1]]
        %v7482 = vstv %s7481
        %v7483 = vadd.f32 %v7473, %v7482
        %v7484 = vadd.f32 %v7474, %v7482
        %v7485 = vadd.f32 %v7475, %v7482
        %v7486 = vadd.f32 %v7476, %v7482
        %v7487 = vadd.f32 %v7477, %v7482
        %v7488 = vadd.f32 %v7478, %v7482
        %v7489 = vadd.f32 %v7479, %v7482
        %v7490 = vadd.f32 %v7480, %v7482
        %vm7491 = vcmp.gt.f32.partialorder %v7483, 0.0
        %vm7492 = vcmp.gt.f32.partialorder %v7484, 0.0
        %vm7493 = vcmp.gt.f32.partialorder %v7485, 0.0
        %vm7494 = vcmp.gt.f32.partialorder %v7486, 0.0
        %vm7495 = vcmp.gt.f32.partialorder %v7487, 0.0
        %vm7496 = vcmp.gt.f32.partialorder %v7488, 0.0
        %vm7497 = vcmp.gt.f32.partialorder %v7489, 0.0
        %vm7498 = vcmp.gt.f32.partialorder %v7490, 0.0
        %v7499 = vmin.f32 %v7483, 0.0
        %v7500 = vmin.f32 %v7484, 0.0
        %v7501 = vmin.f32 %v7485, 0.0
        %v7502 = vmin.f32 %v7486, 0.0
        %v7503 = vmin.f32 %v7487, 0.0
        %v7504 = vmin.f32 %v7488, 0.0
        %v7505 = vmin.f32 %v7489, 0.0
        %v7506 = vmin.f32 %v7490, 0.0
        %v7507 = vmul.f32 %v7499, 1.442695
        %v7508 = vpow.pop %v7507
        %v7509 = vmul.f32 %v7500, 1.442695
        %v7510 = vpow.pop %v7509
        %v7511 = vmul.f32 %v7501, 1.442695
        %v7512 = vpow.pop %v7511
        %v7513 = vmul.f32 %v7502, 1.442695
        %v7514 = vpow.pop %v7513
        %v7515 = vmul.f32 %v7503, 1.442695
        %v7516 = vpow.pop %v7515
        %v7517 = vmul.f32 %v7504, 1.442695
        %v7518 = vpow.pop %v7517
        %v7519 = vmul.f32 %v7505, 1.442695
        %v7520 = vpow.pop %v7519
        %v7521 = vmul.f32 %v7506, 1.442695
        %v7522 = vpow.pop %v7521
        %v7523 = vsub.f32 %v7508, 1.0
        %v7524 = vsub.f32 %v7510, 1.0
        %v7525 = vsub.f32 %v7512, 1.0
        %v7526 = vsub.f32 %v7514, 1.0
        %v7527 = vsub.f32 %v7516, 1.0
        %v7528 = vsub.f32 %v7518, 1.0
        %v7529 = vsub.f32 %v7520, 1.0
        %v7530 = vsub.f32 %v7522, 1.0
        %v7531 = vsel %vm7491, %v7483, %v7523
        %v7532 = vsel %vm7492, %v7484, %v7524
        %v7533 = vsel %vm7493, %v7485, %v7525
        %v7534 = vsel %vm7494, %v7486, %v7526
        %v7535 = vsel %vm7495, %v7487, %v7527
        %v7536 = vsel %vm7496, %v7488, %v7528
        %v7537 = vsel %vm7497, %v7489, %v7529
        %v7538 = vsel %vm7498, %v7490, %v7530
        %s7539 = sld [smem:[#allocation2 + $0x8]]
        %v7540 = vstv %s7539
        %v7541 = vmul.f32 %v7540, %v794
        %v7542 = vmul.f32 %v7540, %v795
        %v7543 = vmul.f32 %v7540, %v796
        %v7544 = vmul.f32 %v7540, %v797
        %v7545 = vmul.f32 %v7540, %v798
        %v7546 = vmul.f32 %v7540, %v799
        %v7547 = vmul.f32 %v7540, %v800
        %v7548 = vmul.f32 %v7540, %v801
        %s7549 = sld [smem:[#allocation2 + $0x9]]
        %v7550 = vstv %s7549
        %v7551 = vmul.f32 %v7550, %v802
        %v7552 = vmul.f32 %v7550, %v803
        %v7553 = vmul.f32 %v7550, %v804
        %v7554 = vmul.f32 %v7550, %v805
        %v7555 = vmul.f32 %v7550, %v806
        %v7556 = vmul.f32 %v7550, %v807
        %v7557 = vmul.f32 %v7550, %v808
        %v7558 = vmul.f32 %v7550, %v809
        %v7559 = vadd.f32 %v7541, %v7551
        %v7560 = vadd.f32 %v7542, %v7552
        %v7561 = vadd.f32 %v7543, %v7553
        %v7562 = vadd.f32 %v7544, %v7554
        %v7563 = vadd.f32 %v7545, %v7555
        %v7564 = vadd.f32 %v7546, %v7556
        %v7565 = vadd.f32 %v7547, %v7557
        %v7566 = vadd.f32 %v7548, %v7558
        %s7567 = sld [smem:[#allocation2 + $0xa]]
        %v7568 = vstv %s7567
        %v7569 = vmul.f32 %v7568, %v810
        %v7570 = vmul.f32 %v7568, %v811
        %v7571 = vmul.f32 %v7568, %v812
        %v7572 = vmul.f32 %v7568, %v813
        %v7573 = vmul.f32 %v7568, %v814
        %v7574 = vmul.f32 %v7568, %v815
        %v7575 = vmul.f32 %v7568, %v816
        %v7576 = vmul.f32 %v7568, %v817
        %v7577 = vadd.f32 %v7559, %v7569
        %v7578 = vadd.f32 %v7560, %v7570
        %v7579 = vadd.f32 %v7561, %v7571
        %v7580 = vadd.f32 %v7562, %v7572
        %v7581 = vadd.f32 %v7563, %v7573
        %v7582 = vadd.f32 %v7564, %v7574
        %v7583 = vadd.f32 %v7565, %v7575
        %v7584 = vadd.f32 %v7566, %v7576
        %s7585 = sld [smem:[#allocation2 + $0xb]]
        %v7586 = vstv %s7585
        %v7587 = vmul.f32 %v7586, %v818
        %v7588 = vmul.f32 %v7586, %v819
        %v7589 = vmul.f32 %v7586, %v820
        %v7590 = vmul.f32 %v7586, %v821
        %v7591 = vmul.f32 %v7586, %v822
        %v7592 = vmul.f32 %v7586, %v823
        %v7593 = vmul.f32 %v7586, %v824
        %v7594 = vmul.f32 %v7586, %v825
        %v7595 = vadd.f32 %v7577, %v7587
        %v7596 = vadd.f32 %v7578, %v7588
        %v7597 = vadd.f32 %v7579, %v7589
        %v7598 = vadd.f32 %v7580, %v7590
        %v7599 = vadd.f32 %v7581, %v7591
        %v7600 = vadd.f32 %v7582, %v7592
        %v7601 = vadd.f32 %v7583, %v7593
        %v7602 = vadd.f32 %v7584, %v7594
        %s7603 = sld [smem:[#allocation7 + $0x2]]
        %v7604 = vstv %s7603
        %v7605 = vadd.f32 %v7595, %v7604
        %v7606 = vadd.f32 %v7596, %v7604
        %v7607 = vadd.f32 %v7597, %v7604
        %v7608 = vadd.f32 %v7598, %v7604
        %v7609 = vadd.f32 %v7599, %v7604
        %v7610 = vadd.f32 %v7600, %v7604
        %v7611 = vadd.f32 %v7601, %v7604
        %v7612 = vadd.f32 %v7602, %v7604
        %vm7613 = vcmp.gt.f32.partialorder %v7605, 0.0
        %vm7614 = vcmp.gt.f32.partialorder %v7606, 0.0
        %vm7615 = vcmp.gt.f32.partialorder %v7607, 0.0
        %vm7616 = vcmp.gt.f32.partialorder %v7608, 0.0
        %vm7617 = vcmp.gt.f32.partialorder %v7609, 0.0
        %vm7618 = vcmp.gt.f32.partialorder %v7610, 0.0
        %vm7619 = vcmp.gt.f32.partialorder %v7611, 0.0
        %vm7620 = vcmp.gt.f32.partialorder %v7612, 0.0
        %v7621 = vmin.f32 %v7605, 0.0
        %v7622 = vmin.f32 %v7606, 0.0
        %v7623 = vmin.f32 %v7607, 0.0
        %v7624 = vmin.f32 %v7608, 0.0
        %v7625 = vmin.f32 %v7609, 0.0
        %v7626 = vmin.f32 %v7610, 0.0
        %v7627 = vmin.f32 %v7611, 0.0
        %v7628 = vmin.f32 %v7612, 0.0
        %v7629 = vmul.f32 %v7621, 1.442695
        %v7630 = vpow.pop %v7629
        %v7631 = vmul.f32 %v7622, 1.442695
        %v7632 = vpow.pop %v7631
        %v7633 = vmul.f32 %v7623, 1.442695
        %v7634 = vpow.pop %v7633
        %v7635 = vmul.f32 %v7624, 1.442695
        %v7636 = vpow.pop %v7635
        %v7637 = vmul.f32 %v7625, 1.442695
        %v7638 = vpow.pop %v7637
        %v7639 = vmul.f32 %v7626, 1.442695
        %v7640 = vpow.pop %v7639
        %v7641 = vmul.f32 %v7627, 1.442695
        %v7642 = vpow.pop %v7641
        %v7643 = vmul.f32 %v7628, 1.442695
        %v7644 = vpow.pop %v7643
        %v7645 = vsub.f32 %v7630, 1.0
        %v7646 = vsub.f32 %v7632, 1.0
        %v7647 = vsub.f32 %v7634, 1.0
        %v7648 = vsub.f32 %v7636, 1.0
        %v7649 = vsub.f32 %v7638, 1.0
        %v7650 = vsub.f32 %v7640, 1.0
        %v7651 = vsub.f32 %v7642, 1.0
        %v7652 = vsub.f32 %v7644, 1.0
        %v7653 = vsel %vm7613, %v7605, %v7645
        %v7654 = vsel %vm7614, %v7606, %v7646
        %v7655 = vsel %vm7615, %v7607, %v7647
        %v7656 = vsel %vm7616, %v7608, %v7648
        %v7657 = vsel %vm7617, %v7609, %v7649
        %v7658 = vsel %vm7618, %v7610, %v7650
        %v7659 = vsel %vm7619, %v7611, %v7651
        %v7660 = vsel %vm7620, %v7612, %v7652
        %s7661 = sld [smem:[#allocation2 + $0xc]]
        %v7662 = vstv %s7661
        %v7663 = vmul.f32 %v7662, %v794
        %v7664 = vmul.f32 %v7662, %v795
        %v7665 = vmul.f32 %v7662, %v796
        %v7666 = vmul.f32 %v7662, %v797
        %v7667 = vmul.f32 %v7662, %v798
        %v7668 = vmul.f32 %v7662, %v799
        %v7669 = vmul.f32 %v7662, %v800
        %v7670 = vmul.f32 %v7662, %v801
        %s7671 = sld [smem:[#allocation2 + $0xd]]
        %v7672 = vstv %s7671
        %v7673 = vmul.f32 %v7672, %v802
        %v7674 = vmul.f32 %v7672, %v803
        %v7675 = vmul.f32 %v7672, %v804
        %v7676 = vmul.f32 %v7672, %v805
        %v7677 = vmul.f32 %v7672, %v806
        %v7678 = vmul.f32 %v7672, %v807
        %v7679 = vmul.f32 %v7672, %v808
        %v7680 = vmul.f32 %v7672, %v809
        %v7681 = vadd.f32 %v7663, %v7673
        %v7682 = vadd.f32 %v7664, %v7674
        %v7683 = vadd.f32 %v7665, %v7675
        %v7684 = vadd.f32 %v7666, %v7676
        %v7685 = vadd.f32 %v7667, %v7677
        %v7686 = vadd.f32 %v7668, %v7678
        %v7687 = vadd.f32 %v7669, %v7679
        %v7688 = vadd.f32 %v7670, %v7680
        %s7689 = sld [smem:[#allocation2 + $0xe]]
        %v7690 = vstv %s7689
        %v7691 = vmul.f32 %v7690, %v810
        %v7692 = vmul.f32 %v7690, %v811
        %v7693 = vmul.f32 %v7690, %v812
        %v7694 = vmul.f32 %v7690, %v813
        %v7695 = vmul.f32 %v7690, %v814
        %v7696 = vmul.f32 %v7690, %v815
        %v7697 = vmul.f32 %v7690, %v816
        %v7698 = vmul.f32 %v7690, %v817
        %v7699 = vadd.f32 %v7681, %v7691
        %v7700 = vadd.f32 %v7682, %v7692
        %v7701 = vadd.f32 %v7683, %v7693
        %v7702 = vadd.f32 %v7684, %v7694
        %v7703 = vadd.f32 %v7685, %v7695
        %v7704 = vadd.f32 %v7686, %v7696
        %v7705 = vadd.f32 %v7687, %v7697
        %v7706 = vadd.f32 %v7688, %v7698
        %s7707 = sld [smem:[#allocation2 + $0xf]]
        %v7708 = vstv %s7707
        %v7709 = vmul.f32 %v7708, %v818
        %v7710 = vmul.f32 %v7708, %v819
        %v7711 = vmul.f32 %v7708, %v820
        %v7712 = vmul.f32 %v7708, %v821
        %v7713 = vmul.f32 %v7708, %v822
        %v7714 = vmul.f32 %v7708, %v823
        %v7715 = vmul.f32 %v7708, %v824
        %v7716 = vmul.f32 %v7708, %v825
        %v7717 = vadd.f32 %v7699, %v7709
        %v7718 = vadd.f32 %v7700, %v7710
        %v7719 = vadd.f32 %v7701, %v7711
        %v7720 = vadd.f32 %v7702, %v7712
        %v7721 = vadd.f32 %v7703, %v7713
        %v7722 = vadd.f32 %v7704, %v7714
        %v7723 = vadd.f32 %v7705, %v7715
        %v7724 = vadd.f32 %v7706, %v7716
        %s7725 = sld [smem:[#allocation7 + $0x3]]
        %v7726 = vstv %s7725
        %v7727 = vadd.f32 %v7717, %v7726
        %v7728 = vadd.f32 %v7718, %v7726
        %v7729 = vadd.f32 %v7719, %v7726
        %v7730 = vadd.f32 %v7720, %v7726
        %v7731 = vadd.f32 %v7721, %v7726
        %v7732 = vadd.f32 %v7722, %v7726
        %v7733 = vadd.f32 %v7723, %v7726
        %v7734 = vadd.f32 %v7724, %v7726
        %vm7735 = vcmp.gt.f32.partialorder %v7727, 0.0
        %vm7736 = vcmp.gt.f32.partialorder %v7728, 0.0
        %vm7737 = vcmp.gt.f32.partialorder %v7729, 0.0
        %vm7738 = vcmp.gt.f32.partialorder %v7730, 0.0
        %vm7739 = vcmp.gt.f32.partialorder %v7731, 0.0
        %vm7740 = vcmp.gt.f32.partialorder %v7732, 0.0
        %vm7741 = vcmp.gt.f32.partialorder %v7733, 0.0
        %vm7742 = vcmp.gt.f32.partialorder %v7734, 0.0
        %v7743 = vmin.f32 %v7727, 0.0
        %v7744 = vmin.f32 %v7728, 0.0
        %v7745 = vmin.f32 %v7729, 0.0
        %v7746 = vmin.f32 %v7730, 0.0
        %v7747 = vmin.f32 %v7731, 0.0
        %v7748 = vmin.f32 %v7732, 0.0
        %v7749 = vmin.f32 %v7733, 0.0
        %v7750 = vmin.f32 %v7734, 0.0
        %v7751 = vmul.f32 %v7743, 1.442695
        %v7752 = vpow.pop %v7751
        %v7753 = vmul.f32 %v7744, 1.442695
        %v7754 = vpow.pop %v7753
        %v7755 = vmul.f32 %v7745, 1.442695
        %v7756 = vpow.pop %v7755
        %v7757 = vmul.f32 %v7746, 1.442695
        %v7758 = vpow.pop %v7757
        %v7759 = vmul.f32 %v7747, 1.442695
        %v7760 = vpow.pop %v7759
        %v7761 = vmul.f32 %v7748, 1.442695
        %v7762 = vpow.pop %v7761
        %v7763 = vmul.f32 %v7749, 1.442695
        %v7764 = vpow.pop %v7763
        %v7765 = vmul.f32 %v7750, 1.442695
        %v7766 = vpow.pop %v7765
        %v7767 = vsub.f32 %v7752, 1.0
        %v7768 = vsub.f32 %v7754, 1.0
        %v7769 = vsub.f32 %v7756, 1.0
        %v7770 = vsub.f32 %v7758, 1.0
        %v7771 = vsub.f32 %v7760, 1.0
        %v7772 = vsub.f32 %v7762, 1.0
        %v7773 = vsub.f32 %v7764, 1.0
        %v7774 = vsub.f32 %v7766, 1.0
        %v7775 = vsel %vm7735, %v7727, %v7767
        %v7776 = vsel %vm7736, %v7728, %v7768
        %v7777 = vsel %vm7737, %v7729, %v7769
        %v7778 = vsel %vm7738, %v7730, %v7770
        %v7779 = vsel %vm7739, %v7731, %v7771
        %v7780 = vsel %vm7740, %v7732, %v7772
        %v7781 = vsel %vm7741, %v7733, %v7773
        %v7782 = vsel %vm7742, %v7734, %v7774
        %s7783 = sld [smem:[#allocation2 + $0x10]]
        %v7784 = vstv %s7783
        %v7785 = vmul.f32 %v7784, %v794
        %v7786 = vmul.f32 %v7784, %v795
        %v7787 = vmul.f32 %v7784, %v796
        %v7788 = vmul.f32 %v7784, %v797
        %v7789 = vmul.f32 %v7784, %v798
        %v7790 = vmul.f32 %v7784, %v799
        %v7791 = vmul.f32 %v7784, %v800
        %v7792 = vmul.f32 %v7784, %v801
        %s7793 = sld [smem:[#allocation2 + $0x11]]
        %v7794 = vstv %s7793
        %v7795 = vmul.f32 %v7794, %v802
        %v7796 = vmul.f32 %v7794, %v803
        %v7797 = vmul.f32 %v7794, %v804
        %v7798 = vmul.f32 %v7794, %v805
        %v7799 = vmul.f32 %v7794, %v806
        %v7800 = vmul.f32 %v7794, %v807
        %v7801 = vmul.f32 %v7794, %v808
        %v7802 = vmul.f32 %v7794, %v809
        %v7803 = vadd.f32 %v7785, %v7795
        %v7804 = vadd.f32 %v7786, %v7796
        %v7805 = vadd.f32 %v7787, %v7797
        %v7806 = vadd.f32 %v7788, %v7798
        %v7807 = vadd.f32 %v7789, %v7799
        %v7808 = vadd.f32 %v7790, %v7800
        %v7809 = vadd.f32 %v7791, %v7801
        %v7810 = vadd.f32 %v7792, %v7802
        %s7811 = sld [smem:[#allocation2 + $0x12]]
        %v7812 = vstv %s7811
        %v7813 = vmul.f32 %v7812, %v810
        %v7814 = vmul.f32 %v7812, %v811
        %v7815 = vmul.f32 %v7812, %v812
        %v7816 = vmul.f32 %v7812, %v813
        %v7817 = vmul.f32 %v7812, %v814
        %v7818 = vmul.f32 %v7812, %v815
        %v7819 = vmul.f32 %v7812, %v816
        %v7820 = vmul.f32 %v7812, %v817
        %v7821 = vadd.f32 %v7803, %v7813
        %v7822 = vadd.f32 %v7804, %v7814
        %v7823 = vadd.f32 %v7805, %v7815
        %v7824 = vadd.f32 %v7806, %v7816
        %v7825 = vadd.f32 %v7807, %v7817
        %v7826 = vadd.f32 %v7808, %v7818
        %v7827 = vadd.f32 %v7809, %v7819
        %v7828 = vadd.f32 %v7810, %v7820
        %s7829 = sld [smem:[#allocation2 + $0x13]]
        %v7830 = vstv %s7829
        %v7831 = vmul.f32 %v7830, %v818
        %v7832 = vmul.f32 %v7830, %v819
        %v7833 = vmul.f32 %v7830, %v820
        %v7834 = vmul.f32 %v7830, %v821
        %v7835 = vmul.f32 %v7830, %v822
        %v7836 = vmul.f32 %v7830, %v823
        %v7837 = vmul.f32 %v7830, %v824
        %v7838 = vmul.f32 %v7830, %v825
        %v7839 = vadd.f32 %v7821, %v7831
        %v7840 = vadd.f32 %v7822, %v7832
        %v7841 = vadd.f32 %v7823, %v7833
        %v7842 = vadd.f32 %v7824, %v7834
        %v7843 = vadd.f32 %v7825, %v7835
        %v7844 = vadd.f32 %v7826, %v7836
        %v7845 = vadd.f32 %v7827, %v7837
        %v7846 = vadd.f32 %v7828, %v7838
        %s7847 = sld [smem:[#allocation7 + $0x4]]
        %v7848 = vstv %s7847
        %v7849 = vadd.f32 %v7839, %v7848
        %v7850 = vadd.f32 %v7840, %v7848
        %v7851 = vadd.f32 %v7841, %v7848
        %v7852 = vadd.f32 %v7842, %v7848
        %v7853 = vadd.f32 %v7843, %v7848
        %v7854 = vadd.f32 %v7844, %v7848
        %v7855 = vadd.f32 %v7845, %v7848
        %v7856 = vadd.f32 %v7846, %v7848
        %vm7857 = vcmp.gt.f32.partialorder %v7849, 0.0
        %vm7858 = vcmp.gt.f32.partialorder %v7850, 0.0
        %vm7859 = vcmp.gt.f32.partialorder %v7851, 0.0
        %vm7860 = vcmp.gt.f32.partialorder %v7852, 0.0
        %vm7861 = vcmp.gt.f32.partialorder %v7853, 0.0
        %vm7862 = vcmp.gt.f32.partialorder %v7854, 0.0
        %vm7863 = vcmp.gt.f32.partialorder %v7855, 0.0
        %vm7864 = vcmp.gt.f32.partialorder %v7856, 0.0
        %v7865 = vmin.f32 %v7849, 0.0
        %v7866 = vmin.f32 %v7850, 0.0
        %v7867 = vmin.f32 %v7851, 0.0
        %v7868 = vmin.f32 %v7852, 0.0
        %v7869 = vmin.f32 %v7853, 0.0
        %v7870 = vmin.f32 %v7854, 0.0
        %v7871 = vmin.f32 %v7855, 0.0
        %v7872 = vmin.f32 %v7856, 0.0
        %v7873 = vmul.f32 %v7865, 1.442695
        %v7874 = vpow.pop %v7873
        %v7875 = vmul.f32 %v7866, 1.442695
        %v7876 = vpow.pop %v7875
        %v7877 = vmul.f32 %v7867, 1.442695
        %v7878 = vpow.pop %v7877
        %v7879 = vmul.f32 %v7868, 1.442695
        %v7880 = vpow.pop %v7879
        %v7881 = vmul.f32 %v7869, 1.442695
        %v7882 = vpow.pop %v7881
        %v7883 = vmul.f32 %v7870, 1.442695
        %v7884 = vpow.pop %v7883
        %v7885 = vmul.f32 %v7871, 1.442695
        %v7886 = vpow.pop %v7885
        %v7887 = vmul.f32 %v7872, 1.442695
        %v7888 = vpow.pop %v7887
        %v7889 = vsub.f32 %v7874, 1.0
        %v7890 = vsub.f32 %v7876, 1.0
        %v7891 = vsub.f32 %v7878, 1.0
        %v7892 = vsub.f32 %v7880, 1.0
        %v7893 = vsub.f32 %v7882, 1.0
        %v7894 = vsub.f32 %v7884, 1.0
        %v7895 = vsub.f32 %v7886, 1.0
        %v7896 = vsub.f32 %v7888, 1.0
        %v7897 = vsel %vm7857, %v7849, %v7889
        %v7898 = vsel %vm7858, %v7850, %v7890
        %v7899 = vsel %vm7859, %v7851, %v7891
        %v7900 = vsel %vm7860, %v7852, %v7892
        %v7901 = vsel %vm7861, %v7853, %v7893
        %v7902 = vsel %vm7862, %v7854, %v7894
        %v7903 = vsel %vm7863, %v7855, %v7895
        %v7904 = vsel %vm7864, %v7856, %v7896
        %s7905 = sld [smem:[#allocation2 + $0x14]]
        %v7906 = vstv %s7905
        %v7907 = vmul.f32 %v7906, %v794
        %v7908 = vmul.f32 %v7906, %v795
        %v7909 = vmul.f32 %v7906, %v796
        %v7910 = vmul.f32 %v7906, %v797
        %v7911 = vmul.f32 %v7906, %v798
        %v7912 = vmul.f32 %v7906, %v799
        %v7913 = vmul.f32 %v7906, %v800
        %v7914 = vmul.f32 %v7906, %v801
        %s7915 = sld [smem:[#allocation2 + $0x15]]
        %v7916 = vstv %s7915
        %v7917 = vmul.f32 %v7916, %v802
        %v7918 = vmul.f32 %v7916, %v803
        %v7919 = vmul.f32 %v7916, %v804
        %v7920 = vmul.f32 %v7916, %v805
        %v7921 = vmul.f32 %v7916, %v806
        %v7922 = vmul.f32 %v7916, %v807
        %v7923 = vmul.f32 %v7916, %v808
        %v7924 = vmul.f32 %v7916, %v809
        %v7925 = vadd.f32 %v7907, %v7917
        %v7926 = vadd.f32 %v7908, %v7918
        %v7927 = vadd.f32 %v7909, %v7919
        %v7928 = vadd.f32 %v7910, %v7920
        %v7929 = vadd.f32 %v7911, %v7921
        %v7930 = vadd.f32 %v7912, %v7922
        %v7931 = vadd.f32 %v7913, %v7923
        %v7932 = vadd.f32 %v7914, %v7924
        %s7933 = sld [smem:[#allocation2 + $0x16]]
        %v7934 = vstv %s7933
        %v7935 = vmul.f32 %v7934, %v810
        %v7936 = vmul.f32 %v7934, %v811
        %v7937 = vmul.f32 %v7934, %v812
        %v7938 = vmul.f32 %v7934, %v813
        %v7939 = vmul.f32 %v7934, %v814
        %v7940 = vmul.f32 %v7934, %v815
        %v7941 = vmul.f32 %v7934, %v816
        %v7942 = vmul.f32 %v7934, %v817
        %v7943 = vadd.f32 %v7925, %v7935
        %v7944 = vadd.f32 %v7926, %v7936
        %v7945 = vadd.f32 %v7927, %v7937
        %v7946 = vadd.f32 %v7928, %v7938
        %v7947 = vadd.f32 %v7929, %v7939
        %v7948 = vadd.f32 %v7930, %v7940
        %v7949 = vadd.f32 %v7931, %v7941
        %v7950 = vadd.f32 %v7932, %v7942
        %s7951 = sld [smem:[#allocation2 + $0x17]]
        %v7952 = vstv %s7951
        %v7953 = vmul.f32 %v7952, %v818
        %v7954 = vmul.f32 %v7952, %v819
        %v7955 = vmul.f32 %v7952, %v820
        %v7956 = vmul.f32 %v7952, %v821
        %v7957 = vmul.f32 %v7952, %v822
        %v7958 = vmul.f32 %v7952, %v823
        %v7959 = vmul.f32 %v7952, %v824
        %v7960 = vmul.f32 %v7952, %v825
        %v7961 = vadd.f32 %v7943, %v7953
        %v7962 = vadd.f32 %v7944, %v7954
        %v7963 = vadd.f32 %v7945, %v7955
        %v7964 = vadd.f32 %v7946, %v7956
        %v7965 = vadd.f32 %v7947, %v7957
        %v7966 = vadd.f32 %v7948, %v7958
        %v7967 = vadd.f32 %v7949, %v7959
        %v7968 = vadd.f32 %v7950, %v7960
        %s7969 = sld [smem:[#allocation7 + $0x5]]
        %v7970 = vstv %s7969
        %v7971 = vadd.f32 %v7961, %v7970
        %v7972 = vadd.f32 %v7962, %v7970
        %v7973 = vadd.f32 %v7963, %v7970
        %v7974 = vadd.f32 %v7964, %v7970
        %v7975 = vadd.f32 %v7965, %v7970
        %v7976 = vadd.f32 %v7966, %v7970
        %v7977 = vadd.f32 %v7967, %v7970
        %v7978 = vadd.f32 %v7968, %v7970
        %vm7979 = vcmp.gt.f32.partialorder %v7971, 0.0
        %vm7980 = vcmp.gt.f32.partialorder %v7972, 0.0
        %vm7981 = vcmp.gt.f32.partialorder %v7973, 0.0
        %vm7982 = vcmp.gt.f32.partialorder %v7974, 0.0
        %vm7983 = vcmp.gt.f32.partialorder %v7975, 0.0
        %vm7984 = vcmp.gt.f32.partialorder %v7976, 0.0
        %vm7985 = vcmp.gt.f32.partialorder %v7977, 0.0
        %vm7986 = vcmp.gt.f32.partialorder %v7978, 0.0
        %v7987 = vmin.f32 %v7971, 0.0
        %v7988 = vmin.f32 %v7972, 0.0
        %v7989 = vmin.f32 %v7973, 0.0
        %v7990 = vmin.f32 %v7974, 0.0
        %v7991 = vmin.f32 %v7975, 0.0
        %v7992 = vmin.f32 %v7976, 0.0
        %v7993 = vmin.f32 %v7977, 0.0
        %v7994 = vmin.f32 %v7978, 0.0
        %v7995 = vmul.f32 %v7987, 1.442695
        %v7996 = vpow.pop %v7995
        %v7997 = vmul.f32 %v7988, 1.442695
        %v7998 = vpow.pop %v7997
        %v7999 = vmul.f32 %v7989, 1.442695
        %v8000 = vpow.pop %v7999
        %v8001 = vmul.f32 %v7990, 1.442695
        %v8002 = vpow.pop %v8001
        %v8003 = vmul.f32 %v7991, 1.442695
        %v8004 = vpow.pop %v8003
        %v8005 = vmul.f32 %v7992, 1.442695
        %v8006 = vpow.pop %v8005
        %v8007 = vmul.f32 %v7993, 1.442695
        %v8008 = vpow.pop %v8007
        %v8009 = vmul.f32 %v7994, 1.442695
        %v8010 = vpow.pop %v8009
        %v8011 = vsub.f32 %v7996, 1.0
        %v8012 = vsub.f32 %v7998, 1.0
        %v8013 = vsub.f32 %v8000, 1.0
        %v8014 = vsub.f32 %v8002, 1.0
        %v8015 = vsub.f32 %v8004, 1.0
        %v8016 = vsub.f32 %v8006, 1.0
        %v8017 = vsub.f32 %v8008, 1.0
        %v8018 = vsub.f32 %v8010, 1.0
        %v8019 = vsel %vm7979, %v7971, %v8011
        %v8020 = vsel %vm7980, %v7972, %v8012
        %v8021 = vsel %vm7981, %v7973, %v8013
        %v8022 = vsel %vm7982, %v7974, %v8014
        %v8023 = vsel %vm7983, %v7975, %v8015
        %v8024 = vsel %vm7984, %v7976, %v8016
        %v8025 = vsel %vm7985, %v7977, %v8017
        %v8026 = vsel %vm7986, %v7978, %v8018
        %s8027 = sld [smem:[#allocation2 + $0x18]]
        %v8028 = vstv %s8027
        %v8029 = vmul.f32 %v8028, %v794
        %v8030 = vmul.f32 %v8028, %v795
        %v8031 = vmul.f32 %v8028, %v796
        %v8032 = vmul.f32 %v8028, %v797
        %v8033 = vmul.f32 %v8028, %v798
        %v8034 = vmul.f32 %v8028, %v799
        %v8035 = vmul.f32 %v8028, %v800
        %v8036 = vmul.f32 %v8028, %v801
        %s8037 = sld [smem:[#allocation2 + $0x19]]
        %v8038 = vstv %s8037
        %v8039 = vmul.f32 %v8038, %v802
        %v8040 = vmul.f32 %v8038, %v803
        %v8041 = vmul.f32 %v8038, %v804
        %v8042 = vmul.f32 %v8038, %v805
        %v8043 = vmul.f32 %v8038, %v806
        %v8044 = vmul.f32 %v8038, %v807
        %v8045 = vmul.f32 %v8038, %v808
        %v8046 = vmul.f32 %v8038, %v809
        %v8047 = vadd.f32 %v8029, %v8039
        %v8048 = vadd.f32 %v8030, %v8040
        %v8049 = vadd.f32 %v8031, %v8041
        %v8050 = vadd.f32 %v8032, %v8042
        %v8051 = vadd.f32 %v8033, %v8043
        %v8052 = vadd.f32 %v8034, %v8044
        %v8053 = vadd.f32 %v8035, %v8045
        %v8054 = vadd.f32 %v8036, %v8046
        %s8055 = sld [smem:[#allocation2 + $0x1a]]
        %v8056 = vstv %s8055
        %v8057 = vmul.f32 %v8056, %v810
        %v8058 = vmul.f32 %v8056, %v811
        %v8059 = vmul.f32 %v8056, %v812
        %v8060 = vmul.f32 %v8056, %v813
        %v8061 = vmul.f32 %v8056, %v814
        %v8062 = vmul.f32 %v8056, %v815
        %v8063 = vmul.f32 %v8056, %v816
        %v8064 = vmul.f32 %v8056, %v817
        %v8065 = vadd.f32 %v8047, %v8057
        %v8066 = vadd.f32 %v8048, %v8058
        %v8067 = vadd.f32 %v8049, %v8059
        %v8068 = vadd.f32 %v8050, %v8060
        %v8069 = vadd.f32 %v8051, %v8061
        %v8070 = vadd.f32 %v8052, %v8062
        %v8071 = vadd.f32 %v8053, %v8063
        %v8072 = vadd.f32 %v8054, %v8064
        %s8073 = sld [smem:[#allocation2 + $0x1b]]
        %v8074 = vstv %s8073
        %v8075 = vmul.f32 %v8074, %v818
        %v8076 = vmul.f32 %v8074, %v819
        %v8077 = vmul.f32 %v8074, %v820
        %v8078 = vmul.f32 %v8074, %v821
        %v8079 = vmul.f32 %v8074, %v822
        %v8080 = vmul.f32 %v8074, %v823
        %v8081 = vmul.f32 %v8074, %v824
        %v8082 = vmul.f32 %v8074, %v825
        %v8083 = vadd.f32 %v8065, %v8075
        %v8084 = vadd.f32 %v8066, %v8076
        %v8085 = vadd.f32 %v8067, %v8077
        %v8086 = vadd.f32 %v8068, %v8078
        %v8087 = vadd.f32 %v8069, %v8079
        %v8088 = vadd.f32 %v8070, %v8080
        %v8089 = vadd.f32 %v8071, %v8081
        %v8090 = vadd.f32 %v8072, %v8082
        %s8091 = sld [smem:[#allocation7 + $0x6]]
        %v8092 = vstv %s8091
        %v8093 = vadd.f32 %v8083, %v8092
        %v8094 = vadd.f32 %v8084, %v8092
        %v8095 = vadd.f32 %v8085, %v8092
        %v8096 = vadd.f32 %v8086, %v8092
        %v8097 = vadd.f32 %v8087, %v8092
        %v8098 = vadd.f32 %v8088, %v8092
        %v8099 = vadd.f32 %v8089, %v8092
        %v8100 = vadd.f32 %v8090, %v8092
        %vm8101 = vcmp.gt.f32.partialorder %v8093, 0.0
        %vm8102 = vcmp.gt.f32.partialorder %v8094, 0.0
        %vm8103 = vcmp.gt.f32.partialorder %v8095, 0.0
        %vm8104 = vcmp.gt.f32.partialorder %v8096, 0.0
        %vm8105 = vcmp.gt.f32.partialorder %v8097, 0.0
        %vm8106 = vcmp.gt.f32.partialorder %v8098, 0.0
        %vm8107 = vcmp.gt.f32.partialorder %v8099, 0.0
        %vm8108 = vcmp.gt.f32.partialorder %v8100, 0.0
        %v8109 = vmin.f32 %v8093, 0.0
        %v8110 = vmin.f32 %v8094, 0.0
        %v8111 = vmin.f32 %v8095, 0.0
        %v8112 = vmin.f32 %v8096, 0.0
        %v8113 = vmin.f32 %v8097, 0.0
        %v8114 = vmin.f32 %v8098, 0.0
        %v8115 = vmin.f32 %v8099, 0.0
        %v8116 = vmin.f32 %v8100, 0.0
        %v8117 = vmul.f32 %v8109, 1.442695
        %v8118 = vpow.pop %v8117
        %v8119 = vmul.f32 %v8110, 1.442695
        %v8120 = vpow.pop %v8119
        %v8121 = vmul.f32 %v8111, 1.442695
        %v8122 = vpow.pop %v8121
        %v8123 = vmul.f32 %v8112, 1.442695
        %v8124 = vpow.pop %v8123
        %v8125 = vmul.f32 %v8113, 1.442695
        %v8126 = vpow.pop %v8125
        %v8127 = vmul.f32 %v8114, 1.442695
        %v8128 = vpow.pop %v8127
        %v8129 = vmul.f32 %v8115, 1.442695
        %v8130 = vpow.pop %v8129
        %v8131 = vmul.f32 %v8116, 1.442695
        %v8132 = vpow.pop %v8131
        %v8133 = vsub.f32 %v8118, 1.0
        %v8134 = vsub.f32 %v8120, 1.0
        %v8135 = vsub.f32 %v8122, 1.0
        %v8136 = vsub.f32 %v8124, 1.0
        %v8137 = vsub.f32 %v8126, 1.0
        %v8138 = vsub.f32 %v8128, 1.0
        %v8139 = vsub.f32 %v8130, 1.0
        %v8140 = vsub.f32 %v8132, 1.0
        %v8141 = vsel %vm8101, %v8093, %v8133
        %v8142 = vsel %vm8102, %v8094, %v8134
        %v8143 = vsel %vm8103, %v8095, %v8135
        %v8144 = vsel %vm8104, %v8096, %v8136
        %v8145 = vsel %vm8105, %v8097, %v8137
        %v8146 = vsel %vm8106, %v8098, %v8138
        %v8147 = vsel %vm8107, %v8099, %v8139
        %v8148 = vsel %vm8108, %v8100, %v8140
        %s8149 = sld [smem:[#allocation2 + $0x1c]]
        %v8150 = vstv %s8149
        %v8151 = vmul.f32 %v8150, %v794
        %v8152 = vmul.f32 %v8150, %v795
        %v8153 = vmul.f32 %v8150, %v796
        %v8154 = vmul.f32 %v8150, %v797
        %v8155 = vmul.f32 %v8150, %v798
        %v8156 = vmul.f32 %v8150, %v799
        %v8157 = vmul.f32 %v8150, %v800
        %v8158 = vmul.f32 %v8150, %v801
        %s8159 = sld [smem:[#allocation2 + $0x1d]]
        %v8160 = vstv %s8159
        %v8161 = vmul.f32 %v8160, %v802
        %v8162 = vmul.f32 %v8160, %v803
        %v8163 = vmul.f32 %v8160, %v804
        %v8164 = vmul.f32 %v8160, %v805
        %v8165 = vmul.f32 %v8160, %v806
        %v8166 = vmul.f32 %v8160, %v807
        %v8167 = vmul.f32 %v8160, %v808
        %v8168 = vmul.f32 %v8160, %v809
        %v8169 = vadd.f32 %v8151, %v8161
        %v8170 = vadd.f32 %v8152, %v8162
        %v8171 = vadd.f32 %v8153, %v8163
        %v8172 = vadd.f32 %v8154, %v8164
        %v8173 = vadd.f32 %v8155, %v8165
        %v8174 = vadd.f32 %v8156, %v8166
        %v8175 = vadd.f32 %v8157, %v8167
        %v8176 = vadd.f32 %v8158, %v8168
        %s8177 = sld [smem:[#allocation2 + $0x1e]]
        %v8178 = vstv %s8177
        %v8179 = vmul.f32 %v8178, %v810
        %v8180 = vmul.f32 %v8178, %v811
        %v8181 = vmul.f32 %v8178, %v812
        %v8182 = vmul.f32 %v8178, %v813
        %v8183 = vmul.f32 %v8178, %v814
        %v8184 = vmul.f32 %v8178, %v815
        %v8185 = vmul.f32 %v8178, %v816
        %v8186 = vmul.f32 %v8178, %v817
        %v8187 = vadd.f32 %v8169, %v8179
        %v8188 = vadd.f32 %v8170, %v8180
        %v8189 = vadd.f32 %v8171, %v8181
        %v8190 = vadd.f32 %v8172, %v8182
        %v8191 = vadd.f32 %v8173, %v8183
        %v8192 = vadd.f32 %v8174, %v8184
        %v8193 = vadd.f32 %v8175, %v8185
        %v8194 = vadd.f32 %v8176, %v8186
        %s8195 = sld [smem:[#allocation2 + $0x1f]]
        %v8196 = vstv %s8195
        %v8197 = vmul.f32 %v8196, %v818
        %v8198 = vmul.f32 %v8196, %v819
        %v8199 = vmul.f32 %v8196, %v820
        %v8200 = vmul.f32 %v8196, %v821
        %v8201 = vmul.f32 %v8196, %v822
        %v8202 = vmul.f32 %v8196, %v823
        %v8203 = vmul.f32 %v8196, %v824
        %v8204 = vmul.f32 %v8196, %v825
        %v8205 = vadd.f32 %v8187, %v8197
        %v8206 = vadd.f32 %v8188, %v8198
        %v8207 = vadd.f32 %v8189, %v8199
        %v8208 = vadd.f32 %v8190, %v8200
        %v8209 = vadd.f32 %v8191, %v8201
        %v8210 = vadd.f32 %v8192, %v8202
        %v8211 = vadd.f32 %v8193, %v8203
        %v8212 = vadd.f32 %v8194, %v8204
        %s8213 = sld [smem:[#allocation7 + $0x7]]
        %v8214 = vstv %s8213
        %v8215 = vadd.f32 %v8205, %v8214
        %v8216 = vadd.f32 %v8206, %v8214
        %v8217 = vadd.f32 %v8207, %v8214
        %v8218 = vadd.f32 %v8208, %v8214
        %v8219 = vadd.f32 %v8209, %v8214
        %v8220 = vadd.f32 %v8210, %v8214
        %v8221 = vadd.f32 %v8211, %v8214
        %v8222 = vadd.f32 %v8212, %v8214
        %vm8223 = vcmp.gt.f32.partialorder %v8215, 0.0
        %vm8224 = vcmp.gt.f32.partialorder %v8216, 0.0
        %vm8225 = vcmp.gt.f32.partialorder %v8217, 0.0
        %vm8226 = vcmp.gt.f32.partialorder %v8218, 0.0
        %vm8227 = vcmp.gt.f32.partialorder %v8219, 0.0
        %vm8228 = vcmp.gt.f32.partialorder %v8220, 0.0
        %vm8229 = vcmp.gt.f32.partialorder %v8221, 0.0
        %vm8230 = vcmp.gt.f32.partialorder %v8222, 0.0
        %v8231 = vmin.f32 %v8215, 0.0
        %v8232 = vmin.f32 %v8216, 0.0
        %v8233 = vmin.f32 %v8217, 0.0
        %v8234 = vmin.f32 %v8218, 0.0
        %v8235 = vmin.f32 %v8219, 0.0
        %v8236 = vmin.f32 %v8220, 0.0
        %v8237 = vmin.f32 %v8221, 0.0
        %v8238 = vmin.f32 %v8222, 0.0
        %v8239 = vmul.f32 %v8231, 1.442695
        %v8240 = vpow.pop %v8239
        %v8241 = vmul.f32 %v8232, 1.442695
        %v8242 = vpow.pop %v8241
        %v8243 = vmul.f32 %v8233, 1.442695
        %v8244 = vpow.pop %v8243
        %v8245 = vmul.f32 %v8234, 1.442695
        %v8246 = vpow.pop %v8245
        %v8247 = vmul.f32 %v8235, 1.442695
        %v8248 = vpow.pop %v8247
        %v8249 = vmul.f32 %v8236, 1.442695
        %v8250 = vpow.pop %v8249
        %v8251 = vmul.f32 %v8237, 1.442695
        %v8252 = vpow.pop %v8251
        %v8253 = vmul.f32 %v8238, 1.442695
        %v8254 = vpow.pop %v8253
        %v8255 = vsub.f32 %v8240, 1.0
        %v8256 = vsub.f32 %v8242, 1.0
        %v8257 = vsub.f32 %v8244, 1.0
        %v8258 = vsub.f32 %v8246, 1.0
        %v8259 = vsub.f32 %v8248, 1.0
        %v8260 = vsub.f32 %v8250, 1.0
        %v8261 = vsub.f32 %v8252, 1.0
        %v8262 = vsub.f32 %v8254, 1.0
        %v8263 = vsel %vm8223, %v8215, %v8255
        %v8264 = vsel %vm8224, %v8216, %v8256
        %v8265 = vsel %vm8225, %v8217, %v8257
        %v8266 = vsel %vm8226, %v8218, %v8258
        %v8267 = vsel %vm8227, %v8219, %v8259
        %v8268 = vsel %vm8228, %v8220, %v8260
        %v8269 = vsel %vm8229, %v8221, %v8261
        %v8270 = vsel %vm8230, %v8222, %v8262
        %v8271 = vmul.f32 %v7409, %v6325
        %v8272 = vmul.f32 %v7410, %v6327
        %v8273 = vmul.f32 %v7411, %v6329
        %v8274 = vmul.f32 %v7412, %v6331
        %v8275 = vmul.f32 %v7413, %v6335
        %v8276 = vmul.f32 %v7414, %v6337
        %v8277 = vmul.f32 %v7415, %v6339
        %v8278 = vmul.f32 %v7416, %v6341
        %v8279 = vmul.f32 %v7531, %v6345
        %v8280 = vmul.f32 %v7532, %v6347
        %v8281 = vmul.f32 %v7533, %v6349
        %v8282 = vmul.f32 %v7534, %v6351
        %v8283 = vmul.f32 %v7535, %v6355
        %v8284 = vmul.f32 %v7536, %v6357
        %v8285 = vmul.f32 %v7537, %v6359
        %v8286 = vmul.f32 %v7538, %v6361
        %v8287 = vmul.f32 %v7653, %v6365
        %v8288 = vmul.f32 %v7654, %v6367
        %v8289 = vmul.f32 %v7655, %v6369
        %v8290 = vmul.f32 %v7656, %v6371
        %v8291 = vmul.f32 %v7657, %v6375
        %v8292 = vmul.f32 %v7658, %v6377
        %v8293 = vmul.f32 %v7659, %v6379
        %v8294 = vmul.f32 %v7660, %v6381
        %v8295 = vmul.f32 %v7775, %v6385
        %v8296 = vmul.f32 %v7776, %v6387
        %v8297 = vmul.f32 %v7777, %v6389
        %v8298 = vmul.f32 %v7778, %v6391
        %v8299 = vmul.f32 %v7779, %v6395
        %v8300 = vmul.f32 %v7780, %v6397
        %v8301 = vmul.f32 %v7781, %v6399
        %v8302 = vmul.f32 %v7782, %v6401
        %v8303 = vmul.f32 %v7897, %v6405
        %v8304 = vmul.f32 %v7898, %v6407
        %v8305 = vmul.f32 %v7899, %v6409
        %v8306 = vmul.f32 %v7900, %v6411
        %v8307 = vmul.f32 %v7901, %v6415
        %v8308 = vmul.f32 %v7902, %v6417
        %v8309 = vmul.f32 %v7903, %v6419
        %v8310 = vmul.f32 %v7904, %v6421
        %v8311 = vmul.f32 %v8019, %v6425
        %v8312 = vmul.f32 %v8020, %v6427
        %v8313 = vmul.f32 %v8021, %v6429
        %v8314 = vmul.f32 %v8022, %v6431
        %v8315 = vmul.f32 %v8023, %v6435
        %v8316 = vmul.f32 %v8024, %v6437
        %v8317 = vmul.f32 %v8025, %v6439
        %v8318 = vmul.f32 %v8026, %v6441
        %v8319 = vmul.f32 %v8141, %v6445
        %v8320 = vmul.f32 %v8142, %v6447
        %v8321 = vmul.f32 %v8143, %v6449
        %v8322 = vmul.f32 %v8144, %v6451
        %v8323 = vmul.f32 %v8145, %v6455
        %v8324 = vmul.f32 %v8146, %v6457
        %v8325 = vmul.f32 %v8147, %v6459
        %v8326 = vmul.f32 %v8148, %v6461
        %v8327 = vmul.f32 %v8263, %v6465
        %v8328 = vmul.f32 %v8264, %v6467
        %v8329 = vmul.f32 %v8265, %v6469
        %v8330 = vmul.f32 %v8266, %v6471
        %v8331 = vmul.f32 %v8267, %v6475
        %v8332 = vmul.f32 %v8268, %v6477
        %v8333 = vmul.f32 %v8269, %v6479
        %v8334 = vmul.f32 %v8270, %v6481
        %v8335 = vadd.f32 %v8271, %v7137
        %v8336 = vadd.f32 %v8272, %v7139
        %v8337 = vadd.f32 %v8273, %v7141
        %v8338 = vadd.f32 %v8274, %v7143
        %v8339 = vadd.f32 %v8275, %v7147
        %v8340 = vadd.f32 %v8276, %v7149
        %v8341 = vadd.f32 %v8277, %v7151
        %v8342 = vadd.f32 %v8278, %v7153
        %v8343 = vadd.f32 %v8279, %v7157
        %v8344 = vadd.f32 %v8280, %v7159
        %v8345 = vadd.f32 %v8281, %v7161
        %v8346 = vadd.f32 %v8282, %v7163
        %v8347 = vadd.f32 %v8283, %v7167
        %v8348 = vadd.f32 %v8284, %v7169
        %v8349 = vadd.f32 %v8285, %v7171
        %v8350 = vadd.f32 %v8286, %v7173
        %v8351 = vadd.f32 %v8287, %v7177
        %v8352 = vadd.f32 %v8288, %v7179
        %v8353 = vadd.f32 %v8289, %v7181
        %v8354 = vadd.f32 %v8290, %v7183
        %v8355 = vadd.f32 %v8291, %v7187
        %v8356 = vadd.f32 %v8292, %v7189
        %v8357 = vadd.f32 %v8293, %v7191
        %v8358 = vadd.f32 %v8294, %v7193
        %v8359 = vadd.f32 %v8295, %v7197
        %v8360 = vadd.f32 %v8296, %v7199
        %v8361 = vadd.f32 %v8297, %v7201
        %v8362 = vadd.f32 %v8298, %v7203
        %v8363 = vadd.f32 %v8299, %v7207
        %v8364 = vadd.f32 %v8300, %v7209
        %v8365 = vadd.f32 %v8301, %v7211
        %v8366 = vadd.f32 %v8302, %v7213
        %v8367 = vadd.f32 %v8303, %v7217
        %v8368 = vadd.f32 %v8304, %v7219
        %v8369 = vadd.f32 %v8305, %v7221
        %v8370 = vadd.f32 %v8306, %v7223
        %v8371 = vadd.f32 %v8307, %v7227
        %v8372 = vadd.f32 %v8308, %v7229
        %v8373 = vadd.f32 %v8309, %v7231
        %v8374 = vadd.f32 %v8310, %v7233
        %v8375 = vadd.f32 %v8311, %v7237
        %v8376 = vadd.f32 %v8312, %v7239
        %v8377 = vadd.f32 %v8313, %v7241
        %v8378 = vadd.f32 %v8314, %v7243
        %v8379 = vadd.f32 %v8315, %v7247
        %v8380 = vadd.f32 %v8316, %v7249
        %v8381 = vadd.f32 %v8317, %v7251
        %v8382 = vadd.f32 %v8318, %v7253
        %v8383 = vadd.f32 %v8319, %v7257
        %v8384 = vadd.f32 %v8320, %v7259
        %v8385 = vadd.f32 %v8321, %v7261
        %v8386 = vadd.f32 %v8322, %v7263
        %v8387 = vadd.f32 %v8323, %v7267
        %v8388 = vadd.f32 %v8324, %v7269
        %v8389 = vadd.f32 %v8325, %v7271
        %v8390 = vadd.f32 %v8326, %v7273
        %v8391 = vadd.f32 %v8327, %v7277
        %v8392 = vadd.f32 %v8328, %v7279
        %v8393 = vadd.f32 %v8329, %v7281
        %v8394 = vadd.f32 %v8330, %v7283
        %v8395 = vadd.f32 %v8331, %v7287
        %v8396 = vadd.f32 %v8332, %v7289
        %v8397 = vadd.f32 %v8333, %v7291
        %v8398 = vadd.f32 %v8334, %v7293
        %8399 = vst [vmem:[%s787] sm:$0xff] %v8335
        %8400 = vst.msk [vmem:[%s787 + $0x8] sm:$0xff] %vm1377, %v8336
        %8401 = vst [vmem:[%s787 + $0x10] sm:$0xff] %v8337
        %8402 = vst.msk [vmem:[%s787 + $0x18] sm:$0xff] %vm1377, %v8338
        %8403 = vst [vmem:[%s787 + $0x20] sm:$0xff] %v8339
        %8404 = vst.msk [vmem:[%s787 + $0x28] sm:$0xff] %vm1377, %v8340
        %8405 = vst [vmem:[%s787 + $0x30] sm:$0xff] %v8341
        %8406 = vst.msk [vmem:[%s787 + $0x38] sm:$0xff] %vm1377, %v8342
        %8407 = vst [vmem:[%s787 + $0x40] sm:$0xff] %v8343
        %8408 = vst.msk [vmem:[%s787 + $0x48] sm:$0xff] %vm1377, %v8344
        %8409 = vst [vmem:[%s787 + $0x50] sm:$0xff] %v8345
        %8410 = vst.msk [vmem:[%s787 + $0x58] sm:$0xff] %vm1377, %v8346
        %8411 = vst [vmem:[%s787 + $0x60] sm:$0xff] %v8347
        %8412 = vst.msk [vmem:[%s787 + $0x68] sm:$0xff] %vm1377, %v8348
        %8413 = vst [vmem:[%s787 + $0x70] sm:$0xff] %v8349
        %8414 = vst.msk [vmem:[%s787 + $0x78] sm:$0xff] %vm1377, %v8350
        %8415 = vst [vmem:[%s787 + $0x80] sm:$0xff] %v8351
        %8416 = vst.msk [vmem:[%s787 + $0x88] sm:$0xff] %vm1377, %v8352
        %8417 = vst [vmem:[%s787 + $0x90] sm:$0xff] %v8353
        %8418 = vst.msk [vmem:[%s787 + $0x98] sm:$0xff] %vm1377, %v8354
        %8419 = vst [vmem:[%s787 + $0xa0] sm:$0xff] %v8355
        %8420 = vst.msk [vmem:[%s787 + $0xa8] sm:$0xff] %vm1377, %v8356
        %8421 = vst [vmem:[%s787 + $0xb0] sm:$0xff] %v8357
        %8422 = vst.msk [vmem:[%s787 + $0xb8] sm:$0xff] %vm1377, %v8358
        %8423 = vst [vmem:[%s787 + $0xc0] sm:$0xff] %v8359
        %8424 = vst.msk [vmem:[%s787 + $0xc8] sm:$0xff] %vm1377, %v8360
        %8425 = vst [vmem:[%s787 + $0xd0] sm:$0xff] %v8361
        %8426 = vst.msk [vmem:[%s787 + $0xd8] sm:$0xff] %vm1377, %v8362
        %8427 = vst [vmem:[%s787 + $0xe0] sm:$0xff] %v8363
        %8428 = vst.msk [vmem:[%s787 + $0xe8] sm:$0xff] %vm1377, %v8364
        %8429 = vst [vmem:[%s787 + $0xf0] sm:$0xff] %v8365
        %8430 = vst.msk [vmem:[%s787 + $0xf8] sm:$0xff] %vm1377, %v8366
        %8431 = vst [vmem:[%s787 + $0x100] sm:$0xff] %v8367
        %8432 = vst.msk [vmem:[%s787 + $0x108] sm:$0xff] %vm1377, %v8368
        %8433 = vst [vmem:[%s787 + $0x110] sm:$0xff] %v8369
        %8434 = vst.msk [vmem:[%s787 + $0x118] sm:$0xff] %vm1377, %v8370
        %8435 = vst [vmem:[%s787 + $0x120] sm:$0xff] %v8371
        %8436 = vst.msk [vmem:[%s787 + $0x128] sm:$0xff] %vm1377, %v8372
        %8437 = vst [vmem:[%s787 + $0x130] sm:$0xff] %v8373
        %8438 = vst.msk [vmem:[%s787 + $0x138] sm:$0xff] %vm1377, %v8374
        %8439 = vst [vmem:[%s787 + $0x140] sm:$0xff] %v8375
        %8440 = vst.msk [vmem:[%s787 + $0x148] sm:$0xff] %vm1377, %v8376
        %8441 = vst [vmem:[%s787 + $0x150] sm:$0xff] %v8377
        %8442 = vst.msk [vmem:[%s787 + $0x158] sm:$0xff] %vm1377, %v8378
        %8443 = vst [vmem:[%s787 + $0x160] sm:$0xff] %v8379
        %8444 = vst.msk [vmem:[%s787 + $0x168] sm:$0xff] %vm1377, %v8380
        %8445 = vst [vmem:[%s787 + $0x170] sm:$0xff] %v8381
        %8446 = vst.msk [vmem:[%s787 + $0x178] sm:$0xff] %vm1377, %v8382
        %8447 = vst [vmem:[%s787 + $0x180] sm:$0xff] %v8383
        %8448 = vst.msk [vmem:[%s787 + $0x188] sm:$0xff] %vm1377, %v8384
        %8449 = vst [vmem:[%s787 + $0x190] sm:$0xff] %v8385
        %8450 = vst.msk [vmem:[%s787 + $0x198] sm:$0xff] %vm1377, %v8386
        %8451 = vst [vmem:[%s787 + $0x1a0] sm:$0xff] %v8387
        %8452 = vst.msk [vmem:[%s787 + $0x1a8] sm:$0xff] %vm1377, %v8388
        %8453 = vst [vmem:[%s787 + $0x1b0] sm:$0xff] %v8389
        %8454 = vst.msk [vmem:[%s787 + $0x1b8] sm:$0xff] %vm1377, %v8390
        %8455 = vst [vmem:[%s787 + $0x1c0] sm:$0xff] %v8391
        %8456 = vst.msk [vmem:[%s787 + $0x1c8] sm:$0xff] %vm1377, %v8392
        %8457 = vst [vmem:[%s787 + $0x1d0] sm:$0xff] %v8393
        %8458 = vst.msk [vmem:[%s787 + $0x1d8] sm:$0xff] %vm1377, %v8394
        %8459 = vst [vmem:[%s787 + $0x1e0] sm:$0xff] %v8395
        %8460 = vst.msk [vmem:[%s787 + $0x1e8] sm:$0xff] %vm1377, %v8396
        %8461 = vst [vmem:[%s787 + $0x1f0] sm:$0xff] %v8397
        %8462 = vst.msk [vmem:[%s787 + $0x1f8] sm:$0xff] %vm1377, %v8398
        %s8463 = sand.u32 %s538, 1
        %s8464 = scalar_lea.sflag [#allocation4], %s8463
        %s8465 = sand.u32 %s538, 1
        %s8466 = smul.addr %s8465, 512
        %s8467 = scalar_lea.vmem [#allocation14], %s8466
        // Predicated region
        $region137: #{fpa_v2_forward.1} parent=111 // pred_check
          %p8468 = pneg %p548
        $region138: #{fpa_v2_forward.1} parent=111 // pred_check_branch
          %8470 = sbr.rel (%p8468) target = $region140
        $region139: #{fpa_v2_forward.1} parent=111 // pred_region
          %s8472 = ssub.s32 8192, 8192
          %8473 = vsyncadd %s8464, %s8472
          %s8474 = smul.addr %s42, 64
          %s8475 = smul.addr %s8474, 128
          %s8476 = scalar_lea.hbm %s23, %s8475
          %s8477 = sshll.u32 %s8467, 4
          %s8478 = int_to_ptr.vmem [resolvable:$true] %s8477
          %8483 = dma.vmem_to_hbm [thread:$0]  %s8478, 8192, %s8476, %s8464, 256, 256, 16
        $region140: #{fpa_v2_forward.1} parent=111 // pred_fallthru
          _
      $region112: #{fpa_v2_forward.1} parent=5 // pred_fallthru
        _
      %p8484 = scmp.le.s32.totalorder 2, %s37
      // Predicated region
      $region141: #{fpa_v2_forward.1} parent=5 // pred_check
        %p8485 = pneg %p8484
      $region142: #{fpa_v2_forward.1} parent=5 // pred_check_branch
        %8487 = sbr.rel (%p8485) target = $region144
      $region143: #{fpa_v2_forward.1} parent=5 // pred_region
        %s8488 = ssub.s32 %s37, 2
        // Predicated region
        $region145: #{fpa_v2_forward.1} parent=143 // pred_check
          %p8489 = pneg %p554
        $region146: #{fpa_v2_forward.1} parent=143 // pred_check_branch
          %8491 = sbr.rel (%p8489) target = $region148
        $region147: #{fpa_v2_forward.1} parent=143 // pred_region
          %s8492 = sand.u32 %s539, 1
          %s8493 = scalar_lea.sflag [#allocation4], %s8492
          %s8494 = sand.u32 %s539, 1
          %s8495 = smul.addr %s8494, 512
          %s8496 = scalar_lea.vmem [#allocation14], %s8495
          %8497 = dma.done %s8493, 8192
        $region148: #{fpa_v2_forward.1} parent=143 // pred_fallthru
          _
      $region144: #{fpa_v2_forward.1} parent=5 // pred_fallthru
        _
    $region6: #{fpa_v2_forward.1} parent=1 // loop_footer
      %s41 = sadd.s32 1, %s37
    $region7: #{fpa_v2_forward.1} parent=1 // loop_footer_branch
      %36 = sbr.rel target = $region3
    $region8: #{fpa_v2_forward.1} parent=1 // loop_exit
      _
    %8498 = vsyncpa [#allocation3], 1
    %s8499 = scalar_lea.sflag [#allocation3], 1
    %8500 = vsyncpa %s8499, 1
    %8501 = vsyncpa [#allocation10], 1
    %8502 = vsyncpa [#allocation13], 1
    %8503 = vsyncpa [#allocation4], 1
    %s8504 = scalar_lea.sflag [#allocation4], 1
    %8505 = vsyncpa %s8504, 1
    %8506 = vsyncpa [#allocation5], 1
    %s8507 = scalar_lea.sflag [#allocation5], 1
    %8508 = vsyncpa %s8507, 1
    %8509 = vsyncpa [#allocation6], 1
    %s8510 = scalar_lea.sflag [#allocation6], 1
    %8511 = vsyncpa %s8510, 1

</llo_original>
